<compile_context>
chip_gen: v7x
topology: tpu7x:2x2x1
jax: 0.10.0
libtpu: 0.0.40
codegen_flags: <defaults>
</compile_context>

<pallas_src>
import jax
import jax.numpy as jnp
from jax.experimental import pallas as pl
from jax.experimental.pallas import tpu as pltpu  # noqa: F401  (TPU backend)


# ------------------------------ Pallas kernel -------------------------------

def _lenet_kernel(x_ref, g1c_ref, sr1_ref, b1r_ref,
                  g2c_ref, sr2_ref, b2r_ref,
                  w1b_ref, fb1_ref, w2f_ref, fb2_ref, w3f_ref, fb3_ref,
                  o_ref):
    """Entire LeNet forward for a (small, static) batch, fully in VMEM."""
    f32 = jnp.float32
    B = x_ref.shape[0]

    for b in range(B):                       # tiny static batch -> unrolled
        xb = x_ref[b]                        # (28, 28)

        # ---- stage 1: conv1 3x3 (1->6) + ReLU + maxpool 2x2 ----------------
        # ycol[dj][i, c*13+q] = conv1_pre[row=i, col=2q+dj, channel=c]
        ycol = []
        for dj in range(2):
            acc = jnp.dot(xb[0:26, :], g1c_ref[dj],
                          preferred_element_type=f32)
            for ki in range(1, 3):
                acc = acc + jnp.dot(xb[ki:ki + 26, :], g1c_ref[ki * 2 + dj],
                                    preferred_element_type=f32)
            ycol.append(acc)                                  # (26, 78)
        # quads[(di,dj)][p, c*13+q] = conv1_pre[2p+di, 2q+dj, c]
        quads = [jnp.dot(sr1_ref[di], ycol[dj], preferred_element_type=f32)
                 for di in range(2) for dj in range(2)]       # 4 x (13, 78)
        pooled = jnp.maximum(jnp.maximum(quads[0], quads[1]),
                             jnp.maximum(quads[2], quads[3]))
        z1 = jnp.maximum(pooled + b1r_ref[...], 0.0)          # (13,78) lane=c*13+q

        # ---- stage 2: conv2 4x4 (6->12) + ReLU + maxpool 2x2 ---------------
        ycol2 = []
        for dj in range(2):
            acc = jnp.dot(z1[0:10, :], g2c_ref[dj],
                          preferred_element_type=f32)
            for ki in range(1, 4):
                acc = acc + jnp.dot(z1[ki:ki + 10, :], g2c_ref[ki * 2 + dj],
                                    preferred_element_type=f32)
            ycol2.append(acc)                                 # (10, 60)
        quads2 = [jnp.dot(sr2_ref[di], ycol2[dj], preferred_element_type=f32)
                  for di in range(2) for dj in range(2)]      # 4 x (5, 60)
        pooled2 = jnp.maximum(jnp.maximum(quads2[0], quads2[1]),
                              jnp.maximum(quads2[2], quads2[3]))
        z2 = jnp.maximum(pooled2 + b2r_ref[...], 0.0)         # (5,60) lane=oc*5+q2

        # ---- FC stack: fc1 + ReLU -> fc2 + ReLU -> fc3 -> log_softmax ------
        # fc1 contraction split over the 5 pooled rows (weights pre-permuted).
        h = jnp.dot(z2[0:1, :], w1b_ref[0], preferred_element_type=f32)
        for p2 in range(1, 5):
            h = h + jnp.dot(z2[p2:p2 + 1, :], w1b_ref[p2],
                            preferred_element_type=f32)
        h = jnp.maximum(h + fb1_ref[...], 0.0)                # (1, 256)
        h = jnp.maximum(
            jnp.dot(h, w2f_ref[...], preferred_element_type=f32) + fb2_ref[...],
            0.0)                                              # (1, 1024)
        z = jnp.dot(h, w3f_ref[...], preferred_element_type=f32) + fb3_ref[...]
        zmax = jnp.max(z, axis=-1, keepdims=True)
        s = z - zmax
        lse = jnp.log(jnp.sum(jnp.exp(s), axis=-1, keepdims=True))
        o_ref[b:b + 1, :] = (s - lse).astype(o_ref.dtype)     # (1, 10)


# ------------------------- parameter preparation ----------------------------

def prepare_params(params):
    """One-time host-side folding of all weights into kernel-ready matrices."""
    f32 = jnp.float32
    w1 = jnp.asarray(params["conv1_w"], f32)          # (6, 1, 3, 3)
    b1 = jnp.asarray(params["conv1_b"], f32)          # (6,)
    w2 = jnp.asarray(params["conv2_w"], f32)          # (12, 6, 4, 4)
    b2 = jnp.asarray(params["conv2_b"], f32)          # (12,)

    dj = jnp.arange(2)
    di = jnp.arange(2)

    # ---- stage 1: conv taps folded with the even-column (+dj) pool select.
    # g1c[ki*2+dj][w, c*13+q] = w1[c, 0, ki, w - (2q+dj)]  when 0 <= kj < 3
    l1 = jnp.arange(6 * 13)
    c1, q1 = l1 // 13, l1 % 13
    wpos = jnp.arange(28)
    ki1 = jnp.arange(3)
    kj1 = (wpos[None, None, :, None]
           - 2 * q1[None, None, None, :]
           - dj[None, :, None, None])                               # (1,2,28,78)
    valid1 = (kj1 >= 0) & (kj1 < 3)
    vals1 = w1[c1[None, None, None, :], 0,
               ki1[:, None, None, None], jnp.clip(kj1, 0, 2)]       # (3,2,28,78)
    g1c = jnp.where(valid1, vals1, 0.0).reshape(6, 28, 78)

    # even-row (+di) pool selectors: sr1[di][p, i] = (i == 2p + di)
    p1, i1 = jnp.arange(13), jnp.arange(26)
    sr1 = (i1[None, None, :] ==
           2 * p1[None, :, None] + di[:, None, None]).astype(f32)   # (2,13,26)
    b1row = jnp.repeat(b1, 13)[None, :]                             # (1, 78)

    # ---- stage 2: conv taps folded with the even-column (+dj) pool select.
    # g2c[ki*2+dj][c*13+m, oc*5+q2] = w2[oc, c, ki, m - (2q2+dj)]  (0 <= kj < 4)
    li = jnp.arange(6 * 13)
    c2, m2 = li // 13, li % 13
    lo = jnp.arange(12 * 5)
    oc, q2 = lo // 5, lo % 5
    ki2 = jnp.arange(4)
    kj2 = (m2[None, None, :, None]
           - 2 * q2[None, None, None, :]
           - dj[None, :, None, None])                               # (1,2,78,60)
    valid2 = (kj2 >= 0) & (kj2 < 4)
    vals2 = w2[oc[None, None, None, :], c2[None, None, :, None],
               ki2[:, None, None, None], jnp.clip(kj2, 0, 3)]       # (4,2,78,60)
    g2c = jnp.where(valid2, vals2, 0.0).reshape(8, 78, 60)

    p2, i2 = jnp.arange(5), jnp.arange(10)
    sr2 = (i2[None, None, :] ==
           2 * p2[None, :, None] + di[:, None, None]).astype(f32)   # (2,5,10)
    b2row = jnp.repeat(b2, 5)[None, :]                              # (1, 60)

    # ---- FC stack: fc1 rows permuted to the kernel's (p2, oc*5+q2) order.
    w1fc = jnp.asarray(params["fc1_w"], f32)                        # (256, 300)
    w1b = (w1fc.T.reshape(12, 5, 5, 256)                            # (oc,p2,q2,n)
                 .transpose(1, 0, 2, 3)                             # (p2,oc,q2,n)
                 .reshape(5, 60, 256))

    return {
        "g1c": g1c, "sr1": sr1, "b1row": b1row,
        "g2c": g2c, "sr2": sr2, "b2row": b2row,
        "w1b": w1b,
        "fc1_b": jnp.asarray(params["fc1_b"], f32)[None, :],        # (1, 256)
        "w2": jnp.asarray(params["fc2_w"], f32).T,                  # (256, 1024)
        "fc2_b": jnp.asarray(params["fc2_b"], f32)[None, :],        # (1, 1024)
        "w3": jnp.asarray(params["fc3_w"], f32).T,                  # (1024, 10)
        "fc3_b": jnp.asarray(params["fc3_b"], f32)[None, :],        # (1, 10)
    }


# ------------------------------ forward pass --------------------------------

def model_forward(x_nchw, pp):
    B = x_nchw.shape[0]
    # C=1, so NCHW -> (B, 28, 28) is a free squeeze (no transpose / copy).
    x = x_nchw.reshape(B, 28, 28).astype(jnp.float32)
    return pl.pallas_call(
        _lenet_kernel,
        out_shape=jax.ShapeDtypeStruct((B, 10), jnp.float32),
        # No grid: single invocation, every operand is a full-array VMEM
        # resident block (total ~1.6 MiB f32 -> fits all of v5e/v6e/v7x).
    )(x, pp["g1c"], pp["sr1"], pp["b1row"],
      pp["g2c"], pp["sr2"], pp["b2row"],
      pp["w1b"], pp["fc1_b"], pp["w2"], pp["fc2_b"], pp["w3"], pp["fc3_b"])


# ------------- pure-JAX reference (PyTorch semantics) for checking ----------

def reference_forward(x_nchw, params):
    def conv(x, w, b):
        y = jax.lax.conv_general_dilated(
            x, w, (1, 1), "VALID",
            dimension_numbers=("NCHW", "OIHW", "NCHW"))
        return jax.nn.relu(y + b.reshape(1, -1, 1, 1))

    def pool(x):
        B, C, H, W = x.shape
        return jnp.max(x.reshape(B, C, H // 2, 2, W // 2, 2), axis=(3, 5))

    x = pool(conv(x_nchw, params["conv1_w"], params["conv1_b"]))
    x = pool(conv(x, params["conv2_w"], params["conv2_b"]))
    x = x.reshape(x.shape[0], -1)
    x = jax.nn.relu(x @ params["fc1_w"].T + params["fc1_b"])
    x = jax.nn.relu(x @ params["fc2_w"].T + params["fc2_b"])
    x = x @ params["fc3_w"].T + params["fc3_b"]
    return jax.nn.log_softmax(x, axis=-1)


def init_params(key):
    ks = jax.random.split(key, 10)

    def u(k, shape, fan_in):
        lim = 1.0 / jnp.sqrt(fan_in)
        return jax.random.uniform(k, shape, jnp.float32, -lim, lim)

    return {
        "conv1_w": u(ks[0], (6, 1, 3, 3), 1 * 3 * 3),
        "conv1_b": u(ks[1], (6,), 1 * 3 * 3),
        "conv2_w": u(ks[2], (12, 6, 4, 4), 6 * 4 * 4),
        "conv2_b": u(ks[3], (12,), 6 * 4 * 4),
        "fc1_w": u(ks[4], (256, 300), 300),
        "fc1_b": u(ks[5], (256,), 300),
        "fc2_w": u(ks[6], (1024, 256), 256),
        "fc2_b": u(ks[7], (1024,), 256),
        "fc3_w": u(ks[8], (10, 1024), 1024),
        "fc3_b": u(ks[9], (10,), 1024),
    }


if __name__ == "__main__":
    key = jax.random.PRNGKey(0)
    kx, kp = jax.random.split(key)
    x = jax.random.normal(kx, (2, 1, 28, 28), jnp.float32)   # (B,1,28,28)
    params = init_params(kp)
    pp = prepare_params(params)

    fwd = jax.jit(model_forward)
    out = jax.block_until_ready(fwd(x, pp))
    ref = jax.block_until_ready(reference_forward(x, params))

    assert out.shape == (2, 10), out.shape
    max_err = float(jnp.max(jnp.abs(out - ref)))
    assert jnp.allclose(out, ref, atol=1e-3, rtol=1e-3), max_err
    print("KERNEL_OK")
</pallas_src>

<mosaic_0001>
module attributes {stable_mosaic.version = 11 : i64} {
  func.func @_lenet_kernel(%arg0: memref<2x28x28xf32, #tpu.memory_space<vmem>>, %arg1: memref<6x28x78xf32, #tpu.memory_space<vmem>>, %arg2: memref<2x13x26xf32, #tpu.memory_space<vmem>>, %arg3: memref<1x78xf32, #tpu.memory_space<vmem>>, %arg4: memref<8x78x60xf32, #tpu.memory_space<vmem>>, %arg5: memref<2x5x10xf32, #tpu.memory_space<vmem>>, %arg6: memref<1x60xf32, #tpu.memory_space<vmem>>, %arg7: memref<5x60x256xf32, #tpu.memory_space<vmem>>, %arg8: memref<1x256xf32, #tpu.memory_space<vmem>>, %arg9: memref<256x1024xf32, #tpu.memory_space<vmem>>, %arg10: memref<1x1024xf32, #tpu.memory_space<vmem>>, %arg11: memref<1024x10xf32, #tpu.memory_space<vmem>>, %arg12: memref<1x10xf32, #tpu.memory_space<vmem>>, %arg13: memref<2x10xf32, #tpu.memory_space<vmem>>) attributes {dimension_semantics = [], scalar_prefetch = 0 : i64, scratch_operands = 0 : i64, tpu.core_type = #tpu.core_type<tc>} {
    %c0 = arith.constant 0 : index
    %c0_0 = arith.constant 0 : index
    %c0_1 = arith.constant 0 : index
    %0 = vector.load %arg0[%c0, %c0_0, %c0_1] : memref<2x28x28xf32, #tpu.memory_space<vmem>>, vector<1x28x28xf32>
    %1 = vector.shape_cast %0 : vector<1x28x28xf32> to vector<28x28xf32>
    %2 = vector.extract_strided_slice %1 {offsets = [0, 0], sizes = [26, 28], strides = [1, 1]} : vector<28x28xf32> to vector<26x28xf32>
    %c0_2 = arith.constant 0 : index
    %c0_3 = arith.constant 0 : index
    %c0_4 = arith.constant 0 : index
    %3 = vector.load %arg1[%c0_2, %c0_3, %c0_4] : memref<6x28x78xf32, #tpu.memory_space<vmem>>, vector<1x28x78xf32>
    %4 = vector.shape_cast %3 : vector<1x28x78xf32> to vector<28x78xf32>
    %cst = arith.constant dense<0.000000e+00> : vector<26x78xf32>
    %5 = tpu.matmul %2, %4, %cst {dimension_numbers = #tpu.dot_dimension_numbers<[1], [0], [0], [1], [0, 0, 1, 1], [], []>} : vector<26x28xf32>, vector<28x78xf32>, vector<26x78xf32> -> vector<26x78xf32>
    %6 = vector.extract_strided_slice %1 {offsets = [1, 0], sizes = [26, 28], strides = [1, 1]} : vector<28x28xf32> to vector<26x28xf32>
    %c2 = arith.constant 2 : index
    %c0_5 = arith.constant 0 : index
    %c0_6 = arith.constant 0 : index
    %7 = vector.load %arg1[%c2, %c0_5, %c0_6] : memref<6x28x78xf32, #tpu.memory_space<vmem>>, vector<1x28x78xf32>
    %8 = vector.shape_cast %7 : vector<1x28x78xf32> to vector<28x78xf32>
    %cst_7 = arith.constant dense<0.000000e+00> : vector<26x78xf32>
    %9 = tpu.matmul %6, %8, %cst_7 {dimension_numbers = #tpu.dot_dimension_numbers<[1], [0], [0], [1], [0, 0, 1, 1], [], []>} : vector<26x28xf32>, vector<28x78xf32>, vector<26x78xf32> -> vector<26x78xf32>
    %10 = arith.addf %5, %9 : vector<26x78xf32>
    %11 = vector.extract_strided_slice %1 {offsets = [2, 0], sizes = [26, 28], strides = [1, 1]} : vector<28x28xf32> to vector<26x28xf32>
    %c4 = arith.constant 4 : index
    %c0_8 = arith.constant 0 : index
    %c0_9 = arith.constant 0 : index
    %12 = vector.load %arg1[%c4, %c0_8, %c0_9] : memref<6x28x78xf32, #tpu.memory_space<vmem>>, vector<1x28x78xf32>
    %13 = vector.shape_cast %12 : vector<1x28x78xf32> to vector<28x78xf32>
    %cst_10 = arith.constant dense<0.000000e+00> : vector<26x78xf32>
    %14 = tpu.matmul %11, %13, %cst_10 {dimension_numbers = #tpu.dot_dimension_numbers<[1], [0], [0], [1], [0, 0, 1, 1], [], []>} : vector<26x28xf32>, vector<28x78xf32>, vector<26x78xf32> -> vector<26x78xf32>
    %15 = arith.addf %10, %14 : vector<26x78xf32>
    %16 = vector.extract_strided_slice %1 {offsets = [0, 0], sizes = [26, 28], strides = [1, 1]} : vector<28x28xf32> to vector<26x28xf32>
    %c1 = arith.constant 1 : index
    %c0_11 = arith.constant 0 : index
    %c0_12 = arith.constant 0 : index
    %17 = vector.load %arg1[%c1, %c0_11, %c0_12] : memref<6x28x78xf32, #tpu.memory_space<vmem>>, vector<1x28x78xf32>
    %18 = vector.shape_cast %17 : vector<1x28x78xf32> to vector<28x78xf32>
    %cst_13 = arith.constant dense<0.000000e+00> : vector<26x78xf32>
    %19 = tpu.matmul %16, %18, %cst_13 {dimension_numbers = #tpu.dot_dimension_numbers<[1], [0], [0], [1], [0, 0, 1, 1], [], []>} : vector<26x28xf32>, vector<28x78xf32>, vector<26x78xf32> -> vector<26x78xf32>
    %20 = vector.extract_strided_slice %1 {offsets = [1, 0], sizes = [26, 28], strides = [1, 1]} : vector<28x28xf32> to vector<26x28xf32>
    %c3 = arith.constant 3 : index
    %c0_14 = arith.constant 0 : index
    %c0_15 = arith.constant 0 : index
    %21 = vector.load %arg1[%c3, %c0_14, %c0_15] : memref<6x28x78xf32, #tpu.memory_space<vmem>>, vector<1x28x78xf32>
    %22 = vector.shape_cast %21 : vector<1x28x78xf32> to vector<28x78xf32>
    %cst_16 = arith.constant dense<0.000000e+00> : vector<26x78xf32>
    %23 = tpu.matmul %20, %22, %cst_16 {dimension_numbers = #tpu.dot_dimension_numbers<[1], [0], [0], [1], [0, 0, 1, 1], [], []>} : vector<26x28xf32>, vector<28x78xf32>, vector<26x78xf32> -> vector<26x78xf32>
    %24 = arith.addf %19, %23 : vector<26x78xf32>
    %25 = vector.extract_strided_slice %1 {offsets = [2, 0], sizes = [26, 28], strides = [1, 1]} : vector<28x28xf32> to vector<26x28xf32>
    %c5 = arith.constant 5 : index
    %c0_17 = arith.constant 0 : index
    %c0_18 = arith.constant 0 : index
    %26 = vector.load %arg1[%c5, %c0_17, %c0_18] : memref<6x28x78xf32, #tpu.memory_space<vmem>>, vector<1x28x78xf32>
    %27 = vector.shape_cast %26 : vector<1x28x78xf32> to vector<28x78xf32>
    %cst_19 = arith.constant dense<0.000000e+00> : vector<26x78xf32>
    %28 = tpu.matmul %25, %27, %cst_19 {dimension_numbers = #tpu.dot_dimension_numbers<[1], [0], [0], [1], [0, 0, 1, 1], [], []>} : vector<26x28xf32>, vector<28x78xf32>, vector<26x78xf32> -> vector<26x78xf32>
    %29 = arith.addf %24, %28 : vector<26x78xf32>
    %c0_20 = arith.constant 0 : index
    %c0_21 = arith.constant 0 : index
    %c0_22 = arith.constant 0 : index
    %30 = vector.load %arg2[%c0_20, %c0_21, %c0_22] : memref<2x13x26xf32, #tpu.memory_space<vmem>>, vector<1x13x26xf32>
    %31 = vector.shape_cast %30 : vector<1x13x26xf32> to vector<13x26xf32>
    %cst_23 = arith.constant dense<0.000000e+00> : vector<13x78xf32>
    %32 = tpu.matmul %31, %15, %cst_23 {dimension_numbers = #tpu.dot_dimension_numbers<[1], [0], [0], [1], [0, 0, 1, 1], [], []>} : vector<13x26xf32>, vector<26x78xf32>, vector<13x78xf32> -> vector<13x78xf32>
    %c0_24 = arith.constant 0 : index
    %c0_25 = arith.constant 0 : index
    %c0_26 = arith.constant 0 : index
    %33 = vector.load %arg2[%c0_24, %c0_25, %c0_26] : memref<2x13x26xf32, #tpu.memory_space<vmem>>, vector<1x13x26xf32>
    %34 = vector.shape_cast %33 : vector<1x13x26xf32> to vector<13x26xf32>
    %cst_27 = arith.constant dense<0.000000e+00> : vector<13x78xf32>
    %35 = tpu.matmul %34, %29, %cst_27 {dimension_numbers = #tpu.dot_dimension_numbers<[1], [0], [0], [1], [0, 0, 1, 1], [], []>} : vector<13x26xf32>, vector<26x78xf32>, vector<13x78xf32> -> vector<13x78xf32>
    %c1_28 = arith.constant 1 : index
    %c0_29 = arith.constant 0 : index
    %c0_30 = arith.constant 0 : index
    %36 = vector.load %arg2[%c1_28, %c0_29, %c0_30] : memref<2x13x26xf32, #tpu.memory_space<vmem>>, vector<1x13x26xf32>
    %37 = vector.shape_cast %36 : vector<1x13x26xf32> to vector<13x26xf32>
    %cst_31 = arith.constant dense<0.000000e+00> : vector<13x78xf32>
    %38 = tpu.matmul %37, %15, %cst_31 {dimension_numbers = #tpu.dot_dimension_numbers<[1], [0], [0], [1], [0, 0, 1, 1], [], []>} : vector<13x26xf32>, vector<26x78xf32>, vector<13x78xf32> -> vector<13x78xf32>
    %c1_32 = arith.constant 1 : index
    %c0_33 = arith.constant 0 : index
    %c0_34 = arith.constant 0 : index
    %39 = vector.load %arg2[%c1_32, %c0_33, %c0_34] : memref<2x13x26xf32, #tpu.memory_space<vmem>>, vector<1x13x26xf32>
    %40 = vector.shape_cast %39 : vector<1x13x26xf32> to vector<13x26xf32>
    %cst_35 = arith.constant dense<0.000000e+00> : vector<13x78xf32>
    %41 = tpu.matmul %40, %29, %cst_35 {dimension_numbers = #tpu.dot_dimension_numbers<[1], [0], [0], [1], [0, 0, 1, 1], [], []>} : vector<13x26xf32>, vector<26x78xf32>, vector<13x78xf32> -> vector<13x78xf32>
    %42 = arith.maximumf %32, %35 : vector<13x78xf32>
    %43 = arith.maximumf %38, %41 : vector<13x78xf32>
    %44 = arith.maximumf %42, %43 : vector<13x78xf32>
    %c0_36 = arith.constant 0 : index
    %c0_37 = arith.constant 0 : index
    %45 = vector.load %arg3[%c0_36, %c0_37] : memref<1x78xf32, #tpu.memory_space<vmem>>, vector<1x78xf32>
    %46 = vector.broadcast %45 : vector<1x78xf32> to vector<13x78xf32>
    %47 = arith.addf %44, %46 : vector<13x78xf32>
    %cst_38 = arith.constant 0.000000e+00 : f32
    %48 = vector.broadcast %cst_38 : f32 to vector<13x78xf32>
    %49 = arith.maximumf %47, %48 : vector<13x78xf32>
    %50 = vector.extract_strided_slice %49 {offsets = [0, 0], sizes = [10, 78], strides = [1, 1]} : vector<13x78xf32> to vector<10x78xf32>
    %c0_39 = arith.constant 0 : index
    %c0_40 = arith.constant 0 : index
    %c0_41 = arith.constant 0 : index
    %51 = vector.load %arg4[%c0_39, %c0_40, %c0_41] : memref<8x78x60xf32, #tpu.memory_space<vmem>>, vector<1x78x60xf32>
    %52 = vector.shape_cast %51 : vector<1x78x60xf32> to vector<78x60xf32>
    %cst_42 = arith.constant dense<0.000000e+00> : vector<10x60xf32>
    %53 = tpu.matmul %50, %52, %cst_42 {dimension_numbers = #tpu.dot_dimension_numbers<[1], [0], [0], [1], [0, 0, 1, 1], [], []>} : vector<10x78xf32>, vector<78x60xf32>, vector<10x60xf32> -> vector<10x60xf32>
    %54 = vector.extract_strided_slice %49 {offsets = [1, 0], sizes = [10, 78], strides = [1, 1]} : vector<13x78xf32> to vector<10x78xf32>
    %c2_43 = arith.constant 2 : index
    %c0_44 = arith.constant 0 : index
    %c0_45 = arith.constant 0 : index
    %55 = vector.load %arg4[%c2_43, %c0_44, %c0_45] : memref<8x78x60xf32, #tpu.memory_space<vmem>>, vector<1x78x60xf32>
    %56 = vector.shape_cast %55 : vector<1x78x60xf32> to vector<78x60xf32>
    %cst_46 = arith.constant dense<0.000000e+00> : vector<10x60xf32>
    %57 = tpu.matmul %54, %56, %cst_46 {dimension_numbers = #tpu.dot_dimension_numbers<[1], [0], [0], [1], [0, 0, 1, 1], [], []>} : vector<10x78xf32>, vector<78x60xf32>, vector<10x60xf32> -> vector<10x60xf32>
    %58 = arith.addf %53, %57 : vector<10x60xf32>
    %59 = vector.extract_strided_slice %49 {offsets = [2, 0], sizes = [10, 78], strides = [1, 1]} : vector<13x78xf32> to vector<10x78xf32>
    %c4_47 = arith.constant 4 : index
    %c0_48 = arith.constant 0 : index
    %c0_49 = arith.constant 0 : index
    %60 = vector.load %arg4[%c4_47, %c0_48, %c0_49] : memref<8x78x60xf32, #tpu.memory_space<vmem>>, vector<1x78x60xf32>
    %61 = vector.shape_cast %60 : vector<1x78x60xf32> to vector<78x60xf32>
    %cst_50 = arith.constant dense<0.000000e+00> : vector<10x60xf32>
    %62 = tpu.matmul %59, %61, %cst_50 {dimension_numbers = #tpu.dot_dimension_numbers<[1], [0], [0], [1], [0, 0, 1, 1], [], []>} : vector<10x78xf32>, vector<78x60xf32>, vector<10x60xf32> -> vector<10x60xf32>
    %63 = arith.addf %58, %62 : vector<10x60xf32>
    %64 = vector.extract_strided_slice %49 {offsets = [3, 0], sizes = [10, 78], strides = [1, 1]} : vector<13x78xf32> to vector<10x78xf32>
    %c6 = arith.constant 6 : index
    %c0_51 = arith.constant 0 : index
    %c0_52 = arith.constant 0 : index
    %65 = vector.load %arg4[%c6, %c0_51, %c0_52] : memref<8x78x60xf32, #tpu.memory_space<vmem>>, vector<1x78x60xf32>
    %66 = vector.shape_cast %65 : vector<1x78x60xf32> to vector<78x60xf32>
    %cst_53 = arith.constant dense<0.000000e+00> : vector<10x60xf32>
    %67 = tpu.matmul %64, %66, %cst_53 {dimension_numbers = #tpu.dot_dimension_numbers<[1], [0], [0], [1], [0, 0, 1, 1], [], []>} : vector<10x78xf32>, vector<78x60xf32>, vector<10x60xf32> -> vector<10x60xf32>
    %68 = arith.addf %63, %67 : vector<10x60xf32>
    %69 = vector.extract_strided_slice %49 {offsets = [0, 0], sizes = [10, 78], strides = [1, 1]} : vector<13x78xf32> to vector<10x78xf32>
    %c1_54 = arith.constant 1 : index
    %c0_55 = arith.constant 0 : index
    %c0_56 = arith.constant 0 : index
    %70 = vector.load %arg4[%c1_54, %c0_55, %c0_56] : memref<8x78x60xf32, #tpu.memory_space<vmem>>, vector<1x78x60xf32>
    %71 = vector.shape_cast %70 : vector<1x78x60xf32> to vector<78x60xf32>
    %cst_57 = arith.constant dense<0.000000e+00> : vector<10x60xf32>
    %72 = tpu.matmul %69, %71, %cst_57 {dimension_numbers = #tpu.dot_dimension_numbers<[1], [0], [0], [1], [0, 0, 1, 1], [], []>} : vector<10x78xf32>, vector<78x60xf32>, vector<10x60xf32> -> vector<10x60xf32>
    %73 = vector.extract_strided_slice %49 {offsets = [1, 0], sizes = [10, 78], strides = [1, 1]} : vector<13x78xf32> to vector<10x78xf32>
    %c3_58 = arith.constant 3 : index
    %c0_59 = arith.constant 0 : index
    %c0_60 = arith.constant 0 : index
    %74 = vector.load %arg4[%c3_58, %c0_59, %c0_60] : memref<8x78x60xf32, #tpu.memory_space<vmem>>, vector<1x78x60xf32>
    %75 = vector.shape_cast %74 : vector<1x78x60xf32> to vector<78x60xf32>
    %cst_61 = arith.constant dense<0.000000e+00> : vector<10x60xf32>
    %76 = tpu.matmul %73, %75, %cst_61 {dimension_numbers = #tpu.dot_dimension_numbers<[1], [0], [0], [1], [0, 0, 1, 1], [], []>} : vector<10x78xf32>, vector<78x60xf32>, vector<10x60xf32> -> vector<10x60xf32>
    %77 = arith.addf %72, %76 : vector<10x60xf32>
    %78 = vector.extract_strided_slice %49 {offsets = [2, 0], sizes = [10, 78], strides = [1, 1]} : vector<13x78xf32> to vector<10x78xf32>
    %c5_62 = arith.constant 5 : index
    %c0_63 = arith.constant 0 : index
    %c0_64 = arith.constant 0 : index
    %79 = vector.load %arg4[%c5_62, %c0_63, %c0_64] : memref<8x78x60xf32, #tpu.memory_space<vmem>>, vector<1x78x60xf32>
    %80 = vector.shape_cast %79 : vector<1x78x60xf32> to vector<78x60xf32>
    %cst_65 = arith.constant dense<0.000000e+00> : vector<10x60xf32>
    %81 = tpu.matmul %78, %80, %cst_65 {dimension_numbers = #tpu.dot_dimension_numbers<[1], [0], [0], [1], [0, 0, 1, 1], [], []>} : vector<10x78xf32>, vector<78x60xf32>, vector<10x60xf32> -> vector<10x60xf32>
    %82 = arith.addf %77, %81 : vector<10x60xf32>
    %83 = vector.extract_strided_slice %49 {offsets = [3, 0], sizes = [10, 78], strides = [1, 1]} : vector<13x78xf32> to vector<10x78xf32>
    %c7 = arith.constant 7 : index
    %c0_66 = arith.constant 0 : index
    %c0_67 = arith.constant 0 : index
    %84 = vector.load %arg4[%c7, %c0_66, %c0_67] : memref<8x78x60xf32, #tpu.memory_space<vmem>>, vector<1x78x60xf32>
    %85 = vector.shape_cast %84 : vector<1x78x60xf32> to vector<78x60xf32>
    %cst_68 = arith.constant dense<0.000000e+00> : vector<10x60xf32>
    %86 = tpu.matmul %83, %85, %cst_68 {dimension_numbers = #tpu.dot_dimension_numbers<[1], [0], [0], [1], [0, 0, 1, 1], [], []>} : vector<10x78xf32>, vector<78x60xf32>, vector<10x60xf32> -> vector<10x60xf32>
    %87 = arith.addf %82, %86 : vector<10x60xf32>
    %c0_69 = arith.constant 0 : index
    %c0_70 = arith.constant 0 : index
    %c0_71 = arith.constant 0 : index
    %88 = vector.load %arg5[%c0_69, %c0_70, %c0_71] : memref<2x5x10xf32, #tpu.memory_space<vmem>>, vector<1x5x10xf32>
    %89 = vector.shape_cast %88 : vector<1x5x10xf32> to vector<5x10xf32>
    %cst_72 = arith.constant dense<0.000000e+00> : vector<5x60xf32>
    %90 = tpu.matmul %89, %68, %cst_72 {dimension_numbers = #tpu.dot_dimension_numbers<[1], [0], [0], [1], [0, 0, 1, 1], [], []>} : vector<5x10xf32>, vector<10x60xf32>, vector<5x60xf32> -> vector<5x60xf32>
    %c0_73 = arith.constant 0 : index
    %c0_74 = arith.constant 0 : index
    %c0_75 = arith.constant 0 : index
    %91 = vector.load %arg5[%c0_73, %c0_74, %c0_75] : memref<2x5x10xf32, #tpu.memory_space<vmem>>, vector<1x5x10xf32>
    %92 = vector.shape_cast %91 : vector<1x5x10xf32> to vector<5x10xf32>
    %cst_76 = arith.constant dense<0.000000e+00> : vector<5x60xf32>
    %93 = tpu.matmul %92, %87, %cst_76 {dimension_numbers = #tpu.dot_dimension_numbers<[1], [0], [0], [1], [0, 0, 1, 1], [], []>} : vector<5x10xf32>, vector<10x60xf32>, vector<5x60xf32> -> vector<5x60xf32>
    %c1_77 = arith.constant 1 : index
    %c0_78 = arith.constant 0 : index
    %c0_79 = arith.constant 0 : index
    %94 = vector.load %arg5[%c1_77, %c0_78, %c0_79] : memref<2x5x10xf32, #tpu.memory_space<vmem>>, vector<1x5x10xf32>
    %95 = vector.shape_cast %94 : vector<1x5x10xf32> to vector<5x10xf32>
    %cst_80 = arith.constant dense<0.000000e+00> : vector<5x60xf32>
    %96 = tpu.matmul %95, %68, %cst_80 {dimension_numbers = #tpu.dot_dimension_numbers<[1], [0], [0], [1], [0, 0, 1, 1], [], []>} : vector<5x10xf32>, vector<10x60xf32>, vector<5x60xf32> -> vector<5x60xf32>
    %c1_81 = arith.constant 1 : index
    %c0_82 = arith.constant 0 : index
    %c0_83 = arith.constant 0 : index
    %97 = vector.load %arg5[%c1_81, %c0_82, %c0_83] : memref<2x5x10xf32, #tpu.memory_space<vmem>>, vector<1x5x10xf32>
    %98 = vector.shape_cast %97 : vector<1x5x10xf32> to vector<5x10xf32>
    %cst_84 = arith.constant dense<0.000000e+00> : vector<5x60xf32>
    %99 = tpu.matmul %98, %87, %cst_84 {dimension_numbers = #tpu.dot_dimension_numbers<[1], [0], [0], [1], [0, 0, 1, 1], [], []>} : vector<5x10xf32>, vector<10x60xf32>, vector<5x60xf32> -> vector<5x60xf32>
    %100 = arith.maximumf %90, %93 : vector<5x60xf32>
    %101 = arith.maximumf %96, %99 : vector<5x60xf32>
    %102 = arith.maximumf %100, %101 : vector<5x60xf32>
    %c0_85 = arith.constant 0 : index
    %c0_86 = arith.constant 0 : index
    %103 = vector.load %arg6[%c0_85, %c0_86] : memref<1x60xf32, #tpu.memory_space<vmem>>, vector<1x60xf32>
    %104 = vector.broadcast %103 : vector<1x60xf32> to vector<5x60xf32>
    %105 = arith.addf %102, %104 : vector<5x60xf32>
    %cst_87 = arith.constant 0.000000e+00 : f32
    %106 = vector.broadcast %cst_87 : f32 to vector<5x60xf32>
    %107 = arith.maximumf %105, %106 : vector<5x60xf32>
    %108 = vector.extract_strided_slice %107 {offsets = [0, 0], sizes = [1, 60], strides = [1, 1]} : vector<5x60xf32> to vector<1x60xf32>
    %c0_88 = arith.constant 0 : index
    %c0_89 = arith.constant 0 : index
    %c0_90 = arith.constant 0 : index
    %109 = vector.load %arg7[%c0_88, %c0_89, %c0_90] : memref<5x60x256xf32, #tpu.memory_space<vmem>>, vector<1x60x256xf32>
    %110 = vector.shape_cast %109 : vector<1x60x256xf32> to vector<60x256xf32>
    %cst_91 = arith.constant dense<0.000000e+00> : vector<1x256xf32>
    %111 = tpu.matmul %108, %110, %cst_91 {dimension_numbers = #tpu.dot_dimension_numbers<[1], [0], [0], [1], [0, 0, 1, 1], [], []>} : vector<1x60xf32>, vector<60x256xf32>, vector<1x256xf32> -> vector<1x256xf32>
    %112 = vector.extract_strided_slice %107 {offsets = [1, 0], sizes = [1, 60], strides = [1, 1]} : vector<5x60xf32> to vector<1x60xf32>
    %c1_92 = arith.constant 1 : index
    %c0_93 = arith.constant 0 : index
    %c0_94 = arith.constant 0 : index
    %113 = vector.load %arg7[%c1_92, %c0_93, %c0_94] : memref<5x60x256xf32, #tpu.memory_space<vmem>>, vector<1x60x256xf32>
    %114 = vector.shape_cast %113 : vector<1x60x256xf32> to vector<60x256xf32>
    %cst_95 = arith.constant dense<0.000000e+00> : vector<1x256xf32>
    %115 = tpu.matmul %112, %114, %cst_95 {dimension_numbers = #tpu.dot_dimension_numbers<[1], [0], [0], [1], [0, 0, 1, 1], [], []>} : vector<1x60xf32>, vector<60x256xf32>, vector<1x256xf32> -> vector<1x256xf32>
    %116 = arith.addf %111, %115 : vector<1x256xf32>
    %117 = vector.extract_strided_slice %107 {offsets = [2, 0], sizes = [1, 60], strides = [1, 1]} : vector<5x60xf32> to vector<1x60xf32>
    %c2_96 = arith.constant 2 : index
    %c0_97 = arith.constant 0 : index
    %c0_98 = arith.constant 0 : index
    %118 = vector.load %arg7[%c2_96, %c0_97, %c0_98] : memref<5x60x256xf32, #tpu.memory_space<vmem>>, vector<1x60x256xf32>
    %119 = vector.shape_cast %118 : vector<1x60x256xf32> to vector<60x256xf32>
    %cst_99 = arith.constant dense<0.000000e+00> : vector<1x256xf32>
    %120 = tpu.matmul %117, %119, %cst_99 {dimension_numbers = #tpu.dot_dimension_numbers<[1], [0], [0], [1], [0, 0, 1, 1], [], []>} : vector<1x60xf32>, vector<60x256xf32>, vector<1x256xf32> -> vector<1x256xf32>
    %121 = arith.addf %116, %120 : vector<1x256xf32>
    %122 = vector.extract_strided_slice %107 {offsets = [3, 0], sizes = [1, 60], strides = [1, 1]} : vector<5x60xf32> to vector<1x60xf32>
    %c3_100 = arith.constant 3 : index
    %c0_101 = arith.constant 0 : index
    %c0_102 = arith.constant 0 : index
    %123 = vector.load %arg7[%c3_100, %c0_101, %c0_102] : memref<5x60x256xf32, #tpu.memory_space<vmem>>, vector<1x60x256xf32>
    %124 = vector.shape_cast %123 : vector<1x60x256xf32> to vector<60x256xf32>
    %cst_103 = arith.constant dense<0.000000e+00> : vector<1x256xf32>
    %125 = tpu.matmul %122, %124, %cst_103 {dimension_numbers = #tpu.dot_dimension_numbers<[1], [0], [0], [1], [0, 0, 1, 1], [], []>} : vector<1x60xf32>, vector<60x256xf32>, vector<1x256xf32> -> vector<1x256xf32>
    %126 = arith.addf %121, %125 : vector<1x256xf32>
    %127 = vector.extract_strided_slice %107 {offsets = [4, 0], sizes = [1, 60], strides = [1, 1]} : vector<5x60xf32> to vector<1x60xf32>
    %c4_104 = arith.constant 4 : index
    %c0_105 = arith.constant 0 : index
    %c0_106 = arith.constant 0 : index
    %128 = vector.load %arg7[%c4_104, %c0_105, %c0_106] : memref<5x60x256xf32, #tpu.memory_space<vmem>>, vector<1x60x256xf32>
    %129 = vector.shape_cast %128 : vector<1x60x256xf32> to vector<60x256xf32>
    %cst_107 = arith.constant dense<0.000000e+00> : vector<1x256xf32>
    %130 = tpu.matmul %127, %129, %cst_107 {dimension_numbers = #tpu.dot_dimension_numbers<[1], [0], [0], [1], [0, 0, 1, 1], [], []>} : vector<1x60xf32>, vector<60x256xf32>, vector<1x256xf32> -> vector<1x256xf32>
    %131 = arith.addf %126, %130 : vector<1x256xf32>
    %c0_108 = arith.constant 0 : index
    %c0_109 = arith.constant 0 : index
    %132 = vector.load %arg8[%c0_108, %c0_109] : memref<1x256xf32, #tpu.memory_space<vmem>>, vector<1x256xf32>
    %133 = arith.addf %131, %132 : vector<1x256xf32>
    %cst_110 = arith.constant 0.000000e+00 : f32
    %134 = vector.broadcast %cst_110 : f32 to vector<1x256xf32>
    %135 = arith.maximumf %133, %134 : vector<1x256xf32>
    %c0_111 = arith.constant 0 : index
    %c0_112 = arith.constant 0 : index
    %136 = vector.load %arg9[%c0_111, %c0_112] : memref<256x1024xf32, #tpu.memory_space<vmem>>, vector<256x1024xf32>
    %cst_113 = arith.constant dense<0.000000e+00> : vector<1x1024xf32>
    %137 = tpu.matmul %135, %136, %cst_113 {dimension_numbers = #tpu.dot_dimension_numbers<[1], [0], [0], [1], [0, 0, 1, 1], [], []>} : vector<1x256xf32>, vector<256x1024xf32>, vector<1x1024xf32> -> vector<1x1024xf32>
    %c0_114 = arith.constant 0 : index
    %c0_115 = arith.constant 0 : index
    %138 = vector.load %arg10[%c0_114, %c0_115] : memref<1x1024xf32, #tpu.memory_space<vmem>>, vector<1x1024xf32>
    %139 = arith.addf %137, %138 : vector<1x1024xf32>
    %cst_116 = arith.constant 0.000000e+00 : f32
    %140 = vector.broadcast %cst_116 : f32 to vector<1x1024xf32>
    %141 = arith.maximumf %139, %140 : vector<1x1024xf32>
    %c0_117 = arith.constant 0 : index
    %c0_118 = arith.constant 0 : index
    %142 = vector.load %arg11[%c0_117, %c0_118] : memref<1024x10xf32, #tpu.memory_space<vmem>>, vector<1024x10xf32>
    %cst_119 = arith.constant dense<0.000000e+00> : vector<1x10xf32>
    %143 = tpu.matmul %141, %142, %cst_119 {dimension_numbers = #tpu.dot_dimension_numbers<[1], [0], [0], [1], [0, 0, 1, 1], [], []>} : vector<1x1024xf32>, vector<1024x10xf32>, vector<1x10xf32> -> vector<1x10xf32>
    %c0_120 = arith.constant 0 : index
    %c0_121 = arith.constant 0 : index
    %144 = vector.load %arg12[%c0_120, %c0_121] : memref<1x10xf32, #tpu.memory_space<vmem>>, vector<1x10xf32>
    %145 = arith.addf %143, %144 : vector<1x10xf32>
    %cst_122 = arith.constant dense<0xFF800000> : vector<1xf32>
    %146 = vector.multi_reduction <maximumf>, %145, %cst_122 [1] : vector<1x10xf32> to vector<1xf32>
    %147 = vector.shape_cast %146 : vector<1xf32> to vector<1x1xf32>
    %148 = vector.broadcast %147 : vector<1x1xf32> to vector<1x10xf32>
    %149 = arith.subf %145, %148 : vector<1x10xf32>
    %150 = math.exp %149 : vector<1x10xf32>
    %cst_123 = arith.constant dense<0.000000e+00> : vector<1xf32>
    %151 = vector.multi_reduction <add>, %150, %cst_123 [1] : vector<1x10xf32> to vector<1xf32>
    %152 = vector.shape_cast %151 : vector<1xf32> to vector<1x1xf32>
    %153 = math.log %152 : vector<1x1xf32>
    %154 = vector.broadcast %153 : vector<1x1xf32> to vector<1x10xf32>
    %155 = arith.subf %149, %154 : vector<1x10xf32>
    %c0_124 = arith.constant 0 : index
    %c0_125 = arith.constant 0 : index
    %156 = vector.load %arg13[%c0_124, %c0_125] : memref<2x10xf32, #tpu.memory_space<vmem>>, vector<1x10xf32>
    tpu.vector_store %arg13[%c0_124, %c0_125], %155 {strides = array<i32>} : memref<2x10xf32, #tpu.memory_space<vmem>>, vector<1x10xf32>,
    %c1_126 = arith.constant 1 : index
    %c0_127 = arith.constant 0 : index
    %c0_128 = arith.constant 0 : index
    %157 = vector.load %arg0[%c1_126, %c0_127, %c0_128] : memref<2x28x28xf32, #tpu.memory_space<vmem>>, vector<1x28x28xf32>
    %158 = vector.shape_cast %157 : vector<1x28x28xf32> to vector<28x28xf32>
    %159 = vector.extract_strided_slice %158 {offsets = [0, 0], sizes = [26, 28], strides = [1, 1]} : vector<28x28xf32> to vector<26x28xf32>
    %c0_129 = arith.constant 0 : index
    %c0_130 = arith.constant 0 : index
    %c0_131 = arith.constant 0 : index
    %160 = vector.load %arg1[%c0_129, %c0_130, %c0_131] : memref<6x28x78xf32, #tpu.memory_space<vmem>>, vector<1x28x78xf32>
    %161 = vector.shape_cast %160 : vector<1x28x78xf32> to vector<28x78xf32>
    %cst_132 = arith.constant dense<0.000000e+00> : vector<26x78xf32>
    %162 = tpu.matmul %159, %161, %cst_132 {dimension_numbers = #tpu.dot_dimension_numbers<[1], [0], [0], [1], [0, 0, 1, 1], [], []>} : vector<26x28xf32>, vector<28x78xf32>, vector<26x78xf32> -> vector<26x78xf32>
    %163 = vector.extract_strided_slice %158 {offsets = [1, 0], sizes = [26, 28], strides = [1, 1]} : vector<28x28xf32> to vector<26x28xf32>
    %c2_133 = arith.constant 2 : index
    %c0_134 = arith.constant 0 : index
    %c0_135 = arith.constant 0 : index
    %164 = vector.load %arg1[%c2_133, %c0_134, %c0_135] : memref<6x28x78xf32, #tpu.memory_space<vmem>>, vector<1x28x78xf32>
    %165 = vector.shape_cast %164 : vector<1x28x78xf32> to vector<28x78xf32>
    %cst_136 = arith.constant dense<0.000000e+00> : vector<26x78xf32>
    %166 = tpu.matmul %163, %165, %cst_136 {dimension_numbers = #tpu.dot_dimension_numbers<[1], [0], [0], [1], [0, 0, 1, 1], [], []>} : vector<26x28xf32>, vector<28x78xf32>, vector<26x78xf32> -> vector<26x78xf32>
    %167 = arith.addf %162, %166 : vector<26x78xf32>
    %168 = vector.extract_strided_slice %158 {offsets = [2, 0], sizes = [26, 28], strides = [1, 1]} : vector<28x28xf32> to vector<26x28xf32>
    %c4_137 = arith.constant 4 : index
    %c0_138 = arith.constant 0 : index
    %c0_139 = arith.constant 0 : index
    %169 = vector.load %arg1[%c4_137, %c0_138, %c0_139] : memref<6x28x78xf32, #tpu.memory_space<vmem>>, vector<1x28x78xf32>
    %170 = vector.shape_cast %169 : vector<1x28x78xf32> to vector<28x78xf32>
    %cst_140 = arith.constant dense<0.000000e+00> : vector<26x78xf32>
    %171 = tpu.matmul %168, %170, %cst_140 {dimension_numbers = #tpu.dot_dimension_numbers<[1], [0], [0], [1], [0, 0, 1, 1], [], []>} : vector<26x28xf32>, vector<28x78xf32>, vector<26x78xf32> -> vector<26x78xf32>
    %172 = arith.addf %167, %171 : vector<26x78xf32>
    %173 = vector.extract_strided_slice %158 {offsets = [0, 0], sizes = [26, 28], strides = [1, 1]} : vector<28x28xf32> to vector<26x28xf32>
    %c1_141 = arith.constant 1 : index
    %c0_142 = arith.constant 0 : index
    %c0_143 = arith.constant 0 : index
    %174 = vector.load %arg1[%c1_141, %c0_142, %c0_143] : memref<6x28x78xf32, #tpu.memory_space<vmem>>, vector<1x28x78xf32>
    %175 = vector.shape_cast %174 : vector<1x28x78xf32> to vector<28x78xf32>
    %cst_144 = arith.constant dense<0.000000e+00> : vector<26x78xf32>
    %176 = tpu.matmul %173, %175, %cst_144 {dimension_numbers = #tpu.dot_dimension_numbers<[1], [0], [0], [1], [0, 0, 1, 1], [], []>} : vector<26x28xf32>, vector<28x78xf32>, vector<26x78xf32> -> vector<26x78xf32>
    %177 = vector.extract_strided_slice %158 {offsets = [1, 0], sizes = [26, 28], strides = [1, 1]} : vector<28x28xf32> to vector<26x28xf32>
    %c3_145 = arith.constant 3 : index
    %c0_146 = arith.constant 0 : index
    %c0_147 = arith.constant 0 : index
    %178 = vector.load %arg1[%c3_145, %c0_146, %c0_147] : memref<6x28x78xf32, #tpu.memory_space<vmem>>, vector<1x28x78xf32>
    %179 = vector.shape_cast %178 : vector<1x28x78xf32> to vector<28x78xf32>
    %cst_148 = arith.constant dense<0.000000e+00> : vector<26x78xf32>
    %180 = tpu.matmul %177, %179, %cst_148 {dimension_numbers = #tpu.dot_dimension_numbers<[1], [0], [0], [1], [0, 0, 1, 1], [], []>} : vector<26x28xf32>, vector<28x78xf32>, vector<26x78xf32> -> vector<26x78xf32>
    %181 = arith.addf %176, %180 : vector<26x78xf32>
    %182 = vector.extract_strided_slice %158 {offsets = [2, 0], sizes = [26, 28], strides = [1, 1]} : vector<28x28xf32> to vector<26x28xf32>
    %c5_149 = arith.constant 5 : index
    %c0_150 = arith.constant 0 : index
    %c0_151 = arith.constant 0 : index
    %183 = vector.load %arg1[%c5_149, %c0_150, %c0_151] : memref<6x28x78xf32, #tpu.memory_space<vmem>>, vector<1x28x78xf32>
    %184 = vector.shape_cast %183 : vector<1x28x78xf32> to vector<28x78xf32>
    %cst_152 = arith.constant dense<0.000000e+00> : vector<26x78xf32>
    %185 = tpu.matmul %182, %184, %cst_152 {dimension_numbers = #tpu.dot_dimension_numbers<[1], [0], [0], [1], [0, 0, 1, 1], [], []>} : vector<26x28xf32>, vector<28x78xf32>, vector<26x78xf32> -> vector<26x78xf32>
    %186 = arith.addf %181, %185 : vector<26x78xf32>
    %c0_153 = arith.constant 0 : index
    %c0_154 = arith.constant 0 : index
    %c0_155 = arith.constant 0 : index
    %187 = vector.load %arg2[%c0_153, %c0_154, %c0_155] : memref<2x13x26xf32, #tpu.memory_space<vmem>>, vector<1x13x26xf32>
    %188 = vector.shape_cast %187 : vector<1x13x26xf32> to vector<13x26xf32>
    %cst_156 = arith.constant dense<0.000000e+00> : vector<13x78xf32>
    %189 = tpu.matmul %188, %172, %cst_156 {dimension_numbers = #tpu.dot_dimension_numbers<[1], [0], [0], [1], [0, 0, 1, 1], [], []>} : vector<13x26xf32>, vector<26x78xf32>, vector<13x78xf32> -> vector<13x78xf32>
    %c0_157 = arith.constant 0 : index
    %c0_158 = arith.constant 0 : index
    %c0_159 = arith.constant 0 : index
    %190 = vector.load %arg2[%c0_157, %c0_158, %c0_159] : memref<2x13x26xf32, #tpu.memory_space<vmem>>, vector<1x13x26xf32>
    %191 = vector.shape_cast %190 : vector<1x13x26xf32> to vector<13x26xf32>
    %cst_160 = arith.constant dense<0.000000e+00> : vector<13x78xf32>
    %192 = tpu.matmul %191, %186, %cst_160 {dimension_numbers = #tpu.dot_dimension_numbers<[1], [0], [0], [1], [0, 0, 1, 1], [], []>} : vector<13x26xf32>, vector<26x78xf32>, vector<13x78xf32> -> vector<13x78xf32>
    %c1_161 = arith.constant 1 : index
    %c0_162 = arith.constant 0 : index
    %c0_163 = arith.constant 0 : index
    %193 = vector.load %arg2[%c1_161, %c0_162, %c0_163] : memref<2x13x26xf32, #tpu.memory_space<vmem>>, vector<1x13x26xf32>
    %194 = vector.shape_cast %193 : vector<1x13x26xf32> to vector<13x26xf32>
    %cst_164 = arith.constant dense<0.000000e+00> : vector<13x78xf32>
    %195 = tpu.matmul %194, %172, %cst_164 {dimension_numbers = #tpu.dot_dimension_numbers<[1], [0], [0], [1], [0, 0, 1, 1], [], []>} : vector<13x26xf32>, vector<26x78xf32>, vector<13x78xf32> -> vector<13x78xf32>
    %c1_165 = arith.constant 1 : index
    %c0_166 = arith.constant 0 : index
    %c0_167 = arith.constant 0 : index
    %196 = vector.load %arg2[%c1_165, %c0_166, %c0_167] : memref<2x13x26xf32, #tpu.memory_space<vmem>>, vector<1x13x26xf32>
    %197 = vector.shape_cast %196 : vector<1x13x26xf32> to vector<13x26xf32>
    %cst_168 = arith.constant dense<0.000000e+00> : vector<13x78xf32>
    %198 = tpu.matmul %197, %186, %cst_168 {dimension_numbers = #tpu.dot_dimension_numbers<[1], [0], [0], [1], [0, 0, 1, 1], [], []>} : vector<13x26xf32>, vector<26x78xf32>, vector<13x78xf32> -> vector<13x78xf32>
    %199 = arith.maximumf %189, %192 : vector<13x78xf32>
    %200 = arith.maximumf %195, %198 : vector<13x78xf32>
    %201 = arith.maximumf %199, %200 : vector<13x78xf32>
    %c0_169 = arith.constant 0 : index
    %c0_170 = arith.constant 0 : index
    %202 = vector.load %arg3[%c0_169, %c0_170] : memref<1x78xf32, #tpu.memory_space<vmem>>, vector<1x78xf32>
    %203 = vector.broadcast %202 : vector<1x78xf32> to vector<13x78xf32>
    %204 = arith.addf %201, %203 : vector<13x78xf32>
    %cst_171 = arith.constant 0.000000e+00 : f32
    %205 = vector.broadcast %cst_171 : f32 to vector<13x78xf32>
    %206 = arith.maximumf %204, %205 : vector<13x78xf32>
    %207 = vector.extract_strided_slice %206 {offsets = [0, 0], sizes = [10, 78], strides = [1, 1]} : vector<13x78xf32> to vector<10x78xf32>
    %c0_172 = arith.constant 0 : index
    %c0_173 = arith.constant 0 : index
    %c0_174 = arith.constant 0 : index
    %208 = vector.load %arg4[%c0_172, %c0_173, %c0_174] : memref<8x78x60xf32, #tpu.memory_space<vmem>>, vector<1x78x60xf32>
    %209 = vector.shape_cast %208 : vector<1x78x60xf32> to vector<78x60xf32>
    %cst_175 = arith.constant dense<0.000000e+00> : vector<10x60xf32>
    %210 = tpu.matmul %207, %209, %cst_175 {dimension_numbers = #tpu.dot_dimension_numbers<[1], [0], [0], [1], [0, 0, 1, 1], [], []>} : vector<10x78xf32>, vector<78x60xf32>, vector<10x60xf32> -> vector<10x60xf32>
    %211 = vector.extract_strided_slice %206 {offsets = [1, 0], sizes = [10, 78], strides = [1, 1]} : vector<13x78xf32> to vector<10x78xf32>
    %c2_176 = arith.constant 2 : index
    %c0_177 = arith.constant 0 : index
    %c0_178 = arith.constant 0 : index
    %212 = vector.load %arg4[%c2_176, %c0_177, %c0_178] : memref<8x78x60xf32, #tpu.memory_space<vmem>>, vector<1x78x60xf32>
    %213 = vector.shape_cast %212 : vector<1x78x60xf32> to vector<78x60xf32>
    %cst_179 = arith.constant dense<0.000000e+00> : vector<10x60xf32>
    %214 = tpu.matmul %211, %213, %cst_179 {dimension_numbers = #tpu.dot_dimension_numbers<[1], [0], [0], [1], [0, 0, 1, 1], [], []>} : vector<10x78xf32>, vector<78x60xf32>, vector<10x60xf32> -> vector<10x60xf32>
    %215 = arith.addf %210, %214 : vector<10x60xf32>
    %216 = vector.extract_strided_slice %206 {offsets = [2, 0], sizes = [10, 78], strides = [1, 1]} : vector<13x78xf32> to vector<10x78xf32>
    %c4_180 = arith.constant 4 : index
    %c0_181 = arith.constant 0 : index
    %c0_182 = arith.constant 0 : index
    %217 = vector.load %arg4[%c4_180, %c0_181, %c0_182] : memref<8x78x60xf32, #tpu.memory_space<vmem>>, vector<1x78x60xf32>
    %218 = vector.shape_cast %217 : vector<1x78x60xf32> to vector<78x60xf32>
    %cst_183 = arith.constant dense<0.000000e+00> : vector<10x60xf32>
    %219 = tpu.matmul %216, %218, %cst_183 {dimension_numbers = #tpu.dot_dimension_numbers<[1], [0], [0], [1], [0, 0, 1, 1], [], []>} : vector<10x78xf32>, vector<78x60xf32>, vector<10x60xf32> -> vector<10x60xf32>
    %220 = arith.addf %215, %219 : vector<10x60xf32>
    %221 = vector.extract_strided_slice %206 {offsets = [3, 0], sizes = [10, 78], strides = [1, 1]} : vector<13x78xf32> to vector<10x78xf32>
    %c6_184 = arith.constant 6 : index
    %c0_185 = arith.constant 0 : index
    %c0_186 = arith.constant 0 : index
    %222 = vector.load %arg4[%c6_184, %c0_185, %c0_186] : memref<8x78x60xf32, #tpu.memory_space<vmem>>, vector<1x78x60xf32>
    %223 = vector.shape_cast %222 : vector<1x78x60xf32> to vector<78x60xf32>
    %cst_187 = arith.constant dense<0.000000e+00> : vector<10x60xf32>
    %224 = tpu.matmul %221, %223, %cst_187 {dimension_numbers = #tpu.dot_dimension_numbers<[1], [0], [0], [1], [0, 0, 1, 1], [], []>} : vector<10x78xf32>, vector<78x60xf32>, vector<10x60xf32> -> vector<10x60xf32>
    %225 = arith.addf %220, %224 : vector<10x60xf32>
    %226 = vector.extract_strided_slice %206 {offsets = [0, 0], sizes = [10, 78], strides = [1, 1]} : vector<13x78xf32> to vector<10x78xf32>
    %c1_188 = arith.constant 1 : index
    %c0_189 = arith.constant 0 : index
    %c0_190 = arith.constant 0 : index
    %227 = vector.load %arg4[%c1_188, %c0_189, %c0_190] : memref<8x78x60xf32, #tpu.memory_space<vmem>>, vector<1x78x60xf32>
    %228 = vector.shape_cast %227 : vector<1x78x60xf32> to vector<78x60xf32>
    %cst_191 = arith.constant dense<0.000000e+00> : vector<10x60xf32>
    %229 = tpu.matmul %226, %228, %cst_191 {dimension_numbers = #tpu.dot_dimension_numbers<[1], [0], [0], [1], [0, 0, 1, 1], [], []>} : vector<10x78xf32>, vector<78x60xf32>, vector<10x60xf32> -> vector<10x60xf32>
    %230 = vector.extract_strided_slice %206 {offsets = [1, 0], sizes = [10, 78], strides = [1, 1]} : vector<13x78xf32> to vector<10x78xf32>
    %c3_192 = arith.constant 3 : index
    %c0_193 = arith.constant 0 : index
    %c0_194 = arith.constant 0 : index
    %231 = vector.load %arg4[%c3_192, %c0_193, %c0_194] : memref<8x78x60xf32, #tpu.memory_space<vmem>>, vector<1x78x60xf32>
    %232 = vector.shape_cast %231 : vector<1x78x60xf32> to vector<78x60xf32>
    %cst_195 = arith.constant dense<0.000000e+00> : vector<10x60xf32>
    %233 = tpu.matmul %230, %232, %cst_195 {dimension_numbers = #tpu.dot_dimension_numbers<[1], [0], [0], [1], [0, 0, 1, 1], [], []>} : vector<10x78xf32>, vector<78x60xf32>, vector<10x60xf32> -> vector<10x60xf32>
    %234 = arith.addf %229, %233 : vector<10x60xf32>
    %235 = vector.extract_strided_slice %206 {offsets = [2, 0], sizes = [10, 78], strides = [1, 1]} : vector<13x78xf32> to vector<10x78xf32>
    %c5_196 = arith.constant 5 : index
    %c0_197 = arith.constant 0 : index
    %c0_198 = arith.constant 0 : index
    %236 = vector.load %arg4[%c5_196, %c0_197, %c0_198] : memref<8x78x60xf32, #tpu.memory_space<vmem>>, vector<1x78x60xf32>
    %237 = vector.shape_cast %236 : vector<1x78x60xf32> to vector<78x60xf32>
    %cst_199 = arith.constant dense<0.000000e+00> : vector<10x60xf32>
    %238 = tpu.matmul %235, %237, %cst_199 {dimension_numbers = #tpu.dot_dimension_numbers<[1], [0], [0], [1], [0, 0, 1, 1], [], []>} : vector<10x78xf32>, vector<78x60xf32>, vector<10x60xf32> -> vector<10x60xf32>
    %239 = arith.addf %234, %238 : vector<10x60xf32>
    %240 = vector.extract_strided_slice %206 {offsets = [3, 0], sizes = [10, 78], strides = [1, 1]} : vector<13x78xf32> to vector<10x78xf32>
    %c7_200 = arith.constant 7 : index
    %c0_201 = arith.constant 0 : index
    %c0_202 = arith.constant 0 : index
    %241 = vector.load %arg4[%c7_200, %c0_201, %c0_202] : memref<8x78x60xf32, #tpu.memory_space<vmem>>, vector<1x78x60xf32>
    %242 = vector.shape_cast %241 : vector<1x78x60xf32> to vector<78x60xf32>
    %cst_203 = arith.constant dense<0.000000e+00> : vector<10x60xf32>
    %243 = tpu.matmul %240, %242, %cst_203 {dimension_numbers = #tpu.dot_dimension_numbers<[1], [0], [0], [1], [0, 0, 1, 1], [], []>} : vector<10x78xf32>, vector<78x60xf32>, vector<10x60xf32> -> vector<10x60xf32>
    %244 = arith.addf %239, %243 : vector<10x60xf32>
    %c0_204 = arith.constant 0 : index
    %c0_205 = arith.constant 0 : index
    %c0_206 = arith.constant 0 : index
    %245 = vector.load %arg5[%c0_204, %c0_205, %c0_206] : memref<2x5x10xf32, #tpu.memory_space<vmem>>, vector<1x5x10xf32>
    %246 = vector.shape_cast %245 : vector<1x5x10xf32> to vector<5x10xf32>
    %cst_207 = arith.constant dense<0.000000e+00> : vector<5x60xf32>
    %247 = tpu.matmul %246, %225, %cst_207 {dimension_numbers = #tpu.dot_dimension_numbers<[1], [0], [0], [1], [0, 0, 1, 1], [], []>} : vector<5x10xf32>, vector<10x60xf32>, vector<5x60xf32> -> vector<5x60xf32>
    %c0_208 = arith.constant 0 : index
    %c0_209 = arith.constant 0 : index
    %c0_210 = arith.constant 0 : index
    %248 = vector.load %arg5[%c0_208, %c0_209, %c0_210] : memref<2x5x10xf32, #tpu.memory_space<vmem>>, vector<1x5x10xf32>
    %249 = vector.shape_cast %248 : vector<1x5x10xf32> to vector<5x10xf32>
    %cst_211 = arith.constant dense<0.000000e+00> : vector<5x60xf32>
    %250 = tpu.matmul %249, %244, %cst_211 {dimension_numbers = #tpu.dot_dimension_numbers<[1], [0], [0], [1], [0, 0, 1, 1], [], []>} : vector<5x10xf32>, vector<10x60xf32>, vector<5x60xf32> -> vector<5x60xf32>
    %c1_212 = arith.constant 1 : index
    %c0_213 = arith.constant 0 : index
    %c0_214 = arith.constant 0 : index
    %251 = vector.load %arg5[%c1_212, %c0_213, %c0_214] : memref<2x5x10xf32, #tpu.memory_space<vmem>>, vector<1x5x10xf32>
    %252 = vector.shape_cast %251 : vector<1x5x10xf32> to vector<5x10xf32>
    %cst_215 = arith.constant dense<0.000000e+00> : vector<5x60xf32>
    %253 = tpu.matmul %252, %225, %cst_215 {dimension_numbers = #tpu.dot_dimension_numbers<[1], [0], [0], [1], [0, 0, 1, 1], [], []>} : vector<5x10xf32>, vector<10x60xf32>, vector<5x60xf32> -> vector<5x60xf32>
    %c1_216 = arith.constant 1 : index
    %c0_217 = arith.constant 0 : index
    %c0_218 = arith.constant 0 : index
    %254 = vector.load %arg5[%c1_216, %c0_217, %c0_218] : memref<2x5x10xf32, #tpu.memory_space<vmem>>, vector<1x5x10xf32>
    %255 = vector.shape_cast %254 : vector<1x5x10xf32> to vector<5x10xf32>
    %cst_219 = arith.constant dense<0.000000e+00> : vector<5x60xf32>
    %256 = tpu.matmul %255, %244, %cst_219 {dimension_numbers = #tpu.dot_dimension_numbers<[1], [0], [0], [1], [0, 0, 1, 1], [], []>} : vector<5x10xf32>, vector<10x60xf32>, vector<5x60xf32> -> vector<5x60xf32>
    %257 = arith.maximumf %247, %250 : vector<5x60xf32>
    %258 = arith.maximumf %253, %256 : vector<5x60xf32>
    %259 = arith.maximumf %257, %258 : vector<5x60xf32>
    %c0_220 = arith.constant 0 : index
    %c0_221 = arith.constant 0 : index
    %260 = vector.load %arg6[%c0_220, %c0_221] : memref<1x60xf32, #tpu.memory_space<vmem>>, vector<1x60xf32>
    %261 = vector.broadcast %260 : vector<1x60xf32> to vector<5x60xf32>
    %262 = arith.addf %259, %261 : vector<5x60xf32>
    %cst_222 = arith.constant 0.000000e+00 : f32
    %263 = vector.broadcast %cst_222 : f32 to vector<5x60xf32>
    %264 = arith.maximumf %262, %263 : vector<5x60xf32>
    %265 = vector.extract_strided_slice %264 {offsets = [0, 0], sizes = [1, 60], strides = [1, 1]} : vector<5x60xf32> to vector<1x60xf32>
    %c0_223 = arith.constant 0 : index
    %c0_224 = arith.constant 0 : index
    %c0_225 = arith.constant 0 : index
    %266 = vector.load %arg7[%c0_223, %c0_224, %c0_225] : memref<5x60x256xf32, #tpu.memory_space<vmem>>, vector<1x60x256xf32>
    %267 = vector.shape_cast %266 : vector<1x60x256xf32> to vector<60x256xf32>
    %cst_226 = arith.constant dense<0.000000e+00> : vector<1x256xf32>
    %268 = tpu.matmul %265, %267, %cst_226 {dimension_numbers = #tpu.dot_dimension_numbers<[1], [0], [0], [1], [0, 0, 1, 1], [], []>} : vector<1x60xf32>, vector<60x256xf32>, vector<1x256xf32> -> vector<1x256xf32>
    %269 = vector.extract_strided_slice %264 {offsets = [1, 0], sizes = [1, 60], strides = [1, 1]} : vector<5x60xf32> to vector<1x60xf32>
    %c1_227 = arith.constant 1 : index
    %c0_228 = arith.constant 0 : index
    %c0_229 = arith.constant 0 : index
    %270 = vector.load %arg7[%c1_227, %c0_228, %c0_229] : memref<5x60x256xf32, #tpu.memory_space<vmem>>, vector<1x60x256xf32>
    %271 = vector.shape_cast %270 : vector<1x60x256xf32> to vector<60x256xf32>
    %cst_230 = arith.constant dense<0.000000e+00> : vector<1x256xf32>
    %272 = tpu.matmul %269, %271, %cst_230 {dimension_numbers = #tpu.dot_dimension_numbers<[1], [0], [0], [1], [0, 0, 1, 1], [], []>} : vector<1x60xf32>, vector<60x256xf32>, vector<1x256xf32> -> vector<1x256xf32>
    %273 = arith.addf %268, %272 : vector<1x256xf32>
    %274 = vector.extract_strided_slice %264 {offsets = [2, 0], sizes = [1, 60], strides = [1, 1]} : vector<5x60xf32> to vector<1x60xf32>
    %c2_231 = arith.constant 2 : index
    %c0_232 = arith.constant 0 : index
    %c0_233 = arith.constant 0 : index
    %275 = vector.load %arg7[%c2_231, %c0_232, %c0_233] : memref<5x60x256xf32, #tpu.memory_space<vmem>>, vector<1x60x256xf32>
    %276 = vector.shape_cast %275 : vector<1x60x256xf32> to vector<60x256xf32>
    %cst_234 = arith.constant dense<0.000000e+00> : vector<1x256xf32>
    %277 = tpu.matmul %274, %276, %cst_234 {dimension_numbers = #tpu.dot_dimension_numbers<[1], [0], [0], [1], [0, 0, 1, 1], [], []>} : vector<1x60xf32>, vector<60x256xf32>, vector<1x256xf32> -> vector<1x256xf32>
    %278 = arith.addf %273, %277 : vector<1x256xf32>
    %279 = vector.extract_strided_slice %264 {offsets = [3, 0], sizes = [1, 60], strides = [1, 1]} : vector<5x60xf32> to vector<1x60xf32>
    %c3_235 = arith.constant 3 : index
    %c0_236 = arith.constant 0 : index
    %c0_237 = arith.constant 0 : index
    %280 = vector.load %arg7[%c3_235, %c0_236, %c0_237] : memref<5x60x256xf32, #tpu.memory_space<vmem>>, vector<1x60x256xf32>
    %281 = vector.shape_cast %280 : vector<1x60x256xf32> to vector<60x256xf32>
    %cst_238 = arith.constant dense<0.000000e+00> : vector<1x256xf32>
    %282 = tpu.matmul %279, %281, %cst_238 {dimension_numbers = #tpu.dot_dimension_numbers<[1], [0], [0], [1], [0, 0, 1, 1], [], []>} : vector<1x60xf32>, vector<60x256xf32>, vector<1x256xf32> -> vector<1x256xf32>
    %283 = arith.addf %278, %282 : vector<1x256xf32>
    %284 = vector.extract_strided_slice %264 {offsets = [4, 0], sizes = [1, 60], strides = [1, 1]} : vector<5x60xf32> to vector<1x60xf32>
    %c4_239 = arith.constant 4 : index
    %c0_240 = arith.constant 0 : index
    %c0_241 = arith.constant 0 : index
    %285 = vector.load %arg7[%c4_239, %c0_240, %c0_241] : memref<5x60x256xf32, #tpu.memory_space<vmem>>, vector<1x60x256xf32>
    %286 = vector.shape_cast %285 : vector<1x60x256xf32> to vector<60x256xf32>
    %cst_242 = arith.constant dense<0.000000e+00> : vector<1x256xf32>
    %287 = tpu.matmul %284, %286, %cst_242 {dimension_numbers = #tpu.dot_dimension_numbers<[1], [0], [0], [1], [0, 0, 1, 1], [], []>} : vector<1x60xf32>, vector<60x256xf32>, vector<1x256xf32> -> vector<1x256xf32>
    %288 = arith.addf %283, %287 : vector<1x256xf32>
    %c0_243 = arith.constant 0 : index
    %c0_244 = arith.constant 0 : index
    %289 = vector.load %arg8[%c0_243, %c0_244] : memref<1x256xf32, #tpu.memory_space<vmem>>, vector<1x256xf32>
    %290 = arith.addf %288, %289 : vector<1x256xf32>
    %cst_245 = arith.constant 0.000000e+00 : f32
    %291 = vector.broadcast %cst_245 : f32 to vector<1x256xf32>
    %292 = arith.maximumf %290, %291 : vector<1x256xf32>
    %c0_246 = arith.constant 0 : index
    %c0_247 = arith.constant 0 : index
    %293 = vector.load %arg9[%c0_246, %c0_247] : memref<256x1024xf32, #tpu.memory_space<vmem>>, vector<256x1024xf32>
    %cst_248 = arith.constant dense<0.000000e+00> : vector<1x1024xf32>
    %294 = tpu.matmul %292, %293, %cst_248 {dimension_numbers = #tpu.dot_dimension_numbers<[1], [0], [0], [1], [0, 0, 1, 1], [], []>} : vector<1x256xf32>, vector<256x1024xf32>, vector<1x1024xf32> -> vector<1x1024xf32>
    %c0_249 = arith.constant 0 : index
    %c0_250 = arith.constant 0 : index
    %295 = vector.load %arg10[%c0_249, %c0_250] : memref<1x1024xf32, #tpu.memory_space<vmem>>, vector<1x1024xf32>
    %296 = arith.addf %294, %295 : vector<1x1024xf32>
    %cst_251 = arith.constant 0.000000e+00 : f32
    %297 = vector.broadcast %cst_251 : f32 to vector<1x1024xf32>
    %298 = arith.maximumf %296, %297 : vector<1x1024xf32>
    %c0_252 = arith.constant 0 : index
    %c0_253 = arith.constant 0 : index
    %299 = vector.load %arg11[%c0_252, %c0_253] : memref<1024x10xf32, #tpu.memory_space<vmem>>, vector<1024x10xf32>
    %cst_254 = arith.constant dense<0.000000e+00> : vector<1x10xf32>
    %300 = tpu.matmul %298, %299, %cst_254 {dimension_numbers = #tpu.dot_dimension_numbers<[1], [0], [0], [1], [0, 0, 1, 1], [], []>} : vector<1x1024xf32>, vector<1024x10xf32>, vector<1x10xf32> -> vector<1x10xf32>
    %c0_255 = arith.constant 0 : index
    %c0_256 = arith.constant 0 : index
    %301 = vector.load %arg12[%c0_255, %c0_256] : memref<1x10xf32, #tpu.memory_space<vmem>>, vector<1x10xf32>
    %302 = arith.addf %300, %301 : vector<1x10xf32>
    %cst_257 = arith.constant dense<0xFF800000> : vector<1xf32>
    %303 = vector.multi_reduction <maximumf>, %302, %cst_257 [1] : vector<1x10xf32> to vector<1xf32>
    %304 = vector.shape_cast %303 : vector<1xf32> to vector<1x1xf32>
    %305 = vector.broadcast %304 : vector<1x1xf32> to vector<1x10xf32>
    %306 = arith.subf %302, %305 : vector<1x10xf32>
    %307 = math.exp %306 : vector<1x10xf32>
    %cst_258 = arith.constant dense<0.000000e+00> : vector<1xf32>
    %308 = vector.multi_reduction <add>, %307, %cst_258 [1] : vector<1x10xf32> to vector<1xf32>
    %309 = vector.shape_cast %308 : vector<1xf32> to vector<1x1xf32>
    %310 = math.log %309 : vector<1x1xf32>
    %311 = vector.broadcast %310 : vector<1x1xf32> to vector<1x10xf32>
    %312 = arith.subf %306, %311 : vector<1x10xf32>
    %c1_259 = arith.constant 1 : index
    %c0_260 = arith.constant 0 : index
    %313 = vector.load %arg13[%c1_259, %c0_260] : memref<2x10xf32, #tpu.memory_space<vmem>>, vector<1x10xf32>
    tpu.vector_store %arg13[%c1_259, %c0_260], %312 {strides = array<i32>} : memref<2x10xf32, #tpu.memory_space<vmem>>, vector<1x10xf32>,
    return
  }
}

</mosaic_0001>

<llo_original>
// kernel: model_forward.1
$region0: #{model_forward.1}
  #allocation0 [shape = 'u32[]', space=smem, size = 0x4, offset = 0x4, fixed_abs, tag = 'smem constant byte address 0x4 - core index']
  #allocation1 [shape = 'u32[144,128]{1,0:T(1,128)}', space=vmem, size = 0x12000, scoped, tag = 'internal scratch']
  %s0 = inlined_call_operand.vmem [shape: f32[2,28,28], index: 0, kind: input, shape index: {}]
  %s1 = inlined_call_operand.vmem [shape: f32[6,28,78], index: 1, kind: input, shape index: {}]
  %s2 = inlined_call_operand.vmem [shape: f32[2,13,26], index: 2, kind: input, shape index: {}]
  %s3 = inlined_call_operand.vmem [shape: f32[1,78], index: 3, kind: input, shape index: {}]
  %s4 = inlined_call_operand.vmem [shape: f32[8,78,60], index: 4, kind: input, shape index: {}]
  %s5 = inlined_call_operand.vmem [shape: f32[2,5,10], index: 5, kind: input, shape index: {}]
  %s6 = inlined_call_operand.vmem [shape: f32[1,60], index: 6, kind: input, shape index: {}]
  %s7 = inlined_call_operand.hbm [shape: f32[5,60,256], index: 7, kind: input, shape index: {}]
  %s8 = inlined_call_operand.vmem [shape: f32[1,256], index: 8, kind: input, shape index: {}]
  %s9 = inlined_call_operand.vmem [shape: f32[256,1024], index: 9, kind: input, shape index: {}]
  %s10 = inlined_call_operand.vmem [shape: f32[1,1024], index: 10, kind: input, shape index: {}]
  %s11 = inlined_call_operand.vmem [shape: f32[1024,10], index: 11, kind: input, shape index: {}]
  %s12 = inlined_call_operand.vmem [shape: f32[1,10], index: 12, kind: input, shape index: {}]
  %s13 = inlined_call_operand.hbm [shape: f32[2,10], index: 13, kind: output, shape index: {}]
  %s14 = sld [smem:[#allocation0]]
  $region66: #{model_forward.1} parent=0
    _
  %s16 = ssub.s32 1, %s14
  %s17 = scalar_select 0, %s16, %s14
  $region1: #{model_forward.1} parent=0
    #allocation2 [shape = 'u8[327680]{0}', space=vmem, size = 0x50000, scoped, tag = 'input window, operand 7, single buffered']
    #allocation3 [shape = 's32[1]{0}', space=sflag, size = 0x4, scoped, tag = 'scoped memory for model_forward.1']
    #allocation4 [shape = 's32[1]{0}', space=sflag, size = 0x4, scoped, tag = 'scoped memory for model_forward.1']
    #allocation5 [shape = 'u8[1024]{0}', space=vmem, size = 0x400, scoped, tag = 'output window, operand 0, single buffered']
    %18 = vsyncpa [#allocation3], 0
    %19 = vsyncpa [#allocation4], 0
    // Predicated region
    $region2: #{model_forward.1} parent=1 // pred_check
      _
    $region3: #{model_forward.1} parent=1 // pred_check_branch
      %21 = sbr.rel (0) target = $region5
    $region4: #{model_forward.1} parent=1 // pred_region
      _
    $region5: #{model_forward.1} parent=1 // pred_fallthru
      _
    // Predicated region
    $region6: #{model_forward.1} parent=1 // pred_check
      _
    $region7: #{model_forward.1} parent=1 // pred_check_branch
      %23 = sbr.rel (0) target = $region9
    $region8: #{model_forward.1} parent=1 // pred_region
      _
    $region9: #{model_forward.1} parent=1 // pred_fallthru
      _
    // Predicated region
    $region10: #{model_forward.1} parent=1 // pred_check
      _
    $region11: #{model_forward.1} parent=1 // pred_check_branch
      %25 = sbr.rel (0) target = $region13
    $region12: #{model_forward.1} parent=1 // pred_region
      _
    $region13: #{model_forward.1} parent=1 // pred_fallthru
      _
    // Predicated region
    $region14: #{model_forward.1} parent=1 // pred_check
      _
    $region15: #{model_forward.1} parent=1 // pred_check_branch
      %27 = sbr.rel (0) target = $region17
    $region16: #{model_forward.1} parent=1 // pred_region
      _
    $region17: #{model_forward.1} parent=1 // pred_fallthru
      _
    // Predicated region
    $region18: #{model_forward.1} parent=1 // pred_check
      _
    $region19: #{model_forward.1} parent=1 // pred_check_branch
      %29 = sbr.rel (0) target = $region21
    $region20: #{model_forward.1} parent=1 // pred_region
      _
    $region21: #{model_forward.1} parent=1 // pred_fallthru
      _
    // Predicated region
    $region22: #{model_forward.1} parent=1 // pred_check
      _
    $region23: #{model_forward.1} parent=1 // pred_check_branch
      %31 = sbr.rel (0) target = $region25
    $region24: #{model_forward.1} parent=1 // pred_region
      _
    $region25: #{model_forward.1} parent=1 // pred_fallthru
      _
    // Predicated region
    $region26: #{model_forward.1} parent=1 // pred_check
      _
    $region27: #{model_forward.1} parent=1 // pred_check_branch
      %33 = sbr.rel (0) target = $region29
    $region28: #{model_forward.1} parent=1 // pred_region
      _
    $region29: #{model_forward.1} parent=1 // pred_fallthru
      _
    // Predicated region
    $region30: #{model_forward.1} parent=1 // pred_check
      _
    $region31: #{model_forward.1} parent=1 // pred_check_branch
      %35 = sbr.rel (0) target = $region33
    $region32: #{model_forward.1} parent=1 // pred_region
      %s37 = ssub.s32 10240, 10240
      %38 = vsyncadd [#allocation3], %s37
      %s39 = sshll.u32 [#allocation2], 4
      %s40 = int_to_ptr.vmem [resolvable:$true] %s39
      %45 = dma.hbm_to_vmem [thread:$0]  %s7, 10240, %s40, [#allocation3], 256, 256, 16
    $region33: #{model_forward.1} parent=1 // pred_fallthru
      _
    // Predicated region
    $region34: #{model_forward.1} parent=1 // pred_check
      _
    $region35: #{model_forward.1} parent=1 // pred_check_branch
      %47 = sbr.rel (0) target = $region37
    $region36: #{model_forward.1} parent=1 // pred_region
      _
    $region37: #{model_forward.1} parent=1 // pred_fallthru
      _
    // Predicated region
    $region38: #{model_forward.1} parent=1 // pred_check
      _
    $region39: #{model_forward.1} parent=1 // pred_check_branch
      %49 = sbr.rel (0) target = $region41
    $region40: #{model_forward.1} parent=1 // pred_region
      _
    $region41: #{model_forward.1} parent=1 // pred_fallthru
      _
    // Predicated region
    $region42: #{model_forward.1} parent=1 // pred_check
      _
    $region43: #{model_forward.1} parent=1 // pred_check_branch
      %51 = sbr.rel (0) target = $region45
    $region44: #{model_forward.1} parent=1 // pred_region
      _
    $region45: #{model_forward.1} parent=1 // pred_fallthru
      _
    // Predicated region
    $region46: #{model_forward.1} parent=1 // pred_check
      _
    $region47: #{model_forward.1} parent=1 // pred_check_branch
      %53 = sbr.rel (0) target = $region49
    $region48: #{model_forward.1} parent=1 // pred_region
      _
    $region49: #{model_forward.1} parent=1 // pred_fallthru
      _
    // Predicated region
    $region50: #{model_forward.1} parent=1 // pred_check
      _
    $region51: #{model_forward.1} parent=1 // pred_check_branch
      %55 = sbr.rel (0) target = $region53
    $region52: #{model_forward.1} parent=1 // pred_region
      _
    $region53: #{model_forward.1} parent=1 // pred_fallthru
      _
    // Predicated region
    $region54: #{model_forward.1} parent=1 // pred_check
      _
    $region55: #{model_forward.1} parent=1 // pred_check_branch
      %57 = sbr.rel (0) target = $region57
    $region56: #{model_forward.1} parent=1 // pred_region
      %58 = dma.done [#allocation3], 10240
    $region57: #{model_forward.1} parent=1 // pred_fallthru
      _
    %v59 = vld [vmem:[%s0] sm:$0xff]
    %v60 = vld [vmem:[%s0 + $0x8] sm:$0xff]
    %v61 = vld [vmem:[%s0 + $0x10] sm:$0xff]
    %v62 = vld [vmem:[%s0 + $0x18] sm:$0xf]
    %v63 = vld [vmem:[%s1] sm:$0xff]
    %v64 = vld [vmem:[%s1 + $0x8] sm:$0xff]
    %v65 = vld [vmem:[%s1 + $0x10] sm:$0xff]
    %v66 = vld [vmem:[%s1 + $0x18] sm:$0xf]
    %s67 = scalar_lea.vmem %s1, 64
    %v68 = vld [vmem:[%s67] sm:$0xff]
    %v69 = vld [vmem:[%s67 + $0x8] sm:$0xff]
    %v70 = vld [vmem:[%s67 + $0x10] sm:$0xff]
    %v71 = vld [vmem:[%s67 + $0x18] sm:$0xf]
    %vm76 = vcmask 1046528
    %v77 = vrot.slane %v59, 1
    %v78 = vrot.slane %v60, 1
    %v79 = vsel %vm76, %v77, %v78
    %v80 = vrot.slane %v61, 1
    %v81 = vsel %vm76, %v78, %v80
    %v82 = vrot.slane %v62, 1
    %v83 = vsel %vm76, %v80, %v82
    %vm84 = vcmask 228352
    %v85 = vsel %vm84, %v79, 0
    %v87 = vsel %vm84, %v81, 0
    %v89 = vsel %vm84, %v83, 0
    %v91 = vsel %vm84, %v82, 0
    %vm93 = vcmask 1043456
    %v95 = vsel %vm93, %v71, 0
    %97 = vmatprep.subr.mxu0 0.0
    %98 = vmatpush1.msra.mxu0 %v68
    %99 = vmatprep.subr.mxu0 0.0
    %100 = vmatpush1.msra.mxu0 %v69
    %101 = vmatprep.subr.mxu0 0.0
    %102 = vmatpush1.msra.mxu0 %v70
    %103 = vmatprep.subr.mxu0 0.0
    %104 = vmatpush1.msra.mxu0 %v95
    %105 = vmatprep.subr.mxu0 0.0
    %106 = vmatpush1.msra.mxu0 0.0
    %107 = vmatprep.subr.mxu0 0.0
    %108 = vmatpush1.msra.mxu0 0.0
    %109 = vmatprep.subr.mxu0 0.0
    %110 = vmatpush1.msra.mxu0 0.0
    %111 = vmatprep.subr.mxu0 0.0
    %112 = vmatpush1.msra.mxu0 0.0
    %113 = vmatprep.subr.mxu0 0.0
    %114 = vmatpush1.msra.mxu0 0.0
    %115 = vmatprep.subr.mxu0 0.0
    %116 = vmatpush1.msra.mxu0 0.0
    %117 = vmatprep.subr.mxu0 0.0
    %118 = vmatpush1.msra.mxu0 0.0
    %119 = vmatprep.subr.mxu0 0.0
    %120 = vmatpush1.msra.mxu0 0.0
    %121 = vmatprep.subr.mxu0 0.0
    %122 = vmatpush1.msra.mxu0 0.0
    %123 = vmatprep.subr.mxu0 0.0
    %124 = vmatpush1.msra.mxu0 0.0
    %125 = vmatprep.subr.mxu0 0.0
    %126 = vmatpush1.msra.mxu0 0.0
    %127 = vmatprep.subr.mxu0 0.0
    %128 = vmatpush1.msra.mxu0 0.0
    %129 = vmatprep.subr.mxu0 0.0
    %130 = vmatpush1.msra.mxu0 0.0
    %131 = vmatprep.subr.mxu0 0.0
    %132 = vmatpush1.msra.mxu0 0.0
    %133 = vmatprep.subr.mxu0 0.0
    %134 = vmatpush1.msra.mxu0 0.0
    %135 = vmatprep.subr.mxu0 0.0
    %136 = vmatpush1.msra.mxu0 0.0
    %137 = vmatprep.subr.mxu0 0.0
    %138 = vmatpush1.msra.mxu0 0.0
    %139 = vmatprep.subr.mxu0 0.0
    %140 = vmatpush1.msra.mxu0 0.0
    %141 = vmatprep.subr.mxu0 0.0
    %142 = vmatpush1.msra.mxu0 0.0
    %143 = vmatprep.subr.mxu0 0.0
    %144 = vmatpush1.msra.mxu0 0.0
    %145 = vmatprep.subr.mxu0 0.0
    %146 = vmatpush1.msra.mxu0 0.0
    %147 = vmatprep.subr.mxu0 0.0
    %148 = vmatpush1.msra.mxu0 0.0
    %149 = vmatprep.subr.mxu0 0.0
    %150 = vmatpush1.msra.mxu0 0.0
    %151 = vmatprep.subr.mxu0 0.0
    %152 = vmatpush1.msra.mxu0 0.0
    %153 = vmatprep.subr.mxu0 0.0
    %154 = vmatpush1.msra.mxu0 0.0
    %155 = vmatprep.subr.mxu0 0.0
    %156 = vmatpush1.msra.mxu0 0.0
    %157 = vmatprep.subr.mxu0 0.0
    %158 = vmatpush1.msra.mxu0 0.0
    %159 = vmatprep.subr.mxu0 0.0
    %160 = vmatpush1.msra.mxu0 0.0
    %161 = vmatprep.mubr.f32.mxu0 0.0
    %162 = vmatmul.mubr.f32.gmra.mrb[0].mxu0 %v85
    %v163 = vpop.f32.mrb[0].mxu0
    %v164 = vadd.f32 0.0, %v163
    %v165 = vpop.f32.mrb[0].mxu0
    %166 = vmatprep.mubr.f32.mxu0 0.0
    %167 = vmatmul.mubr.f32.gmra.mrb[0].mxu0 %v87
    %v168 = vpop.f32.mrb[0].mxu0
    %v169 = vadd.f32 0.0, %v168
    %v170 = vpop.f32.mrb[0].mxu0
    %171 = vmatprep.mubr.f32.mxu0 0.0
    %172 = vmatmul.mubr.f32.gmra.mrb[0].mxu0 %v89
    %v173 = vpop.f32.mrb[0].mxu0
    %v174 = vadd.f32 0.0, %v173
    %v175 = vpop.f32.mrb[0].mxu0
    %176 = vmatprep.mubr.f32.mxu0 0.0
    %177 = vmatmul.mubr.f32.gmra.mrb[0].mxu0 %v91
    %v178 = vpop.f32.mrb[0].mxu0
    %v179 = vadd.f32 0.0, %v178
    %v180 = vpop.f32.mrb[0].mxu0
    %181 = vdwg.mxu0
    %v182 = vsel %vm84, %v59, 0
    %v184 = vsel %vm84, %v60, 0
    %v186 = vsel %vm84, %v61, 0
    %v188 = vsel %vm84, %v62, 0
    %v191 = vsel %vm93, %v66, 0
    %193 = vmatprep.subr.mxu0 0.0
    %194 = vmatpush1.msra.mxu0 %v63
    %195 = vmatprep.subr.mxu0 0.0
    %196 = vmatpush1.msra.mxu0 %v64
    %197 = vmatprep.subr.mxu0 0.0
    %198 = vmatpush1.msra.mxu0 %v65
    %199 = vmatprep.subr.mxu0 0.0
    %200 = vmatpush1.msra.mxu0 %v191
    %201 = vmatprep.subr.mxu0 0.0
    %202 = vmatpush1.msra.mxu0 0.0
    %203 = vmatprep.subr.mxu0 0.0
    %204 = vmatpush1.msra.mxu0 0.0
    %205 = vmatprep.subr.mxu0 0.0
    %206 = vmatpush1.msra.mxu0 0.0
    %207 = vmatprep.subr.mxu0 0.0
    %208 = vmatpush1.msra.mxu0 0.0
    %209 = vmatprep.subr.mxu0 0.0
    %210 = vmatpush1.msra.mxu0 0.0
    %211 = vmatprep.subr.mxu0 0.0
    %212 = vmatpush1.msra.mxu0 0.0
    %213 = vmatprep.subr.mxu0 0.0
    %214 = vmatpush1.msra.mxu0 0.0
    %215 = vmatprep.subr.mxu0 0.0
    %216 = vmatpush1.msra.mxu0 0.0
    %217 = vmatprep.subr.mxu0 0.0
    %218 = vmatpush1.msra.mxu0 0.0
    %219 = vmatprep.subr.mxu0 0.0
    %220 = vmatpush1.msra.mxu0 0.0
    %221 = vmatprep.subr.mxu0 0.0
    %222 = vmatpush1.msra.mxu0 0.0
    %223 = vmatprep.subr.mxu0 0.0
    %224 = vmatpush1.msra.mxu0 0.0
    %225 = vmatprep.subr.mxu0 0.0
    %226 = vmatpush1.msra.mxu0 0.0
    %227 = vmatprep.subr.mxu0 0.0
    %228 = vmatpush1.msra.mxu0 0.0
    %229 = vmatprep.subr.mxu0 0.0
    %230 = vmatpush1.msra.mxu0 0.0
    %231 = vmatprep.subr.mxu0 0.0
    %232 = vmatpush1.msra.mxu0 0.0
    %233 = vmatprep.subr.mxu0 0.0
    %234 = vmatpush1.msra.mxu0 0.0
    %235 = vmatprep.subr.mxu0 0.0
    %236 = vmatpush1.msra.mxu0 0.0
    %237 = vmatprep.subr.mxu0 0.0
    %238 = vmatpush1.msra.mxu0 0.0
    %239 = vmatprep.subr.mxu0 0.0
    %240 = vmatpush1.msra.mxu0 0.0
    %241 = vmatprep.subr.mxu0 0.0
    %242 = vmatpush1.msra.mxu0 0.0
    %243 = vmatprep.subr.mxu0 0.0
    %244 = vmatpush1.msra.mxu0 0.0
    %245 = vmatprep.subr.mxu0 0.0
    %246 = vmatpush1.msra.mxu0 0.0
    %247 = vmatprep.subr.mxu0 0.0
    %248 = vmatpush1.msra.mxu0 0.0
    %249 = vmatprep.subr.mxu0 0.0
    %250 = vmatpush1.msra.mxu0 0.0
    %251 = vmatprep.subr.mxu0 0.0
    %252 = vmatpush1.msra.mxu0 0.0
    %253 = vmatprep.subr.mxu0 0.0
    %254 = vmatpush1.msra.mxu0 0.0
    %255 = vmatprep.subr.mxu0 0.0
    %256 = vmatpush1.msra.mxu0 0.0
    %257 = vmatprep.mubr.f32.mxu0 0.0
    %258 = vmatmul.mubr.f32.gmra.mrb[0].mxu0 %v182
    %v259 = vpop.f32.mrb[0].mxu0
    %v260 = vadd.f32 %v164, %v259
    %v261 = vpop.f32.mrb[0].mxu0
    %262 = vmatprep.mubr.f32.mxu0 0.0
    %263 = vmatmul.mubr.f32.gmra.mrb[0].mxu0 %v184
    %v264 = vpop.f32.mrb[0].mxu0
    %v265 = vadd.f32 %v169, %v264
    %v266 = vpop.f32.mrb[0].mxu0
    %267 = vmatprep.mubr.f32.mxu0 0.0
    %268 = vmatmul.mubr.f32.gmra.mrb[0].mxu0 %v186
    %v269 = vpop.f32.mrb[0].mxu0
    %v270 = vadd.f32 %v174, %v269
    %v271 = vpop.f32.mrb[0].mxu0
    %272 = vmatprep.mubr.f32.mxu0 0.0
    %273 = vmatmul.mubr.f32.gmra.mrb[0].mxu0 %v188
    %v274 = vpop.f32.mrb[0].mxu0
    %v275 = vadd.f32 %v179, %v274
    %v276 = vpop.f32.mrb[0].mxu0
    %277 = vdwg.mxu0
    %s278 = scalar_lea.vmem %s1, 128
    %v279 = vld [vmem:[%s278] sm:$0xff]
    %v280 = vld [vmem:[%s278 + $0x8] sm:$0xff]
    %v281 = vld [vmem:[%s278 + $0x10] sm:$0xff]
    %v282 = vld [vmem:[%s278 + $0x18] sm:$0xf]
    %vm283 = vcmask 1045504
    %v284 = vrot.slane %v59, 2
    %v285 = vrot.slane %v60, 2
    %v286 = vsel %vm283, %v284, %v285
    %v287 = vrot.slane %v61, 2
    %v288 = vsel %vm283, %v285, %v287
    %v289 = vrot.slane %v62, 2
    %v290 = vsel %vm283, %v287, %v289
    %v291 = vsel %vm84, %v286, 0
    %v293 = vsel %vm84, %v288, 0
    %v295 = vsel %vm84, %v290, 0
    %v297 = vsel %vm84, %v289, 0
    %v300 = vsel %vm93, %v282, 0
    %302 = vmatprep.subr.mxu0 0.0
    %303 = vmatpush1.msra.mxu0 %v279
    %304 = vmatprep.subr.mxu0 0.0
    %305 = vmatpush1.msra.mxu0 %v280
    %306 = vmatprep.subr.mxu0 0.0
    %307 = vmatpush1.msra.mxu0 %v281
    %308 = vmatprep.subr.mxu0 0.0
    %309 = vmatpush1.msra.mxu0 %v300
    %310 = vmatprep.subr.mxu0 0.0
    %311 = vmatpush1.msra.mxu0 0.0
    %312 = vmatprep.subr.mxu0 0.0
    %313 = vmatpush1.msra.mxu0 0.0
    %314 = vmatprep.subr.mxu0 0.0
    %315 = vmatpush1.msra.mxu0 0.0
    %316 = vmatprep.subr.mxu0 0.0
    %317 = vmatpush1.msra.mxu0 0.0
    %318 = vmatprep.subr.mxu0 0.0
    %319 = vmatpush1.msra.mxu0 0.0
    %320 = vmatprep.subr.mxu0 0.0
    %321 = vmatpush1.msra.mxu0 0.0
    %322 = vmatprep.subr.mxu0 0.0
    %323 = vmatpush1.msra.mxu0 0.0
    %324 = vmatprep.subr.mxu0 0.0
    %325 = vmatpush1.msra.mxu0 0.0
    %326 = vmatprep.subr.mxu0 0.0
    %327 = vmatpush1.msra.mxu0 0.0
    %328 = vmatprep.subr.mxu0 0.0
    %329 = vmatpush1.msra.mxu0 0.0
    %330 = vmatprep.subr.mxu0 0.0
    %331 = vmatpush1.msra.mxu0 0.0
    %332 = vmatprep.subr.mxu0 0.0
    %333 = vmatpush1.msra.mxu0 0.0
    %334 = vmatprep.subr.mxu0 0.0
    %335 = vmatpush1.msra.mxu0 0.0
    %336 = vmatprep.subr.mxu0 0.0
    %337 = vmatpush1.msra.mxu0 0.0
    %338 = vmatprep.subr.mxu0 0.0
    %339 = vmatpush1.msra.mxu0 0.0
    %340 = vmatprep.subr.mxu0 0.0
    %341 = vmatpush1.msra.mxu0 0.0
    %342 = vmatprep.subr.mxu0 0.0
    %343 = vmatpush1.msra.mxu0 0.0
    %344 = vmatprep.subr.mxu0 0.0
    %345 = vmatpush1.msra.mxu0 0.0
    %346 = vmatprep.subr.mxu0 0.0
    %347 = vmatpush1.msra.mxu0 0.0
    %348 = vmatprep.subr.mxu0 0.0
    %349 = vmatpush1.msra.mxu0 0.0
    %350 = vmatprep.subr.mxu0 0.0
    %351 = vmatpush1.msra.mxu0 0.0
    %352 = vmatprep.subr.mxu0 0.0
    %353 = vmatpush1.msra.mxu0 0.0
    %354 = vmatprep.subr.mxu0 0.0
    %355 = vmatpush1.msra.mxu0 0.0
    %356 = vmatprep.subr.mxu0 0.0
    %357 = vmatpush1.msra.mxu0 0.0
    %358 = vmatprep.subr.mxu0 0.0
    %359 = vmatpush1.msra.mxu0 0.0
    %360 = vmatprep.subr.mxu0 0.0
    %361 = vmatpush1.msra.mxu0 0.0
    %362 = vmatprep.subr.mxu0 0.0
    %363 = vmatpush1.msra.mxu0 0.0
    %364 = vmatprep.subr.mxu0 0.0
    %365 = vmatpush1.msra.mxu0 0.0
    %366 = vmatprep.mubr.f32.mxu0 0.0
    %367 = vmatmul.mubr.f32.gmra.mrb[0].mxu0 %v291
    %v368 = vpop.f32.mrb[0].mxu0
    %v369 = vadd.f32 0.0, %v368
    %v370 = vpop.f32.mrb[0].mxu0
    %371 = vmatprep.mubr.f32.mxu0 0.0
    %372 = vmatmul.mubr.f32.gmra.mrb[0].mxu0 %v293
    %v373 = vpop.f32.mrb[0].mxu0
    %v374 = vadd.f32 0.0, %v373
    %v375 = vpop.f32.mrb[0].mxu0
    %376 = vmatprep.mubr.f32.mxu0 0.0
    %377 = vmatmul.mubr.f32.gmra.mrb[0].mxu0 %v295
    %v378 = vpop.f32.mrb[0].mxu0
    %v379 = vadd.f32 0.0, %v378
    %v380 = vpop.f32.mrb[0].mxu0
    %381 = vmatprep.mubr.f32.mxu0 0.0
    %382 = vmatmul.mubr.f32.gmra.mrb[0].mxu0 %v297
    %v383 = vpop.f32.mrb[0].mxu0
    %v384 = vadd.f32 0.0, %v383
    %v385 = vpop.f32.mrb[0].mxu0
    %386 = vdwg.mxu0
    %v387 = vadd.f32 %v260, %v369
    %v388 = vadd.f32 %v265, %v374
    %v389 = vadd.f32 %v270, %v379
    %v390 = vadd.f32 %v275, %v384
    %s391 = scalar_lea.vmem %s1, 32
    %v392 = vld [vmem:[%s391] sm:$0xff]
    %v393 = vld [vmem:[%s391 + $0x8] sm:$0xff]
    %v394 = vld [vmem:[%s391 + $0x10] sm:$0xff]
    %v395 = vld [vmem:[%s391 + $0x18] sm:$0xf]
    %s396 = scalar_lea.vmem %s1, 96
    %v397 = vld [vmem:[%s396] sm:$0xff]
    %v398 = vld [vmem:[%s396 + $0x8] sm:$0xff]
    %v399 = vld [vmem:[%s396 + $0x10] sm:$0xff]
    %v400 = vld [vmem:[%s396 + $0x18] sm:$0xf]
    %v402 = vsel %vm93, %v400, 0
    %404 = vmatprep.subr.mxu0 0.0
    %405 = vmatpush1.msra.mxu0 %v397
    %406 = vmatprep.subr.mxu0 0.0
    %407 = vmatpush1.msra.mxu0 %v398
    %408 = vmatprep.subr.mxu0 0.0
    %409 = vmatpush1.msra.mxu0 %v399
    %410 = vmatprep.subr.mxu0 0.0
    %411 = vmatpush1.msra.mxu0 %v402
    %412 = vmatprep.subr.mxu0 0.0
    %413 = vmatpush1.msra.mxu0 0.0
    %414 = vmatprep.subr.mxu0 0.0
    %415 = vmatpush1.msra.mxu0 0.0
    %416 = vmatprep.subr.mxu0 0.0
    %417 = vmatpush1.msra.mxu0 0.0
    %418 = vmatprep.subr.mxu0 0.0
    %419 = vmatpush1.msra.mxu0 0.0
    %420 = vmatprep.subr.mxu0 0.0
    %421 = vmatpush1.msra.mxu0 0.0
    %422 = vmatprep.subr.mxu0 0.0
    %423 = vmatpush1.msra.mxu0 0.0
    %424 = vmatprep.subr.mxu0 0.0
    %425 = vmatpush1.msra.mxu0 0.0
    %426 = vmatprep.subr.mxu0 0.0
    %427 = vmatpush1.msra.mxu0 0.0
    %428 = vmatprep.subr.mxu0 0.0
    %429 = vmatpush1.msra.mxu0 0.0
    %430 = vmatprep.subr.mxu0 0.0
    %431 = vmatpush1.msra.mxu0 0.0
    %432 = vmatprep.subr.mxu0 0.0
    %433 = vmatpush1.msra.mxu0 0.0
    %434 = vmatprep.subr.mxu0 0.0
    %435 = vmatpush1.msra.mxu0 0.0
    %436 = vmatprep.subr.mxu0 0.0
    %437 = vmatpush1.msra.mxu0 0.0
    %438 = vmatprep.subr.mxu0 0.0
    %439 = vmatpush1.msra.mxu0 0.0
    %440 = vmatprep.subr.mxu0 0.0
    %441 = vmatpush1.msra.mxu0 0.0
    %442 = vmatprep.subr.mxu0 0.0
    %443 = vmatpush1.msra.mxu0 0.0
    %444 = vmatprep.subr.mxu0 0.0
    %445 = vmatpush1.msra.mxu0 0.0
    %446 = vmatprep.subr.mxu0 0.0
    %447 = vmatpush1.msra.mxu0 0.0
    %448 = vmatprep.subr.mxu0 0.0
    %449 = vmatpush1.msra.mxu0 0.0
    %450 = vmatprep.subr.mxu0 0.0
    %451 = vmatpush1.msra.mxu0 0.0
    %452 = vmatprep.subr.mxu0 0.0
    %453 = vmatpush1.msra.mxu0 0.0
    %454 = vmatprep.subr.mxu0 0.0
    %455 = vmatpush1.msra.mxu0 0.0
    %456 = vmatprep.subr.mxu0 0.0
    %457 = vmatpush1.msra.mxu0 0.0
    %458 = vmatprep.subr.mxu0 0.0
    %459 = vmatpush1.msra.mxu0 0.0
    %460 = vmatprep.subr.mxu0 0.0
    %461 = vmatpush1.msra.mxu0 0.0
    %462 = vmatprep.subr.mxu0 0.0
    %463 = vmatpush1.msra.mxu0 0.0
    %464 = vmatprep.subr.mxu0 0.0
    %465 = vmatpush1.msra.mxu0 0.0
    %466 = vmatprep.subr.mxu0 0.0
    %467 = vmatpush1.msra.mxu0 0.0
    %468 = vmatprep.mubr.f32.mxu0 0.0
    %469 = vmatmul.mubr.f32.gmra.mrb[0].mxu0 %v85
    %v470 = vpop.f32.mrb[0].mxu0
    %v471 = vadd.f32 0.0, %v470
    %v472 = vpop.f32.mrb[0].mxu0
    %473 = vmatprep.mubr.f32.mxu0 0.0
    %474 = vmatmul.mubr.f32.gmra.mrb[0].mxu0 %v87
    %v475 = vpop.f32.mrb[0].mxu0
    %v476 = vadd.f32 0.0, %v475
    %v477 = vpop.f32.mrb[0].mxu0
    %478 = vmatprep.mubr.f32.mxu0 0.0
    %479 = vmatmul.mubr.f32.gmra.mrb[0].mxu0 %v89
    %v480 = vpop.f32.mrb[0].mxu0
    %v481 = vadd.f32 0.0, %v480
    %v482 = vpop.f32.mrb[0].mxu0
    %483 = vmatprep.mubr.f32.mxu0 0.0
    %484 = vmatmul.mubr.f32.gmra.mrb[0].mxu0 %v91
    %v485 = vpop.f32.mrb[0].mxu0
    %v486 = vadd.f32 0.0, %v485
    %v487 = vpop.f32.mrb[0].mxu0
    %488 = vdwg.mxu0
    %v490 = vsel %vm93, %v395, 0
    %492 = vmatprep.subr.mxu0 0.0
    %493 = vmatpush1.msra.mxu0 %v392
    %494 = vmatprep.subr.mxu0 0.0
    %495 = vmatpush1.msra.mxu0 %v393
    %496 = vmatprep.subr.mxu0 0.0
    %497 = vmatpush1.msra.mxu0 %v394
    %498 = vmatprep.subr.mxu0 0.0
    %499 = vmatpush1.msra.mxu0 %v490
    %500 = vmatprep.subr.mxu0 0.0
    %501 = vmatpush1.msra.mxu0 0.0
    %502 = vmatprep.subr.mxu0 0.0
    %503 = vmatpush1.msra.mxu0 0.0
    %504 = vmatprep.subr.mxu0 0.0
    %505 = vmatpush1.msra.mxu0 0.0
    %506 = vmatprep.subr.mxu0 0.0
    %507 = vmatpush1.msra.mxu0 0.0
    %508 = vmatprep.subr.mxu0 0.0
    %509 = vmatpush1.msra.mxu0 0.0
    %510 = vmatprep.subr.mxu0 0.0
    %511 = vmatpush1.msra.mxu0 0.0
    %512 = vmatprep.subr.mxu0 0.0
    %513 = vmatpush1.msra.mxu0 0.0
    %514 = vmatprep.subr.mxu0 0.0
    %515 = vmatpush1.msra.mxu0 0.0
    %516 = vmatprep.subr.mxu0 0.0
    %517 = vmatpush1.msra.mxu0 0.0
    %518 = vmatprep.subr.mxu0 0.0
    %519 = vmatpush1.msra.mxu0 0.0
    %520 = vmatprep.subr.mxu0 0.0
    %521 = vmatpush1.msra.mxu0 0.0
    %522 = vmatprep.subr.mxu0 0.0
    %523 = vmatpush1.msra.mxu0 0.0
    %524 = vmatprep.subr.mxu0 0.0
    %525 = vmatpush1.msra.mxu0 0.0
    %526 = vmatprep.subr.mxu0 0.0
    %527 = vmatpush1.msra.mxu0 0.0
    %528 = vmatprep.subr.mxu0 0.0
    %529 = vmatpush1.msra.mxu0 0.0
    %530 = vmatprep.subr.mxu0 0.0
    %531 = vmatpush1.msra.mxu0 0.0
    %532 = vmatprep.subr.mxu0 0.0
    %533 = vmatpush1.msra.mxu0 0.0
    %534 = vmatprep.subr.mxu0 0.0
    %535 = vmatpush1.msra.mxu0 0.0
    %536 = vmatprep.subr.mxu0 0.0
    %537 = vmatpush1.msra.mxu0 0.0
    %538 = vmatprep.subr.mxu0 0.0
    %539 = vmatpush1.msra.mxu0 0.0
    %540 = vmatprep.subr.mxu0 0.0
    %541 = vmatpush1.msra.mxu0 0.0
    %542 = vmatprep.subr.mxu0 0.0
    %543 = vmatpush1.msra.mxu0 0.0
    %544 = vmatprep.subr.mxu0 0.0
    %545 = vmatpush1.msra.mxu0 0.0
    %546 = vmatprep.subr.mxu0 0.0
    %547 = vmatpush1.msra.mxu0 0.0
    %548 = vmatprep.subr.mxu0 0.0
    %549 = vmatpush1.msra.mxu0 0.0
    %550 = vmatprep.subr.mxu0 0.0
    %551 = vmatpush1.msra.mxu0 0.0
    %552 = vmatprep.subr.mxu0 0.0
    %553 = vmatpush1.msra.mxu0 0.0
    %554 = vmatprep.subr.mxu0 0.0
    %555 = vmatpush1.msra.mxu0 0.0
    %556 = vmatprep.mubr.f32.mxu0 0.0
    %557 = vmatmul.mubr.f32.gmra.mrb[0].mxu0 %v182
    %v558 = vpop.f32.mrb[0].mxu0
    %v559 = vadd.f32 %v471, %v558
    %v560 = vpop.f32.mrb[0].mxu0
    %561 = vmatprep.mubr.f32.mxu0 0.0
    %562 = vmatmul.mubr.f32.gmra.mrb[0].mxu0 %v184
    %v563 = vpop.f32.mrb[0].mxu0
    %v564 = vadd.f32 %v476, %v563
    %v565 = vpop.f32.mrb[0].mxu0
    %566 = vmatprep.mubr.f32.mxu0 0.0
    %567 = vmatmul.mubr.f32.gmra.mrb[0].mxu0 %v186
    %v568 = vpop.f32.mrb[0].mxu0
    %v569 = vadd.f32 %v481, %v568
    %v570 = vpop.f32.mrb[0].mxu0
    %571 = vmatprep.mubr.f32.mxu0 0.0
    %572 = vmatmul.mubr.f32.gmra.mrb[0].mxu0 %v188
    %v573 = vpop.f32.mrb[0].mxu0
    %v574 = vadd.f32 %v486, %v573
    %v575 = vpop.f32.mrb[0].mxu0
    %576 = vdwg.mxu0
    %s577 = scalar_lea.vmem %s1, 160
    %v578 = vld [vmem:[%s577] sm:$0xff]
    %v579 = vld [vmem:[%s577 + $0x8] sm:$0xff]
    %v580 = vld [vmem:[%s577 + $0x10] sm:$0xff]
    %v581 = vld [vmem:[%s577 + $0x18] sm:$0xf]
    %v583 = vsel %vm93, %v581, 0
    %585 = vmatprep.subr.mxu0 0.0
    %586 = vmatpush1.msra.mxu0 %v578
    %587 = vmatprep.subr.mxu0 0.0
    %588 = vmatpush1.msra.mxu0 %v579
    %589 = vmatprep.subr.mxu0 0.0
    %590 = vmatpush1.msra.mxu0 %v580
    %591 = vmatprep.subr.mxu0 0.0
    %592 = vmatpush1.msra.mxu0 %v583
    %593 = vmatprep.subr.mxu0 0.0
    %594 = vmatpush1.msra.mxu0 0.0
    %595 = vmatprep.subr.mxu0 0.0
    %596 = vmatpush1.msra.mxu0 0.0
    %597 = vmatprep.subr.mxu0 0.0
    %598 = vmatpush1.msra.mxu0 0.0
    %599 = vmatprep.subr.mxu0 0.0
    %600 = vmatpush1.msra.mxu0 0.0
    %601 = vmatprep.subr.mxu0 0.0
    %602 = vmatpush1.msra.mxu0 0.0
    %603 = vmatprep.subr.mxu0 0.0
    %604 = vmatpush1.msra.mxu0 0.0
    %605 = vmatprep.subr.mxu0 0.0
    %606 = vmatpush1.msra.mxu0 0.0
    %607 = vmatprep.subr.mxu0 0.0
    %608 = vmatpush1.msra.mxu0 0.0
    %609 = vmatprep.subr.mxu0 0.0
    %610 = vmatpush1.msra.mxu0 0.0
    %611 = vmatprep.subr.mxu0 0.0
    %612 = vmatpush1.msra.mxu0 0.0
    %613 = vmatprep.subr.mxu0 0.0
    %614 = vmatpush1.msra.mxu0 0.0
    %615 = vmatprep.subr.mxu0 0.0
    %616 = vmatpush1.msra.mxu0 0.0
    %617 = vmatprep.subr.mxu0 0.0
    %618 = vmatpush1.msra.mxu0 0.0
    %619 = vmatprep.subr.mxu0 0.0
    %620 = vmatpush1.msra.mxu0 0.0
    %621 = vmatprep.subr.mxu0 0.0
    %622 = vmatpush1.msra.mxu0 0.0
    %623 = vmatprep.subr.mxu0 0.0
    %624 = vmatpush1.msra.mxu0 0.0
    %625 = vmatprep.subr.mxu0 0.0
    %626 = vmatpush1.msra.mxu0 0.0
    %627 = vmatprep.subr.mxu0 0.0
    %628 = vmatpush1.msra.mxu0 0.0
    %629 = vmatprep.subr.mxu0 0.0
    %630 = vmatpush1.msra.mxu0 0.0
    %631 = vmatprep.subr.mxu0 0.0
    %632 = vmatpush1.msra.mxu0 0.0
    %633 = vmatprep.subr.mxu0 0.0
    %634 = vmatpush1.msra.mxu0 0.0
    %635 = vmatprep.subr.mxu0 0.0
    %636 = vmatpush1.msra.mxu0 0.0
    %637 = vmatprep.subr.mxu0 0.0
    %638 = vmatpush1.msra.mxu0 0.0
    %639 = vmatprep.subr.mxu0 0.0
    %640 = vmatpush1.msra.mxu0 0.0
    %641 = vmatprep.subr.mxu0 0.0
    %642 = vmatpush1.msra.mxu0 0.0
    %643 = vmatprep.subr.mxu0 0.0
    %644 = vmatpush1.msra.mxu0 0.0
    %645 = vmatprep.subr.mxu0 0.0
    %646 = vmatpush1.msra.mxu0 0.0
    %647 = vmatprep.subr.mxu0 0.0
    %648 = vmatpush1.msra.mxu0 0.0
    %649 = vmatprep.mubr.f32.mxu0 0.0
    %650 = vmatmul.mubr.f32.gmra.mrb[0].mxu0 %v291
    %v651 = vpop.f32.mrb[0].mxu0
    %v652 = vadd.f32 0.0, %v651
    %v653 = vpop.f32.mrb[0].mxu0
    %654 = vmatprep.mubr.f32.mxu0 0.0
    %655 = vmatmul.mubr.f32.gmra.mrb[0].mxu0 %v293
    %v656 = vpop.f32.mrb[0].mxu0
    %v657 = vadd.f32 0.0, %v656
    %v658 = vpop.f32.mrb[0].mxu0
    %659 = vmatprep.mubr.f32.mxu0 0.0
    %660 = vmatmul.mubr.f32.gmra.mrb[0].mxu0 %v295
    %v661 = vpop.f32.mrb[0].mxu0
    %v662 = vadd.f32 0.0, %v661
    %v663 = vpop.f32.mrb[0].mxu0
    %664 = vmatprep.mubr.f32.mxu0 0.0
    %665 = vmatmul.mubr.f32.gmra.mrb[0].mxu0 %v297
    %v666 = vpop.f32.mrb[0].mxu0
    %v667 = vadd.f32 0.0, %v666
    %v668 = vpop.f32.mrb[0].mxu0
    %669 = vdwg.mxu0
    %v670 = vadd.f32 %v559, %v652
    %v671 = vadd.f32 %v564, %v657
    %v672 = vadd.f32 %v569, %v662
    %v673 = vadd.f32 %v574, %v667
    %v674 = vld [vmem:[%s2] sm:$0xff]
    %v675 = vld [vmem:[%s2 + $0x8] sm:$0x1f]
    %vm676 = vcmask 211968
    %v678 = vsel %vm676, %v674, 0
    %v681 = vsel %vm676, %v675, 0
    %vm683 = vcmask 1041408
    %v685 = vsel %vm683, %v390, 0
    %687 = vmatprep.subr.mxu0 0.0
    %688 = vmatpush1.msra.mxu0 %v387
    %689 = vmatprep.subr.mxu0 0.0
    %690 = vmatpush1.msra.mxu0 %v388
    %691 = vmatprep.subr.mxu0 0.0
    %692 = vmatpush1.msra.mxu0 %v389
    %693 = vmatprep.subr.mxu0 0.0
    %694 = vmatpush1.msra.mxu0 %v685
    %695 = vmatprep.subr.mxu0 0.0
    %696 = vmatpush1.msra.mxu0 0.0
    %697 = vmatprep.subr.mxu0 0.0
    %698 = vmatpush1.msra.mxu0 0.0
    %699 = vmatprep.subr.mxu0 0.0
    %700 = vmatpush1.msra.mxu0 0.0
    %701 = vmatprep.subr.mxu0 0.0
    %702 = vmatpush1.msra.mxu0 0.0
    %703 = vmatprep.subr.mxu0 0.0
    %704 = vmatpush1.msra.mxu0 0.0
    %705 = vmatprep.subr.mxu0 0.0
    %706 = vmatpush1.msra.mxu0 0.0
    %707 = vmatprep.subr.mxu0 0.0
    %708 = vmatpush1.msra.mxu0 0.0
    %709 = vmatprep.subr.mxu0 0.0
    %710 = vmatpush1.msra.mxu0 0.0
    %711 = vmatprep.subr.mxu0 0.0
    %712 = vmatpush1.msra.mxu0 0.0
    %713 = vmatprep.subr.mxu0 0.0
    %714 = vmatpush1.msra.mxu0 0.0
    %715 = vmatprep.subr.mxu0 0.0
    %716 = vmatpush1.msra.mxu0 0.0
    %717 = vmatprep.subr.mxu0 0.0
    %718 = vmatpush1.msra.mxu0 0.0
    %719 = vmatprep.subr.mxu0 0.0
    %720 = vmatpush1.msra.mxu0 0.0
    %721 = vmatprep.subr.mxu0 0.0
    %722 = vmatpush1.msra.mxu0 0.0
    %723 = vmatprep.subr.mxu0 0.0
    %724 = vmatpush1.msra.mxu0 0.0
    %725 = vmatprep.subr.mxu0 0.0
    %726 = vmatpush1.msra.mxu0 0.0
    %727 = vmatprep.subr.mxu0 0.0
    %728 = vmatpush1.msra.mxu0 0.0
    %729 = vmatprep.subr.mxu0 0.0
    %730 = vmatpush1.msra.mxu0 0.0
    %731 = vmatprep.subr.mxu0 0.0
    %732 = vmatpush1.msra.mxu0 0.0
    %733 = vmatprep.subr.mxu0 0.0
    %734 = vmatpush1.msra.mxu0 0.0
    %735 = vmatprep.subr.mxu0 0.0
    %736 = vmatpush1.msra.mxu0 0.0
    %737 = vmatprep.subr.mxu0 0.0
    %738 = vmatpush1.msra.mxu0 0.0
    %739 = vmatprep.subr.mxu0 0.0
    %740 = vmatpush1.msra.mxu0 0.0
    %741 = vmatprep.subr.mxu0 0.0
    %742 = vmatpush1.msra.mxu0 0.0
    %743 = vmatprep.subr.mxu0 0.0
    %744 = vmatpush1.msra.mxu0 0.0
    %745 = vmatprep.subr.mxu0 0.0
    %746 = vmatpush1.msra.mxu0 0.0
    %747 = vmatprep.subr.mxu0 0.0
    %748 = vmatpush1.msra.mxu0 0.0
    %749 = vmatprep.subr.mxu0 0.0
    %750 = vmatpush1.msra.mxu0 0.0
    %751 = vmatprep.mubr.f32.mxu0 0.0
    %752 = vmatmul.mubr.f32.gmra.mrb[0].mxu0 %v678
    %v753 = vpop.f32.mrb[0].mxu0
    %v754 = vadd.f32 0.0, %v753
    %v755 = vpop.f32.mrb[0].mxu0
    %756 = vmatprep.mubr.f32.mxu0 0.0
    %757 = vmatmul.mubr.f32.gmra.mrb[0].mxu0 %v681
    %v758 = vpop.f32.mrb[0].mxu0
    %v759 = vadd.f32 0.0, %v758
    %v760 = vpop.f32.mrb[0].mxu0
    %761 = vdwg.mxu0
    %v763 = vsel %vm683, %v673, 0
    %765 = vmatprep.subr.mxu0 0.0
    %766 = vmatpush1.msra.mxu0 %v670
    %767 = vmatprep.subr.mxu0 0.0
    %768 = vmatpush1.msra.mxu0 %v671
    %769 = vmatprep.subr.mxu0 0.0
    %770 = vmatpush1.msra.mxu0 %v672
    %771 = vmatprep.subr.mxu0 0.0
    %772 = vmatpush1.msra.mxu0 %v763
    %773 = vmatprep.subr.mxu0 0.0
    %774 = vmatpush1.msra.mxu0 0.0
    %775 = vmatprep.subr.mxu0 0.0
    %776 = vmatpush1.msra.mxu0 0.0
    %777 = vmatprep.subr.mxu0 0.0
    %778 = vmatpush1.msra.mxu0 0.0
    %779 = vmatprep.subr.mxu0 0.0
    %780 = vmatpush1.msra.mxu0 0.0
    %781 = vmatprep.subr.mxu0 0.0
    %782 = vmatpush1.msra.mxu0 0.0
    %783 = vmatprep.subr.mxu0 0.0
    %784 = vmatpush1.msra.mxu0 0.0
    %785 = vmatprep.subr.mxu0 0.0
    %786 = vmatpush1.msra.mxu0 0.0
    %787 = vmatprep.subr.mxu0 0.0
    %788 = vmatpush1.msra.mxu0 0.0
    %789 = vmatprep.subr.mxu0 0.0
    %790 = vmatpush1.msra.mxu0 0.0
    %791 = vmatprep.subr.mxu0 0.0
    %792 = vmatpush1.msra.mxu0 0.0
    %793 = vmatprep.subr.mxu0 0.0
    %794 = vmatpush1.msra.mxu0 0.0
    %795 = vmatprep.subr.mxu0 0.0
    %796 = vmatpush1.msra.mxu0 0.0
    %797 = vmatprep.subr.mxu0 0.0
    %798 = vmatpush1.msra.mxu0 0.0
    %799 = vmatprep.subr.mxu0 0.0
    %800 = vmatpush1.msra.mxu0 0.0
    %801 = vmatprep.subr.mxu0 0.0
    %802 = vmatpush1.msra.mxu0 0.0
    %803 = vmatprep.subr.mxu0 0.0
    %804 = vmatpush1.msra.mxu0 0.0
    %805 = vmatprep.subr.mxu0 0.0
    %806 = vmatpush1.msra.mxu0 0.0
    %807 = vmatprep.subr.mxu0 0.0
    %808 = vmatpush1.msra.mxu0 0.0
    %809 = vmatprep.subr.mxu0 0.0
    %810 = vmatpush1.msra.mxu0 0.0
    %811 = vmatprep.subr.mxu0 0.0
    %812 = vmatpush1.msra.mxu0 0.0
    %813 = vmatprep.subr.mxu0 0.0
    %814 = vmatpush1.msra.mxu0 0.0
    %815 = vmatprep.subr.mxu0 0.0
    %816 = vmatpush1.msra.mxu0 0.0
    %817 = vmatprep.subr.mxu0 0.0
    %818 = vmatpush1.msra.mxu0 0.0
    %819 = vmatprep.subr.mxu0 0.0
    %820 = vmatpush1.msra.mxu0 0.0
    %821 = vmatprep.subr.mxu0 0.0
    %822 = vmatpush1.msra.mxu0 0.0
    %823 = vmatprep.subr.mxu0 0.0
    %824 = vmatpush1.msra.mxu0 0.0
    %825 = vmatprep.subr.mxu0 0.0
    %826 = vmatpush1.msra.mxu0 0.0
    %827 = vmatprep.subr.mxu0 0.0
    %828 = vmatpush1.msra.mxu0 0.0
    %829 = vmatprep.mubr.f32.mxu0 0.0
    %830 = vmatmul.mubr.f32.gmra.mrb[0].mxu0 %v678
    %v831 = vpop.f32.mrb[0].mxu0
    %v832 = vadd.f32 0.0, %v831
    %v833 = vpop.f32.mrb[0].mxu0
    %834 = vmatprep.mubr.f32.mxu0 0.0
    %835 = vmatmul.mubr.f32.gmra.mrb[0].mxu0 %v681
    %v836 = vpop.f32.mrb[0].mxu0
    %v837 = vadd.f32 0.0, %v836
    %v838 = vpop.f32.mrb[0].mxu0
    %839 = vdwg.mxu0
    %s840 = scalar_lea.vmem %s2, 16
    %v841 = vld [vmem:[%s840] sm:$0xff]
    %v842 = vld [vmem:[%s840 + $0x8] sm:$0x1f]
    %v844 = vsel %vm676, %v841, 0
    %v847 = vsel %vm676, %v842, 0
    %849 = vmatprep.subr.mxu0 0.0
    %850 = vmatpush1.msra.mxu0 %v387
    %851 = vmatprep.subr.mxu0 0.0
    %852 = vmatpush1.msra.mxu0 %v388
    %853 = vmatprep.subr.mxu0 0.0
    %854 = vmatpush1.msra.mxu0 %v389
    %855 = vmatprep.subr.mxu0 0.0
    %856 = vmatpush1.msra.mxu0 %v685
    %857 = vmatprep.subr.mxu0 0.0
    %858 = vmatpush1.msra.mxu0 0.0
    %859 = vmatprep.subr.mxu0 0.0
    %860 = vmatpush1.msra.mxu0 0.0
    %861 = vmatprep.subr.mxu0 0.0
    %862 = vmatpush1.msra.mxu0 0.0
    %863 = vmatprep.subr.mxu0 0.0
    %864 = vmatpush1.msra.mxu0 0.0
    %865 = vmatprep.subr.mxu0 0.0
    %866 = vmatpush1.msra.mxu0 0.0
    %867 = vmatprep.subr.mxu0 0.0
    %868 = vmatpush1.msra.mxu0 0.0
    %869 = vmatprep.subr.mxu0 0.0
    %870 = vmatpush1.msra.mxu0 0.0
    %871 = vmatprep.subr.mxu0 0.0
    %872 = vmatpush1.msra.mxu0 0.0
    %873 = vmatprep.subr.mxu0 0.0
    %874 = vmatpush1.msra.mxu0 0.0
    %875 = vmatprep.subr.mxu0 0.0
    %876 = vmatpush1.msra.mxu0 0.0
    %877 = vmatprep.subr.mxu0 0.0
    %878 = vmatpush1.msra.mxu0 0.0
    %879 = vmatprep.subr.mxu0 0.0
    %880 = vmatpush1.msra.mxu0 0.0
    %881 = vmatprep.subr.mxu0 0.0
    %882 = vmatpush1.msra.mxu0 0.0
    %883 = vmatprep.subr.mxu0 0.0
    %884 = vmatpush1.msra.mxu0 0.0
    %885 = vmatprep.subr.mxu0 0.0
    %886 = vmatpush1.msra.mxu0 0.0
    %887 = vmatprep.subr.mxu0 0.0
    %888 = vmatpush1.msra.mxu0 0.0
    %889 = vmatprep.subr.mxu0 0.0
    %890 = vmatpush1.msra.mxu0 0.0
    %891 = vmatprep.subr.mxu0 0.0
    %892 = vmatpush1.msra.mxu0 0.0
    %893 = vmatprep.subr.mxu0 0.0
    %894 = vmatpush1.msra.mxu0 0.0
    %895 = vmatprep.subr.mxu0 0.0
    %896 = vmatpush1.msra.mxu0 0.0
    %897 = vmatprep.subr.mxu0 0.0
    %898 = vmatpush1.msra.mxu0 0.0
    %899 = vmatprep.subr.mxu0 0.0
    %900 = vmatpush1.msra.mxu0 0.0
    %901 = vmatprep.subr.mxu0 0.0
    %902 = vmatpush1.msra.mxu0 0.0
    %903 = vmatprep.subr.mxu0 0.0
    %904 = vmatpush1.msra.mxu0 0.0
    %905 = vmatprep.subr.mxu0 0.0
    %906 = vmatpush1.msra.mxu0 0.0
    %907 = vmatprep.subr.mxu0 0.0
    %908 = vmatpush1.msra.mxu0 0.0
    %909 = vmatprep.subr.mxu0 0.0
    %910 = vmatpush1.msra.mxu0 0.0
    %911 = vmatprep.subr.mxu0 0.0
    %912 = vmatpush1.msra.mxu0 0.0
    %913 = vmatprep.mubr.f32.mxu0 0.0
    %914 = vmatmul.mubr.f32.gmra.mrb[0].mxu0 %v844
    %v915 = vpop.f32.mrb[0].mxu0
    %v916 = vadd.f32 0.0, %v915
    %v917 = vpop.f32.mrb[0].mxu0
    %918 = vmatprep.mubr.f32.mxu0 0.0
    %919 = vmatmul.mubr.f32.gmra.mrb[0].mxu0 %v847
    %v920 = vpop.f32.mrb[0].mxu0
    %v921 = vadd.f32 0.0, %v920
    %v922 = vpop.f32.mrb[0].mxu0
    %923 = vdwg.mxu0
    %924 = vmatprep.subr.mxu0 0.0
    %925 = vmatpush1.msra.mxu0 %v670
    %926 = vmatprep.subr.mxu0 0.0
    %927 = vmatpush1.msra.mxu0 %v671
    %928 = vmatprep.subr.mxu0 0.0
    %929 = vmatpush1.msra.mxu0 %v672
    %930 = vmatprep.subr.mxu0 0.0
    %931 = vmatpush1.msra.mxu0 %v763
    %932 = vmatprep.subr.mxu0 0.0
    %933 = vmatpush1.msra.mxu0 0.0
    %934 = vmatprep.subr.mxu0 0.0
    %935 = vmatpush1.msra.mxu0 0.0
    %936 = vmatprep.subr.mxu0 0.0
    %937 = vmatpush1.msra.mxu0 0.0
    %938 = vmatprep.subr.mxu0 0.0
    %939 = vmatpush1.msra.mxu0 0.0
    %940 = vmatprep.subr.mxu0 0.0
    %941 = vmatpush1.msra.mxu0 0.0
    %942 = vmatprep.subr.mxu0 0.0
    %943 = vmatpush1.msra.mxu0 0.0
    %944 = vmatprep.subr.mxu0 0.0
    %945 = vmatpush1.msra.mxu0 0.0
    %946 = vmatprep.subr.mxu0 0.0
    %947 = vmatpush1.msra.mxu0 0.0
    %948 = vmatprep.subr.mxu0 0.0
    %949 = vmatpush1.msra.mxu0 0.0
    %950 = vmatprep.subr.mxu0 0.0
    %951 = vmatpush1.msra.mxu0 0.0
    %952 = vmatprep.subr.mxu0 0.0
    %953 = vmatpush1.msra.mxu0 0.0
    %954 = vmatprep.subr.mxu0 0.0
    %955 = vmatpush1.msra.mxu0 0.0
    %956 = vmatprep.subr.mxu0 0.0
    %957 = vmatpush1.msra.mxu0 0.0
    %958 = vmatprep.subr.mxu0 0.0
    %959 = vmatpush1.msra.mxu0 0.0
    %960 = vmatprep.subr.mxu0 0.0
    %961 = vmatpush1.msra.mxu0 0.0
    %962 = vmatprep.subr.mxu0 0.0
    %963 = vmatpush1.msra.mxu0 0.0
    %964 = vmatprep.subr.mxu0 0.0
    %965 = vmatpush1.msra.mxu0 0.0
    %966 = vmatprep.subr.mxu0 0.0
    %967 = vmatpush1.msra.mxu0 0.0
    %968 = vmatprep.subr.mxu0 0.0
    %969 = vmatpush1.msra.mxu0 0.0
    %970 = vmatprep.subr.mxu0 0.0
    %971 = vmatpush1.msra.mxu0 0.0
    %972 = vmatprep.subr.mxu0 0.0
    %973 = vmatpush1.msra.mxu0 0.0
    %974 = vmatprep.subr.mxu0 0.0
    %975 = vmatpush1.msra.mxu0 0.0
    %976 = vmatprep.subr.mxu0 0.0
    %977 = vmatpush1.msra.mxu0 0.0
    %978 = vmatprep.subr.mxu0 0.0
    %979 = vmatpush1.msra.mxu0 0.0
    %980 = vmatprep.subr.mxu0 0.0
    %981 = vmatpush1.msra.mxu0 0.0
    %982 = vmatprep.subr.mxu0 0.0
    %983 = vmatpush1.msra.mxu0 0.0
    %984 = vmatprep.subr.mxu0 0.0
    %985 = vmatpush1.msra.mxu0 0.0
    %986 = vmatprep.subr.mxu0 0.0
    %987 = vmatpush1.msra.mxu0 0.0
    %988 = vmatprep.mubr.f32.mxu0 0.0
    %989 = vmatmul.mubr.f32.gmra.mrb[0].mxu0 %v844
    %v990 = vpop.f32.mrb[0].mxu0
    %v991 = vadd.f32 0.0, %v990
    %v992 = vpop.f32.mrb[0].mxu0
    %993 = vmatprep.mubr.f32.mxu0 0.0
    %994 = vmatmul.mubr.f32.gmra.mrb[0].mxu0 %v847
    %v995 = vpop.f32.mrb[0].mxu0
    %v996 = vadd.f32 0.0, %v995
    %v997 = vpop.f32.mrb[0].mxu0
    %998 = vdwg.mxu0
    %v999 = vmax.f32 %v754, %v832
    %v1000 = vmax.f32 %v759, %v837
    %v1001 = vmax.f32 %v916, %v991
    %v1002 = vmax.f32 %v921, %v996
    %v1003 = vmax.f32 %v999, %v1001
    %v1004 = vmax.f32 %v1000, %v1002
    %v1005 = vld [vmem:[%s3] sm:$0x1]
    %v1007 = vlaneseq
    %v1008 = vshrl.u32 %v1007, 7
    %v1009 = vsub.s32 0, %v1008
    %v1010 = vrot.slane %v1005, %v1009
    %v1012 = vadd.f32 %v1003, %v1010
    %v1013 = vadd.f32 %v1004, %v1010
    %v1014 = vmax.f32 %v1012, 0.0
    %v1015 = vmax.f32 %v1013, 0.0
    %v1016 = vld [vmem:[%s4] sm:$0xff]
    %v1017 = vld [vmem:[%s4 + $0x8] sm:$0xff]
    %v1018 = vld [vmem:[%s4 + $0x10] sm:$0xff]
    %v1019 = vld [vmem:[%s4 + $0x18] sm:$0xff]
    %v1020 = vld [vmem:[%s4 + $0x20] sm:$0xff]
    %v1021 = vld [vmem:[%s4 + $0x28] sm:$0xff]
    %v1022 = vld [vmem:[%s4 + $0x30] sm:$0xff]
    %v1023 = vld [vmem:[%s4 + $0x38] sm:$0xff]
    %v1024 = vld [vmem:[%s4 + $0x40] sm:$0xff]
    %v1025 = vld [vmem:[%s4 + $0x48] sm:$0x3f]
    %s1026 = scalar_lea.vmem %s4, 160
    %v1027 = vld [vmem:[%s1026] sm:$0xff]
    %v1028 = vld [vmem:[%s1026 + $0x8] sm:$0xff]
    %v1029 = vld [vmem:[%s1026 + $0x10] sm:$0xff]
    %v1030 = vld [vmem:[%s1026 + $0x18] sm:$0xff]
    %v1031 = vld [vmem:[%s1026 + $0x20] sm:$0xff]
    %v1032 = vld [vmem:[%s1026 + $0x28] sm:$0xff]
    %v1033 = vld [vmem:[%s1026 + $0x30] sm:$0xff]
    %v1034 = vld [vmem:[%s1026 + $0x38] sm:$0xff]
    %v1035 = vld [vmem:[%s1026 + $0x40] sm:$0xff]
    %v1036 = vld [vmem:[%s1026 + $0x48] sm:$0x3f]
    %v1039 = vrot.slane %v1014, 1
    %v1040 = vrot.slane %v1015, 1
    %v1041 = vsel %vm76, %v1039, %v1040
    %vm1042 = vcmask 637952
    %v1043 = vsel %vm1042, %v1041, 0
    %v1045 = vsel %vm1042, %v1040, 0
    %v1048 = vsel %vm283, %v1036, 0
    %1050 = vmatprep.subr.mxu0 0.0
    %1051 = vmatpush1.msra.mxu0 %v1027
    %1052 = vmatprep.subr.mxu0 0.0
    %1053 = vmatpush1.msra.mxu0 %v1028
    %1054 = vmatprep.subr.mxu0 0.0
    %1055 = vmatpush1.msra.mxu0 %v1029
    %1056 = vmatprep.subr.mxu0 0.0
    %1057 = vmatpush1.msra.mxu0 %v1030
    %1058 = vmatprep.subr.mxu0 0.0
    %1059 = vmatpush1.msra.mxu0 %v1031
    %1060 = vmatprep.subr.mxu0 0.0
    %1061 = vmatpush1.msra.mxu0 %v1032
    %1062 = vmatprep.subr.mxu0 0.0
    %1063 = vmatpush1.msra.mxu0 %v1033
    %1064 = vmatprep.subr.mxu0 0.0
    %1065 = vmatpush1.msra.mxu0 %v1034
    %1066 = vmatprep.subr.mxu0 0.0
    %1067 = vmatpush1.msra.mxu0 %v1035
    %1068 = vmatprep.subr.mxu0 0.0
    %1069 = vmatpush1.msra.mxu0 %v1048
    %1070 = vmatprep.subr.mxu0 0.0
    %1071 = vmatpush1.msra.mxu0 0.0
    %1072 = vmatprep.subr.mxu0 0.0
    %1073 = vmatpush1.msra.mxu0 0.0
    %1074 = vmatprep.subr.mxu0 0.0
    %1075 = vmatpush1.msra.mxu0 0.0
    %1076 = vmatprep.subr.mxu0 0.0
    %1077 = vmatpush1.msra.mxu0 0.0
    %1078 = vmatprep.subr.mxu0 0.0
    %1079 = vmatpush1.msra.mxu0 0.0
    %1080 = vmatprep.subr.mxu0 0.0
    %1081 = vmatpush1.msra.mxu0 0.0
    %1082 = vmatprep.subr.mxu0 0.0
    %1083 = vmatpush1.msra.mxu0 0.0
    %1084 = vmatprep.subr.mxu0 0.0
    %1085 = vmatpush1.msra.mxu0 0.0
    %1086 = vmatprep.subr.mxu0 0.0
    %1087 = vmatpush1.msra.mxu0 0.0
    %1088 = vmatprep.subr.mxu0 0.0
    %1089 = vmatpush1.msra.mxu0 0.0
    %1090 = vmatprep.subr.mxu0 0.0
    %1091 = vmatpush1.msra.mxu0 0.0
    %1092 = vmatprep.subr.mxu0 0.0
    %1093 = vmatpush1.msra.mxu0 0.0
    %1094 = vmatprep.subr.mxu0 0.0
    %1095 = vmatpush1.msra.mxu0 0.0
    %1096 = vmatprep.subr.mxu0 0.0
    %1097 = vmatpush1.msra.mxu0 0.0
    %1098 = vmatprep.subr.mxu0 0.0
    %1099 = vmatpush1.msra.mxu0 0.0
    %1100 = vmatprep.subr.mxu0 0.0
    %1101 = vmatpush1.msra.mxu0 0.0
    %1102 = vmatprep.subr.mxu0 0.0
    %1103 = vmatpush1.msra.mxu0 0.0
    %1104 = vmatprep.subr.mxu0 0.0
    %1105 = vmatpush1.msra.mxu0 0.0
    %1106 = vmatprep.subr.mxu0 0.0
    %1107 = vmatpush1.msra.mxu0 0.0
    %1108 = vmatprep.subr.mxu0 0.0
    %1109 = vmatpush1.msra.mxu0 0.0
    %1110 = vmatprep.subr.mxu0 0.0
    %1111 = vmatpush1.msra.mxu0 0.0
    %1112 = vmatprep.subr.mxu0 0.0
    %1113 = vmatpush1.msra.mxu0 0.0
    %1114 = vmatprep.mubr.f32.mxu0 0.0
    %1115 = vmatmul.mubr.f32.gmra.mrb[0].mxu0 %v1043
    %v1116 = vpop.f32.mrb[0].mxu0
    %v1117 = vadd.f32 0.0, %v1116
    %v1118 = vpop.f32.mrb[0].mxu0
    %1119 = vmatprep.mubr.f32.mxu0 0.0
    %1120 = vmatmul.mubr.f32.gmra.mrb[0].mxu0 %v1045
    %v1121 = vpop.f32.mrb[0].mxu0
    %v1122 = vadd.f32 0.0, %v1121
    %v1123 = vpop.f32.mrb[0].mxu0
    %1124 = vdwg.mxu0
    %v1125 = vsel %vm1042, %v1014, 0
    %v1127 = vsel %vm1042, %v1015, 0
    %v1130 = vsel %vm283, %v1025, 0
    %1132 = vmatprep.subr.mxu0 0.0
    %1133 = vmatpush1.msra.mxu0 %v1016
    %1134 = vmatprep.subr.mxu0 0.0
    %1135 = vmatpush1.msra.mxu0 %v1017
    %1136 = vmatprep.subr.mxu0 0.0
    %1137 = vmatpush1.msra.mxu0 %v1018
    %1138 = vmatprep.subr.mxu0 0.0
    %1139 = vmatpush1.msra.mxu0 %v1019
    %1140 = vmatprep.subr.mxu0 0.0
    %1141 = vmatpush1.msra.mxu0 %v1020
    %1142 = vmatprep.subr.mxu0 0.0
    %1143 = vmatpush1.msra.mxu0 %v1021
    %1144 = vmatprep.subr.mxu0 0.0
    %1145 = vmatpush1.msra.mxu0 %v1022
    %1146 = vmatprep.subr.mxu0 0.0
    %1147 = vmatpush1.msra.mxu0 %v1023
    %1148 = vmatprep.subr.mxu0 0.0
    %1149 = vmatpush1.msra.mxu0 %v1024
    %1150 = vmatprep.subr.mxu0 0.0
    %1151 = vmatpush1.msra.mxu0 %v1130
    %1152 = vmatprep.subr.mxu0 0.0
    %1153 = vmatpush1.msra.mxu0 0.0
    %1154 = vmatprep.subr.mxu0 0.0
    %1155 = vmatpush1.msra.mxu0 0.0
    %1156 = vmatprep.subr.mxu0 0.0
    %1157 = vmatpush1.msra.mxu0 0.0
    %1158 = vmatprep.subr.mxu0 0.0
    %1159 = vmatpush1.msra.mxu0 0.0
    %1160 = vmatprep.subr.mxu0 0.0
    %1161 = vmatpush1.msra.mxu0 0.0
    %1162 = vmatprep.subr.mxu0 0.0
    %1163 = vmatpush1.msra.mxu0 0.0
    %1164 = vmatprep.subr.mxu0 0.0
    %1165 = vmatpush1.msra.mxu0 0.0
    %1166 = vmatprep.subr.mxu0 0.0
    %1167 = vmatpush1.msra.mxu0 0.0
    %1168 = vmatprep.subr.mxu0 0.0
    %1169 = vmatpush1.msra.mxu0 0.0
    %1170 = vmatprep.subr.mxu0 0.0
    %1171 = vmatpush1.msra.mxu0 0.0
    %1172 = vmatprep.subr.mxu0 0.0
    %1173 = vmatpush1.msra.mxu0 0.0
    %1174 = vmatprep.subr.mxu0 0.0
    %1175 = vmatpush1.msra.mxu0 0.0
    %1176 = vmatprep.subr.mxu0 0.0
    %1177 = vmatpush1.msra.mxu0 0.0
    %1178 = vmatprep.subr.mxu0 0.0
    %1179 = vmatpush1.msra.mxu0 0.0
    %1180 = vmatprep.subr.mxu0 0.0
    %1181 = vmatpush1.msra.mxu0 0.0
    %1182 = vmatprep.subr.mxu0 0.0
    %1183 = vmatpush1.msra.mxu0 0.0
    %1184 = vmatprep.subr.mxu0 0.0
    %1185 = vmatpush1.msra.mxu0 0.0
    %1186 = vmatprep.subr.mxu0 0.0
    %1187 = vmatpush1.msra.mxu0 0.0
    %1188 = vmatprep.subr.mxu0 0.0
    %1189 = vmatpush1.msra.mxu0 0.0
    %1190 = vmatprep.subr.mxu0 0.0
    %1191 = vmatpush1.msra.mxu0 0.0
    %1192 = vmatprep.subr.mxu0 0.0
    %1193 = vmatpush1.msra.mxu0 0.0
    %1194 = vmatprep.subr.mxu0 0.0
    %1195 = vmatpush1.msra.mxu0 0.0
    %1196 = vmatprep.mubr.f32.mxu0 0.0
    %1197 = vmatmul.mubr.f32.gmra.mrb[0].mxu0 %v1125
    %v1198 = vpop.f32.mrb[0].mxu0
    %v1199 = vadd.f32 %v1117, %v1198
    %v1200 = vpop.f32.mrb[0].mxu0
    %1201 = vmatprep.mubr.f32.mxu0 0.0
    %1202 = vmatmul.mubr.f32.gmra.mrb[0].mxu0 %v1127
    %v1203 = vpop.f32.mrb[0].mxu0
    %v1204 = vadd.f32 %v1122, %v1203
    %v1205 = vpop.f32.mrb[0].mxu0
    %1206 = vdwg.mxu0
    %s1207 = scalar_lea.vmem %s4, 320
    %v1208 = vld [vmem:[%s1207] sm:$0xff]
    %v1209 = vld [vmem:[%s1207 + $0x8] sm:$0xff]
    %v1210 = vld [vmem:[%s1207 + $0x10] sm:$0xff]
    %v1211 = vld [vmem:[%s1207 + $0x18] sm:$0xff]
    %v1212 = vld [vmem:[%s1207 + $0x20] sm:$0xff]
    %v1213 = vld [vmem:[%s1207 + $0x28] sm:$0xff]
    %v1214 = vld [vmem:[%s1207 + $0x30] sm:$0xff]
    %v1215 = vld [vmem:[%s1207 + $0x38] sm:$0xff]
    %v1216 = vld [vmem:[%s1207 + $0x40] sm:$0xff]
    %v1217 = vld [vmem:[%s1207 + $0x48] sm:$0x3f]
    %v1218 = vrot.slane %v1014, 2
    %v1219 = vrot.slane %v1015, 2
    %v1220 = vsel %vm283, %v1218, %v1219
    %v1221 = vsel %vm1042, %v1220, 0
    %v1223 = vsel %vm1042, %v1219, 0
    %v1226 = vsel %vm283, %v1217, 0
    %1228 = vmatprep.subr.mxu0 0.0
    %1229 = vmatpush1.msra.mxu0 %v1208
    %1230 = vmatprep.subr.mxu0 0.0
    %1231 = vmatpush1.msra.mxu0 %v1209
    %1232 = vmatprep.subr.mxu0 0.0
    %1233 = vmatpush1.msra.mxu0 %v1210
    %1234 = vmatprep.subr.mxu0 0.0
    %1235 = vmatpush1.msra.mxu0 %v1211
    %1236 = vmatprep.subr.mxu0 0.0
    %1237 = vmatpush1.msra.mxu0 %v1212
    %1238 = vmatprep.subr.mxu0 0.0
    %1239 = vmatpush1.msra.mxu0 %v1213
    %1240 = vmatprep.subr.mxu0 0.0
    %1241 = vmatpush1.msra.mxu0 %v1214
    %1242 = vmatprep.subr.mxu0 0.0
    %1243 = vmatpush1.msra.mxu0 %v1215
    %1244 = vmatprep.subr.mxu0 0.0
    %1245 = vmatpush1.msra.mxu0 %v1216
    %1246 = vmatprep.subr.mxu0 0.0
    %1247 = vmatpush1.msra.mxu0 %v1226
    %1248 = vmatprep.subr.mxu0 0.0
    %1249 = vmatpush1.msra.mxu0 0.0
    %1250 = vmatprep.subr.mxu0 0.0
    %1251 = vmatpush1.msra.mxu0 0.0
    %1252 = vmatprep.subr.mxu0 0.0
    %1253 = vmatpush1.msra.mxu0 0.0
    %1254 = vmatprep.subr.mxu0 0.0
    %1255 = vmatpush1.msra.mxu0 0.0
    %1256 = vmatprep.subr.mxu0 0.0
    %1257 = vmatpush1.msra.mxu0 0.0
    %1258 = vmatprep.subr.mxu0 0.0
    %1259 = vmatpush1.msra.mxu0 0.0
    %1260 = vmatprep.subr.mxu0 0.0
    %1261 = vmatpush1.msra.mxu0 0.0
    %1262 = vmatprep.subr.mxu0 0.0
    %1263 = vmatpush1.msra.mxu0 0.0
    %1264 = vmatprep.subr.mxu0 0.0
    %1265 = vmatpush1.msra.mxu0 0.0
    %1266 = vmatprep.subr.mxu0 0.0
    %1267 = vmatpush1.msra.mxu0 0.0
    %1268 = vmatprep.subr.mxu0 0.0
    %1269 = vmatpush1.msra.mxu0 0.0
    %1270 = vmatprep.subr.mxu0 0.0
    %1271 = vmatpush1.msra.mxu0 0.0
    %1272 = vmatprep.subr.mxu0 0.0
    %1273 = vmatpush1.msra.mxu0 0.0
    %1274 = vmatprep.subr.mxu0 0.0
    %1275 = vmatpush1.msra.mxu0 0.0
    %1276 = vmatprep.subr.mxu0 0.0
    %1277 = vmatpush1.msra.mxu0 0.0
    %1278 = vmatprep.subr.mxu0 0.0
    %1279 = vmatpush1.msra.mxu0 0.0
    %1280 = vmatprep.subr.mxu0 0.0
    %1281 = vmatpush1.msra.mxu0 0.0
    %1282 = vmatprep.subr.mxu0 0.0
    %1283 = vmatpush1.msra.mxu0 0.0
    %1284 = vmatprep.subr.mxu0 0.0
    %1285 = vmatpush1.msra.mxu0 0.0
    %1286 = vmatprep.subr.mxu0 0.0
    %1287 = vmatpush1.msra.mxu0 0.0
    %1288 = vmatprep.subr.mxu0 0.0
    %1289 = vmatpush1.msra.mxu0 0.0
    %1290 = vmatprep.subr.mxu0 0.0
    %1291 = vmatpush1.msra.mxu0 0.0
    %1292 = vmatprep.mubr.f32.mxu0 0.0
    %1293 = vmatmul.mubr.f32.gmra.mrb[0].mxu0 %v1221
    %v1294 = vpop.f32.mrb[0].mxu0
    %v1295 = vadd.f32 0.0, %v1294
    %v1296 = vpop.f32.mrb[0].mxu0
    %1297 = vmatprep.mubr.f32.mxu0 0.0
    %1298 = vmatmul.mubr.f32.gmra.mrb[0].mxu0 %v1223
    %v1299 = vpop.f32.mrb[0].mxu0
    %v1300 = vadd.f32 0.0, %v1299
    %v1301 = vpop.f32.mrb[0].mxu0
    %1302 = vdwg.mxu0
    %v1303 = vadd.f32 %v1199, %v1295
    %v1304 = vadd.f32 %v1204, %v1300
    %s1305 = scalar_lea.vmem %s4, 480
    %v1306 = vld [vmem:[%s1305] sm:$0xff]
    %v1307 = vld [vmem:[%s1305 + $0x8] sm:$0xff]
    %v1308 = vld [vmem:[%s1305 + $0x10] sm:$0xff]
    %v1309 = vld [vmem:[%s1305 + $0x18] sm:$0xff]
    %v1310 = vld [vmem:[%s1305 + $0x20] sm:$0xff]
    %v1311 = vld [vmem:[%s1305 + $0x28] sm:$0xff]
    %v1312 = vld [vmem:[%s1305 + $0x30] sm:$0xff]
    %v1313 = vld [vmem:[%s1305 + $0x38] sm:$0xff]
    %v1314 = vld [vmem:[%s1305 + $0x40] sm:$0xff]
    %v1315 = vld [vmem:[%s1305 + $0x48] sm:$0x3f]
    %vm1316 = vcmask 1044480
    %v1317 = vrot.slane %v1014, 3
    %v1318 = vrot.slane %v1015, 3
    %v1319 = vsel %vm1316, %v1317, %v1318
    %v1320 = vsel %vm1042, %v1319, 0
    %v1322 = vsel %vm1042, %v1318, 0
    %v1325 = vsel %vm283, %v1315, 0
    %1327 = vmatprep.subr.mxu0 0.0
    %1328 = vmatpush1.msra.mxu0 %v1306
    %1329 = vmatprep.subr.mxu0 0.0
    %1330 = vmatpush1.msra.mxu0 %v1307
    %1331 = vmatprep.subr.mxu0 0.0
    %1332 = vmatpush1.msra.mxu0 %v1308
    %1333 = vmatprep.subr.mxu0 0.0
    %1334 = vmatpush1.msra.mxu0 %v1309
    %1335 = vmatprep.subr.mxu0 0.0
    %1336 = vmatpush1.msra.mxu0 %v1310
    %1337 = vmatprep.subr.mxu0 0.0
    %1338 = vmatpush1.msra.mxu0 %v1311
    %1339 = vmatprep.subr.mxu0 0.0
    %1340 = vmatpush1.msra.mxu0 %v1312
    %1341 = vmatprep.subr.mxu0 0.0
    %1342 = vmatpush1.msra.mxu0 %v1313
    %1343 = vmatprep.subr.mxu0 0.0
    %1344 = vmatpush1.msra.mxu0 %v1314
    %1345 = vmatprep.subr.mxu0 0.0
    %1346 = vmatpush1.msra.mxu0 %v1325
    %1347 = vmatprep.subr.mxu0 0.0
    %1348 = vmatpush1.msra.mxu0 0.0
    %1349 = vmatprep.subr.mxu0 0.0
    %1350 = vmatpush1.msra.mxu0 0.0
    %1351 = vmatprep.subr.mxu0 0.0
    %1352 = vmatpush1.msra.mxu0 0.0
    %1353 = vmatprep.subr.mxu0 0.0
    %1354 = vmatpush1.msra.mxu0 0.0
    %1355 = vmatprep.subr.mxu0 0.0
    %1356 = vmatpush1.msra.mxu0 0.0
    %1357 = vmatprep.subr.mxu0 0.0
    %1358 = vmatpush1.msra.mxu0 0.0
    %1359 = vmatprep.subr.mxu0 0.0
    %1360 = vmatpush1.msra.mxu0 0.0
    %1361 = vmatprep.subr.mxu0 0.0
    %1362 = vmatpush1.msra.mxu0 0.0
    %1363 = vmatprep.subr.mxu0 0.0
    %1364 = vmatpush1.msra.mxu0 0.0
    %1365 = vmatprep.subr.mxu0 0.0
    %1366 = vmatpush1.msra.mxu0 0.0
    %1367 = vmatprep.subr.mxu0 0.0
    %1368 = vmatpush1.msra.mxu0 0.0
    %1369 = vmatprep.subr.mxu0 0.0
    %1370 = vmatpush1.msra.mxu0 0.0
    %1371 = vmatprep.subr.mxu0 0.0
    %1372 = vmatpush1.msra.mxu0 0.0
    %1373 = vmatprep.subr.mxu0 0.0
    %1374 = vmatpush1.msra.mxu0 0.0
    %1375 = vmatprep.subr.mxu0 0.0
    %1376 = vmatpush1.msra.mxu0 0.0
    %1377 = vmatprep.subr.mxu0 0.0
    %1378 = vmatpush1.msra.mxu0 0.0
    %1379 = vmatprep.subr.mxu0 0.0
    %1380 = vmatpush1.msra.mxu0 0.0
    %1381 = vmatprep.subr.mxu0 0.0
    %1382 = vmatpush1.msra.mxu0 0.0
    %1383 = vmatprep.subr.mxu0 0.0
    %1384 = vmatpush1.msra.mxu0 0.0
    %1385 = vmatprep.subr.mxu0 0.0
    %1386 = vmatpush1.msra.mxu0 0.0
    %1387 = vmatprep.subr.mxu0 0.0
    %1388 = vmatpush1.msra.mxu0 0.0
    %1389 = vmatprep.subr.mxu0 0.0
    %1390 = vmatpush1.msra.mxu0 0.0
    %1391 = vmatprep.mubr.f32.mxu0 0.0
    %1392 = vmatmul.mubr.f32.gmra.mrb[0].mxu0 %v1320
    %v1393 = vpop.f32.mrb[0].mxu0
    %v1394 = vadd.f32 0.0, %v1393
    %v1395 = vpop.f32.mrb[0].mxu0
    %1396 = vmatprep.mubr.f32.mxu0 0.0
    %1397 = vmatmul.mubr.f32.gmra.mrb[0].mxu0 %v1322
    %v1398 = vpop.f32.mrb[0].mxu0
    %v1399 = vadd.f32 0.0, %v1398
    %v1400 = vpop.f32.mrb[0].mxu0
    %1401 = vdwg.mxu0
    %v1402 = vadd.f32 %v1303, %v1394
    %v1403 = vadd.f32 %v1304, %v1399
    %s1404 = scalar_lea.vmem %s4, 80
    %v1405 = vld [vmem:[%s1404] sm:$0xff]
    %v1406 = vld [vmem:[%s1404 + $0x8] sm:$0xff]
    %v1407 = vld [vmem:[%s1404 + $0x10] sm:$0xff]
    %v1408 = vld [vmem:[%s1404 + $0x18] sm:$0xff]
    %v1409 = vld [vmem:[%s1404 + $0x20] sm:$0xff]
    %v1410 = vld [vmem:[%s1404 + $0x28] sm:$0xff]
    %v1411 = vld [vmem:[%s1404 + $0x30] sm:$0xff]
    %v1412 = vld [vmem:[%s1404 + $0x38] sm:$0xff]
    %v1413 = vld [vmem:[%s1404 + $0x40] sm:$0xff]
    %v1414 = vld [vmem:[%s1404 + $0x48] sm:$0x3f]
    %s1415 = scalar_lea.vmem %s4, 240
    %v1416 = vld [vmem:[%s1415] sm:$0xff]
    %v1417 = vld [vmem:[%s1415 + $0x8] sm:$0xff]
    %v1418 = vld [vmem:[%s1415 + $0x10] sm:$0xff]
    %v1419 = vld [vmem:[%s1415 + $0x18] sm:$0xff]
    %v1420 = vld [vmem:[%s1415 + $0x20] sm:$0xff]
    %v1421 = vld [vmem:[%s1415 + $0x28] sm:$0xff]
    %v1422 = vld [vmem:[%s1415 + $0x30] sm:$0xff]
    %v1423 = vld [vmem:[%s1415 + $0x38] sm:$0xff]
    %v1424 = vld [vmem:[%s1415 + $0x40] sm:$0xff]
    %v1425 = vld [vmem:[%s1415 + $0x48] sm:$0x3f]
    %v1427 = vsel %vm283, %v1425, 0
    %1429 = vmatprep.subr.mxu0 0.0
    %1430 = vmatpush1.msra.mxu0 %v1416
    %1431 = vmatprep.subr.mxu0 0.0
    %1432 = vmatpush1.msra.mxu0 %v1417
    %1433 = vmatprep.subr.mxu0 0.0
    %1434 = vmatpush1.msra.mxu0 %v1418
    %1435 = vmatprep.subr.mxu0 0.0
    %1436 = vmatpush1.msra.mxu0 %v1419
    %1437 = vmatprep.subr.mxu0 0.0
    %1438 = vmatpush1.msra.mxu0 %v1420
    %1439 = vmatprep.subr.mxu0 0.0
    %1440 = vmatpush1.msra.mxu0 %v1421
    %1441 = vmatprep.subr.mxu0 0.0
    %1442 = vmatpush1.msra.mxu0 %v1422
    %1443 = vmatprep.subr.mxu0 0.0
    %1444 = vmatpush1.msra.mxu0 %v1423
    %1445 = vmatprep.subr.mxu0 0.0
    %1446 = vmatpush1.msra.mxu0 %v1424
    %1447 = vmatprep.subr.mxu0 0.0
    %1448 = vmatpush1.msra.mxu0 %v1427
    %1449 = vmatprep.subr.mxu0 0.0
    %1450 = vmatpush1.msra.mxu0 0.0
    %1451 = vmatprep.subr.mxu0 0.0
    %1452 = vmatpush1.msra.mxu0 0.0
    %1453 = vmatprep.subr.mxu0 0.0
    %1454 = vmatpush1.msra.mxu0 0.0
    %1455 = vmatprep.subr.mxu0 0.0
    %1456 = vmatpush1.msra.mxu0 0.0
    %1457 = vmatprep.subr.mxu0 0.0
    %1458 = vmatpush1.msra.mxu0 0.0
    %1459 = vmatprep.subr.mxu0 0.0
    %1460 = vmatpush1.msra.mxu0 0.0
    %1461 = vmatprep.subr.mxu0 0.0
    %1462 = vmatpush1.msra.mxu0 0.0
    %1463 = vmatprep.subr.mxu0 0.0
    %1464 = vmatpush1.msra.mxu0 0.0
    %1465 = vmatprep.subr.mxu0 0.0
    %1466 = vmatpush1.msra.mxu0 0.0
    %1467 = vmatprep.subr.mxu0 0.0
    %1468 = vmatpush1.msra.mxu0 0.0
    %1469 = vmatprep.subr.mxu0 0.0
    %1470 = vmatpush1.msra.mxu0 0.0
    %1471 = vmatprep.subr.mxu0 0.0
    %1472 = vmatpush1.msra.mxu0 0.0
    %1473 = vmatprep.subr.mxu0 0.0
    %1474 = vmatpush1.msra.mxu0 0.0
    %1475 = vmatprep.subr.mxu0 0.0
    %1476 = vmatpush1.msra.mxu0 0.0
    %1477 = vmatprep.subr.mxu0 0.0
    %1478 = vmatpush1.msra.mxu0 0.0
    %1479 = vmatprep.subr.mxu0 0.0
    %1480 = vmatpush1.msra.mxu0 0.0
    %1481 = vmatprep.subr.mxu0 0.0
    %1482 = vmatpush1.msra.mxu0 0.0
    %1483 = vmatprep.subr.mxu0 0.0
    %1484 = vmatpush1.msra.mxu0 0.0
    %1485 = vmatprep.subr.mxu0 0.0
    %1486 = vmatpush1.msra.mxu0 0.0
    %1487 = vmatprep.subr.mxu0 0.0
    %1488 = vmatpush1.msra.mxu0 0.0
    %1489 = vmatprep.subr.mxu0 0.0
    %1490 = vmatpush1.msra.mxu0 0.0
    %1491 = vmatprep.subr.mxu0 0.0
    %1492 = vmatpush1.msra.mxu0 0.0
    %1493 = vmatprep.mubr.f32.mxu0 0.0
    %1494 = vmatmul.mubr.f32.gmra.mrb[0].mxu0 %v1043
    %v1495 = vpop.f32.mrb[0].mxu0
    %v1496 = vadd.f32 0.0, %v1495
    %v1497 = vpop.f32.mrb[0].mxu0
    %1498 = vmatprep.mubr.f32.mxu0 0.0
    %1499 = vmatmul.mubr.f32.gmra.mrb[0].mxu0 %v1045
    %v1500 = vpop.f32.mrb[0].mxu0
    %v1501 = vadd.f32 0.0, %v1500
    %v1502 = vpop.f32.mrb[0].mxu0
    %1503 = vdwg.mxu0
    %v1505 = vsel %vm283, %v1414, 0
    %1507 = vmatprep.subr.mxu0 0.0
    %1508 = vmatpush1.msra.mxu0 %v1405
    %1509 = vmatprep.subr.mxu0 0.0
    %1510 = vmatpush1.msra.mxu0 %v1406
    %1511 = vmatprep.subr.mxu0 0.0
    %1512 = vmatpush1.msra.mxu0 %v1407
    %1513 = vmatprep.subr.mxu0 0.0
    %1514 = vmatpush1.msra.mxu0 %v1408
    %1515 = vmatprep.subr.mxu0 0.0
    %1516 = vmatpush1.msra.mxu0 %v1409
    %1517 = vmatprep.subr.mxu0 0.0
    %1518 = vmatpush1.msra.mxu0 %v1410
    %1519 = vmatprep.subr.mxu0 0.0
    %1520 = vmatpush1.msra.mxu0 %v1411
    %1521 = vmatprep.subr.mxu0 0.0
    %1522 = vmatpush1.msra.mxu0 %v1412
    %1523 = vmatprep.subr.mxu0 0.0
    %1524 = vmatpush1.msra.mxu0 %v1413
    %1525 = vmatprep.subr.mxu0 0.0
    %1526 = vmatpush1.msra.mxu0 %v1505
    %1527 = vmatprep.subr.mxu0 0.0
    %1528 = vmatpush1.msra.mxu0 0.0
    %1529 = vmatprep.subr.mxu0 0.0
    %1530 = vmatpush1.msra.mxu0 0.0
    %1531 = vmatprep.subr.mxu0 0.0
    %1532 = vmatpush1.msra.mxu0 0.0
    %1533 = vmatprep.subr.mxu0 0.0
    %1534 = vmatpush1.msra.mxu0 0.0
    %1535 = vmatprep.subr.mxu0 0.0
    %1536 = vmatpush1.msra.mxu0 0.0
    %1537 = vmatprep.subr.mxu0 0.0
    %1538 = vmatpush1.msra.mxu0 0.0
    %1539 = vmatprep.subr.mxu0 0.0
    %1540 = vmatpush1.msra.mxu0 0.0
    %1541 = vmatprep.subr.mxu0 0.0
    %1542 = vmatpush1.msra.mxu0 0.0
    %1543 = vmatprep.subr.mxu0 0.0
    %1544 = vmatpush1.msra.mxu0 0.0
    %1545 = vmatprep.subr.mxu0 0.0
    %1546 = vmatpush1.msra.mxu0 0.0
    %1547 = vmatprep.subr.mxu0 0.0
    %1548 = vmatpush1.msra.mxu0 0.0
    %1549 = vmatprep.subr.mxu0 0.0
    %1550 = vmatpush1.msra.mxu0 0.0
    %1551 = vmatprep.subr.mxu0 0.0
    %1552 = vmatpush1.msra.mxu0 0.0
    %1553 = vmatprep.subr.mxu0 0.0
    %1554 = vmatpush1.msra.mxu0 0.0
    %1555 = vmatprep.subr.mxu0 0.0
    %1556 = vmatpush1.msra.mxu0 0.0
    %1557 = vmatprep.subr.mxu0 0.0
    %1558 = vmatpush1.msra.mxu0 0.0
    %1559 = vmatprep.subr.mxu0 0.0
    %1560 = vmatpush1.msra.mxu0 0.0
    %1561 = vmatprep.subr.mxu0 0.0
    %1562 = vmatpush1.msra.mxu0 0.0
    %1563 = vmatprep.subr.mxu0 0.0
    %1564 = vmatpush1.msra.mxu0 0.0
    %1565 = vmatprep.subr.mxu0 0.0
    %1566 = vmatpush1.msra.mxu0 0.0
    %1567 = vmatprep.subr.mxu0 0.0
    %1568 = vmatpush1.msra.mxu0 0.0
    %1569 = vmatprep.subr.mxu0 0.0
    %1570 = vmatpush1.msra.mxu0 0.0
    %1571 = vmatprep.mubr.f32.mxu0 0.0
    %1572 = vmatmul.mubr.f32.gmra.mrb[0].mxu0 %v1125
    %v1573 = vpop.f32.mrb[0].mxu0
    %v1574 = vadd.f32 %v1496, %v1573
    %v1575 = vpop.f32.mrb[0].mxu0
    %1576 = vmatprep.mubr.f32.mxu0 0.0
    %1577 = vmatmul.mubr.f32.gmra.mrb[0].mxu0 %v1127
    %v1578 = vpop.f32.mrb[0].mxu0
    %v1579 = vadd.f32 %v1501, %v1578
    %v1580 = vpop.f32.mrb[0].mxu0
    %1581 = vdwg.mxu0
    %s1582 = scalar_lea.vmem %s4, 400
    %v1583 = vld [vmem:[%s1582] sm:$0xff]
    %v1584 = vld [vmem:[%s1582 + $0x8] sm:$0xff]
    %v1585 = vld [vmem:[%s1582 + $0x10] sm:$0xff]
    %v1586 = vld [vmem:[%s1582 + $0x18] sm:$0xff]
    %v1587 = vld [vmem:[%s1582 + $0x20] sm:$0xff]
    %v1588 = vld [vmem:[%s1582 + $0x28] sm:$0xff]
    %v1589 = vld [vmem:[%s1582 + $0x30] sm:$0xff]
    %v1590 = vld [vmem:[%s1582 + $0x38] sm:$0xff]
    %v1591 = vld [vmem:[%s1582 + $0x40] sm:$0xff]
    %v1592 = vld [vmem:[%s1582 + $0x48] sm:$0x3f]
    %v1594 = vsel %vm283, %v1592, 0
    %1596 = vmatprep.subr.mxu0 0.0
    %1597 = vmatpush1.msra.mxu0 %v1583
    %1598 = vmatprep.subr.mxu0 0.0
    %1599 = vmatpush1.msra.mxu0 %v1584
    %1600 = vmatprep.subr.mxu0 0.0
    %1601 = vmatpush1.msra.mxu0 %v1585
    %1602 = vmatprep.subr.mxu0 0.0
    %1603 = vmatpush1.msra.mxu0 %v1586
    %1604 = vmatprep.subr.mxu0 0.0
    %1605 = vmatpush1.msra.mxu0 %v1587
    %1606 = vmatprep.subr.mxu0 0.0
    %1607 = vmatpush1.msra.mxu0 %v1588
    %1608 = vmatprep.subr.mxu0 0.0
    %1609 = vmatpush1.msra.mxu0 %v1589
    %1610 = vmatprep.subr.mxu0 0.0
    %1611 = vmatpush1.msra.mxu0 %v1590
    %1612 = vmatprep.subr.mxu0 0.0
    %1613 = vmatpush1.msra.mxu0 %v1591
    %1614 = vmatprep.subr.mxu0 0.0
    %1615 = vmatpush1.msra.mxu0 %v1594
    %1616 = vmatprep.subr.mxu0 0.0
    %1617 = vmatpush1.msra.mxu0 0.0
    %1618 = vmatprep.subr.mxu0 0.0
    %1619 = vmatpush1.msra.mxu0 0.0
    %1620 = vmatprep.subr.mxu0 0.0
    %1621 = vmatpush1.msra.mxu0 0.0
    %1622 = vmatprep.subr.mxu0 0.0
    %1623 = vmatpush1.msra.mxu0 0.0
    %1624 = vmatprep.subr.mxu0 0.0
    %1625 = vmatpush1.msra.mxu0 0.0
    %1626 = vmatprep.subr.mxu0 0.0
    %1627 = vmatpush1.msra.mxu0 0.0
    %1628 = vmatprep.subr.mxu0 0.0
    %1629 = vmatpush1.msra.mxu0 0.0
    %1630 = vmatprep.subr.mxu0 0.0
    %1631 = vmatpush1.msra.mxu0 0.0
    %1632 = vmatprep.subr.mxu0 0.0
    %1633 = vmatpush1.msra.mxu0 0.0
    %1634 = vmatprep.subr.mxu0 0.0
    %1635 = vmatpush1.msra.mxu0 0.0
    %1636 = vmatprep.subr.mxu0 0.0
    %1637 = vmatpush1.msra.mxu0 0.0
    %1638 = vmatprep.subr.mxu0 0.0
    %1639 = vmatpush1.msra.mxu0 0.0
    %1640 = vmatprep.subr.mxu0 0.0
    %1641 = vmatpush1.msra.mxu0 0.0
    %1642 = vmatprep.subr.mxu0 0.0
    %1643 = vmatpush1.msra.mxu0 0.0
    %1644 = vmatprep.subr.mxu0 0.0
    %1645 = vmatpush1.msra.mxu0 0.0
    %1646 = vmatprep.subr.mxu0 0.0
    %1647 = vmatpush1.msra.mxu0 0.0
    %1648 = vmatprep.subr.mxu0 0.0
    %1649 = vmatpush1.msra.mxu0 0.0
    %1650 = vmatprep.subr.mxu0 0.0
    %1651 = vmatpush1.msra.mxu0 0.0
    %1652 = vmatprep.subr.mxu0 0.0
    %1653 = vmatpush1.msra.mxu0 0.0
    %1654 = vmatprep.subr.mxu0 0.0
    %1655 = vmatpush1.msra.mxu0 0.0
    %1656 = vmatprep.subr.mxu0 0.0
    %1657 = vmatpush1.msra.mxu0 0.0
    %1658 = vmatprep.subr.mxu0 0.0
    %1659 = vmatpush1.msra.mxu0 0.0
    %1660 = vmatprep.mubr.f32.mxu0 0.0
    %1661 = vmatmul.mubr.f32.gmra.mrb[0].mxu0 %v1221
    %v1662 = vpop.f32.mrb[0].mxu0
    %v1663 = vadd.f32 0.0, %v1662
    %v1664 = vpop.f32.mrb[0].mxu0
    %1665 = vmatprep.mubr.f32.mxu0 0.0
    %1666 = vmatmul.mubr.f32.gmra.mrb[0].mxu0 %v1223
    %v1667 = vpop.f32.mrb[0].mxu0
    %v1668 = vadd.f32 0.0, %v1667
    %v1669 = vpop.f32.mrb[0].mxu0
    %1670 = vdwg.mxu0
    %v1671 = vadd.f32 %v1574, %v1663
    %v1672 = vadd.f32 %v1579, %v1668
    %s1673 = scalar_lea.vmem %s4, 560
    %v1674 = vld [vmem:[%s1673] sm:$0xff]
    %v1675 = vld [vmem:[%s1673 + $0x8] sm:$0xff]
    %v1676 = vld [vmem:[%s1673 + $0x10] sm:$0xff]
    %v1677 = vld [vmem:[%s1673 + $0x18] sm:$0xff]
    %v1678 = vld [vmem:[%s1673 + $0x20] sm:$0xff]
    %v1679 = vld [vmem:[%s1673 + $0x28] sm:$0xff]
    %v1680 = vld [vmem:[%s1673 + $0x30] sm:$0xff]
    %v1681 = vld [vmem:[%s1673 + $0x38] sm:$0xff]
    %v1682 = vld [vmem:[%s1673 + $0x40] sm:$0xff]
    %v1683 = vld [vmem:[%s1673 + $0x48] sm:$0x3f]
    %v1685 = vsel %vm283, %v1683, 0
    %1687 = vmatprep.subr.mxu0 0.0
    %1688 = vmatpush1.msra.mxu0 %v1674
    %1689 = vmatprep.subr.mxu0 0.0
    %1690 = vmatpush1.msra.mxu0 %v1675
    %1691 = vmatprep.subr.mxu0 0.0
    %1692 = vmatpush1.msra.mxu0 %v1676
    %1693 = vmatprep.subr.mxu0 0.0
    %1694 = vmatpush1.msra.mxu0 %v1677
    %1695 = vmatprep.subr.mxu0 0.0
    %1696 = vmatpush1.msra.mxu0 %v1678
    %1697 = vmatprep.subr.mxu0 0.0
    %1698 = vmatpush1.msra.mxu0 %v1679
    %1699 = vmatprep.subr.mxu0 0.0
    %1700 = vmatpush1.msra.mxu0 %v1680
    %1701 = vmatprep.subr.mxu0 0.0
    %1702 = vmatpush1.msra.mxu0 %v1681
    %1703 = vmatprep.subr.mxu0 0.0
    %1704 = vmatpush1.msra.mxu0 %v1682
    %1705 = vmatprep.subr.mxu0 0.0
    %1706 = vmatpush1.msra.mxu0 %v1685
    %1707 = vmatprep.subr.mxu0 0.0
    %1708 = vmatpush1.msra.mxu0 0.0
    %1709 = vmatprep.subr.mxu0 0.0
    %1710 = vmatpush1.msra.mxu0 0.0
    %1711 = vmatprep.subr.mxu0 0.0
    %1712 = vmatpush1.msra.mxu0 0.0
    %1713 = vmatprep.subr.mxu0 0.0
    %1714 = vmatpush1.msra.mxu0 0.0
    %1715 = vmatprep.subr.mxu0 0.0
    %1716 = vmatpush1.msra.mxu0 0.0
    %1717 = vmatprep.subr.mxu0 0.0
    %1718 = vmatpush1.msra.mxu0 0.0
    %1719 = vmatprep.subr.mxu0 0.0
    %1720 = vmatpush1.msra.mxu0 0.0
    %1721 = vmatprep.subr.mxu0 0.0
    %1722 = vmatpush1.msra.mxu0 0.0
    %1723 = vmatprep.subr.mxu0 0.0
    %1724 = vmatpush1.msra.mxu0 0.0
    %1725 = vmatprep.subr.mxu0 0.0
    %1726 = vmatpush1.msra.mxu0 0.0
    %1727 = vmatprep.subr.mxu0 0.0
    %1728 = vmatpush1.msra.mxu0 0.0
    %1729 = vmatprep.subr.mxu0 0.0
    %1730 = vmatpush1.msra.mxu0 0.0
    %1731 = vmatprep.subr.mxu0 0.0
    %1732 = vmatpush1.msra.mxu0 0.0
    %1733 = vmatprep.subr.mxu0 0.0
    %1734 = vmatpush1.msra.mxu0 0.0
    %1735 = vmatprep.subr.mxu0 0.0
    %1736 = vmatpush1.msra.mxu0 0.0
    %1737 = vmatprep.subr.mxu0 0.0
    %1738 = vmatpush1.msra.mxu0 0.0
    %1739 = vmatprep.subr.mxu0 0.0
    %1740 = vmatpush1.msra.mxu0 0.0
    %1741 = vmatprep.subr.mxu0 0.0
    %1742 = vmatpush1.msra.mxu0 0.0
    %1743 = vmatprep.subr.mxu0 0.0
    %1744 = vmatpush1.msra.mxu0 0.0
    %1745 = vmatprep.subr.mxu0 0.0
    %1746 = vmatpush1.msra.mxu0 0.0
    %1747 = vmatprep.subr.mxu0 0.0
    %1748 = vmatpush1.msra.mxu0 0.0
    %1749 = vmatprep.subr.mxu0 0.0
    %1750 = vmatpush1.msra.mxu0 0.0
    %1751 = vmatprep.mubr.f32.mxu0 0.0
    %1752 = vmatmul.mubr.f32.gmra.mrb[0].mxu0 %v1320
    %v1753 = vpop.f32.mrb[0].mxu0
    %v1754 = vadd.f32 0.0, %v1753
    %v1755 = vpop.f32.mrb[0].mxu0
    %1756 = vmatprep.mubr.f32.mxu0 0.0
    %1757 = vmatmul.mubr.f32.gmra.mrb[0].mxu0 %v1322
    %v1758 = vpop.f32.mrb[0].mxu0
    %v1759 = vadd.f32 0.0, %v1758
    %v1760 = vpop.f32.mrb[0].mxu0
    %1761 = vdwg.mxu0
    %v1762 = vadd.f32 %v1671, %v1754
    %v1763 = vadd.f32 %v1672, %v1759
    %v1764 = vld [vmem:[%s5] sm:$0x1f]
    %vm1765 = vcmask 80896
    %v1767 = vsel %vm1765, %v1764, 0
    %v1770 = vsel %vm683, %v1403, 0
    %1772 = vmatprep.subr.mxu0 0.0
    %1773 = vmatpush1.msra.mxu0 %v1402
    %1774 = vmatprep.subr.mxu0 0.0
    %1775 = vmatpush1.msra.mxu0 %v1770
    %1776 = vmatprep.subr.mxu0 0.0
    %1777 = vmatpush1.msra.mxu0 0.0
    %1778 = vmatprep.subr.mxu0 0.0
    %1779 = vmatpush1.msra.mxu0 0.0
    %1780 = vmatprep.subr.mxu0 0.0
    %1781 = vmatpush1.msra.mxu0 0.0
    %1782 = vmatprep.subr.mxu0 0.0
    %1783 = vmatpush1.msra.mxu0 0.0
    %1784 = vmatprep.subr.mxu0 0.0
    %1785 = vmatpush1.msra.mxu0 0.0
    %1786 = vmatprep.subr.mxu0 0.0
    %1787 = vmatpush1.msra.mxu0 0.0
    %1788 = vmatprep.subr.mxu0 0.0
    %1789 = vmatpush1.msra.mxu0 0.0
    %1790 = vmatprep.subr.mxu0 0.0
    %1791 = vmatpush1.msra.mxu0 0.0
    %1792 = vmatprep.subr.mxu0 0.0
    %1793 = vmatpush1.msra.mxu0 0.0
    %1794 = vmatprep.subr.mxu0 0.0
    %1795 = vmatpush1.msra.mxu0 0.0
    %1796 = vmatprep.subr.mxu0 0.0
    %1797 = vmatpush1.msra.mxu0 0.0
    %1798 = vmatprep.subr.mxu0 0.0
    %1799 = vmatpush1.msra.mxu0 0.0
    %1800 = vmatprep.subr.mxu0 0.0
    %1801 = vmatpush1.msra.mxu0 0.0
    %1802 = vmatprep.subr.mxu0 0.0
    %1803 = vmatpush1.msra.mxu0 0.0
    %1804 = vmatprep.subr.mxu0 0.0
    %1805 = vmatpush1.msra.mxu0 0.0
    %1806 = vmatprep.subr.mxu0 0.0
    %1807 = vmatpush1.msra.mxu0 0.0
    %1808 = vmatprep.subr.mxu0 0.0
    %1809 = vmatpush1.msra.mxu0 0.0
    %1810 = vmatprep.subr.mxu0 0.0
    %1811 = vmatpush1.msra.mxu0 0.0
    %1812 = vmatprep.subr.mxu0 0.0
    %1813 = vmatpush1.msra.mxu0 0.0
    %1814 = vmatprep.subr.mxu0 0.0
    %1815 = vmatpush1.msra.mxu0 0.0
    %1816 = vmatprep.subr.mxu0 0.0
    %1817 = vmatpush1.msra.mxu0 0.0
    %1818 = vmatprep.subr.mxu0 0.0
    %1819 = vmatpush1.msra.mxu0 0.0
    %1820 = vmatprep.subr.mxu0 0.0
    %1821 = vmatpush1.msra.mxu0 0.0
    %1822 = vmatprep.subr.mxu0 0.0
    %1823 = vmatpush1.msra.mxu0 0.0
    %1824 = vmatprep.subr.mxu0 0.0
    %1825 = vmatpush1.msra.mxu0 0.0
    %1826 = vmatprep.subr.mxu0 0.0
    %1827 = vmatpush1.msra.mxu0 0.0
    %1828 = vmatprep.subr.mxu0 0.0
    %1829 = vmatpush1.msra.mxu0 0.0
    %1830 = vmatprep.subr.mxu0 0.0
    %1831 = vmatpush1.msra.mxu0 0.0
    %1832 = vmatprep.subr.mxu0 0.0
    %1833 = vmatpush1.msra.mxu0 0.0
    %1834 = vmatprep.subr.mxu0 0.0
    %1835 = vmatpush1.msra.mxu0 0.0
    %1836 = vmatprep.mubr.f32.mxu0 0.0
    %1837 = vmatmul.mubr.f32.gmra.mrb[0].mxu0 %v1767
    %v1838 = vpop.f32.mrb[0].mxu0
    %v1839 = vadd.f32 0.0, %v1838
    %v1840 = vpop.f32.mrb[0].mxu0
    %1841 = vdwg.mxu0
    %v1843 = vsel %vm683, %v1763, 0
    %1845 = vmatprep.subr.mxu0 0.0
    %1846 = vmatpush1.msra.mxu0 %v1762
    %1847 = vmatprep.subr.mxu0 0.0
    %1848 = vmatpush1.msra.mxu0 %v1843
    %1849 = vmatprep.subr.mxu0 0.0
    %1850 = vmatpush1.msra.mxu0 0.0
    %1851 = vmatprep.subr.mxu0 0.0
    %1852 = vmatpush1.msra.mxu0 0.0
    %1853 = vmatprep.subr.mxu0 0.0
    %1854 = vmatpush1.msra.mxu0 0.0
    %1855 = vmatprep.subr.mxu0 0.0
    %1856 = vmatpush1.msra.mxu0 0.0
    %1857 = vmatprep.subr.mxu0 0.0
    %1858 = vmatpush1.msra.mxu0 0.0
    %1859 = vmatprep.subr.mxu0 0.0
    %1860 = vmatpush1.msra.mxu0 0.0
    %1861 = vmatprep.subr.mxu0 0.0
    %1862 = vmatpush1.msra.mxu0 0.0
    %1863 = vmatprep.subr.mxu0 0.0
    %1864 = vmatpush1.msra.mxu0 0.0
    %1865 = vmatprep.subr.mxu0 0.0
    %1866 = vmatpush1.msra.mxu0 0.0
    %1867 = vmatprep.subr.mxu0 0.0
    %1868 = vmatpush1.msra.mxu0 0.0
    %1869 = vmatprep.subr.mxu0 0.0
    %1870 = vmatpush1.msra.mxu0 0.0
    %1871 = vmatprep.subr.mxu0 0.0
    %1872 = vmatpush1.msra.mxu0 0.0
    %1873 = vmatprep.subr.mxu0 0.0
    %1874 = vmatpush1.msra.mxu0 0.0
    %1875 = vmatprep.subr.mxu0 0.0
    %1876 = vmatpush1.msra.mxu0 0.0
    %1877 = vmatprep.subr.mxu0 0.0
    %1878 = vmatpush1.msra.mxu0 0.0
    %1879 = vmatprep.subr.mxu0 0.0
    %1880 = vmatpush1.msra.mxu0 0.0
    %1881 = vmatprep.subr.mxu0 0.0
    %1882 = vmatpush1.msra.mxu0 0.0
    %1883 = vmatprep.subr.mxu0 0.0
    %1884 = vmatpush1.msra.mxu0 0.0
    %1885 = vmatprep.subr.mxu0 0.0
    %1886 = vmatpush1.msra.mxu0 0.0
    %1887 = vmatprep.subr.mxu0 0.0
    %1888 = vmatpush1.msra.mxu0 0.0
    %1889 = vmatprep.subr.mxu0 0.0
    %1890 = vmatpush1.msra.mxu0 0.0
    %1891 = vmatprep.subr.mxu0 0.0
    %1892 = vmatpush1.msra.mxu0 0.0
    %1893 = vmatprep.subr.mxu0 0.0
    %1894 = vmatpush1.msra.mxu0 0.0
    %1895 = vmatprep.subr.mxu0 0.0
    %1896 = vmatpush1.msra.mxu0 0.0
    %1897 = vmatprep.subr.mxu0 0.0
    %1898 = vmatpush1.msra.mxu0 0.0
    %1899 = vmatprep.subr.mxu0 0.0
    %1900 = vmatpush1.msra.mxu0 0.0
    %1901 = vmatprep.subr.mxu0 0.0
    %1902 = vmatpush1.msra.mxu0 0.0
    %1903 = vmatprep.subr.mxu0 0.0
    %1904 = vmatpush1.msra.mxu0 0.0
    %1905 = vmatprep.subr.mxu0 0.0
    %1906 = vmatpush1.msra.mxu0 0.0
    %1907 = vmatprep.subr.mxu0 0.0
    %1908 = vmatpush1.msra.mxu0 0.0
    %1909 = vmatprep.mubr.f32.mxu0 0.0
    %1910 = vmatmul.mubr.f32.gmra.mrb[0].mxu0 %v1767
    %v1911 = vpop.f32.mrb[0].mxu0
    %v1912 = vadd.f32 0.0, %v1911
    %v1913 = vpop.f32.mrb[0].mxu0
    %1914 = vdwg.mxu0
    %s1915 = scalar_lea.vmem %s5, 8
    %v1916 = vld [vmem:[%s1915] sm:$0x1f]
    %v1918 = vsel %vm1765, %v1916, 0
    %1920 = vmatprep.subr.mxu0 0.0
    %1921 = vmatpush1.msra.mxu0 %v1402
    %1922 = vmatprep.subr.mxu0 0.0
    %1923 = vmatpush1.msra.mxu0 %v1770
    %1924 = vmatprep.subr.mxu0 0.0
    %1925 = vmatpush1.msra.mxu0 0.0
    %1926 = vmatprep.subr.mxu0 0.0
    %1927 = vmatpush1.msra.mxu0 0.0
    %1928 = vmatprep.subr.mxu0 0.0
    %1929 = vmatpush1.msra.mxu0 0.0
    %1930 = vmatprep.subr.mxu0 0.0
    %1931 = vmatpush1.msra.mxu0 0.0
    %1932 = vmatprep.subr.mxu0 0.0
    %1933 = vmatpush1.msra.mxu0 0.0
    %1934 = vmatprep.subr.mxu0 0.0
    %1935 = vmatpush1.msra.mxu0 0.0
    %1936 = vmatprep.subr.mxu0 0.0
    %1937 = vmatpush1.msra.mxu0 0.0
    %1938 = vmatprep.subr.mxu0 0.0
    %1939 = vmatpush1.msra.mxu0 0.0
    %1940 = vmatprep.subr.mxu0 0.0
    %1941 = vmatpush1.msra.mxu0 0.0
    %1942 = vmatprep.subr.mxu0 0.0
    %1943 = vmatpush1.msra.mxu0 0.0
    %1944 = vmatprep.subr.mxu0 0.0
    %1945 = vmatpush1.msra.mxu0 0.0
    %1946 = vmatprep.subr.mxu0 0.0
    %1947 = vmatpush1.msra.mxu0 0.0
    %1948 = vmatprep.subr.mxu0 0.0
    %1949 = vmatpush1.msra.mxu0 0.0
    %1950 = vmatprep.subr.mxu0 0.0
    %1951 = vmatpush1.msra.mxu0 0.0
    %1952 = vmatprep.subr.mxu0 0.0
    %1953 = vmatpush1.msra.mxu0 0.0
    %1954 = vmatprep.subr.mxu0 0.0
    %1955 = vmatpush1.msra.mxu0 0.0
    %1956 = vmatprep.subr.mxu0 0.0
    %1957 = vmatpush1.msra.mxu0 0.0
    %1958 = vmatprep.subr.mxu0 0.0
    %1959 = vmatpush1.msra.mxu0 0.0
    %1960 = vmatprep.subr.mxu0 0.0
    %1961 = vmatpush1.msra.mxu0 0.0
    %1962 = vmatprep.subr.mxu0 0.0
    %1963 = vmatpush1.msra.mxu0 0.0
    %1964 = vmatprep.subr.mxu0 0.0
    %1965 = vmatpush1.msra.mxu0 0.0
    %1966 = vmatprep.subr.mxu0 0.0
    %1967 = vmatpush1.msra.mxu0 0.0
    %1968 = vmatprep.subr.mxu0 0.0
    %1969 = vmatpush1.msra.mxu0 0.0
    %1970 = vmatprep.subr.mxu0 0.0
    %1971 = vmatpush1.msra.mxu0 0.0
    %1972 = vmatprep.subr.mxu0 0.0
    %1973 = vmatpush1.msra.mxu0 0.0
    %1974 = vmatprep.subr.mxu0 0.0
    %1975 = vmatpush1.msra.mxu0 0.0
    %1976 = vmatprep.subr.mxu0 0.0
    %1977 = vmatpush1.msra.mxu0 0.0
    %1978 = vmatprep.subr.mxu0 0.0
    %1979 = vmatpush1.msra.mxu0 0.0
    %1980 = vmatprep.subr.mxu0 0.0
    %1981 = vmatpush1.msra.mxu0 0.0
    %1982 = vmatprep.subr.mxu0 0.0
    %1983 = vmatpush1.msra.mxu0 0.0
    %1984 = vmatprep.mubr.f32.mxu0 0.0
    %1985 = vmatmul.mubr.f32.gmra.mrb[0].mxu0 %v1918
    %v1986 = vpop.f32.mrb[0].mxu0
    %v1987 = vadd.f32 0.0, %v1986
    %v1988 = vpop.f32.mrb[0].mxu0
    %1989 = vdwg.mxu0
    %1990 = vmatprep.subr.mxu0 0.0
    %1991 = vmatpush1.msra.mxu0 %v1762
    %1992 = vmatprep.subr.mxu0 0.0
    %1993 = vmatpush1.msra.mxu0 %v1843
    %1994 = vmatprep.subr.mxu0 0.0
    %1995 = vmatpush1.msra.mxu0 0.0
    %1996 = vmatprep.subr.mxu0 0.0
    %1997 = vmatpush1.msra.mxu0 0.0
    %1998 = vmatprep.subr.mxu0 0.0
    %1999 = vmatpush1.msra.mxu0 0.0
    %2000 = vmatprep.subr.mxu0 0.0
    %2001 = vmatpush1.msra.mxu0 0.0
    %2002 = vmatprep.subr.mxu0 0.0
    %2003 = vmatpush1.msra.mxu0 0.0
    %2004 = vmatprep.subr.mxu0 0.0
    %2005 = vmatpush1.msra.mxu0 0.0
    %2006 = vmatprep.subr.mxu0 0.0
    %2007 = vmatpush1.msra.mxu0 0.0
    %2008 = vmatprep.subr.mxu0 0.0
    %2009 = vmatpush1.msra.mxu0 0.0
    %2010 = vmatprep.subr.mxu0 0.0
    %2011 = vmatpush1.msra.mxu0 0.0
    %2012 = vmatprep.subr.mxu0 0.0
    %2013 = vmatpush1.msra.mxu0 0.0
    %2014 = vmatprep.subr.mxu0 0.0
    %2015 = vmatpush1.msra.mxu0 0.0
    %2016 = vmatprep.subr.mxu0 0.0
    %2017 = vmatpush1.msra.mxu0 0.0
    %2018 = vmatprep.subr.mxu0 0.0
    %2019 = vmatpush1.msra.mxu0 0.0
    %2020 = vmatprep.subr.mxu0 0.0
    %2021 = vmatpush1.msra.mxu0 0.0
    %2022 = vmatprep.subr.mxu0 0.0
    %2023 = vmatpush1.msra.mxu0 0.0
    %2024 = vmatprep.subr.mxu0 0.0
    %2025 = vmatpush1.msra.mxu0 0.0
    %2026 = vmatprep.subr.mxu0 0.0
    %2027 = vmatpush1.msra.mxu0 0.0
    %2028 = vmatprep.subr.mxu0 0.0
    %2029 = vmatpush1.msra.mxu0 0.0
    %2030 = vmatprep.subr.mxu0 0.0
    %2031 = vmatpush1.msra.mxu0 0.0
    %2032 = vmatprep.subr.mxu0 0.0
    %2033 = vmatpush1.msra.mxu0 0.0
    %2034 = vmatprep.subr.mxu0 0.0
    %2035 = vmatpush1.msra.mxu0 0.0
    %2036 = vmatprep.subr.mxu0 0.0
    %2037 = vmatpush1.msra.mxu0 0.0
    %2038 = vmatprep.subr.mxu0 0.0
    %2039 = vmatpush1.msra.mxu0 0.0
    %2040 = vmatprep.subr.mxu0 0.0
    %2041 = vmatpush1.msra.mxu0 0.0
    %2042 = vmatprep.subr.mxu0 0.0
    %2043 = vmatpush1.msra.mxu0 0.0
    %2044 = vmatprep.subr.mxu0 0.0
    %2045 = vmatpush1.msra.mxu0 0.0
    %2046 = vmatprep.subr.mxu0 0.0
    %2047 = vmatpush1.msra.mxu0 0.0
    %2048 = vmatprep.subr.mxu0 0.0
    %2049 = vmatpush1.msra.mxu0 0.0
    %2050 = vmatprep.subr.mxu0 0.0
    %2051 = vmatpush1.msra.mxu0 0.0
    %2052 = vmatprep.subr.mxu0 0.0
    %2053 = vmatpush1.msra.mxu0 0.0
    %2054 = vmatprep.mubr.f32.mxu0 0.0
    %2055 = vmatmul.mubr.f32.gmra.mrb[0].mxu0 %v1918
    %v2056 = vpop.f32.mrb[0].mxu0
    %v2057 = vadd.f32 0.0, %v2056
    %v2058 = vpop.f32.mrb[0].mxu0
    %2059 = vdwg.mxu0
    %v2060 = vmax.f32 %v1839, %v1912
    %v2061 = vmax.f32 %v1987, %v2057
    %v2062 = vmax.f32 %v2060, %v2061
    %v2063 = vld [vmem:[%s6] sm:$0x1]
    %v2065 = vlaneseq
    %v2066 = vshrl.u32 %v2065, 7
    %v2067 = vsub.s32 0, %v2066
    %v2068 = vrot.slane %v2063, %v2067
    %v2070 = vadd.f32 %v2062, %v2068
    %v2071 = vmax.f32 %v2070, 0.0
    %v2072 = vld [vmem:[#allocation2] sm:$0xff]
    %v2073 = vld [vmem:[#allocation2 + $0x8] sm:$0xff]
    %v2074 = vld [vmem:[#allocation2 + $0x10] sm:$0xff]
    %v2075 = vld [vmem:[#allocation2 + $0x18] sm:$0xff]
    %v2076 = vld [vmem:[#allocation2 + $0x20] sm:$0xff]
    %v2077 = vld [vmem:[#allocation2 + $0x28] sm:$0xff]
    %v2078 = vld [vmem:[#allocation2 + $0x30] sm:$0xff]
    %v2079 = vld [vmem:[#allocation2 + $0x38] sm:$0xff]
    %v2080 = vld [vmem:[#allocation2 + $0x40] sm:$0xff]
    %v2081 = vld [vmem:[#allocation2 + $0x48] sm:$0xff]
    %v2082 = vld [vmem:[#allocation2 + $0x50] sm:$0xff]
    %v2083 = vld [vmem:[#allocation2 + $0x58] sm:$0xff]
    %v2084 = vld [vmem:[#allocation2 + $0x60] sm:$0xff]
    %v2085 = vld [vmem:[#allocation2 + $0x68] sm:$0xff]
    %v2086 = vld [vmem:[#allocation2 + $0x70] sm:$0xf]
    %v2087 = vld [vmem:[#allocation2 + $0x78] sm:$0xf]
    %s2088 = scalar_lea.vmem [#allocation2], 128
    %v2089 = vld [vmem:[%s2088] sm:$0xff]
    %v2090 = vld [vmem:[%s2088 + $0x8] sm:$0xff]
    %v2091 = vld [vmem:[%s2088 + $0x10] sm:$0xff]
    %v2092 = vld [vmem:[%s2088 + $0x18] sm:$0xff]
    %v2093 = vld [vmem:[%s2088 + $0x20] sm:$0xff]
    %v2094 = vld [vmem:[%s2088 + $0x28] sm:$0xff]
    %v2095 = vld [vmem:[%s2088 + $0x30] sm:$0xff]
    %v2096 = vld [vmem:[%s2088 + $0x38] sm:$0xff]
    %v2097 = vld [vmem:[%s2088 + $0x40] sm:$0xff]
    %v2098 = vld [vmem:[%s2088 + $0x48] sm:$0xff]
    %v2099 = vld [vmem:[%s2088 + $0x50] sm:$0xff]
    %v2100 = vld [vmem:[%s2088 + $0x58] sm:$0xff]
    %v2101 = vld [vmem:[%s2088 + $0x60] sm:$0xff]
    %v2102 = vld [vmem:[%s2088 + $0x68] sm:$0xff]
    %v2103 = vld [vmem:[%s2088 + $0x70] sm:$0xf]
    %v2104 = vld [vmem:[%s2088 + $0x78] sm:$0xf]
    %v2106 = vrot.slane %v2071, 1
    %vm2107 = vcmask 490496
    %v2108 = vsel %vm2107, %v2106, 0
    %v2111 = vsel %vm93, %v2103, 0
    %v2114 = vsel %vm93, %v2104, 0
    %2116 = vmatprep.subr.mxu0 %v2090
    %2117 = vmatpush1.msra.mxu0 %v2089
    %2118 = vmatprep.subr.mxu0 %v2092
    %2119 = vmatpush1.msra.mxu0 %v2091
    %2120 = vmatprep.subr.mxu0 %v2094
    %2121 = vmatpush1.msra.mxu0 %v2093
    %2122 = vmatprep.subr.mxu0 %v2096
    %2123 = vmatpush1.msra.mxu0 %v2095
    %2124 = vmatprep.subr.mxu0 %v2098
    %2125 = vmatpush1.msra.mxu0 %v2097
    %2126 = vmatprep.subr.mxu0 %v2100
    %2127 = vmatpush1.msra.mxu0 %v2099
    %2128 = vmatprep.subr.mxu0 %v2102
    %2129 = vmatpush1.msra.mxu0 %v2101
    %2130 = vmatprep.subr.mxu0 %v2114
    %2131 = vmatpush1.msra.mxu0 %v2111
    %2132 = vmatprep.subr.mxu0 0.0
    %2133 = vmatpush1.msra.mxu0 0.0
    %2134 = vmatprep.subr.mxu0 0.0
    %2135 = vmatpush1.msra.mxu0 0.0
    %2136 = vmatprep.subr.mxu0 0.0
    %2137 = vmatpush1.msra.mxu0 0.0
    %2138 = vmatprep.subr.mxu0 0.0
    %2139 = vmatpush1.msra.mxu0 0.0
    %2140 = vmatprep.subr.mxu0 0.0
    %2141 = vmatpush1.msra.mxu0 0.0
    %2142 = vmatprep.subr.mxu0 0.0
    %2143 = vmatpush1.msra.mxu0 0.0
    %2144 = vmatprep.subr.mxu0 0.0
    %2145 = vmatpush1.msra.mxu0 0.0
    %2146 = vmatprep.subr.mxu0 0.0
    %2147 = vmatpush1.msra.mxu0 0.0
    %2148 = vmatprep.subr.mxu0 0.0
    %2149 = vmatpush1.msra.mxu0 0.0
    %2150 = vmatprep.subr.mxu0 0.0
    %2151 = vmatpush1.msra.mxu0 0.0
    %2152 = vmatprep.subr.mxu0 0.0
    %2153 = vmatpush1.msra.mxu0 0.0
    %2154 = vmatprep.subr.mxu0 0.0
    %2155 = vmatpush1.msra.mxu0 0.0
    %2156 = vmatprep.subr.mxu0 0.0
    %2157 = vmatpush1.msra.mxu0 0.0
    %2158 = vmatprep.subr.mxu0 0.0
    %2159 = vmatpush1.msra.mxu0 0.0
    %2160 = vmatprep.subr.mxu0 0.0
    %2161 = vmatpush1.msra.mxu0 0.0
    %2162 = vmatprep.subr.mxu0 0.0
    %2163 = vmatpush1.msra.mxu0 0.0
    %2164 = vmatprep.subr.mxu0 0.0
    %2165 = vmatpush1.msra.mxu0 0.0
    %2166 = vmatprep.subr.mxu0 0.0
    %2167 = vmatpush1.msra.mxu0 0.0
    %2168 = vmatprep.subr.mxu0 0.0
    %2169 = vmatpush1.msra.mxu0 0.0
    %2170 = vmatprep.subr.mxu0 0.0
    %2171 = vmatpush1.msra.mxu0 0.0
    %2172 = vmatprep.subr.mxu0 0.0
    %2173 = vmatpush1.msra.mxu0 0.0
    %2174 = vmatprep.subr.mxu0 0.0
    %2175 = vmatpush1.msra.mxu0 0.0
    %2176 = vmatprep.subr.mxu0 0.0
    %2177 = vmatpush1.msra.mxu0 0.0
    %2178 = vmatprep.subr.mxu0 0.0
    %2179 = vmatpush1.msra.mxu0 0.0
    %2180 = vmatprep.mubr.f32.mxu0 0.0
    %2181 = vmatmul.mubr.f32.gmra.mrb[0].mxu0 %v2108
    %v2182 = vpop.f32.mrb[0].mxu0
    %v2183 = vadd.f32 0.0, %v2182
    %v2184 = vpop.f32.mrb[0].mxu0
    %v2185 = vadd.f32 0.0, %v2184
    %2186 = vdwg.mxu0
    %v2187 = vsel %vm2107, %v2071, 0
    %v2190 = vsel %vm93, %v2086, 0
    %v2193 = vsel %vm93, %v2087, 0
    %2195 = vmatprep.subr.mxu0 %v2073
    %2196 = vmatpush1.msra.mxu0 %v2072
    %2197 = vmatprep.subr.mxu0 %v2075
    %2198 = vmatpush1.msra.mxu0 %v2074
    %2199 = vmatprep.subr.mxu0 %v2077
    %2200 = vmatpush1.msra.mxu0 %v2076
    %2201 = vmatprep.subr.mxu0 %v2079
    %2202 = vmatpush1.msra.mxu0 %v2078
    %2203 = vmatprep.subr.mxu0 %v2081
    %2204 = vmatpush1.msra.mxu0 %v2080
    %2205 = vmatprep.subr.mxu0 %v2083
    %2206 = vmatpush1.msra.mxu0 %v2082
    %2207 = vmatprep.subr.mxu0 %v2085
    %2208 = vmatpush1.msra.mxu0 %v2084
    %2209 = vmatprep.subr.mxu0 %v2193
    %2210 = vmatpush1.msra.mxu0 %v2190
    %2211 = vmatprep.subr.mxu0 0.0
    %2212 = vmatpush1.msra.mxu0 0.0
    %2213 = vmatprep.subr.mxu0 0.0
    %2214 = vmatpush1.msra.mxu0 0.0
    %2215 = vmatprep.subr.mxu0 0.0
    %2216 = vmatpush1.msra.mxu0 0.0
    %2217 = vmatprep.subr.mxu0 0.0
    %2218 = vmatpush1.msra.mxu0 0.0
    %2219 = vmatprep.subr.mxu0 0.0
    %2220 = vmatpush1.msra.mxu0 0.0
    %2221 = vmatprep.subr.mxu0 0.0
    %2222 = vmatpush1.msra.mxu0 0.0
    %2223 = vmatprep.subr.mxu0 0.0
    %2224 = vmatpush1.msra.mxu0 0.0
    %2225 = vmatprep.subr.mxu0 0.0
    %2226 = vmatpush1.msra.mxu0 0.0
    %2227 = vmatprep.subr.mxu0 0.0
    %2228 = vmatpush1.msra.mxu0 0.0
    %2229 = vmatprep.subr.mxu0 0.0
    %2230 = vmatpush1.msra.mxu0 0.0
    %2231 = vmatprep.subr.mxu0 0.0
    %2232 = vmatpush1.msra.mxu0 0.0
    %2233 = vmatprep.subr.mxu0 0.0
    %2234 = vmatpush1.msra.mxu0 0.0
    %2235 = vmatprep.subr.mxu0 0.0
    %2236 = vmatpush1.msra.mxu0 0.0
    %2237 = vmatprep.subr.mxu0 0.0
    %2238 = vmatpush1.msra.mxu0 0.0
    %2239 = vmatprep.subr.mxu0 0.0
    %2240 = vmatpush1.msra.mxu0 0.0
    %2241 = vmatprep.subr.mxu0 0.0
    %2242 = vmatpush1.msra.mxu0 0.0
    %2243 = vmatprep.subr.mxu0 0.0
    %2244 = vmatpush1.msra.mxu0 0.0
    %2245 = vmatprep.subr.mxu0 0.0
    %2246 = vmatpush1.msra.mxu0 0.0
    %2247 = vmatprep.subr.mxu0 0.0
    %2248 = vmatpush1.msra.mxu0 0.0
    %2249 = vmatprep.subr.mxu0 0.0
    %2250 = vmatpush1.msra.mxu0 0.0
    %2251 = vmatprep.subr.mxu0 0.0
    %2252 = vmatpush1.msra.mxu0 0.0
    %2253 = vmatprep.subr.mxu0 0.0
    %2254 = vmatpush1.msra.mxu0 0.0
    %2255 = vmatprep.subr.mxu0 0.0
    %2256 = vmatpush1.msra.mxu0 0.0
    %2257 = vmatprep.subr.mxu0 0.0
    %2258 = vmatpush1.msra.mxu0 0.0
    %2259 = vmatprep.mubr.f32.mxu0 0.0
    %2260 = vmatmul.mubr.f32.gmra.mrb[0].mxu0 %v2187
    %v2261 = vpop.f32.mrb[0].mxu0
    %v2262 = vadd.f32 %v2183, %v2261
    %v2263 = vpop.f32.mrb[0].mxu0
    %v2264 = vadd.f32 %v2185, %v2263
    %2265 = vdwg.mxu0
    %s2266 = scalar_lea.vmem [#allocation2], 256
    %v2267 = vld [vmem:[%s2266] sm:$0xff]
    %v2268 = vld [vmem:[%s2266 + $0x8] sm:$0xff]
    %v2269 = vld [vmem:[%s2266 + $0x10] sm:$0xff]
    %v2270 = vld [vmem:[%s2266 + $0x18] sm:$0xff]
    %v2271 = vld [vmem:[%s2266 + $0x20] sm:$0xff]
    %v2272 = vld [vmem:[%s2266 + $0x28] sm:$0xff]
    %v2273 = vld [vmem:[%s2266 + $0x30] sm:$0xff]
    %v2274 = vld [vmem:[%s2266 + $0x38] sm:$0xff]
    %v2275 = vld [vmem:[%s2266 + $0x40] sm:$0xff]
    %v2276 = vld [vmem:[%s2266 + $0x48] sm:$0xff]
    %v2277 = vld [vmem:[%s2266 + $0x50] sm:$0xff]
    %v2278 = vld [vmem:[%s2266 + $0x58] sm:$0xff]
    %v2279 = vld [vmem:[%s2266 + $0x60] sm:$0xff]
    %v2280 = vld [vmem:[%s2266 + $0x68] sm:$0xff]
    %v2281 = vld [vmem:[%s2266 + $0x70] sm:$0xf]
    %v2282 = vld [vmem:[%s2266 + $0x78] sm:$0xf]
    %v2283 = vrot.slane %v2071, 2
    %v2284 = vsel %vm2107, %v2283, 0
    %v2287 = vsel %vm93, %v2281, 0
    %v2290 = vsel %vm93, %v2282, 0
    %2292 = vmatprep.subr.mxu0 %v2268
    %2293 = vmatpush1.msra.mxu0 %v2267
    %2294 = vmatprep.subr.mxu0 %v2270
    %2295 = vmatpush1.msra.mxu0 %v2269
    %2296 = vmatprep.subr.mxu0 %v2272
    %2297 = vmatpush1.msra.mxu0 %v2271
    %2298 = vmatprep.subr.mxu0 %v2274
    %2299 = vmatpush1.msra.mxu0 %v2273
    %2300 = vmatprep.subr.mxu0 %v2276
    %2301 = vmatpush1.msra.mxu0 %v2275
    %2302 = vmatprep.subr.mxu0 %v2278
    %2303 = vmatpush1.msra.mxu0 %v2277
    %2304 = vmatprep.subr.mxu0 %v2280
    %2305 = vmatpush1.msra.mxu0 %v2279
    %2306 = vmatprep.subr.mxu0 %v2290
    %2307 = vmatpush1.msra.mxu0 %v2287
    %2308 = vmatprep.subr.mxu0 0.0
    %2309 = vmatpush1.msra.mxu0 0.0
    %2310 = vmatprep.subr.mxu0 0.0
    %2311 = vmatpush1.msra.mxu0 0.0
    %2312 = vmatprep.subr.mxu0 0.0
    %2313 = vmatpush1.msra.mxu0 0.0
    %2314 = vmatprep.subr.mxu0 0.0
    %2315 = vmatpush1.msra.mxu0 0.0
    %2316 = vmatprep.subr.mxu0 0.0
    %2317 = vmatpush1.msra.mxu0 0.0
    %2318 = vmatprep.subr.mxu0 0.0
    %2319 = vmatpush1.msra.mxu0 0.0
    %2320 = vmatprep.subr.mxu0 0.0
    %2321 = vmatpush1.msra.mxu0 0.0
    %2322 = vmatprep.subr.mxu0 0.0
    %2323 = vmatpush1.msra.mxu0 0.0
    %2324 = vmatprep.subr.mxu0 0.0
    %2325 = vmatpush1.msra.mxu0 0.0
    %2326 = vmatprep.subr.mxu0 0.0
    %2327 = vmatpush1.msra.mxu0 0.0
    %2328 = vmatprep.subr.mxu0 0.0
    %2329 = vmatpush1.msra.mxu0 0.0
    %2330 = vmatprep.subr.mxu0 0.0
    %2331 = vmatpush1.msra.mxu0 0.0
    %2332 = vmatprep.subr.mxu0 0.0
    %2333 = vmatpush1.msra.mxu0 0.0
    %2334 = vmatprep.subr.mxu0 0.0
    %2335 = vmatpush1.msra.mxu0 0.0
    %2336 = vmatprep.subr.mxu0 0.0
    %2337 = vmatpush1.msra.mxu0 0.0
    %2338 = vmatprep.subr.mxu0 0.0
    %2339 = vmatpush1.msra.mxu0 0.0
    %2340 = vmatprep.subr.mxu0 0.0
    %2341 = vmatpush1.msra.mxu0 0.0
    %2342 = vmatprep.subr.mxu0 0.0
    %2343 = vmatpush1.msra.mxu0 0.0
    %2344 = vmatprep.subr.mxu0 0.0
    %2345 = vmatpush1.msra.mxu0 0.0
    %2346 = vmatprep.subr.mxu0 0.0
    %2347 = vmatpush1.msra.mxu0 0.0
    %2348 = vmatprep.subr.mxu0 0.0
    %2349 = vmatpush1.msra.mxu0 0.0
    %2350 = vmatprep.subr.mxu0 0.0
    %2351 = vmatpush1.msra.mxu0 0.0
    %2352 = vmatprep.subr.mxu0 0.0
    %2353 = vmatpush1.msra.mxu0 0.0
    %2354 = vmatprep.subr.mxu0 0.0
    %2355 = vmatpush1.msra.mxu0 0.0
    %2356 = vmatprep.mubr.f32.mxu0 0.0
    %2357 = vmatmul.mubr.f32.gmra.mrb[0].mxu0 %v2284
    %v2358 = vpop.f32.mrb[0].mxu0
    %v2359 = vadd.f32 0.0, %v2358
    %v2360 = vpop.f32.mrb[0].mxu0
    %v2361 = vadd.f32 0.0, %v2360
    %2362 = vdwg.mxu0
    %v2363 = vadd.f32 %v2262, %v2359
    %v2364 = vadd.f32 %v2264, %v2361
    %s2365 = scalar_lea.vmem [#allocation2], 384
    %v2366 = vld [vmem:[%s2365] sm:$0xff]
    %v2367 = vld [vmem:[%s2365 + $0x8] sm:$0xff]
    %v2368 = vld [vmem:[%s2365 + $0x10] sm:$0xff]
    %v2369 = vld [vmem:[%s2365 + $0x18] sm:$0xff]
    %v2370 = vld [vmem:[%s2365 + $0x20] sm:$0xff]
    %v2371 = vld [vmem:[%s2365 + $0x28] sm:$0xff]
    %v2372 = vld [vmem:[%s2365 + $0x30] sm:$0xff]
    %v2373 = vld [vmem:[%s2365 + $0x38] sm:$0xff]
    %v2374 = vld [vmem:[%s2365 + $0x40] sm:$0xff]
    %v2375 = vld [vmem:[%s2365 + $0x48] sm:$0xff]
    %v2376 = vld [vmem:[%s2365 + $0x50] sm:$0xff]
    %v2377 = vld [vmem:[%s2365 + $0x58] sm:$0xff]
    %v2378 = vld [vmem:[%s2365 + $0x60] sm:$0xff]
    %v2379 = vld [vmem:[%s2365 + $0x68] sm:$0xff]
    %v2380 = vld [vmem:[%s2365 + $0x70] sm:$0xf]
    %v2381 = vld [vmem:[%s2365 + $0x78] sm:$0xf]
    %v2382 = vrot.slane %v2071, 3
    %v2383 = vsel %vm2107, %v2382, 0
    %v2386 = vsel %vm93, %v2380, 0
    %v2389 = vsel %vm93, %v2381, 0
    %2391 = vmatprep.subr.mxu0 %v2367
    %2392 = vmatpush1.msra.mxu0 %v2366
    %2393 = vmatprep.subr.mxu0 %v2369
    %2394 = vmatpush1.msra.mxu0 %v2368
    %2395 = vmatprep.subr.mxu0 %v2371
    %2396 = vmatpush1.msra.mxu0 %v2370
    %2397 = vmatprep.subr.mxu0 %v2373
    %2398 = vmatpush1.msra.mxu0 %v2372
    %2399 = vmatprep.subr.mxu0 %v2375
    %2400 = vmatpush1.msra.mxu0 %v2374
    %2401 = vmatprep.subr.mxu0 %v2377
    %2402 = vmatpush1.msra.mxu0 %v2376
    %2403 = vmatprep.subr.mxu0 %v2379
    %2404 = vmatpush1.msra.mxu0 %v2378
    %2405 = vmatprep.subr.mxu0 %v2389
    %2406 = vmatpush1.msra.mxu0 %v2386
    %2407 = vmatprep.subr.mxu0 0.0
    %2408 = vmatpush1.msra.mxu0 0.0
    %2409 = vmatprep.subr.mxu0 0.0
    %2410 = vmatpush1.msra.mxu0 0.0
    %2411 = vmatprep.subr.mxu0 0.0
    %2412 = vmatpush1.msra.mxu0 0.0
    %2413 = vmatprep.subr.mxu0 0.0
    %2414 = vmatpush1.msra.mxu0 0.0
    %2415 = vmatprep.subr.mxu0 0.0
    %2416 = vmatpush1.msra.mxu0 0.0
    %2417 = vmatprep.subr.mxu0 0.0
    %2418 = vmatpush1.msra.mxu0 0.0
    %2419 = vmatprep.subr.mxu0 0.0
    %2420 = vmatpush1.msra.mxu0 0.0
    %2421 = vmatprep.subr.mxu0 0.0
    %2422 = vmatpush1.msra.mxu0 0.0
    %2423 = vmatprep.subr.mxu0 0.0
    %2424 = vmatpush1.msra.mxu0 0.0
    %2425 = vmatprep.subr.mxu0 0.0
    %2426 = vmatpush1.msra.mxu0 0.0
    %2427 = vmatprep.subr.mxu0 0.0
    %2428 = vmatpush1.msra.mxu0 0.0
    %2429 = vmatprep.subr.mxu0 0.0
    %2430 = vmatpush1.msra.mxu0 0.0
    %2431 = vmatprep.subr.mxu0 0.0
    %2432 = vmatpush1.msra.mxu0 0.0
    %2433 = vmatprep.subr.mxu0 0.0
    %2434 = vmatpush1.msra.mxu0 0.0
    %2435 = vmatprep.subr.mxu0 0.0
    %2436 = vmatpush1.msra.mxu0 0.0
    %2437 = vmatprep.subr.mxu0 0.0
    %2438 = vmatpush1.msra.mxu0 0.0
    %2439 = vmatprep.subr.mxu0 0.0
    %2440 = vmatpush1.msra.mxu0 0.0
    %2441 = vmatprep.subr.mxu0 0.0
    %2442 = vmatpush1.msra.mxu0 0.0
    %2443 = vmatprep.subr.mxu0 0.0
    %2444 = vmatpush1.msra.mxu0 0.0
    %2445 = vmatprep.subr.mxu0 0.0
    %2446 = vmatpush1.msra.mxu0 0.0
    %2447 = vmatprep.subr.mxu0 0.0
    %2448 = vmatpush1.msra.mxu0 0.0
    %2449 = vmatprep.subr.mxu0 0.0
    %2450 = vmatpush1.msra.mxu0 0.0
    %2451 = vmatprep.subr.mxu0 0.0
    %2452 = vmatpush1.msra.mxu0 0.0
    %2453 = vmatprep.subr.mxu0 0.0
    %2454 = vmatpush1.msra.mxu0 0.0
    %2455 = vmatprep.mubr.f32.mxu0 0.0
    %2456 = vmatmul.mubr.f32.gmra.mrb[0].mxu0 %v2383
    %v2457 = vpop.f32.mrb[0].mxu0
    %v2458 = vadd.f32 0.0, %v2457
    %v2459 = vpop.f32.mrb[0].mxu0
    %v2460 = vadd.f32 0.0, %v2459
    %2461 = vdwg.mxu0
    %v2462 = vadd.f32 %v2363, %v2458
    %v2463 = vadd.f32 %v2364, %v2460
    %s2464 = scalar_lea.vmem [#allocation2], 512
    %v2465 = vld [vmem:[%s2464] sm:$0xff]
    %v2466 = vld [vmem:[%s2464 + $0x8] sm:$0xff]
    %v2467 = vld [vmem:[%s2464 + $0x10] sm:$0xff]
    %v2468 = vld [vmem:[%s2464 + $0x18] sm:$0xff]
    %v2469 = vld [vmem:[%s2464 + $0x20] sm:$0xff]
    %v2470 = vld [vmem:[%s2464 + $0x28] sm:$0xff]
    %v2471 = vld [vmem:[%s2464 + $0x30] sm:$0xff]
    %v2472 = vld [vmem:[%s2464 + $0x38] sm:$0xff]
    %v2473 = vld [vmem:[%s2464 + $0x40] sm:$0xff]
    %v2474 = vld [vmem:[%s2464 + $0x48] sm:$0xff]
    %v2475 = vld [vmem:[%s2464 + $0x50] sm:$0xff]
    %v2476 = vld [vmem:[%s2464 + $0x58] sm:$0xff]
    %v2477 = vld [vmem:[%s2464 + $0x60] sm:$0xff]
    %v2478 = vld [vmem:[%s2464 + $0x68] sm:$0xff]
    %v2479 = vld [vmem:[%s2464 + $0x70] sm:$0xf]
    %v2480 = vld [vmem:[%s2464 + $0x78] sm:$0xf]
    %v2481 = vrot.slane %v2071, 4
    %v2482 = vsel %vm2107, %v2481, 0
    %v2485 = vsel %vm93, %v2479, 0
    %v2488 = vsel %vm93, %v2480, 0
    %2490 = vmatprep.subr.mxu0 %v2466
    %2491 = vmatpush1.msra.mxu0 %v2465
    %2492 = vmatprep.subr.mxu0 %v2468
    %2493 = vmatpush1.msra.mxu0 %v2467
    %2494 = vmatprep.subr.mxu0 %v2470
    %2495 = vmatpush1.msra.mxu0 %v2469
    %2496 = vmatprep.subr.mxu0 %v2472
    %2497 = vmatpush1.msra.mxu0 %v2471
    %2498 = vmatprep.subr.mxu0 %v2474
    %2499 = vmatpush1.msra.mxu0 %v2473
    %2500 = vmatprep.subr.mxu0 %v2476
    %2501 = vmatpush1.msra.mxu0 %v2475
    %2502 = vmatprep.subr.mxu0 %v2478
    %2503 = vmatpush1.msra.mxu0 %v2477
    %2504 = vmatprep.subr.mxu0 %v2488
    %2505 = vmatpush1.msra.mxu0 %v2485
    %2506 = vmatprep.subr.mxu0 0.0
    %2507 = vmatpush1.msra.mxu0 0.0
    %2508 = vmatprep.subr.mxu0 0.0
    %2509 = vmatpush1.msra.mxu0 0.0
    %2510 = vmatprep.subr.mxu0 0.0
    %2511 = vmatpush1.msra.mxu0 0.0
    %2512 = vmatprep.subr.mxu0 0.0
    %2513 = vmatpush1.msra.mxu0 0.0
    %2514 = vmatprep.subr.mxu0 0.0
    %2515 = vmatpush1.msra.mxu0 0.0
    %2516 = vmatprep.subr.mxu0 0.0
    %2517 = vmatpush1.msra.mxu0 0.0
    %2518 = vmatprep.subr.mxu0 0.0
    %2519 = vmatpush1.msra.mxu0 0.0
    %2520 = vmatprep.subr.mxu0 0.0
    %2521 = vmatpush1.msra.mxu0 0.0
    %2522 = vmatprep.subr.mxu0 0.0
    %2523 = vmatpush1.msra.mxu0 0.0
    %2524 = vmatprep.subr.mxu0 0.0
    %2525 = vmatpush1.msra.mxu0 0.0
    %2526 = vmatprep.subr.mxu0 0.0
    %2527 = vmatpush1.msra.mxu0 0.0
    %2528 = vmatprep.subr.mxu0 0.0
    %2529 = vmatpush1.msra.mxu0 0.0
    %2530 = vmatprep.subr.mxu0 0.0
    %2531 = vmatpush1.msra.mxu0 0.0
    %2532 = vmatprep.subr.mxu0 0.0
    %2533 = vmatpush1.msra.mxu0 0.0
    %2534 = vmatprep.subr.mxu0 0.0
    %2535 = vmatpush1.msra.mxu0 0.0
    %2536 = vmatprep.subr.mxu0 0.0
    %2537 = vmatpush1.msra.mxu0 0.0
    %2538 = vmatprep.subr.mxu0 0.0
    %2539 = vmatpush1.msra.mxu0 0.0
    %2540 = vmatprep.subr.mxu0 0.0
    %2541 = vmatpush1.msra.mxu0 0.0
    %2542 = vmatprep.subr.mxu0 0.0
    %2543 = vmatpush1.msra.mxu0 0.0
    %2544 = vmatprep.subr.mxu0 0.0
    %2545 = vmatpush1.msra.mxu0 0.0
    %2546 = vmatprep.subr.mxu0 0.0
    %2547 = vmatpush1.msra.mxu0 0.0
    %2548 = vmatprep.subr.mxu0 0.0
    %2549 = vmatpush1.msra.mxu0 0.0
    %2550 = vmatprep.subr.mxu0 0.0
    %2551 = vmatpush1.msra.mxu0 0.0
    %2552 = vmatprep.subr.mxu0 0.0
    %2553 = vmatpush1.msra.mxu0 0.0
    %2554 = vmatprep.mubr.f32.mxu0 0.0
    %2555 = vmatmul.mubr.f32.gmra.mrb[0].mxu0 %v2482
    %v2556 = vpop.f32.mrb[0].mxu0
    %v2557 = vadd.f32 0.0, %v2556
    %v2558 = vpop.f32.mrb[0].mxu0
    %v2559 = vadd.f32 0.0, %v2558
    %2560 = vdwg.mxu0
    %v2561 = vadd.f32 %v2462, %v2557
    %v2562 = vadd.f32 %v2463, %v2559
    %v2563 = vld [vmem:[%s8] sm:$0x3]
    %v2565 = vlaneseq
    %v2566 = vshrl.u32 %v2565, 7
    %v2567 = vsub.s32 0, %v2566
    %v2568 = vrot.slane %v2563, %v2567
    %v2569 = vlaneseq
    %v2570 = vshrl.u32 %v2569, 7
    %v2571 = vsub.s32 1, %v2570
    %v2572 = vrot.slane %v2563, %v2571
    %v2575 = vadd.f32 %v2561, %v2568
    %v2576 = vadd.f32 %v2562, %v2572
    %v2577 = vmax.f32 %v2575, 0.0
    %v2578 = vmax.f32 %v2576, 0.0
    %v2579 = vld [vmem:[%s9] sm:$0xff]
    %v2580 = vld [vmem:[%s9 + $0x8] sm:$0xff]
    %v2581 = vld [vmem:[%s9 + $0x10] sm:$0xff]
    %v2582 = vld [vmem:[%s9 + $0x18] sm:$0xff]
    %v2583 = vld [vmem:[%s9 + $0x20] sm:$0xff]
    %v2584 = vld [vmem:[%s9 + $0x28] sm:$0xff]
    %v2585 = vld [vmem:[%s9 + $0x30] sm:$0xff]
    %v2586 = vld [vmem:[%s9 + $0x38] sm:$0xff]
    %v2587 = vld [vmem:[%s9 + $0x40] sm:$0xff]
    %v2588 = vld [vmem:[%s9 + $0x48] sm:$0xff]
    %v2589 = vld [vmem:[%s9 + $0x50] sm:$0xff]
    %v2590 = vld [vmem:[%s9 + $0x58] sm:$0xff]
    %v2591 = vld [vmem:[%s9 + $0x60] sm:$0xff]
    %v2592 = vld [vmem:[%s9 + $0x68] sm:$0xff]
    %v2593 = vld [vmem:[%s9 + $0x70] sm:$0xff]
    %v2594 = vld [vmem:[%s9 + $0x78] sm:$0xff]
    %v2595 = vld [vmem:[%s9 + $0x80] sm:$0xff]
    %v2596 = vld [vmem:[%s9 + $0x88] sm:$0xff]
    %v2597 = vld [vmem:[%s9 + $0x90] sm:$0xff]
    %v2598 = vld [vmem:[%s9 + $0x98] sm:$0xff]
    %v2599 = vld [vmem:[%s9 + $0xa0] sm:$0xff]
    %v2600 = vld [vmem:[%s9 + $0xa8] sm:$0xff]
    %v2601 = vld [vmem:[%s9 + $0xb0] sm:$0xff]
    %v2602 = vld [vmem:[%s9 + $0xb8] sm:$0xff]
    %v2603 = vld [vmem:[%s9 + $0xc0] sm:$0xff]
    %v2604 = vld [vmem:[%s9 + $0xc8] sm:$0xff]
    %v2605 = vld [vmem:[%s9 + $0xd0] sm:$0xff]
    %v2606 = vld [vmem:[%s9 + $0xd8] sm:$0xff]
    %v2607 = vld [vmem:[%s9 + $0xe0] sm:$0xff]
    %v2608 = vld [vmem:[%s9 + $0xe8] sm:$0xff]
    %v2609 = vld [vmem:[%s9 + $0xf0] sm:$0xff]
    %v2610 = vld [vmem:[%s9 + $0xf8] sm:$0xff]
    %v2611 = vld [vmem:[%s9 + $0x100] sm:$0xff]
    %v2612 = vld [vmem:[%s9 + $0x108] sm:$0xff]
    %v2613 = vld [vmem:[%s9 + $0x110] sm:$0xff]
    %v2614 = vld [vmem:[%s9 + $0x118] sm:$0xff]
    %v2615 = vld [vmem:[%s9 + $0x120] sm:$0xff]
    %v2616 = vld [vmem:[%s9 + $0x128] sm:$0xff]
    %v2617 = vld [vmem:[%s9 + $0x130] sm:$0xff]
    %v2618 = vld [vmem:[%s9 + $0x138] sm:$0xff]
    %v2619 = vld [vmem:[%s9 + $0x140] sm:$0xff]
    %v2620 = vld [vmem:[%s9 + $0x148] sm:$0xff]
    %v2621 = vld [vmem:[%s9 + $0x150] sm:$0xff]
    %v2622 = vld [vmem:[%s9 + $0x158] sm:$0xff]
    %v2623 = vld [vmem:[%s9 + $0x160] sm:$0xff]
    %v2624 = vld [vmem:[%s9 + $0x168] sm:$0xff]
    %v2625 = vld [vmem:[%s9 + $0x170] sm:$0xff]
    %v2626 = vld [vmem:[%s9 + $0x178] sm:$0xff]
    %v2627 = vld [vmem:[%s9 + $0x180] sm:$0xff]
    %v2628 = vld [vmem:[%s9 + $0x188] sm:$0xff]
    %v2629 = vld [vmem:[%s9 + $0x190] sm:$0xff]
    %v2630 = vld [vmem:[%s9 + $0x198] sm:$0xff]
    %v2631 = vld [vmem:[%s9 + $0x1a0] sm:$0xff]
    %v2632 = vld [vmem:[%s9 + $0x1a8] sm:$0xff]
    %v2633 = vld [vmem:[%s9 + $0x1b0] sm:$0xff]
    %v2634 = vld [vmem:[%s9 + $0x1b8] sm:$0xff]
    %v2635 = vld [vmem:[%s9 + $0x1c0] sm:$0xff]
    %v2636 = vld [vmem:[%s9 + $0x1c8] sm:$0xff]
    %v2637 = vld [vmem:[%s9 + $0x1d0] sm:$0xff]
    %v2638 = vld [vmem:[%s9 + $0x1d8] sm:$0xff]
    %v2639 = vld [vmem:[%s9 + $0x1e0] sm:$0xff]
    %v2640 = vld [vmem:[%s9 + $0x1e8] sm:$0xff]
    %v2641 = vld [vmem:[%s9 + $0x1f0] sm:$0xff]
    %v2642 = vld [vmem:[%s9 + $0x1f8] sm:$0xff]
    %v2643 = vld [vmem:[%s9 + $0x200] sm:$0xff]
    %v2644 = vld [vmem:[%s9 + $0x208] sm:$0xff]
    %v2645 = vld [vmem:[%s9 + $0x210] sm:$0xff]
    %v2646 = vld [vmem:[%s9 + $0x218] sm:$0xff]
    %v2647 = vld [vmem:[%s9 + $0x220] sm:$0xff]
    %v2648 = vld [vmem:[%s9 + $0x228] sm:$0xff]
    %v2649 = vld [vmem:[%s9 + $0x230] sm:$0xff]
    %v2650 = vld [vmem:[%s9 + $0x238] sm:$0xff]
    %v2651 = vld [vmem:[%s9 + $0x240] sm:$0xff]
    %v2652 = vld [vmem:[%s9 + $0x248] sm:$0xff]
    %v2653 = vld [vmem:[%s9 + $0x250] sm:$0xff]
    %v2654 = vld [vmem:[%s9 + $0x258] sm:$0xff]
    %v2655 = vld [vmem:[%s9 + $0x260] sm:$0xff]
    %v2656 = vld [vmem:[%s9 + $0x268] sm:$0xff]
    %v2657 = vld [vmem:[%s9 + $0x270] sm:$0xff]
    %v2658 = vld [vmem:[%s9 + $0x278] sm:$0xff]
    %v2659 = vld [vmem:[%s9 + $0x280] sm:$0xff]
    %v2660 = vld [vmem:[%s9 + $0x288] sm:$0xff]
    %v2661 = vld [vmem:[%s9 + $0x290] sm:$0xff]
    %v2662 = vld [vmem:[%s9 + $0x298] sm:$0xff]
    %v2663 = vld [vmem:[%s9 + $0x2a0] sm:$0xff]
    %v2664 = vld [vmem:[%s9 + $0x2a8] sm:$0xff]
    %v2665 = vld [vmem:[%s9 + $0x2b0] sm:$0xff]
    %v2666 = vld [vmem:[%s9 + $0x2b8] sm:$0xff]
    %v2667 = vld [vmem:[%s9 + $0x2c0] sm:$0xff]
    %v2668 = vld [vmem:[%s9 + $0x2c8] sm:$0xff]
    %v2669 = vld [vmem:[%s9 + $0x2d0] sm:$0xff]
    %v2670 = vld [vmem:[%s9 + $0x2d8] sm:$0xff]
    %v2671 = vld [vmem:[%s9 + $0x2e0] sm:$0xff]
    %v2672 = vld [vmem:[%s9 + $0x2e8] sm:$0xff]
    %v2673 = vld [vmem:[%s9 + $0x2f0] sm:$0xff]
    %v2674 = vld [vmem:[%s9 + $0x2f8] sm:$0xff]
    %v2675 = vld [vmem:[%s9 + $0x300] sm:$0xff]
    %v2676 = vld [vmem:[%s9 + $0x308] sm:$0xff]
    %v2677 = vld [vmem:[%s9 + $0x310] sm:$0xff]
    %v2678 = vld [vmem:[%s9 + $0x318] sm:$0xff]
    %v2679 = vld [vmem:[%s9 + $0x320] sm:$0xff]
    %v2680 = vld [vmem:[%s9 + $0x328] sm:$0xff]
    %v2681 = vld [vmem:[%s9 + $0x330] sm:$0xff]
    %v2682 = vld [vmem:[%s9 + $0x338] sm:$0xff]
    %v2683 = vld [vmem:[%s9 + $0x340] sm:$0xff]
    %v2684 = vld [vmem:[%s9 + $0x348] sm:$0xff]
    %v2685 = vld [vmem:[%s9 + $0x350] sm:$0xff]
    %v2686 = vld [vmem:[%s9 + $0x358] sm:$0xff]
    %v2687 = vld [vmem:[%s9 + $0x360] sm:$0xff]
    %v2688 = vld [vmem:[%s9 + $0x368] sm:$0xff]
    %v2689 = vld [vmem:[%s9 + $0x370] sm:$0xff]
    %v2690 = vld [vmem:[%s9 + $0x378] sm:$0xff]
    %v2691 = vld [vmem:[%s9 + $0x380] sm:$0xff]
    %v2692 = vld [vmem:[%s9 + $0x388] sm:$0xff]
    %v2693 = vld [vmem:[%s9 + $0x390] sm:$0xff]
    %v2694 = vld [vmem:[%s9 + $0x398] sm:$0xff]
    %v2695 = vld [vmem:[%s9 + $0x3a0] sm:$0xff]
    %v2696 = vld [vmem:[%s9 + $0x3a8] sm:$0xff]
    %v2697 = vld [vmem:[%s9 + $0x3b0] sm:$0xff]
    %v2698 = vld [vmem:[%s9 + $0x3b8] sm:$0xff]
    %v2699 = vld [vmem:[%s9 + $0x3c0] sm:$0xff]
    %v2700 = vld [vmem:[%s9 + $0x3c8] sm:$0xff]
    %v2701 = vld [vmem:[%s9 + $0x3d0] sm:$0xff]
    %v2702 = vld [vmem:[%s9 + $0x3d8] sm:$0xff]
    %v2703 = vld [vmem:[%s9 + $0x3e0] sm:$0xff]
    %v2704 = vld [vmem:[%s9 + $0x3e8] sm:$0xff]
    %v2705 = vld [vmem:[%s9 + $0x3f0] sm:$0xff]
    %v2706 = vld [vmem:[%s9 + $0x3f8] sm:$0xff]
    %v2707 = vld [vmem:[%s9 + $0x400] sm:$0xff]
    %v2708 = vld [vmem:[%s9 + $0x408] sm:$0xff]
    %v2709 = vld [vmem:[%s9 + $0x410] sm:$0xff]
    %v2710 = vld [vmem:[%s9 + $0x418] sm:$0xff]
    %v2711 = vld [vmem:[%s9 + $0x420] sm:$0xff]
    %v2712 = vld [vmem:[%s9 + $0x428] sm:$0xff]
    %v2713 = vld [vmem:[%s9 + $0x430] sm:$0xff]
    %v2714 = vld [vmem:[%s9 + $0x438] sm:$0xff]
    %v2715 = vld [vmem:[%s9 + $0x440] sm:$0xff]
    %v2716 = vld [vmem:[%s9 + $0x448] sm:$0xff]
    %v2717 = vld [vmem:[%s9 + $0x450] sm:$0xff]
    %v2718 = vld [vmem:[%s9 + $0x458] sm:$0xff]
    %v2719 = vld [vmem:[%s9 + $0x460] sm:$0xff]
    %v2720 = vld [vmem:[%s9 + $0x468] sm:$0xff]
    %v2721 = vld [vmem:[%s9 + $0x470] sm:$0xff]
    %v2722 = vld [vmem:[%s9 + $0x478] sm:$0xff]
    %v2723 = vld [vmem:[%s9 + $0x480] sm:$0xff]
    %v2724 = vld [vmem:[%s9 + $0x488] sm:$0xff]
    %v2725 = vld [vmem:[%s9 + $0x490] sm:$0xff]
    %v2726 = vld [vmem:[%s9 + $0x498] sm:$0xff]
    %v2727 = vld [vmem:[%s9 + $0x4a0] sm:$0xff]
    %v2728 = vld [vmem:[%s9 + $0x4a8] sm:$0xff]
    %v2729 = vld [vmem:[%s9 + $0x4b0] sm:$0xff]
    %v2730 = vld [vmem:[%s9 + $0x4b8] sm:$0xff]
    %v2731 = vld [vmem:[%s9 + $0x4c0] sm:$0xff]
    %v2732 = vld [vmem:[%s9 + $0x4c8] sm:$0xff]
    %v2733 = vld [vmem:[%s9 + $0x4d0] sm:$0xff]
    %v2734 = vld [vmem:[%s9 + $0x4d8] sm:$0xff]
    %v2735 = vld [vmem:[%s9 + $0x4e0] sm:$0xff]
    %v2736 = vld [vmem:[%s9 + $0x4e8] sm:$0xff]
    %v2737 = vld [vmem:[%s9 + $0x4f0] sm:$0xff]
    %v2738 = vld [vmem:[%s9 + $0x4f8] sm:$0xff]
    %v2739 = vld [vmem:[%s9 + $0x500] sm:$0xff]
    %v2740 = vld [vmem:[%s9 + $0x508] sm:$0xff]
    %v2741 = vld [vmem:[%s9 + $0x510] sm:$0xff]
    %v2742 = vld [vmem:[%s9 + $0x518] sm:$0xff]
    %v2743 = vld [vmem:[%s9 + $0x520] sm:$0xff]
    %v2744 = vld [vmem:[%s9 + $0x528] sm:$0xff]
    %v2745 = vld [vmem:[%s9 + $0x530] sm:$0xff]
    %v2746 = vld [vmem:[%s9 + $0x538] sm:$0xff]
    %v2747 = vld [vmem:[%s9 + $0x540] sm:$0xff]
    %v2748 = vld [vmem:[%s9 + $0x548] sm:$0xff]
    %v2749 = vld [vmem:[%s9 + $0x550] sm:$0xff]
    %v2750 = vld [vmem:[%s9 + $0x558] sm:$0xff]
    %v2751 = vld [vmem:[%s9 + $0x560] sm:$0xff]
    %v2752 = vld [vmem:[%s9 + $0x568] sm:$0xff]
    %v2753 = vld [vmem:[%s9 + $0x570] sm:$0xff]
    %v2754 = vld [vmem:[%s9 + $0x578] sm:$0xff]
    %v2755 = vld [vmem:[%s9 + $0x580] sm:$0xff]
    %v2756 = vld [vmem:[%s9 + $0x588] sm:$0xff]
    %v2757 = vld [vmem:[%s9 + $0x590] sm:$0xff]
    %v2758 = vld [vmem:[%s9 + $0x598] sm:$0xff]
    %v2759 = vld [vmem:[%s9 + $0x5a0] sm:$0xff]
    %v2760 = vld [vmem:[%s9 + $0x5a8] sm:$0xff]
    %v2761 = vld [vmem:[%s9 + $0x5b0] sm:$0xff]
    %v2762 = vld [vmem:[%s9 + $0x5b8] sm:$0xff]
    %v2763 = vld [vmem:[%s9 + $0x5c0] sm:$0xff]
    %v2764 = vld [vmem:[%s9 + $0x5c8] sm:$0xff]
    %v2765 = vld [vmem:[%s9 + $0x5d0] sm:$0xff]
    %v2766 = vld [vmem:[%s9 + $0x5d8] sm:$0xff]
    %v2767 = vld [vmem:[%s9 + $0x5e0] sm:$0xff]
    %v2768 = vld [vmem:[%s9 + $0x5e8] sm:$0xff]
    %v2769 = vld [vmem:[%s9 + $0x5f0] sm:$0xff]
    %v2770 = vld [vmem:[%s9 + $0x5f8] sm:$0xff]
    %v2771 = vld [vmem:[%s9 + $0x600] sm:$0xff]
    %v2772 = vld [vmem:[%s9 + $0x608] sm:$0xff]
    %v2773 = vld [vmem:[%s9 + $0x610] sm:$0xff]
    %v2774 = vld [vmem:[%s9 + $0x618] sm:$0xff]
    %v2775 = vld [vmem:[%s9 + $0x620] sm:$0xff]
    %v2776 = vld [vmem:[%s9 + $0x628] sm:$0xff]
    %v2777 = vld [vmem:[%s9 + $0x630] sm:$0xff]
    %v2778 = vld [vmem:[%s9 + $0x638] sm:$0xff]
    %v2779 = vld [vmem:[%s9 + $0x640] sm:$0xff]
    %v2780 = vld [vmem:[%s9 + $0x648] sm:$0xff]
    %v2781 = vld [vmem:[%s9 + $0x650] sm:$0xff]
    %v2782 = vld [vmem:[%s9 + $0x658] sm:$0xff]
    %v2783 = vld [vmem:[%s9 + $0x660] sm:$0xff]
    %v2784 = vld [vmem:[%s9 + $0x668] sm:$0xff]
    %v2785 = vld [vmem:[%s9 + $0x670] sm:$0xff]
    %v2786 = vld [vmem:[%s9 + $0x678] sm:$0xff]
    %v2787 = vld [vmem:[%s9 + $0x680] sm:$0xff]
    %v2788 = vld [vmem:[%s9 + $0x688] sm:$0xff]
    %v2789 = vld [vmem:[%s9 + $0x690] sm:$0xff]
    %v2790 = vld [vmem:[%s9 + $0x698] sm:$0xff]
    %v2791 = vld [vmem:[%s9 + $0x6a0] sm:$0xff]
    %v2792 = vld [vmem:[%s9 + $0x6a8] sm:$0xff]
    %v2793 = vld [vmem:[%s9 + $0x6b0] sm:$0xff]
    %v2794 = vld [vmem:[%s9 + $0x6b8] sm:$0xff]
    %v2795 = vld [vmem:[%s9 + $0x6c0] sm:$0xff]
    %v2796 = vld [vmem:[%s9 + $0x6c8] sm:$0xff]
    %v2797 = vld [vmem:[%s9 + $0x6d0] sm:$0xff]
    %v2798 = vld [vmem:[%s9 + $0x6d8] sm:$0xff]
    %v2799 = vld [vmem:[%s9 + $0x6e0] sm:$0xff]
    %v2800 = vld [vmem:[%s9 + $0x6e8] sm:$0xff]
    %v2801 = vld [vmem:[%s9 + $0x6f0] sm:$0xff]
    %v2802 = vld [vmem:[%s9 + $0x6f8] sm:$0xff]
    %v2803 = vld [vmem:[%s9 + $0x700] sm:$0xff]
    %v2804 = vld [vmem:[%s9 + $0x708] sm:$0xff]
    %v2805 = vld [vmem:[%s9 + $0x710] sm:$0xff]
    %v2806 = vld [vmem:[%s9 + $0x718] sm:$0xff]
    %v2807 = vld [vmem:[%s9 + $0x720] sm:$0xff]
    %v2808 = vld [vmem:[%s9 + $0x728] sm:$0xff]
    %v2809 = vld [vmem:[%s9 + $0x730] sm:$0xff]
    %v2810 = vld [vmem:[%s9 + $0x738] sm:$0xff]
    %v2811 = vld [vmem:[%s9 + $0x740] sm:$0xff]
    %v2812 = vld [vmem:[%s9 + $0x748] sm:$0xff]
    %v2813 = vld [vmem:[%s9 + $0x750] sm:$0xff]
    %v2814 = vld [vmem:[%s9 + $0x758] sm:$0xff]
    %v2815 = vld [vmem:[%s9 + $0x760] sm:$0xff]
    %v2816 = vld [vmem:[%s9 + $0x768] sm:$0xff]
    %v2817 = vld [vmem:[%s9 + $0x770] sm:$0xff]
    %v2818 = vld [vmem:[%s9 + $0x778] sm:$0xff]
    %v2819 = vld [vmem:[%s9 + $0x780] sm:$0xff]
    %v2820 = vld [vmem:[%s9 + $0x788] sm:$0xff]
    %v2821 = vld [vmem:[%s9 + $0x790] sm:$0xff]
    %v2822 = vld [vmem:[%s9 + $0x798] sm:$0xff]
    %v2823 = vld [vmem:[%s9 + $0x7a0] sm:$0xff]
    %v2824 = vld [vmem:[%s9 + $0x7a8] sm:$0xff]
    %v2825 = vld [vmem:[%s9 + $0x7b0] sm:$0xff]
    %v2826 = vld [vmem:[%s9 + $0x7b8] sm:$0xff]
    %v2827 = vld [vmem:[%s9 + $0x7c0] sm:$0xff]
    %v2828 = vld [vmem:[%s9 + $0x7c8] sm:$0xff]
    %v2829 = vld [vmem:[%s9 + $0x7d0] sm:$0xff]
    %v2830 = vld [vmem:[%s9 + $0x7d8] sm:$0xff]
    %v2831 = vld [vmem:[%s9 + $0x7e0] sm:$0xff]
    %v2832 = vld [vmem:[%s9 + $0x7e8] sm:$0xff]
    %v2833 = vld [vmem:[%s9 + $0x7f0] sm:$0xff]
    %v2834 = vld [vmem:[%s9 + $0x7f8] sm:$0xff]
    %v2835 = vld [vmem:[%s10] sm:$0xff]
    %v2837 = vlaneseq
    %v2838 = vshrl.u32 %v2837, 7
    %v2839 = vsub.s32 0, %v2838
    %v2840 = vrot.slane %v2835, %v2839
    %v2841 = vlaneseq
    %v2842 = vshrl.u32 %v2841, 7
    %v2843 = vsub.s32 1, %v2842
    %v2844 = vrot.slane %v2835, %v2843
    %v2845 = vlaneseq
    %v2846 = vshrl.u32 %v2845, 7
    %v2847 = vsub.s32 2, %v2846
    %v2848 = vrot.slane %v2835, %v2847
    %v2849 = vlaneseq
    %v2850 = vshrl.u32 %v2849, 7
    %v2851 = vsub.s32 3, %v2850
    %v2852 = vrot.slane %v2835, %v2851
    %v2853 = vlaneseq
    %v2854 = vshrl.u32 %v2853, 7
    %v2855 = vsub.s32 4, %v2854
    %v2856 = vrot.slane %v2835, %v2855
    %v2857 = vlaneseq
    %v2858 = vshrl.u32 %v2857, 7
    %v2859 = vsub.s32 5, %v2858
    %v2860 = vrot.slane %v2835, %v2859
    %v2861 = vlaneseq
    %v2862 = vshrl.u32 %v2861, 7
    %v2863 = vsub.s32 6, %v2862
    %v2864 = vrot.slane %v2835, %v2863
    %v2865 = vlaneseq
    %v2866 = vshrl.u32 %v2865, 7
    %v2867 = vsub.s32 7, %v2866
    %v2868 = vrot.slane %v2835, %v2867
    %2877 = vmatprep.subr.mxu0 %v2580
    %2878 = vmatpush1.msra.mxu0 %v2579
    %2879 = vmatprep.subr.mxu0 %v2588
    %2880 = vmatpush1.msra.mxu0 %v2587
    %2881 = vmatprep.subr.mxu0 %v2596
    %2882 = vmatpush1.msra.mxu0 %v2595
    %2883 = vmatprep.subr.mxu0 %v2604
    %2884 = vmatpush1.msra.mxu0 %v2603
    %2885 = vmatprep.subr.mxu0 %v2612
    %2886 = vmatpush1.msra.mxu0 %v2611
    %2887 = vmatprep.subr.mxu0 %v2620
    %2888 = vmatpush1.msra.mxu0 %v2619
    %2889 = vmatprep.subr.mxu0 %v2628
    %2890 = vmatpush1.msra.mxu0 %v2627
    %2891 = vmatprep.subr.mxu0 %v2636
    %2892 = vmatpush1.msra.mxu0 %v2635
    %2893 = vmatprep.subr.mxu0 %v2644
    %2894 = vmatpush1.msra.mxu0 %v2643
    %2895 = vmatprep.subr.mxu0 %v2652
    %2896 = vmatpush1.msra.mxu0 %v2651
    %2897 = vmatprep.subr.mxu0 %v2660
    %2898 = vmatpush1.msra.mxu0 %v2659
    %2899 = vmatprep.subr.mxu0 %v2668
    %2900 = vmatpush1.msra.mxu0 %v2667
    %2901 = vmatprep.subr.mxu0 %v2676
    %2902 = vmatpush1.msra.mxu0 %v2675
    %2903 = vmatprep.subr.mxu0 %v2684
    %2904 = vmatpush1.msra.mxu0 %v2683
    %2905 = vmatprep.subr.mxu0 %v2692
    %2906 = vmatpush1.msra.mxu0 %v2691
    %2907 = vmatprep.subr.mxu0 %v2700
    %2908 = vmatpush1.msra.mxu0 %v2699
    %2909 = vmatprep.subr.mxu0 %v2708
    %2910 = vmatpush1.msra.mxu0 %v2707
    %2911 = vmatprep.subr.mxu0 %v2716
    %2912 = vmatpush1.msra.mxu0 %v2715
    %2913 = vmatprep.subr.mxu0 %v2724
    %2914 = vmatpush1.msra.mxu0 %v2723
    %2915 = vmatprep.subr.mxu0 %v2732
    %2916 = vmatpush1.msra.mxu0 %v2731
    %2917 = vmatprep.subr.mxu0 %v2740
    %2918 = vmatpush1.msra.mxu0 %v2739
    %2919 = vmatprep.subr.mxu0 %v2748
    %2920 = vmatpush1.msra.mxu0 %v2747
    %2921 = vmatprep.subr.mxu0 %v2756
    %2922 = vmatpush1.msra.mxu0 %v2755
    %2923 = vmatprep.subr.mxu0 %v2764
    %2924 = vmatpush1.msra.mxu0 %v2763
    %2925 = vmatprep.subr.mxu0 %v2772
    %2926 = vmatpush1.msra.mxu0 %v2771
    %2927 = vmatprep.subr.mxu0 %v2780
    %2928 = vmatpush1.msra.mxu0 %v2779
    %2929 = vmatprep.subr.mxu0 %v2788
    %2930 = vmatpush1.msra.mxu0 %v2787
    %2931 = vmatprep.subr.mxu0 %v2796
    %2932 = vmatpush1.msra.mxu0 %v2795
    %2933 = vmatprep.subr.mxu0 %v2804
    %2934 = vmatpush1.msra.mxu0 %v2803
    %2935 = vmatprep.subr.mxu0 %v2812
    %2936 = vmatpush1.msra.mxu0 %v2811
    %2937 = vmatprep.subr.mxu0 %v2820
    %2938 = vmatpush1.msra.mxu0 %v2819
    %2939 = vmatprep.subr.mxu0 %v2828
    %2940 = vmatpush1.msra.mxu0 %v2827
    %2941 = vmatprep.mubr.f32.mxu0 %v2578
    %2942 = vmatmul.mubr.f32.gmra.mrb[0].mxu0 %v2577
    %v2943 = vpop.f32.mrb[0].mxu0
    %v2944 = vadd.f32 %v2840, %v2943
    %v2945 = vpop.f32.mrb[0].mxu0
    %v2946 = vadd.f32 %v2844, %v2945
    %2947 = vdwg.mxu0
    %2948 = vmatprep.subr.mxu0 %v2582
    %2949 = vmatpush1.msra.mxu0 %v2581
    %2950 = vmatprep.subr.mxu0 %v2590
    %2951 = vmatpush1.msra.mxu0 %v2589
    %2952 = vmatprep.subr.mxu0 %v2598
    %2953 = vmatpush1.msra.mxu0 %v2597
    %2954 = vmatprep.subr.mxu0 %v2606
    %2955 = vmatpush1.msra.mxu0 %v2605
    %2956 = vmatprep.subr.mxu0 %v2614
    %2957 = vmatpush1.msra.mxu0 %v2613
    %2958 = vmatprep.subr.mxu0 %v2622
    %2959 = vmatpush1.msra.mxu0 %v2621
    %2960 = vmatprep.subr.mxu0 %v2630
    %2961 = vmatpush1.msra.mxu0 %v2629
    %2962 = vmatprep.subr.mxu0 %v2638
    %2963 = vmatpush1.msra.mxu0 %v2637
    %2964 = vmatprep.subr.mxu0 %v2646
    %2965 = vmatpush1.msra.mxu0 %v2645
    %2966 = vmatprep.subr.mxu0 %v2654
    %2967 = vmatpush1.msra.mxu0 %v2653
    %2968 = vmatprep.subr.mxu0 %v2662
    %2969 = vmatpush1.msra.mxu0 %v2661
    %2970 = vmatprep.subr.mxu0 %v2670
    %2971 = vmatpush1.msra.mxu0 %v2669
    %2972 = vmatprep.subr.mxu0 %v2678
    %2973 = vmatpush1.msra.mxu0 %v2677
    %2974 = vmatprep.subr.mxu0 %v2686
    %2975 = vmatpush1.msra.mxu0 %v2685
    %2976 = vmatprep.subr.mxu0 %v2694
    %2977 = vmatpush1.msra.mxu0 %v2693
    %2978 = vmatprep.subr.mxu0 %v2702
    %2979 = vmatpush1.msra.mxu0 %v2701
    %2980 = vmatprep.subr.mxu0 %v2710
    %2981 = vmatpush1.msra.mxu0 %v2709
    %2982 = vmatprep.subr.mxu0 %v2718
    %2983 = vmatpush1.msra.mxu0 %v2717
    %2984 = vmatprep.subr.mxu0 %v2726
    %2985 = vmatpush1.msra.mxu0 %v2725
    %2986 = vmatprep.subr.mxu0 %v2734
    %2987 = vmatpush1.msra.mxu0 %v2733
    %2988 = vmatprep.subr.mxu0 %v2742
    %2989 = vmatpush1.msra.mxu0 %v2741
    %2990 = vmatprep.subr.mxu0 %v2750
    %2991 = vmatpush1.msra.mxu0 %v2749
    %2992 = vmatprep.subr.mxu0 %v2758
    %2993 = vmatpush1.msra.mxu0 %v2757
    %2994 = vmatprep.subr.mxu0 %v2766
    %2995 = vmatpush1.msra.mxu0 %v2765
    %2996 = vmatprep.subr.mxu0 %v2774
    %2997 = vmatpush1.msra.mxu0 %v2773
    %2998 = vmatprep.subr.mxu0 %v2782
    %2999 = vmatpush1.msra.mxu0 %v2781
    %3000 = vmatprep.subr.mxu0 %v2790
    %3001 = vmatpush1.msra.mxu0 %v2789
    %3002 = vmatprep.subr.mxu0 %v2798
    %3003 = vmatpush1.msra.mxu0 %v2797
    %3004 = vmatprep.subr.mxu0 %v2806
    %3005 = vmatpush1.msra.mxu0 %v2805
    %3006 = vmatprep.subr.mxu0 %v2814
    %3007 = vmatpush1.msra.mxu0 %v2813
    %3008 = vmatprep.subr.mxu0 %v2822
    %3009 = vmatpush1.msra.mxu0 %v2821
    %3010 = vmatprep.subr.mxu0 %v2830
    %3011 = vmatpush1.msra.mxu0 %v2829
    %3012 = vmatprep.mubr.f32.mxu0 %v2578
    %3013 = vmatmul.mubr.f32.gmra.mrb[0].mxu0 %v2577
    %v3014 = vpop.f32.mrb[0].mxu0
    %v3015 = vadd.f32 %v2848, %v3014
    %v3016 = vpop.f32.mrb[0].mxu0
    %v3017 = vadd.f32 %v2852, %v3016
    %3018 = vdwg.mxu0
    %3019 = vmatprep.subr.mxu0 %v2584
    %3020 = vmatpush1.msra.mxu0 %v2583
    %3021 = vmatprep.subr.mxu0 %v2592
    %3022 = vmatpush1.msra.mxu0 %v2591
    %3023 = vmatprep.subr.mxu0 %v2600
    %3024 = vmatpush1.msra.mxu0 %v2599
    %3025 = vmatprep.subr.mxu0 %v2608
    %3026 = vmatpush1.msra.mxu0 %v2607
    %3027 = vmatprep.subr.mxu0 %v2616
    %3028 = vmatpush1.msra.mxu0 %v2615
    %3029 = vmatprep.subr.mxu0 %v2624
    %3030 = vmatpush1.msra.mxu0 %v2623
    %3031 = vmatprep.subr.mxu0 %v2632
    %3032 = vmatpush1.msra.mxu0 %v2631
    %3033 = vmatprep.subr.mxu0 %v2640
    %3034 = vmatpush1.msra.mxu0 %v2639
    %3035 = vmatprep.subr.mxu0 %v2648
    %3036 = vmatpush1.msra.mxu0 %v2647
    %3037 = vmatprep.subr.mxu0 %v2656
    %3038 = vmatpush1.msra.mxu0 %v2655
    %3039 = vmatprep.subr.mxu0 %v2664
    %3040 = vmatpush1.msra.mxu0 %v2663
    %3041 = vmatprep.subr.mxu0 %v2672
    %3042 = vmatpush1.msra.mxu0 %v2671
    %3043 = vmatprep.subr.mxu0 %v2680
    %3044 = vmatpush1.msra.mxu0 %v2679
    %3045 = vmatprep.subr.mxu0 %v2688
    %3046 = vmatpush1.msra.mxu0 %v2687
    %3047 = vmatprep.subr.mxu0 %v2696
    %3048 = vmatpush1.msra.mxu0 %v2695
    %3049 = vmatprep.subr.mxu0 %v2704
    %3050 = vmatpush1.msra.mxu0 %v2703
    %3051 = vmatprep.subr.mxu0 %v2712
    %3052 = vmatpush1.msra.mxu0 %v2711
    %3053 = vmatprep.subr.mxu0 %v2720
    %3054 = vmatpush1.msra.mxu0 %v2719
    %3055 = vmatprep.subr.mxu0 %v2728
    %3056 = vmatpush1.msra.mxu0 %v2727
    %3057 = vmatprep.subr.mxu0 %v2736
    %3058 = vmatpush1.msra.mxu0 %v2735
    %3059 = vmatprep.subr.mxu0 %v2744
    %3060 = vmatpush1.msra.mxu0 %v2743
    %3061 = vmatprep.subr.mxu0 %v2752
    %3062 = vmatpush1.msra.mxu0 %v2751
    %3063 = vmatprep.subr.mxu0 %v2760
    %3064 = vmatpush1.msra.mxu0 %v2759
    %3065 = vmatprep.subr.mxu0 %v2768
    %3066 = vmatpush1.msra.mxu0 %v2767
    %3067 = vmatprep.subr.mxu0 %v2776
    %3068 = vmatpush1.msra.mxu0 %v2775
    %3069 = vmatprep.subr.mxu0 %v2784
    %3070 = vmatpush1.msra.mxu0 %v2783
    %3071 = vmatprep.subr.mxu0 %v2792
    %3072 = vmatpush1.msra.mxu0 %v2791
    %3073 = vmatprep.subr.mxu0 %v2800
    %3074 = vmatpush1.msra.mxu0 %v2799
    %3075 = vmatprep.subr.mxu0 %v2808
    %3076 = vmatpush1.msra.mxu0 %v2807
    %3077 = vmatprep.subr.mxu0 %v2816
    %3078 = vmatpush1.msra.mxu0 %v2815
    %3079 = vmatprep.subr.mxu0 %v2824
    %3080 = vmatpush1.msra.mxu0 %v2823
    %3081 = vmatprep.subr.mxu0 %v2832
    %3082 = vmatpush1.msra.mxu0 %v2831
    %3083 = vmatprep.mubr.f32.mxu0 %v2578
    %3084 = vmatmul.mubr.f32.gmra.mrb[0].mxu0 %v2577
    %v3085 = vpop.f32.mrb[0].mxu0
    %v3086 = vadd.f32 %v2856, %v3085
    %v3087 = vpop.f32.mrb[0].mxu0
    %v3088 = vadd.f32 %v2860, %v3087
    %3089 = vdwg.mxu0
    %3090 = vmatprep.subr.mxu0 %v2586
    %3091 = vmatpush1.msra.mxu0 %v2585
    %3092 = vmatprep.subr.mxu0 %v2594
    %3093 = vmatpush1.msra.mxu0 %v2593
    %3094 = vmatprep.subr.mxu0 %v2602
    %3095 = vmatpush1.msra.mxu0 %v2601
    %3096 = vmatprep.subr.mxu0 %v2610
    %3097 = vmatpush1.msra.mxu0 %v2609
    %3098 = vmatprep.subr.mxu0 %v2618
    %3099 = vmatpush1.msra.mxu0 %v2617
    %3100 = vmatprep.subr.mxu0 %v2626
    %3101 = vmatpush1.msra.mxu0 %v2625
    %3102 = vmatprep.subr.mxu0 %v2634
    %3103 = vmatpush1.msra.mxu0 %v2633
    %3104 = vmatprep.subr.mxu0 %v2642
    %3105 = vmatpush1.msra.mxu0 %v2641
    %3106 = vmatprep.subr.mxu0 %v2650
    %3107 = vmatpush1.msra.mxu0 %v2649
    %3108 = vmatprep.subr.mxu0 %v2658
    %3109 = vmatpush1.msra.mxu0 %v2657
    %3110 = vmatprep.subr.mxu0 %v2666
    %3111 = vmatpush1.msra.mxu0 %v2665
    %3112 = vmatprep.subr.mxu0 %v2674
    %3113 = vmatpush1.msra.mxu0 %v2673
    %3114 = vmatprep.subr.mxu0 %v2682
    %3115 = vmatpush1.msra.mxu0 %v2681
    %3116 = vmatprep.subr.mxu0 %v2690
    %3117 = vmatpush1.msra.mxu0 %v2689
    %3118 = vmatprep.subr.mxu0 %v2698
    %3119 = vmatpush1.msra.mxu0 %v2697
    %3120 = vmatprep.subr.mxu0 %v2706
    %3121 = vmatpush1.msra.mxu0 %v2705
    %3122 = vmatprep.subr.mxu0 %v2714
    %3123 = vmatpush1.msra.mxu0 %v2713
    %3124 = vmatprep.subr.mxu0 %v2722
    %3125 = vmatpush1.msra.mxu0 %v2721
    %3126 = vmatprep.subr.mxu0 %v2730
    %3127 = vmatpush1.msra.mxu0 %v2729
    %3128 = vmatprep.subr.mxu0 %v2738
    %3129 = vmatpush1.msra.mxu0 %v2737
    %3130 = vmatprep.subr.mxu0 %v2746
    %3131 = vmatpush1.msra.mxu0 %v2745
    %3132 = vmatprep.subr.mxu0 %v2754
    %3133 = vmatpush1.msra.mxu0 %v2753
    %3134 = vmatprep.subr.mxu0 %v2762
    %3135 = vmatpush1.msra.mxu0 %v2761
    %3136 = vmatprep.subr.mxu0 %v2770
    %3137 = vmatpush1.msra.mxu0 %v2769
    %3138 = vmatprep.subr.mxu0 %v2778
    %3139 = vmatpush1.msra.mxu0 %v2777
    %3140 = vmatprep.subr.mxu0 %v2786
    %3141 = vmatpush1.msra.mxu0 %v2785
    %3142 = vmatprep.subr.mxu0 %v2794
    %3143 = vmatpush1.msra.mxu0 %v2793
    %3144 = vmatprep.subr.mxu0 %v2802
    %3145 = vmatpush1.msra.mxu0 %v2801
    %3146 = vmatprep.subr.mxu0 %v2810
    %3147 = vmatpush1.msra.mxu0 %v2809
    %3148 = vmatprep.subr.mxu0 %v2818
    %3149 = vmatpush1.msra.mxu0 %v2817
    %3150 = vmatprep.subr.mxu0 %v2826
    %3151 = vmatpush1.msra.mxu0 %v2825
    %3152 = vmatprep.subr.mxu0 %v2834
    %3153 = vmatpush1.msra.mxu0 %v2833
    %3154 = vmatprep.mubr.f32.mxu0 %v2578
    %3155 = vmatmul.mubr.f32.gmra.mrb[0].mxu0 %v2577
    %v3156 = vpop.f32.mrb[0].mxu0
    %v3157 = vadd.f32 %v2864, %v3156
    %v3158 = vpop.f32.mrb[0].mxu0
    %v3159 = vadd.f32 %v2868, %v3158
    %3160 = vdwg.mxu0
    %v3161 = vmax.f32 %v2944, 0.0
    %v3162 = vmax.f32 %v2946, 0.0
    %v3163 = vmax.f32 %v3015, 0.0
    %v3164 = vmax.f32 %v3017, 0.0
    %v3165 = vmax.f32 %v3086, 0.0
    %v3166 = vmax.f32 %v3088, 0.0
    %v3167 = vmax.f32 %v3157, 0.0
    %v3168 = vmax.f32 %v3159, 0.0
    %v3169 = vld [vmem:[%s11] sm:$0xff]
    %v3170 = vld [vmem:[%s11 + $0x8] sm:$0xff]
    %v3171 = vld [vmem:[%s11 + $0x10] sm:$0xff]
    %v3172 = vld [vmem:[%s11 + $0x18] sm:$0xff]
    %v3173 = vld [vmem:[%s11 + $0x20] sm:$0xff]
    %v3174 = vld [vmem:[%s11 + $0x28] sm:$0xff]
    %v3175 = vld [vmem:[%s11 + $0x30] sm:$0xff]
    %v3176 = vld [vmem:[%s11 + $0x38] sm:$0xff]
    %v3177 = vld [vmem:[%s11 + $0x40] sm:$0xff]
    %v3178 = vld [vmem:[%s11 + $0x48] sm:$0xff]
    %v3179 = vld [vmem:[%s11 + $0x50] sm:$0xff]
    %v3180 = vld [vmem:[%s11 + $0x58] sm:$0xff]
    %v3181 = vld [vmem:[%s11 + $0x60] sm:$0xff]
    %v3182 = vld [vmem:[%s11 + $0x68] sm:$0xff]
    %v3183 = vld [vmem:[%s11 + $0x70] sm:$0xff]
    %v3184 = vld [vmem:[%s11 + $0x78] sm:$0xff]
    %v3185 = vld [vmem:[%s11 + $0x80] sm:$0xff]
    %v3186 = vld [vmem:[%s11 + $0x88] sm:$0xff]
    %v3187 = vld [vmem:[%s11 + $0x90] sm:$0xff]
    %v3188 = vld [vmem:[%s11 + $0x98] sm:$0xff]
    %v3189 = vld [vmem:[%s11 + $0xa0] sm:$0xff]
    %v3190 = vld [vmem:[%s11 + $0xa8] sm:$0xff]
    %v3191 = vld [vmem:[%s11 + $0xb0] sm:$0xff]
    %v3192 = vld [vmem:[%s11 + $0xb8] sm:$0xff]
    %v3193 = vld [vmem:[%s11 + $0xc0] sm:$0xff]
    %v3194 = vld [vmem:[%s11 + $0xc8] sm:$0xff]
    %v3195 = vld [vmem:[%s11 + $0xd0] sm:$0xff]
    %v3196 = vld [vmem:[%s11 + $0xd8] sm:$0xff]
    %v3197 = vld [vmem:[%s11 + $0xe0] sm:$0xff]
    %v3198 = vld [vmem:[%s11 + $0xe8] sm:$0xff]
    %v3199 = vld [vmem:[%s11 + $0xf0] sm:$0xff]
    %v3200 = vld [vmem:[%s11 + $0xf8] sm:$0xff]
    %v3201 = vld [vmem:[%s11 + $0x100] sm:$0xff]
    %v3202 = vld [vmem:[%s11 + $0x108] sm:$0xff]
    %v3203 = vld [vmem:[%s11 + $0x110] sm:$0xff]
    %v3204 = vld [vmem:[%s11 + $0x118] sm:$0xff]
    %v3205 = vld [vmem:[%s11 + $0x120] sm:$0xff]
    %v3206 = vld [vmem:[%s11 + $0x128] sm:$0xff]
    %v3207 = vld [vmem:[%s11 + $0x130] sm:$0xff]
    %v3208 = vld [vmem:[%s11 + $0x138] sm:$0xff]
    %v3209 = vld [vmem:[%s11 + $0x140] sm:$0xff]
    %v3210 = vld [vmem:[%s11 + $0x148] sm:$0xff]
    %v3211 = vld [vmem:[%s11 + $0x150] sm:$0xff]
    %v3212 = vld [vmem:[%s11 + $0x158] sm:$0xff]
    %v3213 = vld [vmem:[%s11 + $0x160] sm:$0xff]
    %v3214 = vld [vmem:[%s11 + $0x168] sm:$0xff]
    %v3215 = vld [vmem:[%s11 + $0x170] sm:$0xff]
    %v3216 = vld [vmem:[%s11 + $0x178] sm:$0xff]
    %v3217 = vld [vmem:[%s11 + $0x180] sm:$0xff]
    %v3218 = vld [vmem:[%s11 + $0x188] sm:$0xff]
    %v3219 = vld [vmem:[%s11 + $0x190] sm:$0xff]
    %v3220 = vld [vmem:[%s11 + $0x198] sm:$0xff]
    %v3221 = vld [vmem:[%s11 + $0x1a0] sm:$0xff]
    %v3222 = vld [vmem:[%s11 + $0x1a8] sm:$0xff]
    %v3223 = vld [vmem:[%s11 + $0x1b0] sm:$0xff]
    %v3224 = vld [vmem:[%s11 + $0x1b8] sm:$0xff]
    %v3225 = vld [vmem:[%s11 + $0x1c0] sm:$0xff]
    %v3226 = vld [vmem:[%s11 + $0x1c8] sm:$0xff]
    %v3227 = vld [vmem:[%s11 + $0x1d0] sm:$0xff]
    %v3228 = vld [vmem:[%s11 + $0x1d8] sm:$0xff]
    %v3229 = vld [vmem:[%s11 + $0x1e0] sm:$0xff]
    %v3230 = vld [vmem:[%s11 + $0x1e8] sm:$0xff]
    %v3231 = vld [vmem:[%s11 + $0x1f0] sm:$0xff]
    %v3232 = vld [vmem:[%s11 + $0x1f8] sm:$0xff]
    %v3233 = vld [vmem:[%s11 + $0x200] sm:$0xff]
    %v3234 = vld [vmem:[%s11 + $0x208] sm:$0xff]
    %v3235 = vld [vmem:[%s11 + $0x210] sm:$0xff]
    %v3236 = vld [vmem:[%s11 + $0x218] sm:$0xff]
    %v3237 = vld [vmem:[%s11 + $0x220] sm:$0xff]
    %v3238 = vld [vmem:[%s11 + $0x228] sm:$0xff]
    %v3239 = vld [vmem:[%s11 + $0x230] sm:$0xff]
    %v3240 = vld [vmem:[%s11 + $0x238] sm:$0xff]
    %v3241 = vld [vmem:[%s11 + $0x240] sm:$0xff]
    %v3242 = vld [vmem:[%s11 + $0x248] sm:$0xff]
    %v3243 = vld [vmem:[%s11 + $0x250] sm:$0xff]
    %v3244 = vld [vmem:[%s11 + $0x258] sm:$0xff]
    %v3245 = vld [vmem:[%s11 + $0x260] sm:$0xff]
    %v3246 = vld [vmem:[%s11 + $0x268] sm:$0xff]
    %v3247 = vld [vmem:[%s11 + $0x270] sm:$0xff]
    %v3248 = vld [vmem:[%s11 + $0x278] sm:$0xff]
    %v3249 = vld [vmem:[%s11 + $0x280] sm:$0xff]
    %v3250 = vld [vmem:[%s11 + $0x288] sm:$0xff]
    %v3251 = vld [vmem:[%s11 + $0x290] sm:$0xff]
    %v3252 = vld [vmem:[%s11 + $0x298] sm:$0xff]
    %v3253 = vld [vmem:[%s11 + $0x2a0] sm:$0xff]
    %v3254 = vld [vmem:[%s11 + $0x2a8] sm:$0xff]
    %v3255 = vld [vmem:[%s11 + $0x2b0] sm:$0xff]
    %v3256 = vld [vmem:[%s11 + $0x2b8] sm:$0xff]
    %v3257 = vld [vmem:[%s11 + $0x2c0] sm:$0xff]
    %v3258 = vld [vmem:[%s11 + $0x2c8] sm:$0xff]
    %v3259 = vld [vmem:[%s11 + $0x2d0] sm:$0xff]
    %v3260 = vld [vmem:[%s11 + $0x2d8] sm:$0xff]
    %v3261 = vld [vmem:[%s11 + $0x2e0] sm:$0xff]
    %v3262 = vld [vmem:[%s11 + $0x2e8] sm:$0xff]
    %v3263 = vld [vmem:[%s11 + $0x2f0] sm:$0xff]
    %v3264 = vld [vmem:[%s11 + $0x2f8] sm:$0xff]
    %v3265 = vld [vmem:[%s11 + $0x300] sm:$0xff]
    %v3266 = vld [vmem:[%s11 + $0x308] sm:$0xff]
    %v3267 = vld [vmem:[%s11 + $0x310] sm:$0xff]
    %v3268 = vld [vmem:[%s11 + $0x318] sm:$0xff]
    %v3269 = vld [vmem:[%s11 + $0x320] sm:$0xff]
    %v3270 = vld [vmem:[%s11 + $0x328] sm:$0xff]
    %v3271 = vld [vmem:[%s11 + $0x330] sm:$0xff]
    %v3272 = vld [vmem:[%s11 + $0x338] sm:$0xff]
    %v3273 = vld [vmem:[%s11 + $0x340] sm:$0xff]
    %v3274 = vld [vmem:[%s11 + $0x348] sm:$0xff]
    %v3275 = vld [vmem:[%s11 + $0x350] sm:$0xff]
    %v3276 = vld [vmem:[%s11 + $0x358] sm:$0xff]
    %v3277 = vld [vmem:[%s11 + $0x360] sm:$0xff]
    %v3278 = vld [vmem:[%s11 + $0x368] sm:$0xff]
    %v3279 = vld [vmem:[%s11 + $0x370] sm:$0xff]
    %v3280 = vld [vmem:[%s11 + $0x378] sm:$0xff]
    %v3281 = vld [vmem:[%s11 + $0x380] sm:$0xff]
    %v3282 = vld [vmem:[%s11 + $0x388] sm:$0xff]
    %v3283 = vld [vmem:[%s11 + $0x390] sm:$0xff]
    %v3284 = vld [vmem:[%s11 + $0x398] sm:$0xff]
    %v3285 = vld [vmem:[%s11 + $0x3a0] sm:$0xff]
    %v3286 = vld [vmem:[%s11 + $0x3a8] sm:$0xff]
    %v3287 = vld [vmem:[%s11 + $0x3b0] sm:$0xff]
    %v3288 = vld [vmem:[%s11 + $0x3b8] sm:$0xff]
    %v3289 = vld [vmem:[%s11 + $0x3c0] sm:$0xff]
    %v3290 = vld [vmem:[%s11 + $0x3c8] sm:$0xff]
    %v3291 = vld [vmem:[%s11 + $0x3d0] sm:$0xff]
    %v3292 = vld [vmem:[%s11 + $0x3d8] sm:$0xff]
    %v3293 = vld [vmem:[%s11 + $0x3e0] sm:$0xff]
    %v3294 = vld [vmem:[%s11 + $0x3e8] sm:$0xff]
    %v3295 = vld [vmem:[%s11 + $0x3f0] sm:$0xff]
    %v3296 = vld [vmem:[%s11 + $0x3f8] sm:$0xff]
    %v3297 = vld [vmem:[%s12] sm:$0x1]
    %3298 = vmatprep.subr.mxu0 0.0
    %3299 = vmatpush1.msra.mxu0 %v3169
    %3300 = vmatprep.subr.mxu0 0.0
    %3301 = vmatpush1.msra.mxu0 %v3170
    %3302 = vmatprep.subr.mxu0 0.0
    %3303 = vmatpush1.msra.mxu0 %v3171
    %3304 = vmatprep.subr.mxu0 0.0
    %3305 = vmatpush1.msra.mxu0 %v3172
    %3306 = vmatprep.subr.mxu0 0.0
    %3307 = vmatpush1.msra.mxu0 %v3173
    %3308 = vmatprep.subr.mxu0 0.0
    %3309 = vmatpush1.msra.mxu0 %v3174
    %3310 = vmatprep.subr.mxu0 0.0
    %3311 = vmatpush1.msra.mxu0 %v3175
    %3312 = vmatprep.subr.mxu0 0.0
    %3313 = vmatpush1.msra.mxu0 %v3176
    %3314 = vmatprep.subr.mxu0 0.0
    %3315 = vmatpush1.msra.mxu0 %v3177
    %3316 = vmatprep.subr.mxu0 0.0
    %3317 = vmatpush1.msra.mxu0 %v3178
    %3318 = vmatprep.subr.mxu0 0.0
    %3319 = vmatpush1.msra.mxu0 %v3179
    %3320 = vmatprep.subr.mxu0 0.0
    %3321 = vmatpush1.msra.mxu0 %v3180
    %3322 = vmatprep.subr.mxu0 0.0
    %3323 = vmatpush1.msra.mxu0 %v3181
    %3324 = vmatprep.subr.mxu0 0.0
    %3325 = vmatpush1.msra.mxu0 %v3182
    %3326 = vmatprep.subr.mxu0 0.0
    %3327 = vmatpush1.msra.mxu0 %v3183
    %3328 = vmatprep.subr.mxu0 0.0
    %3329 = vmatpush1.msra.mxu0 %v3184
    %3330 = vmatprep.subr.mxu0 0.0
    %3331 = vmatpush1.msra.mxu0 %v3185
    %3332 = vmatprep.subr.mxu0 0.0
    %3333 = vmatpush1.msra.mxu0 %v3186
    %3334 = vmatprep.subr.mxu0 0.0
    %3335 = vmatpush1.msra.mxu0 %v3187
    %3336 = vmatprep.subr.mxu0 0.0
    %3337 = vmatpush1.msra.mxu0 %v3188
    %3338 = vmatprep.subr.mxu0 0.0
    %3339 = vmatpush1.msra.mxu0 %v3189
    %3340 = vmatprep.subr.mxu0 0.0
    %3341 = vmatpush1.msra.mxu0 %v3190
    %3342 = vmatprep.subr.mxu0 0.0
    %3343 = vmatpush1.msra.mxu0 %v3191
    %3344 = vmatprep.subr.mxu0 0.0
    %3345 = vmatpush1.msra.mxu0 %v3192
    %3346 = vmatprep.subr.mxu0 0.0
    %3347 = vmatpush1.msra.mxu0 %v3193
    %3348 = vmatprep.subr.mxu0 0.0
    %3349 = vmatpush1.msra.mxu0 %v3194
    %3350 = vmatprep.subr.mxu0 0.0
    %3351 = vmatpush1.msra.mxu0 %v3195
    %3352 = vmatprep.subr.mxu0 0.0
    %3353 = vmatpush1.msra.mxu0 %v3196
    %3354 = vmatprep.subr.mxu0 0.0
    %3355 = vmatpush1.msra.mxu0 %v3197
    %3356 = vmatprep.subr.mxu0 0.0
    %3357 = vmatpush1.msra.mxu0 %v3198
    %3358 = vmatprep.subr.mxu0 0.0
    %3359 = vmatpush1.msra.mxu0 %v3199
    %3360 = vmatprep.subr.mxu0 0.0
    %3361 = vmatpush1.msra.mxu0 %v3200
    %3362 = vmatprep.mubr.f32.mxu0 %v3162
    %3363 = vmatmul.mubr.f32.gmra.mrb[0].mxu0 %v3161
    %v3364 = vpop.f32.mrb[0].mxu0
    %v3365 = vadd.f32 %v3297, %v3364
    %v3366 = vpop.f32.mrb[0].mxu0
    %3367 = vdwg.mxu0
    %3368 = vmatprep.subr.mxu0 0.0
    %3369 = vmatpush1.msra.mxu0 %v3201
    %3370 = vmatprep.subr.mxu0 0.0
    %3371 = vmatpush1.msra.mxu0 %v3202
    %3372 = vmatprep.subr.mxu0 0.0
    %3373 = vmatpush1.msra.mxu0 %v3203
    %3374 = vmatprep.subr.mxu0 0.0
    %3375 = vmatpush1.msra.mxu0 %v3204
    %3376 = vmatprep.subr.mxu0 0.0
    %3377 = vmatpush1.msra.mxu0 %v3205
    %3378 = vmatprep.subr.mxu0 0.0
    %3379 = vmatpush1.msra.mxu0 %v3206
    %3380 = vmatprep.subr.mxu0 0.0
    %3381 = vmatpush1.msra.mxu0 %v3207
    %3382 = vmatprep.subr.mxu0 0.0
    %3383 = vmatpush1.msra.mxu0 %v3208
    %3384 = vmatprep.subr.mxu0 0.0
    %3385 = vmatpush1.msra.mxu0 %v3209
    %3386 = vmatprep.subr.mxu0 0.0
    %3387 = vmatpush1.msra.mxu0 %v3210
    %3388 = vmatprep.subr.mxu0 0.0
    %3389 = vmatpush1.msra.mxu0 %v3211
    %3390 = vmatprep.subr.mxu0 0.0
    %3391 = vmatpush1.msra.mxu0 %v3212
    %3392 = vmatprep.subr.mxu0 0.0
    %3393 = vmatpush1.msra.mxu0 %v3213
    %3394 = vmatprep.subr.mxu0 0.0
    %3395 = vmatpush1.msra.mxu0 %v3214
    %3396 = vmatprep.subr.mxu0 0.0
    %3397 = vmatpush1.msra.mxu0 %v3215
    %3398 = vmatprep.subr.mxu0 0.0
    %3399 = vmatpush1.msra.mxu0 %v3216
    %3400 = vmatprep.subr.mxu0 0.0
    %3401 = vmatpush1.msra.mxu0 %v3217
    %3402 = vmatprep.subr.mxu0 0.0
    %3403 = vmatpush1.msra.mxu0 %v3218
    %3404 = vmatprep.subr.mxu0 0.0
    %3405 = vmatpush1.msra.mxu0 %v3219
    %3406 = vmatprep.subr.mxu0 0.0
    %3407 = vmatpush1.msra.mxu0 %v3220
    %3408 = vmatprep.subr.mxu0 0.0
    %3409 = vmatpush1.msra.mxu0 %v3221
    %3410 = vmatprep.subr.mxu0 0.0
    %3411 = vmatpush1.msra.mxu0 %v3222
    %3412 = vmatprep.subr.mxu0 0.0
    %3413 = vmatpush1.msra.mxu0 %v3223
    %3414 = vmatprep.subr.mxu0 0.0
    %3415 = vmatpush1.msra.mxu0 %v3224
    %3416 = vmatprep.subr.mxu0 0.0
    %3417 = vmatpush1.msra.mxu0 %v3225
    %3418 = vmatprep.subr.mxu0 0.0
    %3419 = vmatpush1.msra.mxu0 %v3226
    %3420 = vmatprep.subr.mxu0 0.0
    %3421 = vmatpush1.msra.mxu0 %v3227
    %3422 = vmatprep.subr.mxu0 0.0
    %3423 = vmatpush1.msra.mxu0 %v3228
    %3424 = vmatprep.subr.mxu0 0.0
    %3425 = vmatpush1.msra.mxu0 %v3229
    %3426 = vmatprep.subr.mxu0 0.0
    %3427 = vmatpush1.msra.mxu0 %v3230
    %3428 = vmatprep.subr.mxu0 0.0
    %3429 = vmatpush1.msra.mxu0 %v3231
    %3430 = vmatprep.subr.mxu0 0.0
    %3431 = vmatpush1.msra.mxu0 %v3232
    %3432 = vmatprep.mubr.f32.mxu0 %v3164
    %3433 = vmatmul.mubr.f32.gmra.mrb[0].mxu0 %v3163
    %v3434 = vpop.f32.mrb[0].mxu0
    %v3435 = vadd.f32 %v3365, %v3434
    %v3436 = vpop.f32.mrb[0].mxu0
    %3437 = vdwg.mxu0
    %3438 = vmatprep.subr.mxu0 0.0
    %3439 = vmatpush1.msra.mxu0 %v3233
    %3440 = vmatprep.subr.mxu0 0.0
    %3441 = vmatpush1.msra.mxu0 %v3234
    %3442 = vmatprep.subr.mxu0 0.0
    %3443 = vmatpush1.msra.mxu0 %v3235
    %3444 = vmatprep.subr.mxu0 0.0
    %3445 = vmatpush1.msra.mxu0 %v3236
    %3446 = vmatprep.subr.mxu0 0.0
    %3447 = vmatpush1.msra.mxu0 %v3237
    %3448 = vmatprep.subr.mxu0 0.0
    %3449 = vmatpush1.msra.mxu0 %v3238
    %3450 = vmatprep.subr.mxu0 0.0
    %3451 = vmatpush1.msra.mxu0 %v3239
    %3452 = vmatprep.subr.mxu0 0.0
    %3453 = vmatpush1.msra.mxu0 %v3240
    %3454 = vmatprep.subr.mxu0 0.0
    %3455 = vmatpush1.msra.mxu0 %v3241
    %3456 = vmatprep.subr.mxu0 0.0
    %3457 = vmatpush1.msra.mxu0 %v3242
    %3458 = vmatprep.subr.mxu0 0.0
    %3459 = vmatpush1.msra.mxu0 %v3243
    %3460 = vmatprep.subr.mxu0 0.0
    %3461 = vmatpush1.msra.mxu0 %v3244
    %3462 = vmatprep.subr.mxu0 0.0
    %3463 = vmatpush1.msra.mxu0 %v3245
    %3464 = vmatprep.subr.mxu0 0.0
    %3465 = vmatpush1.msra.mxu0 %v3246
    %3466 = vmatprep.subr.mxu0 0.0
    %3467 = vmatpush1.msra.mxu0 %v3247
    %3468 = vmatprep.subr.mxu0 0.0
    %3469 = vmatpush1.msra.mxu0 %v3248
    %3470 = vmatprep.subr.mxu0 0.0
    %3471 = vmatpush1.msra.mxu0 %v3249
    %3472 = vmatprep.subr.mxu0 0.0
    %3473 = vmatpush1.msra.mxu0 %v3250
    %3474 = vmatprep.subr.mxu0 0.0
    %3475 = vmatpush1.msra.mxu0 %v3251
    %3476 = vmatprep.subr.mxu0 0.0
    %3477 = vmatpush1.msra.mxu0 %v3252
    %3478 = vmatprep.subr.mxu0 0.0
    %3479 = vmatpush1.msra.mxu0 %v3253
    %3480 = vmatprep.subr.mxu0 0.0
    %3481 = vmatpush1.msra.mxu0 %v3254
    %3482 = vmatprep.subr.mxu0 0.0
    %3483 = vmatpush1.msra.mxu0 %v3255
    %3484 = vmatprep.subr.mxu0 0.0
    %3485 = vmatpush1.msra.mxu0 %v3256
    %3486 = vmatprep.subr.mxu0 0.0
    %3487 = vmatpush1.msra.mxu0 %v3257
    %3488 = vmatprep.subr.mxu0 0.0
    %3489 = vmatpush1.msra.mxu0 %v3258
    %3490 = vmatprep.subr.mxu0 0.0
    %3491 = vmatpush1.msra.mxu0 %v3259
    %3492 = vmatprep.subr.mxu0 0.0
    %3493 = vmatpush1.msra.mxu0 %v3260
    %3494 = vmatprep.subr.mxu0 0.0
    %3495 = vmatpush1.msra.mxu0 %v3261
    %3496 = vmatprep.subr.mxu0 0.0
    %3497 = vmatpush1.msra.mxu0 %v3262
    %3498 = vmatprep.subr.mxu0 0.0
    %3499 = vmatpush1.msra.mxu0 %v3263
    %3500 = vmatprep.subr.mxu0 0.0
    %3501 = vmatpush1.msra.mxu0 %v3264
    %3502 = vmatprep.mubr.f32.mxu0 %v3166
    %3503 = vmatmul.mubr.f32.gmra.mrb[0].mxu0 %v3165
    %v3504 = vpop.f32.mrb[0].mxu0
    %v3505 = vadd.f32 %v3435, %v3504
    %v3506 = vpop.f32.mrb[0].mxu0
    %3507 = vdwg.mxu0
    %3508 = vmatprep.subr.mxu0 0.0
    %3509 = vmatpush1.msra.mxu0 %v3265
    %3510 = vmatprep.subr.mxu0 0.0
    %3511 = vmatpush1.msra.mxu0 %v3266
    %3512 = vmatprep.subr.mxu0 0.0
    %3513 = vmatpush1.msra.mxu0 %v3267
    %3514 = vmatprep.subr.mxu0 0.0
    %3515 = vmatpush1.msra.mxu0 %v3268
    %3516 = vmatprep.subr.mxu0 0.0
    %3517 = vmatpush1.msra.mxu0 %v3269
    %3518 = vmatprep.subr.mxu0 0.0
    %3519 = vmatpush1.msra.mxu0 %v3270
    %3520 = vmatprep.subr.mxu0 0.0
    %3521 = vmatpush1.msra.mxu0 %v3271
    %3522 = vmatprep.subr.mxu0 0.0
    %3523 = vmatpush1.msra.mxu0 %v3272
    %3524 = vmatprep.subr.mxu0 0.0
    %3525 = vmatpush1.msra.mxu0 %v3273
    %3526 = vmatprep.subr.mxu0 0.0
    %3527 = vmatpush1.msra.mxu0 %v3274
    %3528 = vmatprep.subr.mxu0 0.0
    %3529 = vmatpush1.msra.mxu0 %v3275
    %3530 = vmatprep.subr.mxu0 0.0
    %3531 = vmatpush1.msra.mxu0 %v3276
    %3532 = vmatprep.subr.mxu0 0.0
    %3533 = vmatpush1.msra.mxu0 %v3277
    %3534 = vmatprep.subr.mxu0 0.0
    %3535 = vmatpush1.msra.mxu0 %v3278
    %3536 = vmatprep.subr.mxu0 0.0
    %3537 = vmatpush1.msra.mxu0 %v3279
    %3538 = vmatprep.subr.mxu0 0.0
    %3539 = vmatpush1.msra.mxu0 %v3280
    %3540 = vmatprep.subr.mxu0 0.0
    %3541 = vmatpush1.msra.mxu0 %v3281
    %3542 = vmatprep.subr.mxu0 0.0
    %3543 = vmatpush1.msra.mxu0 %v3282
    %3544 = vmatprep.subr.mxu0 0.0
    %3545 = vmatpush1.msra.mxu0 %v3283
    %3546 = vmatprep.subr.mxu0 0.0
    %3547 = vmatpush1.msra.mxu0 %v3284
    %3548 = vmatprep.subr.mxu0 0.0
    %3549 = vmatpush1.msra.mxu0 %v3285
    %3550 = vmatprep.subr.mxu0 0.0
    %3551 = vmatpush1.msra.mxu0 %v3286
    %3552 = vmatprep.subr.mxu0 0.0
    %3553 = vmatpush1.msra.mxu0 %v3287
    %3554 = vmatprep.subr.mxu0 0.0
    %3555 = vmatpush1.msra.mxu0 %v3288
    %3556 = vmatprep.subr.mxu0 0.0
    %3557 = vmatpush1.msra.mxu0 %v3289
    %3558 = vmatprep.subr.mxu0 0.0
    %3559 = vmatpush1.msra.mxu0 %v3290
    %3560 = vmatprep.subr.mxu0 0.0
    %3561 = vmatpush1.msra.mxu0 %v3291
    %3562 = vmatprep.subr.mxu0 0.0
    %3563 = vmatpush1.msra.mxu0 %v3292
    %3564 = vmatprep.subr.mxu0 0.0
    %3565 = vmatpush1.msra.mxu0 %v3293
    %3566 = vmatprep.subr.mxu0 0.0
    %3567 = vmatpush1.msra.mxu0 %v3294
    %3568 = vmatprep.subr.mxu0 0.0
    %3569 = vmatpush1.msra.mxu0 %v3295
    %3570 = vmatprep.subr.mxu0 0.0
    %3571 = vmatpush1.msra.mxu0 %v3296
    %3572 = vmatprep.mubr.f32.mxu0 %v3168
    %3573 = vmatmul.mubr.f32.gmra.mrb[0].mxu0 %v3167
    %v3574 = vpop.f32.mrb[0].mxu0
    %v3575 = vadd.f32 %v3505, %v3574
    %v3576 = vpop.f32.mrb[0].mxu0
    %3577 = vdwg.mxu0
    %vm3578 = vcmask 73728
    %v3579 = vsel %vm3578, %v3575, -inf
    %3580 = vmax.xlane.f32.xlu0 %v3579
    %v3581 = vpop.xlane.xlu0 %3580
    %v3582 = vsub.f32 %v3575, %v3581
    %v3583 = vmul.f32 %v3582, 1.442695
    %v3584 = vpow.pop %v3583
    %v3585 = vsel %vm3578, %v3584, 0.0
    %3586 = vadd.xlane.f32.xlu0 %v3585
    %v3587 = vpop.xlane.xlu0 %3586
    %v3588 = vlog2.pop %v3587
    %v3589 = vmul.f32 %v3588, 0.6931472
    %v3590 = vsub.f32 %v3582, %v3589
    %3591 = vst.msk [vmem:[#allocation5] sm:$0x1] %vm3578, %v3590
    %s3592 = scalar_lea.vmem %s0, 32
    %v3593 = vld [vmem:[%s3592] sm:$0xff]
    %v3594 = vld [vmem:[%s3592 + $0x8] sm:$0xff]
    %v3595 = vld [vmem:[%s3592 + $0x10] sm:$0xff]
    %v3596 = vld [vmem:[%s3592 + $0x18] sm:$0xf]
    %v3597 = vld [vmem:[%s1] sm:$0xff]
    %v3598 = vld [vmem:[%s1 + $0x8] sm:$0xff]
    %v3599 = vld [vmem:[%s1 + $0x10] sm:$0xff]
    %v3600 = vld [vmem:[%s1 + $0x18] sm:$0xf]
    %v3601 = vld [vmem:[%s67] sm:$0xff]
    %v3602 = vld [vmem:[%s67 + $0x8] sm:$0xff]
    %v3603 = vld [vmem:[%s67 + $0x10] sm:$0xff]
    %v3604 = vld [vmem:[%s67 + $0x18] sm:$0xf]
    %v3609 = vrot.slane %v3593, 1
    %v3610 = vrot.slane %v3594, 1
    %v3611 = vsel %vm76, %v3609, %v3610
    %v3612 = vrot.slane %v3595, 1
    %v3613 = vsel %vm76, %v3610, %v3612
    %v3614 = vrot.slane %v3596, 1
    %v3615 = vsel %vm76, %v3612, %v3614
    %v3616 = vsel %vm84, %v3611, 0
    %v3618 = vsel %vm84, %v3613, 0
    %v3620 = vsel %vm84, %v3615, 0
    %v3622 = vsel %vm84, %v3614, 0
    %v3625 = vsel %vm93, %v3604, 0
    %3627 = vmatprep.subr.mxu0 0.0
    %3628 = vmatpush1.msra.mxu0 %v3601
    %3629 = vmatprep.subr.mxu0 0.0
    %3630 = vmatpush1.msra.mxu0 %v3602
    %3631 = vmatprep.subr.mxu0 0.0
    %3632 = vmatpush1.msra.mxu0 %v3603
    %3633 = vmatprep.subr.mxu0 0.0
    %3634 = vmatpush1.msra.mxu0 %v3625
    %3635 = vmatprep.subr.mxu0 0.0
    %3636 = vmatpush1.msra.mxu0 0.0
    %3637 = vmatprep.subr.mxu0 0.0
    %3638 = vmatpush1.msra.mxu0 0.0
    %3639 = vmatprep.subr.mxu0 0.0
    %3640 = vmatpush1.msra.mxu0 0.0
    %3641 = vmatprep.subr.mxu0 0.0
    %3642 = vmatpush1.msra.mxu0 0.0
    %3643 = vmatprep.subr.mxu0 0.0
    %3644 = vmatpush1.msra.mxu0 0.0
    %3645 = vmatprep.subr.mxu0 0.0
    %3646 = vmatpush1.msra.mxu0 0.0
    %3647 = vmatprep.subr.mxu0 0.0
    %3648 = vmatpush1.msra.mxu0 0.0
    %3649 = vmatprep.subr.mxu0 0.0
    %3650 = vmatpush1.msra.mxu0 0.0
    %3651 = vmatprep.subr.mxu0 0.0
    %3652 = vmatpush1.msra.mxu0 0.0
    %3653 = vmatprep.subr.mxu0 0.0
    %3654 = vmatpush1.msra.mxu0 0.0
    %3655 = vmatprep.subr.mxu0 0.0
    %3656 = vmatpush1.msra.mxu0 0.0
    %3657 = vmatprep.subr.mxu0 0.0
    %3658 = vmatpush1.msra.mxu0 0.0
    %3659 = vmatprep.subr.mxu0 0.0
    %3660 = vmatpush1.msra.mxu0 0.0
    %3661 = vmatprep.subr.mxu0 0.0
    %3662 = vmatpush1.msra.mxu0 0.0
    %3663 = vmatprep.subr.mxu0 0.0
    %3664 = vmatpush1.msra.mxu0 0.0
    %3665 = vmatprep.subr.mxu0 0.0
    %3666 = vmatpush1.msra.mxu0 0.0
    %3667 = vmatprep.subr.mxu0 0.0
    %3668 = vmatpush1.msra.mxu0 0.0
    %3669 = vmatprep.subr.mxu0 0.0
    %3670 = vmatpush1.msra.mxu0 0.0
    %3671 = vmatprep.subr.mxu0 0.0
    %3672 = vmatpush1.msra.mxu0 0.0
    %3673 = vmatprep.subr.mxu0 0.0
    %3674 = vmatpush1.msra.mxu0 0.0
    %3675 = vmatprep.subr.mxu0 0.0
    %3676 = vmatpush1.msra.mxu0 0.0
    %3677 = vmatprep.subr.mxu0 0.0
    %3678 = vmatpush1.msra.mxu0 0.0
    %3679 = vmatprep.subr.mxu0 0.0
    %3680 = vmatpush1.msra.mxu0 0.0
    %3681 = vmatprep.subr.mxu0 0.0
    %3682 = vmatpush1.msra.mxu0 0.0
    %3683 = vmatprep.subr.mxu0 0.0
    %3684 = vmatpush1.msra.mxu0 0.0
    %3685 = vmatprep.subr.mxu0 0.0
    %3686 = vmatpush1.msra.mxu0 0.0
    %3687 = vmatprep.subr.mxu0 0.0
    %3688 = vmatpush1.msra.mxu0 0.0
    %3689 = vmatprep.subr.mxu0 0.0
    %3690 = vmatpush1.msra.mxu0 0.0
    %3691 = vmatprep.mubr.f32.mxu0 0.0
    %3692 = vmatmul.mubr.f32.gmra.mrb[0].mxu0 %v3616
    %v3693 = vpop.f32.mrb[0].mxu0
    %v3694 = vadd.f32 0.0, %v3693
    %v3695 = vpop.f32.mrb[0].mxu0
    %3696 = vmatprep.mubr.f32.mxu0 0.0
    %3697 = vmatmul.mubr.f32.gmra.mrb[0].mxu0 %v3618
    %v3698 = vpop.f32.mrb[0].mxu0
    %v3699 = vadd.f32 0.0, %v3698
    %v3700 = vpop.f32.mrb[0].mxu0
    %3701 = vmatprep.mubr.f32.mxu0 0.0
    %3702 = vmatmul.mubr.f32.gmra.mrb[0].mxu0 %v3620
    %v3703 = vpop.f32.mrb[0].mxu0
    %v3704 = vadd.f32 0.0, %v3703
    %v3705 = vpop.f32.mrb[0].mxu0
    %3706 = vmatprep.mubr.f32.mxu0 0.0
    %3707 = vmatmul.mubr.f32.gmra.mrb[0].mxu0 %v3622
    %v3708 = vpop.f32.mrb[0].mxu0
    %v3709 = vadd.f32 0.0, %v3708
    %v3710 = vpop.f32.mrb[0].mxu0
    %3711 = vdwg.mxu0
    %v3712 = vsel %vm84, %v3593, 0
    %v3714 = vsel %vm84, %v3594, 0
    %v3716 = vsel %vm84, %v3595, 0
    %v3718 = vsel %vm84, %v3596, 0
    %v3721 = vsel %vm93, %v3600, 0
    %3723 = vmatprep.subr.mxu0 0.0
    %3724 = vmatpush1.msra.mxu0 %v3597
    %3725 = vmatprep.subr.mxu0 0.0
    %3726 = vmatpush1.msra.mxu0 %v3598
    %3727 = vmatprep.subr.mxu0 0.0
    %3728 = vmatpush1.msra.mxu0 %v3599
    %3729 = vmatprep.subr.mxu0 0.0
    %3730 = vmatpush1.msra.mxu0 %v3721
    %3731 = vmatprep.subr.mxu0 0.0
    %3732 = vmatpush1.msra.mxu0 0.0
    %3733 = vmatprep.subr.mxu0 0.0
    %3734 = vmatpush1.msra.mxu0 0.0
    %3735 = vmatprep.subr.mxu0 0.0
    %3736 = vmatpush1.msra.mxu0 0.0
    %3737 = vmatprep.subr.mxu0 0.0
    %3738 = vmatpush1.msra.mxu0 0.0
    %3739 = vmatprep.subr.mxu0 0.0
    %3740 = vmatpush1.msra.mxu0 0.0
    %3741 = vmatprep.subr.mxu0 0.0
    %3742 = vmatpush1.msra.mxu0 0.0
    %3743 = vmatprep.subr.mxu0 0.0
    %3744 = vmatpush1.msra.mxu0 0.0
    %3745 = vmatprep.subr.mxu0 0.0
    %3746 = vmatpush1.msra.mxu0 0.0
    %3747 = vmatprep.subr.mxu0 0.0
    %3748 = vmatpush1.msra.mxu0 0.0
    %3749 = vmatprep.subr.mxu0 0.0
    %3750 = vmatpush1.msra.mxu0 0.0
    %3751 = vmatprep.subr.mxu0 0.0
    %3752 = vmatpush1.msra.mxu0 0.0
    %3753 = vmatprep.subr.mxu0 0.0
    %3754 = vmatpush1.msra.mxu0 0.0
    %3755 = vmatprep.subr.mxu0 0.0
    %3756 = vmatpush1.msra.mxu0 0.0
    %3757 = vmatprep.subr.mxu0 0.0
    %3758 = vmatpush1.msra.mxu0 0.0
    %3759 = vmatprep.subr.mxu0 0.0
    %3760 = vmatpush1.msra.mxu0 0.0
    %3761 = vmatprep.subr.mxu0 0.0
    %3762 = vmatpush1.msra.mxu0 0.0
    %3763 = vmatprep.subr.mxu0 0.0
    %3764 = vmatpush1.msra.mxu0 0.0
    %3765 = vmatprep.subr.mxu0 0.0
    %3766 = vmatpush1.msra.mxu0 0.0
    %3767 = vmatprep.subr.mxu0 0.0
    %3768 = vmatpush1.msra.mxu0 0.0
    %3769 = vmatprep.subr.mxu0 0.0
    %3770 = vmatpush1.msra.mxu0 0.0
    %3771 = vmatprep.subr.mxu0 0.0
    %3772 = vmatpush1.msra.mxu0 0.0
    %3773 = vmatprep.subr.mxu0 0.0
    %3774 = vmatpush1.msra.mxu0 0.0
    %3775 = vmatprep.subr.mxu0 0.0
    %3776 = vmatpush1.msra.mxu0 0.0
    %3777 = vmatprep.subr.mxu0 0.0
    %3778 = vmatpush1.msra.mxu0 0.0
    %3779 = vmatprep.subr.mxu0 0.0
    %3780 = vmatpush1.msra.mxu0 0.0
    %3781 = vmatprep.subr.mxu0 0.0
    %3782 = vmatpush1.msra.mxu0 0.0
    %3783 = vmatprep.subr.mxu0 0.0
    %3784 = vmatpush1.msra.mxu0 0.0
    %3785 = vmatprep.subr.mxu0 0.0
    %3786 = vmatpush1.msra.mxu0 0.0
    %3787 = vmatprep.mubr.f32.mxu0 0.0
    %3788 = vmatmul.mubr.f32.gmra.mrb[0].mxu0 %v3712
    %v3789 = vpop.f32.mrb[0].mxu0
    %v3790 = vadd.f32 %v3694, %v3789
    %v3791 = vpop.f32.mrb[0].mxu0
    %3792 = vmatprep.mubr.f32.mxu0 0.0
    %3793 = vmatmul.mubr.f32.gmra.mrb[0].mxu0 %v3714
    %v3794 = vpop.f32.mrb[0].mxu0
    %v3795 = vadd.f32 %v3699, %v3794
    %v3796 = vpop.f32.mrb[0].mxu0
    %3797 = vmatprep.mubr.f32.mxu0 0.0
    %3798 = vmatmul.mubr.f32.gmra.mrb[0].mxu0 %v3716
    %v3799 = vpop.f32.mrb[0].mxu0
    %v3800 = vadd.f32 %v3704, %v3799
    %v3801 = vpop.f32.mrb[0].mxu0
    %3802 = vmatprep.mubr.f32.mxu0 0.0
    %3803 = vmatmul.mubr.f32.gmra.mrb[0].mxu0 %v3718
    %v3804 = vpop.f32.mrb[0].mxu0
    %v3805 = vadd.f32 %v3709, %v3804
    %v3806 = vpop.f32.mrb[0].mxu0
    %3807 = vdwg.mxu0
    %v3808 = vld [vmem:[%s278] sm:$0xff]
    %v3809 = vld [vmem:[%s278 + $0x8] sm:$0xff]
    %v3810 = vld [vmem:[%s278 + $0x10] sm:$0xff]
    %v3811 = vld [vmem:[%s278 + $0x18] sm:$0xf]
    %v3812 = vrot.slane %v3593, 2
    %v3813 = vrot.slane %v3594, 2
    %v3814 = vsel %vm283, %v3812, %v3813
    %v3815 = vrot.slane %v3595, 2
    %v3816 = vsel %vm283, %v3813, %v3815
    %v3817 = vrot.slane %v3596, 2
    %v3818 = vsel %vm283, %v3815, %v3817
    %v3819 = vsel %vm84, %v3814, 0
    %v3821 = vsel %vm84, %v3816, 0
    %v3823 = vsel %vm84, %v3818, 0
    %v3825 = vsel %vm84, %v3817, 0
    %v3828 = vsel %vm93, %v3811, 0
    %3830 = vmatprep.subr.mxu0 0.0
    %3831 = vmatpush1.msra.mxu0 %v3808
    %3832 = vmatprep.subr.mxu0 0.0
    %3833 = vmatpush1.msra.mxu0 %v3809
    %3834 = vmatprep.subr.mxu0 0.0
    %3835 = vmatpush1.msra.mxu0 %v3810
    %3836 = vmatprep.subr.mxu0 0.0
    %3837 = vmatpush1.msra.mxu0 %v3828
    %3838 = vmatprep.subr.mxu0 0.0
    %3839 = vmatpush1.msra.mxu0 0.0
    %3840 = vmatprep.subr.mxu0 0.0
    %3841 = vmatpush1.msra.mxu0 0.0
    %3842 = vmatprep.subr.mxu0 0.0
    %3843 = vmatpush1.msra.mxu0 0.0
    %3844 = vmatprep.subr.mxu0 0.0
    %3845 = vmatpush1.msra.mxu0 0.0
    %3846 = vmatprep.subr.mxu0 0.0
    %3847 = vmatpush1.msra.mxu0 0.0
    %3848 = vmatprep.subr.mxu0 0.0
    %3849 = vmatpush1.msra.mxu0 0.0
    %3850 = vmatprep.subr.mxu0 0.0
    %3851 = vmatpush1.msra.mxu0 0.0
    %3852 = vmatprep.subr.mxu0 0.0
    %3853 = vmatpush1.msra.mxu0 0.0
    %3854 = vmatprep.subr.mxu0 0.0
    %3855 = vmatpush1.msra.mxu0 0.0
    %3856 = vmatprep.subr.mxu0 0.0
    %3857 = vmatpush1.msra.mxu0 0.0
    %3858 = vmatprep.subr.mxu0 0.0
    %3859 = vmatpush1.msra.mxu0 0.0
    %3860 = vmatprep.subr.mxu0 0.0
    %3861 = vmatpush1.msra.mxu0 0.0
    %3862 = vmatprep.subr.mxu0 0.0
    %3863 = vmatpush1.msra.mxu0 0.0
    %3864 = vmatprep.subr.mxu0 0.0
    %3865 = vmatpush1.msra.mxu0 0.0
    %3866 = vmatprep.subr.mxu0 0.0
    %3867 = vmatpush1.msra.mxu0 0.0
    %3868 = vmatprep.subr.mxu0 0.0
    %3869 = vmatpush1.msra.mxu0 0.0
    %3870 = vmatprep.subr.mxu0 0.0
    %3871 = vmatpush1.msra.mxu0 0.0
    %3872 = vmatprep.subr.mxu0 0.0
    %3873 = vmatpush1.msra.mxu0 0.0
    %3874 = vmatprep.subr.mxu0 0.0
    %3875 = vmatpush1.msra.mxu0 0.0
    %3876 = vmatprep.subr.mxu0 0.0
    %3877 = vmatpush1.msra.mxu0 0.0
    %3878 = vmatprep.subr.mxu0 0.0
    %3879 = vmatpush1.msra.mxu0 0.0
    %3880 = vmatprep.subr.mxu0 0.0
    %3881 = vmatpush1.msra.mxu0 0.0
    %3882 = vmatprep.subr.mxu0 0.0
    %3883 = vmatpush1.msra.mxu0 0.0
    %3884 = vmatprep.subr.mxu0 0.0
    %3885 = vmatpush1.msra.mxu0 0.0
    %3886 = vmatprep.subr.mxu0 0.0
    %3887 = vmatpush1.msra.mxu0 0.0
    %3888 = vmatprep.subr.mxu0 0.0
    %3889 = vmatpush1.msra.mxu0 0.0
    %3890 = vmatprep.subr.mxu0 0.0
    %3891 = vmatpush1.msra.mxu0 0.0
    %3892 = vmatprep.subr.mxu0 0.0
    %3893 = vmatpush1.msra.mxu0 0.0
    %3894 = vmatprep.mubr.f32.mxu0 0.0
    %3895 = vmatmul.mubr.f32.gmra.mrb[0].mxu0 %v3819
    %v3896 = vpop.f32.mrb[0].mxu0
    %v3897 = vadd.f32 0.0, %v3896
    %v3898 = vpop.f32.mrb[0].mxu0
    %3899 = vmatprep.mubr.f32.mxu0 0.0
    %3900 = vmatmul.mubr.f32.gmra.mrb[0].mxu0 %v3821
    %v3901 = vpop.f32.mrb[0].mxu0
    %v3902 = vadd.f32 0.0, %v3901
    %v3903 = vpop.f32.mrb[0].mxu0
    %3904 = vmatprep.mubr.f32.mxu0 0.0
    %3905 = vmatmul.mubr.f32.gmra.mrb[0].mxu0 %v3823
    %v3906 = vpop.f32.mrb[0].mxu0
    %v3907 = vadd.f32 0.0, %v3906
    %v3908 = vpop.f32.mrb[0].mxu0
    %3909 = vmatprep.mubr.f32.mxu0 0.0
    %3910 = vmatmul.mubr.f32.gmra.mrb[0].mxu0 %v3825
    %v3911 = vpop.f32.mrb[0].mxu0
    %v3912 = vadd.f32 0.0, %v3911
    %v3913 = vpop.f32.mrb[0].mxu0
    %3914 = vdwg.mxu0
    %v3915 = vadd.f32 %v3790, %v3897
    %v3916 = vadd.f32 %v3795, %v3902
    %v3917 = vadd.f32 %v3800, %v3907
    %v3918 = vadd.f32 %v3805, %v3912
    %v3919 = vld [vmem:[%s391] sm:$0xff]
    %v3920 = vld [vmem:[%s391 + $0x8] sm:$0xff]
    %v3921 = vld [vmem:[%s391 + $0x10] sm:$0xff]
    %v3922 = vld [vmem:[%s391 + $0x18] sm:$0xf]
    %v3923 = vld [vmem:[%s396] sm:$0xff]
    %v3924 = vld [vmem:[%s396 + $0x8] sm:$0xff]
    %v3925 = vld [vmem:[%s396 + $0x10] sm:$0xff]
    %v3926 = vld [vmem:[%s396 + $0x18] sm:$0xf]
    %v3928 = vsel %vm93, %v3926, 0
    %3930 = vmatprep.subr.mxu0 0.0
    %3931 = vmatpush1.msra.mxu0 %v3923
    %3932 = vmatprep.subr.mxu0 0.0
    %3933 = vmatpush1.msra.mxu0 %v3924
    %3934 = vmatprep.subr.mxu0 0.0
    %3935 = vmatpush1.msra.mxu0 %v3925
    %3936 = vmatprep.subr.mxu0 0.0
    %3937 = vmatpush1.msra.mxu0 %v3928
    %3938 = vmatprep.subr.mxu0 0.0
    %3939 = vmatpush1.msra.mxu0 0.0
    %3940 = vmatprep.subr.mxu0 0.0
    %3941 = vmatpush1.msra.mxu0 0.0
    %3942 = vmatprep.subr.mxu0 0.0
    %3943 = vmatpush1.msra.mxu0 0.0
    %3944 = vmatprep.subr.mxu0 0.0
    %3945 = vmatpush1.msra.mxu0 0.0
    %3946 = vmatprep.subr.mxu0 0.0
    %3947 = vmatpush1.msra.mxu0 0.0
    %3948 = vmatprep.subr.mxu0 0.0
    %3949 = vmatpush1.msra.mxu0 0.0
    %3950 = vmatprep.subr.mxu0 0.0
    %3951 = vmatpush1.msra.mxu0 0.0
    %3952 = vmatprep.subr.mxu0 0.0
    %3953 = vmatpush1.msra.mxu0 0.0
    %3954 = vmatprep.subr.mxu0 0.0
    %3955 = vmatpush1.msra.mxu0 0.0
    %3956 = vmatprep.subr.mxu0 0.0
    %3957 = vmatpush1.msra.mxu0 0.0
    %3958 = vmatprep.subr.mxu0 0.0
    %3959 = vmatpush1.msra.mxu0 0.0
    %3960 = vmatprep.subr.mxu0 0.0
    %3961 = vmatpush1.msra.mxu0 0.0
    %3962 = vmatprep.subr.mxu0 0.0
    %3963 = vmatpush1.msra.mxu0 0.0
    %3964 = vmatprep.subr.mxu0 0.0
    %3965 = vmatpush1.msra.mxu0 0.0
    %3966 = vmatprep.subr.mxu0 0.0
    %3967 = vmatpush1.msra.mxu0 0.0
    %3968 = vmatprep.subr.mxu0 0.0
    %3969 = vmatpush1.msra.mxu0 0.0
    %3970 = vmatprep.subr.mxu0 0.0
    %3971 = vmatpush1.msra.mxu0 0.0
    %3972 = vmatprep.subr.mxu0 0.0
    %3973 = vmatpush1.msra.mxu0 0.0
    %3974 = vmatprep.subr.mxu0 0.0
    %3975 = vmatpush1.msra.mxu0 0.0
    %3976 = vmatprep.subr.mxu0 0.0
    %3977 = vmatpush1.msra.mxu0 0.0
    %3978 = vmatprep.subr.mxu0 0.0
    %3979 = vmatpush1.msra.mxu0 0.0
    %3980 = vmatprep.subr.mxu0 0.0
    %3981 = vmatpush1.msra.mxu0 0.0
    %3982 = vmatprep.subr.mxu0 0.0
    %3983 = vmatpush1.msra.mxu0 0.0
    %3984 = vmatprep.subr.mxu0 0.0
    %3985 = vmatpush1.msra.mxu0 0.0
    %3986 = vmatprep.subr.mxu0 0.0
    %3987 = vmatpush1.msra.mxu0 0.0
    %3988 = vmatprep.subr.mxu0 0.0
    %3989 = vmatpush1.msra.mxu0 0.0
    %3990 = vmatprep.subr.mxu0 0.0
    %3991 = vmatpush1.msra.mxu0 0.0
    %3992 = vmatprep.subr.mxu0 0.0
    %3993 = vmatpush1.msra.mxu0 0.0
    %3994 = vmatprep.mubr.f32.mxu0 0.0
    %3995 = vmatmul.mubr.f32.gmra.mrb[0].mxu0 %v3616
    %v3996 = vpop.f32.mrb[0].mxu0
    %v3997 = vadd.f32 0.0, %v3996
    %v3998 = vpop.f32.mrb[0].mxu0
    %3999 = vmatprep.mubr.f32.mxu0 0.0
    %4000 = vmatmul.mubr.f32.gmra.mrb[0].mxu0 %v3618
    %v4001 = vpop.f32.mrb[0].mxu0
    %v4002 = vadd.f32 0.0, %v4001
    %v4003 = vpop.f32.mrb[0].mxu0
    %4004 = vmatprep.mubr.f32.mxu0 0.0
    %4005 = vmatmul.mubr.f32.gmra.mrb[0].mxu0 %v3620
    %v4006 = vpop.f32.mrb[0].mxu0
    %v4007 = vadd.f32 0.0, %v4006
    %v4008 = vpop.f32.mrb[0].mxu0
    %4009 = vmatprep.mubr.f32.mxu0 0.0
    %4010 = vmatmul.mubr.f32.gmra.mrb[0].mxu0 %v3622
    %v4011 = vpop.f32.mrb[0].mxu0
    %v4012 = vadd.f32 0.0, %v4011
    %v4013 = vpop.f32.mrb[0].mxu0
    %4014 = vdwg.mxu0
    %v4016 = vsel %vm93, %v3922, 0
    %4018 = vmatprep.subr.mxu0 0.0
    %4019 = vmatpush1.msra.mxu0 %v3919
    %4020 = vmatprep.subr.mxu0 0.0
    %4021 = vmatpush1.msra.mxu0 %v3920
    %4022 = vmatprep.subr.mxu0 0.0
    %4023 = vmatpush1.msra.mxu0 %v3921
    %4024 = vmatprep.subr.mxu0 0.0
    %4025 = vmatpush1.msra.mxu0 %v4016
    %4026 = vmatprep.subr.mxu0 0.0
    %4027 = vmatpush1.msra.mxu0 0.0
    %4028 = vmatprep.subr.mxu0 0.0
    %4029 = vmatpush1.msra.mxu0 0.0
    %4030 = vmatprep.subr.mxu0 0.0
    %4031 = vmatpush1.msra.mxu0 0.0
    %4032 = vmatprep.subr.mxu0 0.0
    %4033 = vmatpush1.msra.mxu0 0.0
    %4034 = vmatprep.subr.mxu0 0.0
    %4035 = vmatpush1.msra.mxu0 0.0
    %4036 = vmatprep.subr.mxu0 0.0
    %4037 = vmatpush1.msra.mxu0 0.0
    %4038 = vmatprep.subr.mxu0 0.0
    %4039 = vmatpush1.msra.mxu0 0.0
    %4040 = vmatprep.subr.mxu0 0.0
    %4041 = vmatpush1.msra.mxu0 0.0
    %4042 = vmatprep.subr.mxu0 0.0
    %4043 = vmatpush1.msra.mxu0 0.0
    %4044 = vmatprep.subr.mxu0 0.0
    %4045 = vmatpush1.msra.mxu0 0.0
    %4046 = vmatprep.subr.mxu0 0.0
    %4047 = vmatpush1.msra.mxu0 0.0
    %4048 = vmatprep.subr.mxu0 0.0
    %4049 = vmatpush1.msra.mxu0 0.0
    %4050 = vmatprep.subr.mxu0 0.0
    %4051 = vmatpush1.msra.mxu0 0.0
    %4052 = vmatprep.subr.mxu0 0.0
    %4053 = vmatpush1.msra.mxu0 0.0
    %4054 = vmatprep.subr.mxu0 0.0
    %4055 = vmatpush1.msra.mxu0 0.0
    %4056 = vmatprep.subr.mxu0 0.0
    %4057 = vmatpush1.msra.mxu0 0.0
    %4058 = vmatprep.subr.mxu0 0.0
    %4059 = vmatpush1.msra.mxu0 0.0
    %4060 = vmatprep.subr.mxu0 0.0
    %4061 = vmatpush1.msra.mxu0 0.0
    %4062 = vmatprep.subr.mxu0 0.0
    %4063 = vmatpush1.msra.mxu0 0.0
    %4064 = vmatprep.subr.mxu0 0.0
    %4065 = vmatpush1.msra.mxu0 0.0
    %4066 = vmatprep.subr.mxu0 0.0
    %4067 = vmatpush1.msra.mxu0 0.0
    %4068 = vmatprep.subr.mxu0 0.0
    %4069 = vmatpush1.msra.mxu0 0.0
    %4070 = vmatprep.subr.mxu0 0.0
    %4071 = vmatpush1.msra.mxu0 0.0
    %4072 = vmatprep.subr.mxu0 0.0
    %4073 = vmatpush1.msra.mxu0 0.0
    %4074 = vmatprep.subr.mxu0 0.0
    %4075 = vmatpush1.msra.mxu0 0.0
    %4076 = vmatprep.subr.mxu0 0.0
    %4077 = vmatpush1.msra.mxu0 0.0
    %4078 = vmatprep.subr.mxu0 0.0
    %4079 = vmatpush1.msra.mxu0 0.0
    %4080 = vmatprep.subr.mxu0 0.0
    %4081 = vmatpush1.msra.mxu0 0.0
    %4082 = vmatprep.mubr.f32.mxu0 0.0
    %4083 = vmatmul.mubr.f32.gmra.mrb[0].mxu0 %v3712
    %v4084 = vpop.f32.mrb[0].mxu0
    %v4085 = vadd.f32 %v3997, %v4084
    %v4086 = vpop.f32.mrb[0].mxu0
    %4087 = vmatprep.mubr.f32.mxu0 0.0
    %4088 = vmatmul.mubr.f32.gmra.mrb[0].mxu0 %v3714
    %v4089 = vpop.f32.mrb[0].mxu0
    %v4090 = vadd.f32 %v4002, %v4089
    %v4091 = vpop.f32.mrb[0].mxu0
    %4092 = vmatprep.mubr.f32.mxu0 0.0
    %4093 = vmatmul.mubr.f32.gmra.mrb[0].mxu0 %v3716
    %v4094 = vpop.f32.mrb[0].mxu0
    %v4095 = vadd.f32 %v4007, %v4094
    %v4096 = vpop.f32.mrb[0].mxu0
    %4097 = vmatprep.mubr.f32.mxu0 0.0
    %4098 = vmatmul.mubr.f32.gmra.mrb[0].mxu0 %v3718
    %v4099 = vpop.f32.mrb[0].mxu0
    %v4100 = vadd.f32 %v4012, %v4099
    %v4101 = vpop.f32.mrb[0].mxu0
    %4102 = vdwg.mxu0
    %v4103 = vld [vmem:[%s577] sm:$0xff]
    %v4104 = vld [vmem:[%s577 + $0x8] sm:$0xff]
    %v4105 = vld [vmem:[%s577 + $0x10] sm:$0xff]
    %v4106 = vld [vmem:[%s577 + $0x18] sm:$0xf]
    %v4108 = vsel %vm93, %v4106, 0
    %4110 = vmatprep.subr.mxu0 0.0
    %4111 = vmatpush1.msra.mxu0 %v4103
    %4112 = vmatprep.subr.mxu0 0.0
    %4113 = vmatpush1.msra.mxu0 %v4104
    %4114 = vmatprep.subr.mxu0 0.0
    %4115 = vmatpush1.msra.mxu0 %v4105
    %4116 = vmatprep.subr.mxu0 0.0
    %4117 = vmatpush1.msra.mxu0 %v4108
    %4118 = vmatprep.subr.mxu0 0.0
    %4119 = vmatpush1.msra.mxu0 0.0
    %4120 = vmatprep.subr.mxu0 0.0
    %4121 = vmatpush1.msra.mxu0 0.0
    %4122 = vmatprep.subr.mxu0 0.0
    %4123 = vmatpush1.msra.mxu0 0.0
    %4124 = vmatprep.subr.mxu0 0.0
    %4125 = vmatpush1.msra.mxu0 0.0
    %4126 = vmatprep.subr.mxu0 0.0
    %4127 = vmatpush1.msra.mxu0 0.0
    %4128 = vmatprep.subr.mxu0 0.0
    %4129 = vmatpush1.msra.mxu0 0.0
    %4130 = vmatprep.subr.mxu0 0.0
    %4131 = vmatpush1.msra.mxu0 0.0
    %4132 = vmatprep.subr.mxu0 0.0
    %4133 = vmatpush1.msra.mxu0 0.0
    %4134 = vmatprep.subr.mxu0 0.0
    %4135 = vmatpush1.msra.mxu0 0.0
    %4136 = vmatprep.subr.mxu0 0.0
    %4137 = vmatpush1.msra.mxu0 0.0
    %4138 = vmatprep.subr.mxu0 0.0
    %4139 = vmatpush1.msra.mxu0 0.0
    %4140 = vmatprep.subr.mxu0 0.0
    %4141 = vmatpush1.msra.mxu0 0.0
    %4142 = vmatprep.subr.mxu0 0.0
    %4143 = vmatpush1.msra.mxu0 0.0
    %4144 = vmatprep.subr.mxu0 0.0
    %4145 = vmatpush1.msra.mxu0 0.0
    %4146 = vmatprep.subr.mxu0 0.0
    %4147 = vmatpush1.msra.mxu0 0.0
    %4148 = vmatprep.subr.mxu0 0.0
    %4149 = vmatpush1.msra.mxu0 0.0
    %4150 = vmatprep.subr.mxu0 0.0
    %4151 = vmatpush1.msra.mxu0 0.0
    %4152 = vmatprep.subr.mxu0 0.0
    %4153 = vmatpush1.msra.mxu0 0.0
    %4154 = vmatprep.subr.mxu0 0.0
    %4155 = vmatpush1.msra.mxu0 0.0
    %4156 = vmatprep.subr.mxu0 0.0
    %4157 = vmatpush1.msra.mxu0 0.0
    %4158 = vmatprep.subr.mxu0 0.0
    %4159 = vmatpush1.msra.mxu0 0.0
    %4160 = vmatprep.subr.mxu0 0.0
    %4161 = vmatpush1.msra.mxu0 0.0
    %4162 = vmatprep.subr.mxu0 0.0
    %4163 = vmatpush1.msra.mxu0 0.0
    %4164 = vmatprep.subr.mxu0 0.0
    %4165 = vmatpush1.msra.mxu0 0.0
    %4166 = vmatprep.subr.mxu0 0.0
    %4167 = vmatpush1.msra.mxu0 0.0
    %4168 = vmatprep.subr.mxu0 0.0
    %4169 = vmatpush1.msra.mxu0 0.0
    %4170 = vmatprep.subr.mxu0 0.0
    %4171 = vmatpush1.msra.mxu0 0.0
    %4172 = vmatprep.subr.mxu0 0.0
    %4173 = vmatpush1.msra.mxu0 0.0
    %4174 = vmatprep.mubr.f32.mxu0 0.0
    %4175 = vmatmul.mubr.f32.gmra.mrb[0].mxu0 %v3819
    %v4176 = vpop.f32.mrb[0].mxu0
    %v4177 = vadd.f32 0.0, %v4176
    %v4178 = vpop.f32.mrb[0].mxu0
    %4179 = vmatprep.mubr.f32.mxu0 0.0
    %4180 = vmatmul.mubr.f32.gmra.mrb[0].mxu0 %v3821
    %v4181 = vpop.f32.mrb[0].mxu0
    %v4182 = vadd.f32 0.0, %v4181
    %v4183 = vpop.f32.mrb[0].mxu0
    %4184 = vmatprep.mubr.f32.mxu0 0.0
    %4185 = vmatmul.mubr.f32.gmra.mrb[0].mxu0 %v3823
    %v4186 = vpop.f32.mrb[0].mxu0
    %v4187 = vadd.f32 0.0, %v4186
    %v4188 = vpop.f32.mrb[0].mxu0
    %4189 = vmatprep.mubr.f32.mxu0 0.0
    %4190 = vmatmul.mubr.f32.gmra.mrb[0].mxu0 %v3825
    %v4191 = vpop.f32.mrb[0].mxu0
    %v4192 = vadd.f32 0.0, %v4191
    %v4193 = vpop.f32.mrb[0].mxu0
    %4194 = vdwg.mxu0
    %v4195 = vadd.f32 %v4085, %v4177
    %v4196 = vadd.f32 %v4090, %v4182
    %v4197 = vadd.f32 %v4095, %v4187
    %v4198 = vadd.f32 %v4100, %v4192
    %v4199 = vld [vmem:[%s2] sm:$0xff]
    %v4200 = vld [vmem:[%s2 + $0x8] sm:$0x1f]
    %v4202 = vsel %vm676, %v4199, 0
    %v4205 = vsel %vm676, %v4200, 0
    %v4208 = vsel %vm683, %v3918, 0
    %4210 = vmatprep.subr.mxu0 0.0
    %4211 = vmatpush1.msra.mxu0 %v3915
    %4212 = vmatprep.subr.mxu0 0.0
    %4213 = vmatpush1.msra.mxu0 %v3916
    %4214 = vmatprep.subr.mxu0 0.0
    %4215 = vmatpush1.msra.mxu0 %v3917
    %4216 = vmatprep.subr.mxu0 0.0
    %4217 = vmatpush1.msra.mxu0 %v4208
    %4218 = vmatprep.subr.mxu0 0.0
    %4219 = vmatpush1.msra.mxu0 0.0
    %4220 = vmatprep.subr.mxu0 0.0
    %4221 = vmatpush1.msra.mxu0 0.0
    %4222 = vmatprep.subr.mxu0 0.0
    %4223 = vmatpush1.msra.mxu0 0.0
    %4224 = vmatprep.subr.mxu0 0.0
    %4225 = vmatpush1.msra.mxu0 0.0
    %4226 = vmatprep.subr.mxu0 0.0
    %4227 = vmatpush1.msra.mxu0 0.0
    %4228 = vmatprep.subr.mxu0 0.0
    %4229 = vmatpush1.msra.mxu0 0.0
    %4230 = vmatprep.subr.mxu0 0.0
    %4231 = vmatpush1.msra.mxu0 0.0
    %4232 = vmatprep.subr.mxu0 0.0
    %4233 = vmatpush1.msra.mxu0 0.0
    %4234 = vmatprep.subr.mxu0 0.0
    %4235 = vmatpush1.msra.mxu0 0.0
    %4236 = vmatprep.subr.mxu0 0.0
    %4237 = vmatpush1.msra.mxu0 0.0
    %4238 = vmatprep.subr.mxu0 0.0
    %4239 = vmatpush1.msra.mxu0 0.0
    %4240 = vmatprep.subr.mxu0 0.0
    %4241 = vmatpush1.msra.mxu0 0.0
    %4242 = vmatprep.subr.mxu0 0.0
    %4243 = vmatpush1.msra.mxu0 0.0
    %4244 = vmatprep.subr.mxu0 0.0
    %4245 = vmatpush1.msra.mxu0 0.0
    %4246 = vmatprep.subr.mxu0 0.0
    %4247 = vmatpush1.msra.mxu0 0.0
    %4248 = vmatprep.subr.mxu0 0.0
    %4249 = vmatpush1.msra.mxu0 0.0
    %4250 = vmatprep.subr.mxu0 0.0
    %4251 = vmatpush1.msra.mxu0 0.0
    %4252 = vmatprep.subr.mxu0 0.0
    %4253 = vmatpush1.msra.mxu0 0.0
    %4254 = vmatprep.subr.mxu0 0.0
    %4255 = vmatpush1.msra.mxu0 0.0
    %4256 = vmatprep.subr.mxu0 0.0
    %4257 = vmatpush1.msra.mxu0 0.0
    %4258 = vmatprep.subr.mxu0 0.0
    %4259 = vmatpush1.msra.mxu0 0.0
    %4260 = vmatprep.subr.mxu0 0.0
    %4261 = vmatpush1.msra.mxu0 0.0
    %4262 = vmatprep.subr.mxu0 0.0
    %4263 = vmatpush1.msra.mxu0 0.0
    %4264 = vmatprep.subr.mxu0 0.0
    %4265 = vmatpush1.msra.mxu0 0.0
    %4266 = vmatprep.subr.mxu0 0.0
    %4267 = vmatpush1.msra.mxu0 0.0
    %4268 = vmatprep.subr.mxu0 0.0
    %4269 = vmatpush1.msra.mxu0 0.0
    %4270 = vmatprep.subr.mxu0 0.0
    %4271 = vmatpush1.msra.mxu0 0.0
    %4272 = vmatprep.subr.mxu0 0.0
    %4273 = vmatpush1.msra.mxu0 0.0
    %4274 = vmatprep.mubr.f32.mxu0 0.0
    %4275 = vmatmul.mubr.f32.gmra.mrb[0].mxu0 %v4202
    %v4276 = vpop.f32.mrb[0].mxu0
    %v4277 = vadd.f32 0.0, %v4276
    %v4278 = vpop.f32.mrb[0].mxu0
    %4279 = vmatprep.mubr.f32.mxu0 0.0
    %4280 = vmatmul.mubr.f32.gmra.mrb[0].mxu0 %v4205
    %v4281 = vpop.f32.mrb[0].mxu0
    %v4282 = vadd.f32 0.0, %v4281
    %v4283 = vpop.f32.mrb[0].mxu0
    %4284 = vdwg.mxu0
    %v4286 = vsel %vm683, %v4198, 0
    %4288 = vmatprep.subr.mxu0 0.0
    %4289 = vmatpush1.msra.mxu0 %v4195
    %4290 = vmatprep.subr.mxu0 0.0
    %4291 = vmatpush1.msra.mxu0 %v4196
    %4292 = vmatprep.subr.mxu0 0.0
    %4293 = vmatpush1.msra.mxu0 %v4197
    %4294 = vmatprep.subr.mxu0 0.0
    %4295 = vmatpush1.msra.mxu0 %v4286
    %4296 = vmatprep.subr.mxu0 0.0
    %4297 = vmatpush1.msra.mxu0 0.0
    %4298 = vmatprep.subr.mxu0 0.0
    %4299 = vmatpush1.msra.mxu0 0.0
    %4300 = vmatprep.subr.mxu0 0.0
    %4301 = vmatpush1.msra.mxu0 0.0
    %4302 = vmatprep.subr.mxu0 0.0
    %4303 = vmatpush1.msra.mxu0 0.0
    %4304 = vmatprep.subr.mxu0 0.0
    %4305 = vmatpush1.msra.mxu0 0.0
    %4306 = vmatprep.subr.mxu0 0.0
    %4307 = vmatpush1.msra.mxu0 0.0
    %4308 = vmatprep.subr.mxu0 0.0
    %4309 = vmatpush1.msra.mxu0 0.0
    %4310 = vmatprep.subr.mxu0 0.0
    %4311 = vmatpush1.msra.mxu0 0.0
    %4312 = vmatprep.subr.mxu0 0.0
    %4313 = vmatpush1.msra.mxu0 0.0
    %4314 = vmatprep.subr.mxu0 0.0
    %4315 = vmatpush1.msra.mxu0 0.0
    %4316 = vmatprep.subr.mxu0 0.0
    %4317 = vmatpush1.msra.mxu0 0.0
    %4318 = vmatprep.subr.mxu0 0.0
    %4319 = vmatpush1.msra.mxu0 0.0
    %4320 = vmatprep.subr.mxu0 0.0
    %4321 = vmatpush1.msra.mxu0 0.0
    %4322 = vmatprep.subr.mxu0 0.0
    %4323 = vmatpush1.msra.mxu0 0.0
    %4324 = vmatprep.subr.mxu0 0.0
    %4325 = vmatpush1.msra.mxu0 0.0
    %4326 = vmatprep.subr.mxu0 0.0
    %4327 = vmatpush1.msra.mxu0 0.0
    %4328 = vmatprep.subr.mxu0 0.0
    %4329 = vmatpush1.msra.mxu0 0.0
    %4330 = vmatprep.subr.mxu0 0.0
    %4331 = vmatpush1.msra.mxu0 0.0
    %4332 = vmatprep.subr.mxu0 0.0
    %4333 = vmatpush1.msra.mxu0 0.0
    %4334 = vmatprep.subr.mxu0 0.0
    %4335 = vmatpush1.msra.mxu0 0.0
    %4336 = vmatprep.subr.mxu0 0.0
    %4337 = vmatpush1.msra.mxu0 0.0
    %4338 = vmatprep.subr.mxu0 0.0
    %4339 = vmatpush1.msra.mxu0 0.0
    %4340 = vmatprep.subr.mxu0 0.0
    %4341 = vmatpush1.msra.mxu0 0.0
    %4342 = vmatprep.subr.mxu0 0.0
    %4343 = vmatpush1.msra.mxu0 0.0
    %4344 = vmatprep.subr.mxu0 0.0
    %4345 = vmatpush1.msra.mxu0 0.0
    %4346 = vmatprep.subr.mxu0 0.0
    %4347 = vmatpush1.msra.mxu0 0.0
    %4348 = vmatprep.subr.mxu0 0.0
    %4349 = vmatpush1.msra.mxu0 0.0
    %4350 = vmatprep.subr.mxu0 0.0
    %4351 = vmatpush1.msra.mxu0 0.0
    %4352 = vmatprep.mubr.f32.mxu0 0.0
    %4353 = vmatmul.mubr.f32.gmra.mrb[0].mxu0 %v4202
    %v4354 = vpop.f32.mrb[0].mxu0
    %v4355 = vadd.f32 0.0, %v4354
    %v4356 = vpop.f32.mrb[0].mxu0
    %4357 = vmatprep.mubr.f32.mxu0 0.0
    %4358 = vmatmul.mubr.f32.gmra.mrb[0].mxu0 %v4205
    %v4359 = vpop.f32.mrb[0].mxu0
    %v4360 = vadd.f32 0.0, %v4359
    %v4361 = vpop.f32.mrb[0].mxu0
    %4362 = vdwg.mxu0
    %v4363 = vld [vmem:[%s840] sm:$0xff]
    %v4364 = vld [vmem:[%s840 + $0x8] sm:$0x1f]
    %v4366 = vsel %vm676, %v4363, 0
    %v4369 = vsel %vm676, %v4364, 0
    %4371 = vmatprep.subr.mxu0 0.0
    %4372 = vmatpush1.msra.mxu0 %v3915
    %4373 = vmatprep.subr.mxu0 0.0
    %4374 = vmatpush1.msra.mxu0 %v3916
    %4375 = vmatprep.subr.mxu0 0.0
    %4376 = vmatpush1.msra.mxu0 %v3917
    %4377 = vmatprep.subr.mxu0 0.0
    %4378 = vmatpush1.msra.mxu0 %v4208
    %4379 = vmatprep.subr.mxu0 0.0
    %4380 = vmatpush1.msra.mxu0 0.0
    %4381 = vmatprep.subr.mxu0 0.0
    %4382 = vmatpush1.msra.mxu0 0.0
    %4383 = vmatprep.subr.mxu0 0.0
    %4384 = vmatpush1.msra.mxu0 0.0
    %4385 = vmatprep.subr.mxu0 0.0
    %4386 = vmatpush1.msra.mxu0 0.0
    %4387 = vmatprep.subr.mxu0 0.0
    %4388 = vmatpush1.msra.mxu0 0.0
    %4389 = vmatprep.subr.mxu0 0.0
    %4390 = vmatpush1.msra.mxu0 0.0
    %4391 = vmatprep.subr.mxu0 0.0
    %4392 = vmatpush1.msra.mxu0 0.0
    %4393 = vmatprep.subr.mxu0 0.0
    %4394 = vmatpush1.msra.mxu0 0.0
    %4395 = vmatprep.subr.mxu0 0.0
    %4396 = vmatpush1.msra.mxu0 0.0
    %4397 = vmatprep.subr.mxu0 0.0
    %4398 = vmatpush1.msra.mxu0 0.0
    %4399 = vmatprep.subr.mxu0 0.0
    %4400 = vmatpush1.msra.mxu0 0.0
    %4401 = vmatprep.subr.mxu0 0.0
    %4402 = vmatpush1.msra.mxu0 0.0
    %4403 = vmatprep.subr.mxu0 0.0
    %4404 = vmatpush1.msra.mxu0 0.0
    %4405 = vmatprep.subr.mxu0 0.0
    %4406 = vmatpush1.msra.mxu0 0.0
    %4407 = vmatprep.subr.mxu0 0.0
    %4408 = vmatpush1.msra.mxu0 0.0
    %4409 = vmatprep.subr.mxu0 0.0
    %4410 = vmatpush1.msra.mxu0 0.0
    %4411 = vmatprep.subr.mxu0 0.0
    %4412 = vmatpush1.msra.mxu0 0.0
    %4413 = vmatprep.subr.mxu0 0.0
    %4414 = vmatpush1.msra.mxu0 0.0
    %4415 = vmatprep.subr.mxu0 0.0
    %4416 = vmatpush1.msra.mxu0 0.0
    %4417 = vmatprep.subr.mxu0 0.0
    %4418 = vmatpush1.msra.mxu0 0.0
    %4419 = vmatprep.subr.mxu0 0.0
    %4420 = vmatpush1.msra.mxu0 0.0
    %4421 = vmatprep.subr.mxu0 0.0
    %4422 = vmatpush1.msra.mxu0 0.0
    %4423 = vmatprep.subr.mxu0 0.0
    %4424 = vmatpush1.msra.mxu0 0.0
    %4425 = vmatprep.subr.mxu0 0.0
    %4426 = vmatpush1.msra.mxu0 0.0
    %4427 = vmatprep.subr.mxu0 0.0
    %4428 = vmatpush1.msra.mxu0 0.0
    %4429 = vmatprep.subr.mxu0 0.0
    %4430 = vmatpush1.msra.mxu0 0.0
    %4431 = vmatprep.subr.mxu0 0.0
    %4432 = vmatpush1.msra.mxu0 0.0
    %4433 = vmatprep.subr.mxu0 0.0
    %4434 = vmatpush1.msra.mxu0 0.0
    %4435 = vmatprep.mubr.f32.mxu0 0.0
    %4436 = vmatmul.mubr.f32.gmra.mrb[0].mxu0 %v4366
    %v4437 = vpop.f32.mrb[0].mxu0
    %v4438 = vadd.f32 0.0, %v4437
    %v4439 = vpop.f32.mrb[0].mxu0
    %4440 = vmatprep.mubr.f32.mxu0 0.0
    %4441 = vmatmul.mubr.f32.gmra.mrb[0].mxu0 %v4369
    %v4442 = vpop.f32.mrb[0].mxu0
    %v4443 = vadd.f32 0.0, %v4442
    %v4444 = vpop.f32.mrb[0].mxu0
    %4445 = vdwg.mxu0
    %4446 = vmatprep.subr.mxu0 0.0
    %4447 = vmatpush1.msra.mxu0 %v4195
    %4448 = vmatprep.subr.mxu0 0.0
    %4449 = vmatpush1.msra.mxu0 %v4196
    %4450 = vmatprep.subr.mxu0 0.0
    %4451 = vmatpush1.msra.mxu0 %v4197
    %4452 = vmatprep.subr.mxu0 0.0
    %4453 = vmatpush1.msra.mxu0 %v4286
    %4454 = vmatprep.subr.mxu0 0.0
    %4455 = vmatpush1.msra.mxu0 0.0
    %4456 = vmatprep.subr.mxu0 0.0
    %4457 = vmatpush1.msra.mxu0 0.0
    %4458 = vmatprep.subr.mxu0 0.0
    %4459 = vmatpush1.msra.mxu0 0.0
    %4460 = vmatprep.subr.mxu0 0.0
    %4461 = vmatpush1.msra.mxu0 0.0
    %4462 = vmatprep.subr.mxu0 0.0
    %4463 = vmatpush1.msra.mxu0 0.0
    %4464 = vmatprep.subr.mxu0 0.0
    %4465 = vmatpush1.msra.mxu0 0.0
    %4466 = vmatprep.subr.mxu0 0.0
    %4467 = vmatpush1.msra.mxu0 0.0
    %4468 = vmatprep.subr.mxu0 0.0
    %4469 = vmatpush1.msra.mxu0 0.0
    %4470 = vmatprep.subr.mxu0 0.0
    %4471 = vmatpush1.msra.mxu0 0.0
    %4472 = vmatprep.subr.mxu0 0.0
    %4473 = vmatpush1.msra.mxu0 0.0
    %4474 = vmatprep.subr.mxu0 0.0
    %4475 = vmatpush1.msra.mxu0 0.0
    %4476 = vmatprep.subr.mxu0 0.0
    %4477 = vmatpush1.msra.mxu0 0.0
    %4478 = vmatprep.subr.mxu0 0.0
    %4479 = vmatpush1.msra.mxu0 0.0
    %4480 = vmatprep.subr.mxu0 0.0
    %4481 = vmatpush1.msra.mxu0 0.0
    %4482 = vmatprep.subr.mxu0 0.0
    %4483 = vmatpush1.msra.mxu0 0.0
    %4484 = vmatprep.subr.mxu0 0.0
    %4485 = vmatpush1.msra.mxu0 0.0
    %4486 = vmatprep.subr.mxu0 0.0
    %4487 = vmatpush1.msra.mxu0 0.0
    %4488 = vmatprep.subr.mxu0 0.0
    %4489 = vmatpush1.msra.mxu0 0.0
    %4490 = vmatprep.subr.mxu0 0.0
    %4491 = vmatpush1.msra.mxu0 0.0
    %4492 = vmatprep.subr.mxu0 0.0
    %4493 = vmatpush1.msra.mxu0 0.0
    %4494 = vmatprep.subr.mxu0 0.0
    %4495 = vmatpush1.msra.mxu0 0.0
    %4496 = vmatprep.subr.mxu0 0.0
    %4497 = vmatpush1.msra.mxu0 0.0
    %4498 = vmatprep.subr.mxu0 0.0
    %4499 = vmatpush1.msra.mxu0 0.0
    %4500 = vmatprep.subr.mxu0 0.0
    %4501 = vmatpush1.msra.mxu0 0.0
    %4502 = vmatprep.subr.mxu0 0.0
    %4503 = vmatpush1.msra.mxu0 0.0
    %4504 = vmatprep.subr.mxu0 0.0
    %4505 = vmatpush1.msra.mxu0 0.0
    %4506 = vmatprep.subr.mxu0 0.0
    %4507 = vmatpush1.msra.mxu0 0.0
    %4508 = vmatprep.subr.mxu0 0.0
    %4509 = vmatpush1.msra.mxu0 0.0
    %4510 = vmatprep.mubr.f32.mxu0 0.0
    %4511 = vmatmul.mubr.f32.gmra.mrb[0].mxu0 %v4366
    %v4512 = vpop.f32.mrb[0].mxu0
    %v4513 = vadd.f32 0.0, %v4512
    %v4514 = vpop.f32.mrb[0].mxu0
    %4515 = vmatprep.mubr.f32.mxu0 0.0
    %4516 = vmatmul.mubr.f32.gmra.mrb[0].mxu0 %v4369
    %v4517 = vpop.f32.mrb[0].mxu0
    %v4518 = vadd.f32 0.0, %v4517
    %v4519 = vpop.f32.mrb[0].mxu0
    %4520 = vdwg.mxu0
    %v4521 = vmax.f32 %v4277, %v4355
    %v4522 = vmax.f32 %v4282, %v4360
    %v4523 = vmax.f32 %v4438, %v4513
    %v4524 = vmax.f32 %v4443, %v4518
    %v4525 = vmax.f32 %v4521, %v4523
    %v4526 = vmax.f32 %v4522, %v4524
    %v4527 = vld [vmem:[%s3] sm:$0x1]
    %v4529 = vlaneseq
    %v4530 = vshrl.u32 %v4529, 7
    %v4531 = vsub.s32 0, %v4530
    %v4532 = vrot.slane %v4527, %v4531
    %v4534 = vadd.f32 %v4525, %v4532
    %v4535 = vadd.f32 %v4526, %v4532
    %v4536 = vmax.f32 %v4534, 0.0
    %v4537 = vmax.f32 %v4535, 0.0
    %v4538 = vld [vmem:[%s4] sm:$0xff]
    %v4539 = vld [vmem:[%s4 + $0x8] sm:$0xff]
    %v4540 = vld [vmem:[%s4 + $0x10] sm:$0xff]
    %v4541 = vld [vmem:[%s4 + $0x18] sm:$0xff]
    %v4542 = vld [vmem:[%s4 + $0x20] sm:$0xff]
    %v4543 = vld [vmem:[%s4 + $0x28] sm:$0xff]
    %v4544 = vld [vmem:[%s4 + $0x30] sm:$0xff]
    %v4545 = vld [vmem:[%s4 + $0x38] sm:$0xff]
    %v4546 = vld [vmem:[%s4 + $0x40] sm:$0xff]
    %v4547 = vld [vmem:[%s4 + $0x48] sm:$0x3f]
    %v4548 = vld [vmem:[%s1026] sm:$0xff]
    %v4549 = vld [vmem:[%s1026 + $0x8] sm:$0xff]
    %v4550 = vld [vmem:[%s1026 + $0x10] sm:$0xff]
    %v4551 = vld [vmem:[%s1026 + $0x18] sm:$0xff]
    %v4552 = vld [vmem:[%s1026 + $0x20] sm:$0xff]
    %v4553 = vld [vmem:[%s1026 + $0x28] sm:$0xff]
    %v4554 = vld [vmem:[%s1026 + $0x30] sm:$0xff]
    %v4555 = vld [vmem:[%s1026 + $0x38] sm:$0xff]
    %v4556 = vld [vmem:[%s1026 + $0x40] sm:$0xff]
    %v4557 = vld [vmem:[%s1026 + $0x48] sm:$0x3f]
    %v4560 = vrot.slane %v4536, 1
    %v4561 = vrot.slane %v4537, 1
    %v4562 = vsel %vm76, %v4560, %v4561
    %v4563 = vsel %vm1042, %v4562, 0
    %v4565 = vsel %vm1042, %v4561, 0
    %v4568 = vsel %vm283, %v4557, 0
    %4570 = vmatprep.subr.mxu0 0.0
    %4571 = vmatpush1.msra.mxu0 %v4548
    %4572 = vmatprep.subr.mxu0 0.0
    %4573 = vmatpush1.msra.mxu0 %v4549
    %4574 = vmatprep.subr.mxu0 0.0
    %4575 = vmatpush1.msra.mxu0 %v4550
    %4576 = vmatprep.subr.mxu0 0.0
    %4577 = vmatpush1.msra.mxu0 %v4551
    %4578 = vmatprep.subr.mxu0 0.0
    %4579 = vmatpush1.msra.mxu0 %v4552
    %4580 = vmatprep.subr.mxu0 0.0
    %4581 = vmatpush1.msra.mxu0 %v4553
    %4582 = vmatprep.subr.mxu0 0.0
    %4583 = vmatpush1.msra.mxu0 %v4554
    %4584 = vmatprep.subr.mxu0 0.0
    %4585 = vmatpush1.msra.mxu0 %v4555
    %4586 = vmatprep.subr.mxu0 0.0
    %4587 = vmatpush1.msra.mxu0 %v4556
    %4588 = vmatprep.subr.mxu0 0.0
    %4589 = vmatpush1.msra.mxu0 %v4568
    %4590 = vmatprep.subr.mxu0 0.0
    %4591 = vmatpush1.msra.mxu0 0.0
    %4592 = vmatprep.subr.mxu0 0.0
    %4593 = vmatpush1.msra.mxu0 0.0
    %4594 = vmatprep.subr.mxu0 0.0
    %4595 = vmatpush1.msra.mxu0 0.0
    %4596 = vmatprep.subr.mxu0 0.0
    %4597 = vmatpush1.msra.mxu0 0.0
    %4598 = vmatprep.subr.mxu0 0.0
    %4599 = vmatpush1.msra.mxu0 0.0
    %4600 = vmatprep.subr.mxu0 0.0
    %4601 = vmatpush1.msra.mxu0 0.0
    %4602 = vmatprep.subr.mxu0 0.0
    %4603 = vmatpush1.msra.mxu0 0.0
    %4604 = vmatprep.subr.mxu0 0.0
    %4605 = vmatpush1.msra.mxu0 0.0
    %4606 = vmatprep.subr.mxu0 0.0
    %4607 = vmatpush1.msra.mxu0 0.0
    %4608 = vmatprep.subr.mxu0 0.0
    %4609 = vmatpush1.msra.mxu0 0.0
    %4610 = vmatprep.subr.mxu0 0.0
    %4611 = vmatpush1.msra.mxu0 0.0
    %4612 = vmatprep.subr.mxu0 0.0
    %4613 = vmatpush1.msra.mxu0 0.0
    %4614 = vmatprep.subr.mxu0 0.0
    %4615 = vmatpush1.msra.mxu0 0.0
    %4616 = vmatprep.subr.mxu0 0.0
    %4617 = vmatpush1.msra.mxu0 0.0
    %4618 = vmatprep.subr.mxu0 0.0
    %4619 = vmatpush1.msra.mxu0 0.0
    %4620 = vmatprep.subr.mxu0 0.0
    %4621 = vmatpush1.msra.mxu0 0.0
    %4622 = vmatprep.subr.mxu0 0.0
    %4623 = vmatpush1.msra.mxu0 0.0
    %4624 = vmatprep.subr.mxu0 0.0
    %4625 = vmatpush1.msra.mxu0 0.0
    %4626 = vmatprep.subr.mxu0 0.0
    %4627 = vmatpush1.msra.mxu0 0.0
    %4628 = vmatprep.subr.mxu0 0.0
    %4629 = vmatpush1.msra.mxu0 0.0
    %4630 = vmatprep.subr.mxu0 0.0
    %4631 = vmatpush1.msra.mxu0 0.0
    %4632 = vmatprep.subr.mxu0 0.0
    %4633 = vmatpush1.msra.mxu0 0.0
    %4634 = vmatprep.mubr.f32.mxu0 0.0
    %4635 = vmatmul.mubr.f32.gmra.mrb[0].mxu0 %v4563
    %v4636 = vpop.f32.mrb[0].mxu0
    %v4637 = vadd.f32 0.0, %v4636
    %v4638 = vpop.f32.mrb[0].mxu0
    %4639 = vmatprep.mubr.f32.mxu0 0.0
    %4640 = vmatmul.mubr.f32.gmra.mrb[0].mxu0 %v4565
    %v4641 = vpop.f32.mrb[0].mxu0
    %v4642 = vadd.f32 0.0, %v4641
    %v4643 = vpop.f32.mrb[0].mxu0
    %4644 = vdwg.mxu0
    %v4645 = vsel %vm1042, %v4536, 0
    %v4647 = vsel %vm1042, %v4537, 0
    %v4650 = vsel %vm283, %v4547, 0
    %4652 = vmatprep.subr.mxu0 0.0
    %4653 = vmatpush1.msra.mxu0 %v4538
    %4654 = vmatprep.subr.mxu0 0.0
    %4655 = vmatpush1.msra.mxu0 %v4539
    %4656 = vmatprep.subr.mxu0 0.0
    %4657 = vmatpush1.msra.mxu0 %v4540
    %4658 = vmatprep.subr.mxu0 0.0
    %4659 = vmatpush1.msra.mxu0 %v4541
    %4660 = vmatprep.subr.mxu0 0.0
    %4661 = vmatpush1.msra.mxu0 %v4542
    %4662 = vmatprep.subr.mxu0 0.0
    %4663 = vmatpush1.msra.mxu0 %v4543
    %4664 = vmatprep.subr.mxu0 0.0
    %4665 = vmatpush1.msra.mxu0 %v4544
    %4666 = vmatprep.subr.mxu0 0.0
    %4667 = vmatpush1.msra.mxu0 %v4545
    %4668 = vmatprep.subr.mxu0 0.0
    %4669 = vmatpush1.msra.mxu0 %v4546
    %4670 = vmatprep.subr.mxu0 0.0
    %4671 = vmatpush1.msra.mxu0 %v4650
    %4672 = vmatprep.subr.mxu0 0.0
    %4673 = vmatpush1.msra.mxu0 0.0
    %4674 = vmatprep.subr.mxu0 0.0
    %4675 = vmatpush1.msra.mxu0 0.0
    %4676 = vmatprep.subr.mxu0 0.0
    %4677 = vmatpush1.msra.mxu0 0.0
    %4678 = vmatprep.subr.mxu0 0.0
    %4679 = vmatpush1.msra.mxu0 0.0
    %4680 = vmatprep.subr.mxu0 0.0
    %4681 = vmatpush1.msra.mxu0 0.0
    %4682 = vmatprep.subr.mxu0 0.0
    %4683 = vmatpush1.msra.mxu0 0.0
    %4684 = vmatprep.subr.mxu0 0.0
    %4685 = vmatpush1.msra.mxu0 0.0
    %4686 = vmatprep.subr.mxu0 0.0
    %4687 = vmatpush1.msra.mxu0 0.0
    %4688 = vmatprep.subr.mxu0 0.0
    %4689 = vmatpush1.msra.mxu0 0.0
    %4690 = vmatprep.subr.mxu0 0.0
    %4691 = vmatpush1.msra.mxu0 0.0
    %4692 = vmatprep.subr.mxu0 0.0
    %4693 = vmatpush1.msra.mxu0 0.0
    %4694 = vmatprep.subr.mxu0 0.0
    %4695 = vmatpush1.msra.mxu0 0.0
    %4696 = vmatprep.subr.mxu0 0.0
    %4697 = vmatpush1.msra.mxu0 0.0
    %4698 = vmatprep.subr.mxu0 0.0
    %4699 = vmatpush1.msra.mxu0 0.0
    %4700 = vmatprep.subr.mxu0 0.0
    %4701 = vmatpush1.msra.mxu0 0.0
    %4702 = vmatprep.subr.mxu0 0.0
    %4703 = vmatpush1.msra.mxu0 0.0
    %4704 = vmatprep.subr.mxu0 0.0
    %4705 = vmatpush1.msra.mxu0 0.0
    %4706 = vmatprep.subr.mxu0 0.0
    %4707 = vmatpush1.msra.mxu0 0.0
    %4708 = vmatprep.subr.mxu0 0.0
    %4709 = vmatpush1.msra.mxu0 0.0
    %4710 = vmatprep.subr.mxu0 0.0
    %4711 = vmatpush1.msra.mxu0 0.0
    %4712 = vmatprep.subr.mxu0 0.0
    %4713 = vmatpush1.msra.mxu0 0.0
    %4714 = vmatprep.subr.mxu0 0.0
    %4715 = vmatpush1.msra.mxu0 0.0
    %4716 = vmatprep.mubr.f32.mxu0 0.0
    %4717 = vmatmul.mubr.f32.gmra.mrb[0].mxu0 %v4645
    %v4718 = vpop.f32.mrb[0].mxu0
    %v4719 = vadd.f32 %v4637, %v4718
    %v4720 = vpop.f32.mrb[0].mxu0
    %4721 = vmatprep.mubr.f32.mxu0 0.0
    %4722 = vmatmul.mubr.f32.gmra.mrb[0].mxu0 %v4647
    %v4723 = vpop.f32.mrb[0].mxu0
    %v4724 = vadd.f32 %v4642, %v4723
    %v4725 = vpop.f32.mrb[0].mxu0
    %4726 = vdwg.mxu0
    %v4727 = vld [vmem:[%s1207] sm:$0xff]
    %v4728 = vld [vmem:[%s1207 + $0x8] sm:$0xff]
    %v4729 = vld [vmem:[%s1207 + $0x10] sm:$0xff]
    %v4730 = vld [vmem:[%s1207 + $0x18] sm:$0xff]
    %v4731 = vld [vmem:[%s1207 + $0x20] sm:$0xff]
    %v4732 = vld [vmem:[%s1207 + $0x28] sm:$0xff]
    %v4733 = vld [vmem:[%s1207 + $0x30] sm:$0xff]
    %v4734 = vld [vmem:[%s1207 + $0x38] sm:$0xff]
    %v4735 = vld [vmem:[%s1207 + $0x40] sm:$0xff]
    %v4736 = vld [vmem:[%s1207 + $0x48] sm:$0x3f]
    %v4737 = vrot.slane %v4536, 2
    %v4738 = vrot.slane %v4537, 2
    %v4739 = vsel %vm283, %v4737, %v4738
    %v4740 = vsel %vm1042, %v4739, 0
    %v4742 = vsel %vm1042, %v4738, 0
    %v4745 = vsel %vm283, %v4736, 0
    %4747 = vmatprep.subr.mxu0 0.0
    %4748 = vmatpush1.msra.mxu0 %v4727
    %4749 = vmatprep.subr.mxu0 0.0
    %4750 = vmatpush1.msra.mxu0 %v4728
    %4751 = vmatprep.subr.mxu0 0.0
    %4752 = vmatpush1.msra.mxu0 %v4729
    %4753 = vmatprep.subr.mxu0 0.0
    %4754 = vmatpush1.msra.mxu0 %v4730
    %4755 = vmatprep.subr.mxu0 0.0
    %4756 = vmatpush1.msra.mxu0 %v4731
    %4757 = vmatprep.subr.mxu0 0.0
    %4758 = vmatpush1.msra.mxu0 %v4732
    %4759 = vmatprep.subr.mxu0 0.0
    %4760 = vmatpush1.msra.mxu0 %v4733
    %4761 = vmatprep.subr.mxu0 0.0
    %4762 = vmatpush1.msra.mxu0 %v4734
    %4763 = vmatprep.subr.mxu0 0.0
    %4764 = vmatpush1.msra.mxu0 %v4735
    %4765 = vmatprep.subr.mxu0 0.0
    %4766 = vmatpush1.msra.mxu0 %v4745
    %4767 = vmatprep.subr.mxu0 0.0
    %4768 = vmatpush1.msra.mxu0 0.0
    %4769 = vmatprep.subr.mxu0 0.0
    %4770 = vmatpush1.msra.mxu0 0.0
    %4771 = vmatprep.subr.mxu0 0.0
    %4772 = vmatpush1.msra.mxu0 0.0
    %4773 = vmatprep.subr.mxu0 0.0
    %4774 = vmatpush1.msra.mxu0 0.0
    %4775 = vmatprep.subr.mxu0 0.0
    %4776 = vmatpush1.msra.mxu0 0.0
    %4777 = vmatprep.subr.mxu0 0.0
    %4778 = vmatpush1.msra.mxu0 0.0
    %4779 = vmatprep.subr.mxu0 0.0
    %4780 = vmatpush1.msra.mxu0 0.0
    %4781 = vmatprep.subr.mxu0 0.0
    %4782 = vmatpush1.msra.mxu0 0.0
    %4783 = vmatprep.subr.mxu0 0.0
    %4784 = vmatpush1.msra.mxu0 0.0
    %4785 = vmatprep.subr.mxu0 0.0
    %4786 = vmatpush1.msra.mxu0 0.0
    %4787 = vmatprep.subr.mxu0 0.0
    %4788 = vmatpush1.msra.mxu0 0.0
    %4789 = vmatprep.subr.mxu0 0.0
    %4790 = vmatpush1.msra.mxu0 0.0
    %4791 = vmatprep.subr.mxu0 0.0
    %4792 = vmatpush1.msra.mxu0 0.0
    %4793 = vmatprep.subr.mxu0 0.0
    %4794 = vmatpush1.msra.mxu0 0.0
    %4795 = vmatprep.subr.mxu0 0.0
    %4796 = vmatpush1.msra.mxu0 0.0
    %4797 = vmatprep.subr.mxu0 0.0
    %4798 = vmatpush1.msra.mxu0 0.0
    %4799 = vmatprep.subr.mxu0 0.0
    %4800 = vmatpush1.msra.mxu0 0.0
    %4801 = vmatprep.subr.mxu0 0.0
    %4802 = vmatpush1.msra.mxu0 0.0
    %4803 = vmatprep.subr.mxu0 0.0
    %4804 = vmatpush1.msra.mxu0 0.0
    %4805 = vmatprep.subr.mxu0 0.0
    %4806 = vmatpush1.msra.mxu0 0.0
    %4807 = vmatprep.subr.mxu0 0.0
    %4808 = vmatpush1.msra.mxu0 0.0
    %4809 = vmatprep.subr.mxu0 0.0
    %4810 = vmatpush1.msra.mxu0 0.0
    %4811 = vmatprep.mubr.f32.mxu0 0.0
    %4812 = vmatmul.mubr.f32.gmra.mrb[0].mxu0 %v4740
    %v4813 = vpop.f32.mrb[0].mxu0
    %v4814 = vadd.f32 0.0, %v4813
    %v4815 = vpop.f32.mrb[0].mxu0
    %4816 = vmatprep.mubr.f32.mxu0 0.0
    %4817 = vmatmul.mubr.f32.gmra.mrb[0].mxu0 %v4742
    %v4818 = vpop.f32.mrb[0].mxu0
    %v4819 = vadd.f32 0.0, %v4818
    %v4820 = vpop.f32.mrb[0].mxu0
    %4821 = vdwg.mxu0
    %v4822 = vadd.f32 %v4719, %v4814
    %v4823 = vadd.f32 %v4724, %v4819
    %v4824 = vld [vmem:[%s1305] sm:$0xff]
    %v4825 = vld [vmem:[%s1305 + $0x8] sm:$0xff]
    %v4826 = vld [vmem:[%s1305 + $0x10] sm:$0xff]
    %v4827 = vld [vmem:[%s1305 + $0x18] sm:$0xff]
    %v4828 = vld [vmem:[%s1305 + $0x20] sm:$0xff]
    %v4829 = vld [vmem:[%s1305 + $0x28] sm:$0xff]
    %v4830 = vld [vmem:[%s1305 + $0x30] sm:$0xff]
    %v4831 = vld [vmem:[%s1305 + $0x38] sm:$0xff]
    %v4832 = vld [vmem:[%s1305 + $0x40] sm:$0xff]
    %v4833 = vld [vmem:[%s1305 + $0x48] sm:$0x3f]
    %v4834 = vrot.slane %v4536, 3
    %v4835 = vrot.slane %v4537, 3
    %v4836 = vsel %vm1316, %v4834, %v4835
    %v4837 = vsel %vm1042, %v4836, 0
    %v4839 = vsel %vm1042, %v4835, 0
    %v4842 = vsel %vm283, %v4833, 0
    %4844 = vmatprep.subr.mxu0 0.0
    %4845 = vmatpush1.msra.mxu0 %v4824
    %4846 = vmatprep.subr.mxu0 0.0
    %4847 = vmatpush1.msra.mxu0 %v4825
    %4848 = vmatprep.subr.mxu0 0.0
    %4849 = vmatpush1.msra.mxu0 %v4826
    %4850 = vmatprep.subr.mxu0 0.0
    %4851 = vmatpush1.msra.mxu0 %v4827
    %4852 = vmatprep.subr.mxu0 0.0
    %4853 = vmatpush1.msra.mxu0 %v4828
    %4854 = vmatprep.subr.mxu0 0.0
    %4855 = vmatpush1.msra.mxu0 %v4829
    %4856 = vmatprep.subr.mxu0 0.0
    %4857 = vmatpush1.msra.mxu0 %v4830
    %4858 = vmatprep.subr.mxu0 0.0
    %4859 = vmatpush1.msra.mxu0 %v4831
    %4860 = vmatprep.subr.mxu0 0.0
    %4861 = vmatpush1.msra.mxu0 %v4832
    %4862 = vmatprep.subr.mxu0 0.0
    %4863 = vmatpush1.msra.mxu0 %v4842
    %4864 = vmatprep.subr.mxu0 0.0
    %4865 = vmatpush1.msra.mxu0 0.0
    %4866 = vmatprep.subr.mxu0 0.0
    %4867 = vmatpush1.msra.mxu0 0.0
    %4868 = vmatprep.subr.mxu0 0.0
    %4869 = vmatpush1.msra.mxu0 0.0
    %4870 = vmatprep.subr.mxu0 0.0
    %4871 = vmatpush1.msra.mxu0 0.0
    %4872 = vmatprep.subr.mxu0 0.0
    %4873 = vmatpush1.msra.mxu0 0.0
    %4874 = vmatprep.subr.mxu0 0.0
    %4875 = vmatpush1.msra.mxu0 0.0
    %4876 = vmatprep.subr.mxu0 0.0
    %4877 = vmatpush1.msra.mxu0 0.0
    %4878 = vmatprep.subr.mxu0 0.0
    %4879 = vmatpush1.msra.mxu0 0.0
    %4880 = vmatprep.subr.mxu0 0.0
    %4881 = vmatpush1.msra.mxu0 0.0
    %4882 = vmatprep.subr.mxu0 0.0
    %4883 = vmatpush1.msra.mxu0 0.0
    %4884 = vmatprep.subr.mxu0 0.0
    %4885 = vmatpush1.msra.mxu0 0.0
    %4886 = vmatprep.subr.mxu0 0.0
    %4887 = vmatpush1.msra.mxu0 0.0
    %4888 = vmatprep.subr.mxu0 0.0
    %4889 = vmatpush1.msra.mxu0 0.0
    %4890 = vmatprep.subr.mxu0 0.0
    %4891 = vmatpush1.msra.mxu0 0.0
    %4892 = vmatprep.subr.mxu0 0.0
    %4893 = vmatpush1.msra.mxu0 0.0
    %4894 = vmatprep.subr.mxu0 0.0
    %4895 = vmatpush1.msra.mxu0 0.0
    %4896 = vmatprep.subr.mxu0 0.0
    %4897 = vmatpush1.msra.mxu0 0.0
    %4898 = vmatprep.subr.mxu0 0.0
    %4899 = vmatpush1.msra.mxu0 0.0
    %4900 = vmatprep.subr.mxu0 0.0
    %4901 = vmatpush1.msra.mxu0 0.0
    %4902 = vmatprep.subr.mxu0 0.0
    %4903 = vmatpush1.msra.mxu0 0.0
    %4904 = vmatprep.subr.mxu0 0.0
    %4905 = vmatpush1.msra.mxu0 0.0
    %4906 = vmatprep.subr.mxu0 0.0
    %4907 = vmatpush1.msra.mxu0 0.0
    %4908 = vmatprep.mubr.f32.mxu0 0.0
    %4909 = vmatmul.mubr.f32.gmra.mrb[0].mxu0 %v4837
    %v4910 = vpop.f32.mrb[0].mxu0
    %v4911 = vadd.f32 0.0, %v4910
    %v4912 = vpop.f32.mrb[0].mxu0
    %4913 = vmatprep.mubr.f32.mxu0 0.0
    %4914 = vmatmul.mubr.f32.gmra.mrb[0].mxu0 %v4839
    %v4915 = vpop.f32.mrb[0].mxu0
    %v4916 = vadd.f32 0.0, %v4915
    %v4917 = vpop.f32.mrb[0].mxu0
    %4918 = vdwg.mxu0
    %v4919 = vadd.f32 %v4822, %v4911
    %v4920 = vadd.f32 %v4823, %v4916
    %v4921 = vld [vmem:[%s1404] sm:$0xff]
    %v4922 = vld [vmem:[%s1404 + $0x8] sm:$0xff]
    %v4923 = vld [vmem:[%s1404 + $0x10] sm:$0xff]
    %v4924 = vld [vmem:[%s1404 + $0x18] sm:$0xff]
    %v4925 = vld [vmem:[%s1404 + $0x20] sm:$0xff]
    %v4926 = vld [vmem:[%s1404 + $0x28] sm:$0xff]
    %v4927 = vld [vmem:[%s1404 + $0x30] sm:$0xff]
    %v4928 = vld [vmem:[%s1404 + $0x38] sm:$0xff]
    %v4929 = vld [vmem:[%s1404 + $0x40] sm:$0xff]
    %v4930 = vld [vmem:[%s1404 + $0x48] sm:$0x3f]
    %v4931 = vld [vmem:[%s1415] sm:$0xff]
    %v4932 = vld [vmem:[%s1415 + $0x8] sm:$0xff]
    %v4933 = vld [vmem:[%s1415 + $0x10] sm:$0xff]
    %v4934 = vld [vmem:[%s1415 + $0x18] sm:$0xff]
    %v4935 = vld [vmem:[%s1415 + $0x20] sm:$0xff]
    %v4936 = vld [vmem:[%s1415 + $0x28] sm:$0xff]
    %v4937 = vld [vmem:[%s1415 + $0x30] sm:$0xff]
    %v4938 = vld [vmem:[%s1415 + $0x38] sm:$0xff]
    %v4939 = vld [vmem:[%s1415 + $0x40] sm:$0xff]
    %v4940 = vld [vmem:[%s1415 + $0x48] sm:$0x3f]
    %v4942 = vsel %vm283, %v4940, 0
    %4944 = vmatprep.subr.mxu0 0.0
    %4945 = vmatpush1.msra.mxu0 %v4931
    %4946 = vmatprep.subr.mxu0 0.0
    %4947 = vmatpush1.msra.mxu0 %v4932
    %4948 = vmatprep.subr.mxu0 0.0
    %4949 = vmatpush1.msra.mxu0 %v4933
    %4950 = vmatprep.subr.mxu0 0.0
    %4951 = vmatpush1.msra.mxu0 %v4934
    %4952 = vmatprep.subr.mxu0 0.0
    %4953 = vmatpush1.msra.mxu0 %v4935
    %4954 = vmatprep.subr.mxu0 0.0
    %4955 = vmatpush1.msra.mxu0 %v4936
    %4956 = vmatprep.subr.mxu0 0.0
    %4957 = vmatpush1.msra.mxu0 %v4937
    %4958 = vmatprep.subr.mxu0 0.0
    %4959 = vmatpush1.msra.mxu0 %v4938
    %4960 = vmatprep.subr.mxu0 0.0
    %4961 = vmatpush1.msra.mxu0 %v4939
    %4962 = vmatprep.subr.mxu0 0.0
    %4963 = vmatpush1.msra.mxu0 %v4942
    %4964 = vmatprep.subr.mxu0 0.0
    %4965 = vmatpush1.msra.mxu0 0.0
    %4966 = vmatprep.subr.mxu0 0.0
    %4967 = vmatpush1.msra.mxu0 0.0
    %4968 = vmatprep.subr.mxu0 0.0
    %4969 = vmatpush1.msra.mxu0 0.0
    %4970 = vmatprep.subr.mxu0 0.0
    %4971 = vmatpush1.msra.mxu0 0.0
    %4972 = vmatprep.subr.mxu0 0.0
    %4973 = vmatpush1.msra.mxu0 0.0
    %4974 = vmatprep.subr.mxu0 0.0
    %4975 = vmatpush1.msra.mxu0 0.0
    %4976 = vmatprep.subr.mxu0 0.0
    %4977 = vmatpush1.msra.mxu0 0.0
    %4978 = vmatprep.subr.mxu0 0.0
    %4979 = vmatpush1.msra.mxu0 0.0
    %4980 = vmatprep.subr.mxu0 0.0
    %4981 = vmatpush1.msra.mxu0 0.0
    %4982 = vmatprep.subr.mxu0 0.0
    %4983 = vmatpush1.msra.mxu0 0.0
    %4984 = vmatprep.subr.mxu0 0.0
    %4985 = vmatpush1.msra.mxu0 0.0
    %4986 = vmatprep.subr.mxu0 0.0
    %4987 = vmatpush1.msra.mxu0 0.0
    %4988 = vmatprep.subr.mxu0 0.0
    %4989 = vmatpush1.msra.mxu0 0.0
    %4990 = vmatprep.subr.mxu0 0.0
    %4991 = vmatpush1.msra.mxu0 0.0
    %4992 = vmatprep.subr.mxu0 0.0
    %4993 = vmatpush1.msra.mxu0 0.0
    %4994 = vmatprep.subr.mxu0 0.0
    %4995 = vmatpush1.msra.mxu0 0.0
    %4996 = vmatprep.subr.mxu0 0.0
    %4997 = vmatpush1.msra.mxu0 0.0
    %4998 = vmatprep.subr.mxu0 0.0
    %4999 = vmatpush1.msra.mxu0 0.0
    %5000 = vmatprep.subr.mxu0 0.0
    %5001 = vmatpush1.msra.mxu0 0.0
    %5002 = vmatprep.subr.mxu0 0.0
    %5003 = vmatpush1.msra.mxu0 0.0
    %5004 = vmatprep.subr.mxu0 0.0
    %5005 = vmatpush1.msra.mxu0 0.0
    %5006 = vmatprep.subr.mxu0 0.0
    %5007 = vmatpush1.msra.mxu0 0.0
    %5008 = vmatprep.mubr.f32.mxu0 0.0
    %5009 = vmatmul.mubr.f32.gmra.mrb[0].mxu0 %v4563
    %v5010 = vpop.f32.mrb[0].mxu0
    %v5011 = vadd.f32 0.0, %v5010
    %v5012 = vpop.f32.mrb[0].mxu0
    %5013 = vmatprep.mubr.f32.mxu0 0.0
    %5014 = vmatmul.mubr.f32.gmra.mrb[0].mxu0 %v4565
    %v5015 = vpop.f32.mrb[0].mxu0
    %v5016 = vadd.f32 0.0, %v5015
    %v5017 = vpop.f32.mrb[0].mxu0
    %5018 = vdwg.mxu0
    %v5020 = vsel %vm283, %v4930, 0
    %5022 = vmatprep.subr.mxu0 0.0
    %5023 = vmatpush1.msra.mxu0 %v4921
    %5024 = vmatprep.subr.mxu0 0.0
    %5025 = vmatpush1.msra.mxu0 %v4922
    %5026 = vmatprep.subr.mxu0 0.0
    %5027 = vmatpush1.msra.mxu0 %v4923
    %5028 = vmatprep.subr.mxu0 0.0
    %5029 = vmatpush1.msra.mxu0 %v4924
    %5030 = vmatprep.subr.mxu0 0.0
    %5031 = vmatpush1.msra.mxu0 %v4925
    %5032 = vmatprep.subr.mxu0 0.0
    %5033 = vmatpush1.msra.mxu0 %v4926
    %5034 = vmatprep.subr.mxu0 0.0
    %5035 = vmatpush1.msra.mxu0 %v4927
    %5036 = vmatprep.subr.mxu0 0.0
    %5037 = vmatpush1.msra.mxu0 %v4928
    %5038 = vmatprep.subr.mxu0 0.0
    %5039 = vmatpush1.msra.mxu0 %v4929
    %5040 = vmatprep.subr.mxu0 0.0
    %5041 = vmatpush1.msra.mxu0 %v5020
    %5042 = vmatprep.subr.mxu0 0.0
    %5043 = vmatpush1.msra.mxu0 0.0
    %5044 = vmatprep.subr.mxu0 0.0
    %5045 = vmatpush1.msra.mxu0 0.0
    %5046 = vmatprep.subr.mxu0 0.0
    %5047 = vmatpush1.msra.mxu0 0.0
    %5048 = vmatprep.subr.mxu0 0.0
    %5049 = vmatpush1.msra.mxu0 0.0
    %5050 = vmatprep.subr.mxu0 0.0
    %5051 = vmatpush1.msra.mxu0 0.0
    %5052 = vmatprep.subr.mxu0 0.0
    %5053 = vmatpush1.msra.mxu0 0.0
    %5054 = vmatprep.subr.mxu0 0.0
    %5055 = vmatpush1.msra.mxu0 0.0
    %5056 = vmatprep.subr.mxu0 0.0
    %5057 = vmatpush1.msra.mxu0 0.0
    %5058 = vmatprep.subr.mxu0 0.0
    %5059 = vmatpush1.msra.mxu0 0.0
    %5060 = vmatprep.subr.mxu0 0.0
    %5061 = vmatpush1.msra.mxu0 0.0
    %5062 = vmatprep.subr.mxu0 0.0
    %5063 = vmatpush1.msra.mxu0 0.0
    %5064 = vmatprep.subr.mxu0 0.0
    %5065 = vmatpush1.msra.mxu0 0.0
    %5066 = vmatprep.subr.mxu0 0.0
    %5067 = vmatpush1.msra.mxu0 0.0
    %5068 = vmatprep.subr.mxu0 0.0
    %5069 = vmatpush1.msra.mxu0 0.0
    %5070 = vmatprep.subr.mxu0 0.0
    %5071 = vmatpush1.msra.mxu0 0.0
    %5072 = vmatprep.subr.mxu0 0.0
    %5073 = vmatpush1.msra.mxu0 0.0
    %5074 = vmatprep.subr.mxu0 0.0
    %5075 = vmatpush1.msra.mxu0 0.0
    %5076 = vmatprep.subr.mxu0 0.0
    %5077 = vmatpush1.msra.mxu0 0.0
    %5078 = vmatprep.subr.mxu0 0.0
    %5079 = vmatpush1.msra.mxu0 0.0
    %5080 = vmatprep.subr.mxu0 0.0
    %5081 = vmatpush1.msra.mxu0 0.0
    %5082 = vmatprep.subr.mxu0 0.0
    %5083 = vmatpush1.msra.mxu0 0.0
    %5084 = vmatprep.subr.mxu0 0.0
    %5085 = vmatpush1.msra.mxu0 0.0
    %5086 = vmatprep.mubr.f32.mxu0 0.0
    %5087 = vmatmul.mubr.f32.gmra.mrb[0].mxu0 %v4645
    %v5088 = vpop.f32.mrb[0].mxu0
    %v5089 = vadd.f32 %v5011, %v5088
    %v5090 = vpop.f32.mrb[0].mxu0
    %5091 = vmatprep.mubr.f32.mxu0 0.0
    %5092 = vmatmul.mubr.f32.gmra.mrb[0].mxu0 %v4647
    %v5093 = vpop.f32.mrb[0].mxu0
    %v5094 = vadd.f32 %v5016, %v5093
    %v5095 = vpop.f32.mrb[0].mxu0
    %5096 = vdwg.mxu0
    %v5097 = vld [vmem:[%s1582] sm:$0xff]
    %v5098 = vld [vmem:[%s1582 + $0x8] sm:$0xff]
    %v5099 = vld [vmem:[%s1582 + $0x10] sm:$0xff]
    %v5100 = vld [vmem:[%s1582 + $0x18] sm:$0xff]
    %v5101 = vld [vmem:[%s1582 + $0x20] sm:$0xff]
    %v5102 = vld [vmem:[%s1582 + $0x28] sm:$0xff]
    %v5103 = vld [vmem:[%s1582 + $0x30] sm:$0xff]
    %v5104 = vld [vmem:[%s1582 + $0x38] sm:$0xff]
    %v5105 = vld [vmem:[%s1582 + $0x40] sm:$0xff]
    %v5106 = vld [vmem:[%s1582 + $0x48] sm:$0x3f]
    %v5108 = vsel %vm283, %v5106, 0
    %5110 = vmatprep.subr.mxu0 0.0
    %5111 = vmatpush1.msra.mxu0 %v5097
    %5112 = vmatprep.subr.mxu0 0.0
    %5113 = vmatpush1.msra.mxu0 %v5098
    %5114 = vmatprep.subr.mxu0 0.0
    %5115 = vmatpush1.msra.mxu0 %v5099
    %5116 = vmatprep.subr.mxu0 0.0
    %5117 = vmatpush1.msra.mxu0 %v5100
    %5118 = vmatprep.subr.mxu0 0.0
    %5119 = vmatpush1.msra.mxu0 %v5101
    %5120 = vmatprep.subr.mxu0 0.0
    %5121 = vmatpush1.msra.mxu0 %v5102
    %5122 = vmatprep.subr.mxu0 0.0
    %5123 = vmatpush1.msra.mxu0 %v5103
    %5124 = vmatprep.subr.mxu0 0.0
    %5125 = vmatpush1.msra.mxu0 %v5104
    %5126 = vmatprep.subr.mxu0 0.0
    %5127 = vmatpush1.msra.mxu0 %v5105
    %5128 = vmatprep.subr.mxu0 0.0
    %5129 = vmatpush1.msra.mxu0 %v5108
    %5130 = vmatprep.subr.mxu0 0.0
    %5131 = vmatpush1.msra.mxu0 0.0
    %5132 = vmatprep.subr.mxu0 0.0
    %5133 = vmatpush1.msra.mxu0 0.0
    %5134 = vmatprep.subr.mxu0 0.0
    %5135 = vmatpush1.msra.mxu0 0.0
    %5136 = vmatprep.subr.mxu0 0.0
    %5137 = vmatpush1.msra.mxu0 0.0
    %5138 = vmatprep.subr.mxu0 0.0
    %5139 = vmatpush1.msra.mxu0 0.0
    %5140 = vmatprep.subr.mxu0 0.0
    %5141 = vmatpush1.msra.mxu0 0.0
    %5142 = vmatprep.subr.mxu0 0.0
    %5143 = vmatpush1.msra.mxu0 0.0
    %5144 = vmatprep.subr.mxu0 0.0
    %5145 = vmatpush1.msra.mxu0 0.0
    %5146 = vmatprep.subr.mxu0 0.0
    %5147 = vmatpush1.msra.mxu0 0.0
    %5148 = vmatprep.subr.mxu0 0.0
    %5149 = vmatpush1.msra.mxu0 0.0
    %5150 = vmatprep.subr.mxu0 0.0
    %5151 = vmatpush1.msra.mxu0 0.0
    %5152 = vmatprep.subr.mxu0 0.0
    %5153 = vmatpush1.msra.mxu0 0.0
    %5154 = vmatprep.subr.mxu0 0.0
    %5155 = vmatpush1.msra.mxu0 0.0
    %5156 = vmatprep.subr.mxu0 0.0
    %5157 = vmatpush1.msra.mxu0 0.0
    %5158 = vmatprep.subr.mxu0 0.0
    %5159 = vmatpush1.msra.mxu0 0.0
    %5160 = vmatprep.subr.mxu0 0.0
    %5161 = vmatpush1.msra.mxu0 0.0
    %5162 = vmatprep.subr.mxu0 0.0
    %5163 = vmatpush1.msra.mxu0 0.0
    %5164 = vmatprep.subr.mxu0 0.0
    %5165 = vmatpush1.msra.mxu0 0.0
    %5166 = vmatprep.subr.mxu0 0.0
    %5167 = vmatpush1.msra.mxu0 0.0
    %5168 = vmatprep.subr.mxu0 0.0
    %5169 = vmatpush1.msra.mxu0 0.0
    %5170 = vmatprep.subr.mxu0 0.0
    %5171 = vmatpush1.msra.mxu0 0.0
    %5172 = vmatprep.subr.mxu0 0.0
    %5173 = vmatpush1.msra.mxu0 0.0
    %5174 = vmatprep.mubr.f32.mxu0 0.0
    %5175 = vmatmul.mubr.f32.gmra.mrb[0].mxu0 %v4740
    %v5176 = vpop.f32.mrb[0].mxu0
    %v5177 = vadd.f32 0.0, %v5176
    %v5178 = vpop.f32.mrb[0].mxu0
    %5179 = vmatprep.mubr.f32.mxu0 0.0
    %5180 = vmatmul.mubr.f32.gmra.mrb[0].mxu0 %v4742
    %v5181 = vpop.f32.mrb[0].mxu0
    %v5182 = vadd.f32 0.0, %v5181
    %v5183 = vpop.f32.mrb[0].mxu0
    %5184 = vdwg.mxu0
    %v5185 = vadd.f32 %v5089, %v5177
    %v5186 = vadd.f32 %v5094, %v5182
    %v5187 = vld [vmem:[%s1673] sm:$0xff]
    %v5188 = vld [vmem:[%s1673 + $0x8] sm:$0xff]
    %v5189 = vld [vmem:[%s1673 + $0x10] sm:$0xff]
    %v5190 = vld [vmem:[%s1673 + $0x18] sm:$0xff]
    %v5191 = vld [vmem:[%s1673 + $0x20] sm:$0xff]
    %v5192 = vld [vmem:[%s1673 + $0x28] sm:$0xff]
    %v5193 = vld [vmem:[%s1673 + $0x30] sm:$0xff]
    %v5194 = vld [vmem:[%s1673 + $0x38] sm:$0xff]
    %v5195 = vld [vmem:[%s1673 + $0x40] sm:$0xff]
    %v5196 = vld [vmem:[%s1673 + $0x48] sm:$0x3f]
    %v5198 = vsel %vm283, %v5196, 0
    %5200 = vmatprep.subr.mxu0 0.0
    %5201 = vmatpush1.msra.mxu0 %v5187
    %5202 = vmatprep.subr.mxu0 0.0
    %5203 = vmatpush1.msra.mxu0 %v5188
    %5204 = vmatprep.subr.mxu0 0.0
    %5205 = vmatpush1.msra.mxu0 %v5189
    %5206 = vmatprep.subr.mxu0 0.0
    %5207 = vmatpush1.msra.mxu0 %v5190
    %5208 = vmatprep.subr.mxu0 0.0
    %5209 = vmatpush1.msra.mxu0 %v5191
    %5210 = vmatprep.subr.mxu0 0.0
    %5211 = vmatpush1.msra.mxu0 %v5192
    %5212 = vmatprep.subr.mxu0 0.0
    %5213 = vmatpush1.msra.mxu0 %v5193
    %5214 = vmatprep.subr.mxu0 0.0
    %5215 = vmatpush1.msra.mxu0 %v5194
    %5216 = vmatprep.subr.mxu0 0.0
    %5217 = vmatpush1.msra.mxu0 %v5195
    %5218 = vmatprep.subr.mxu0 0.0
    %5219 = vmatpush1.msra.mxu0 %v5198
    %5220 = vmatprep.subr.mxu0 0.0
    %5221 = vmatpush1.msra.mxu0 0.0
    %5222 = vmatprep.subr.mxu0 0.0
    %5223 = vmatpush1.msra.mxu0 0.0
    %5224 = vmatprep.subr.mxu0 0.0
    %5225 = vmatpush1.msra.mxu0 0.0
    %5226 = vmatprep.subr.mxu0 0.0
    %5227 = vmatpush1.msra.mxu0 0.0
    %5228 = vmatprep.subr.mxu0 0.0
    %5229 = vmatpush1.msra.mxu0 0.0
    %5230 = vmatprep.subr.mxu0 0.0
    %5231 = vmatpush1.msra.mxu0 0.0
    %5232 = vmatprep.subr.mxu0 0.0
    %5233 = vmatpush1.msra.mxu0 0.0
    %5234 = vmatprep.subr.mxu0 0.0
    %5235 = vmatpush1.msra.mxu0 0.0
    %5236 = vmatprep.subr.mxu0 0.0
    %5237 = vmatpush1.msra.mxu0 0.0
    %5238 = vmatprep.subr.mxu0 0.0
    %5239 = vmatpush1.msra.mxu0 0.0
    %5240 = vmatprep.subr.mxu0 0.0
    %5241 = vmatpush1.msra.mxu0 0.0
    %5242 = vmatprep.subr.mxu0 0.0
    %5243 = vmatpush1.msra.mxu0 0.0
    %5244 = vmatprep.subr.mxu0 0.0
    %5245 = vmatpush1.msra.mxu0 0.0
    %5246 = vmatprep.subr.mxu0 0.0
    %5247 = vmatpush1.msra.mxu0 0.0
    %5248 = vmatprep.subr.mxu0 0.0
    %5249 = vmatpush1.msra.mxu0 0.0
    %5250 = vmatprep.subr.mxu0 0.0
    %5251 = vmatpush1.msra.mxu0 0.0
    %5252 = vmatprep.subr.mxu0 0.0
    %5253 = vmatpush1.msra.mxu0 0.0
    %5254 = vmatprep.subr.mxu0 0.0
    %5255 = vmatpush1.msra.mxu0 0.0
    %5256 = vmatprep.subr.mxu0 0.0
    %5257 = vmatpush1.msra.mxu0 0.0
    %5258 = vmatprep.subr.mxu0 0.0
    %5259 = vmatpush1.msra.mxu0 0.0
    %5260 = vmatprep.subr.mxu0 0.0
    %5261 = vmatpush1.msra.mxu0 0.0
    %5262 = vmatprep.subr.mxu0 0.0
    %5263 = vmatpush1.msra.mxu0 0.0
    %5264 = vmatprep.mubr.f32.mxu0 0.0
    %5265 = vmatmul.mubr.f32.gmra.mrb[0].mxu0 %v4837
    %v5266 = vpop.f32.mrb[0].mxu0
    %v5267 = vadd.f32 0.0, %v5266
    %v5268 = vpop.f32.mrb[0].mxu0
    %5269 = vmatprep.mubr.f32.mxu0 0.0
    %5270 = vmatmul.mubr.f32.gmra.mrb[0].mxu0 %v4839
    %v5271 = vpop.f32.mrb[0].mxu0
    %v5272 = vadd.f32 0.0, %v5271
    %v5273 = vpop.f32.mrb[0].mxu0
    %5274 = vdwg.mxu0
    %v5275 = vadd.f32 %v5185, %v5267
    %v5276 = vadd.f32 %v5186, %v5272
    %v5277 = vld [vmem:[%s5] sm:$0x1f]
    %v5279 = vsel %vm1765, %v5277, 0
    %v5282 = vsel %vm683, %v4920, 0
    %5284 = vmatprep.subr.mxu0 0.0
    %5285 = vmatpush1.msra.mxu0 %v4919
    %5286 = vmatprep.subr.mxu0 0.0
    %5287 = vmatpush1.msra.mxu0 %v5282
    %5288 = vmatprep.subr.mxu0 0.0
    %5289 = vmatpush1.msra.mxu0 0.0
    %5290 = vmatprep.subr.mxu0 0.0
    %5291 = vmatpush1.msra.mxu0 0.0
    %5292 = vmatprep.subr.mxu0 0.0
    %5293 = vmatpush1.msra.mxu0 0.0
    %5294 = vmatprep.subr.mxu0 0.0
    %5295 = vmatpush1.msra.mxu0 0.0
    %5296 = vmatprep.subr.mxu0 0.0
    %5297 = vmatpush1.msra.mxu0 0.0
    %5298 = vmatprep.subr.mxu0 0.0
    %5299 = vmatpush1.msra.mxu0 0.0
    %5300 = vmatprep.subr.mxu0 0.0
    %5301 = vmatpush1.msra.mxu0 0.0
    %5302 = vmatprep.subr.mxu0 0.0
    %5303 = vmatpush1.msra.mxu0 0.0
    %5304 = vmatprep.subr.mxu0 0.0
    %5305 = vmatpush1.msra.mxu0 0.0
    %5306 = vmatprep.subr.mxu0 0.0
    %5307 = vmatpush1.msra.mxu0 0.0
    %5308 = vmatprep.subr.mxu0 0.0
    %5309 = vmatpush1.msra.mxu0 0.0
    %5310 = vmatprep.subr.mxu0 0.0
    %5311 = vmatpush1.msra.mxu0 0.0
    %5312 = vmatprep.subr.mxu0 0.0
    %5313 = vmatpush1.msra.mxu0 0.0
    %5314 = vmatprep.subr.mxu0 0.0
    %5315 = vmatpush1.msra.mxu0 0.0
    %5316 = vmatprep.subr.mxu0 0.0
    %5317 = vmatpush1.msra.mxu0 0.0
    %5318 = vmatprep.subr.mxu0 0.0
    %5319 = vmatpush1.msra.mxu0 0.0
    %5320 = vmatprep.subr.mxu0 0.0
    %5321 = vmatpush1.msra.mxu0 0.0
    %5322 = vmatprep.subr.mxu0 0.0
    %5323 = vmatpush1.msra.mxu0 0.0
    %5324 = vmatprep.subr.mxu0 0.0
    %5325 = vmatpush1.msra.mxu0 0.0
    %5326 = vmatprep.subr.mxu0 0.0
    %5327 = vmatpush1.msra.mxu0 0.0
    %5328 = vmatprep.subr.mxu0 0.0
    %5329 = vmatpush1.msra.mxu0 0.0
    %5330 = vmatprep.subr.mxu0 0.0
    %5331 = vmatpush1.msra.mxu0 0.0
    %5332 = vmatprep.subr.mxu0 0.0
    %5333 = vmatpush1.msra.mxu0 0.0
    %5334 = vmatprep.subr.mxu0 0.0
    %5335 = vmatpush1.msra.mxu0 0.0
    %5336 = vmatprep.subr.mxu0 0.0
    %5337 = vmatpush1.msra.mxu0 0.0
    %5338 = vmatprep.subr.mxu0 0.0
    %5339 = vmatpush1.msra.mxu0 0.0
    %5340 = vmatprep.subr.mxu0 0.0
    %5341 = vmatpush1.msra.mxu0 0.0
    %5342 = vmatprep.subr.mxu0 0.0
    %5343 = vmatpush1.msra.mxu0 0.0
    %5344 = vmatprep.subr.mxu0 0.0
    %5345 = vmatpush1.msra.mxu0 0.0
    %5346 = vmatprep.subr.mxu0 0.0
    %5347 = vmatpush1.msra.mxu0 0.0
    %5348 = vmatprep.mubr.f32.mxu0 0.0
    %5349 = vmatmul.mubr.f32.gmra.mrb[0].mxu0 %v5279
    %v5350 = vpop.f32.mrb[0].mxu0
    %v5351 = vadd.f32 0.0, %v5350
    %v5352 = vpop.f32.mrb[0].mxu0
    %5353 = vdwg.mxu0
    %v5355 = vsel %vm683, %v5276, 0
    %5357 = vmatprep.subr.mxu0 0.0
    %5358 = vmatpush1.msra.mxu0 %v5275
    %5359 = vmatprep.subr.mxu0 0.0
    %5360 = vmatpush1.msra.mxu0 %v5355
    %5361 = vmatprep.subr.mxu0 0.0
    %5362 = vmatpush1.msra.mxu0 0.0
    %5363 = vmatprep.subr.mxu0 0.0
    %5364 = vmatpush1.msra.mxu0 0.0
    %5365 = vmatprep.subr.mxu0 0.0
    %5366 = vmatpush1.msra.mxu0 0.0
    %5367 = vmatprep.subr.mxu0 0.0
    %5368 = vmatpush1.msra.mxu0 0.0
    %5369 = vmatprep.subr.mxu0 0.0
    %5370 = vmatpush1.msra.mxu0 0.0
    %5371 = vmatprep.subr.mxu0 0.0
    %5372 = vmatpush1.msra.mxu0 0.0
    %5373 = vmatprep.subr.mxu0 0.0
    %5374 = vmatpush1.msra.mxu0 0.0
    %5375 = vmatprep.subr.mxu0 0.0
    %5376 = vmatpush1.msra.mxu0 0.0
    %5377 = vmatprep.subr.mxu0 0.0
    %5378 = vmatpush1.msra.mxu0 0.0
    %5379 = vmatprep.subr.mxu0 0.0
    %5380 = vmatpush1.msra.mxu0 0.0
    %5381 = vmatprep.subr.mxu0 0.0
    %5382 = vmatpush1.msra.mxu0 0.0
    %5383 = vmatprep.subr.mxu0 0.0
    %5384 = vmatpush1.msra.mxu0 0.0
    %5385 = vmatprep.subr.mxu0 0.0
    %5386 = vmatpush1.msra.mxu0 0.0
    %5387 = vmatprep.subr.mxu0 0.0
    %5388 = vmatpush1.msra.mxu0 0.0
    %5389 = vmatprep.subr.mxu0 0.0
    %5390 = vmatpush1.msra.mxu0 0.0
    %5391 = vmatprep.subr.mxu0 0.0
    %5392 = vmatpush1.msra.mxu0 0.0
    %5393 = vmatprep.subr.mxu0 0.0
    %5394 = vmatpush1.msra.mxu0 0.0
    %5395 = vmatprep.subr.mxu0 0.0
    %5396 = vmatpush1.msra.mxu0 0.0
    %5397 = vmatprep.subr.mxu0 0.0
    %5398 = vmatpush1.msra.mxu0 0.0
    %5399 = vmatprep.subr.mxu0 0.0
    %5400 = vmatpush1.msra.mxu0 0.0
    %5401 = vmatprep.subr.mxu0 0.0
    %5402 = vmatpush1.msra.mxu0 0.0
    %5403 = vmatprep.subr.mxu0 0.0
    %5404 = vmatpush1.msra.mxu0 0.0
    %5405 = vmatprep.subr.mxu0 0.0
    %5406 = vmatpush1.msra.mxu0 0.0
    %5407 = vmatprep.subr.mxu0 0.0
    %5408 = vmatpush1.msra.mxu0 0.0
    %5409 = vmatprep.subr.mxu0 0.0
    %5410 = vmatpush1.msra.mxu0 0.0
    %5411 = vmatprep.subr.mxu0 0.0
    %5412 = vmatpush1.msra.mxu0 0.0
    %5413 = vmatprep.subr.mxu0 0.0
    %5414 = vmatpush1.msra.mxu0 0.0
    %5415 = vmatprep.subr.mxu0 0.0
    %5416 = vmatpush1.msra.mxu0 0.0
    %5417 = vmatprep.subr.mxu0 0.0
    %5418 = vmatpush1.msra.mxu0 0.0
    %5419 = vmatprep.subr.mxu0 0.0
    %5420 = vmatpush1.msra.mxu0 0.0
    %5421 = vmatprep.mubr.f32.mxu0 0.0
    %5422 = vmatmul.mubr.f32.gmra.mrb[0].mxu0 %v5279
    %v5423 = vpop.f32.mrb[0].mxu0
    %v5424 = vadd.f32 0.0, %v5423
    %v5425 = vpop.f32.mrb[0].mxu0
    %5426 = vdwg.mxu0
    %v5427 = vld [vmem:[%s1915] sm:$0x1f]
    %v5429 = vsel %vm1765, %v5427, 0
    %5431 = vmatprep.subr.mxu0 0.0
    %5432 = vmatpush1.msra.mxu0 %v4919
    %5433 = vmatprep.subr.mxu0 0.0
    %5434 = vmatpush1.msra.mxu0 %v5282
    %5435 = vmatprep.subr.mxu0 0.0
    %5436 = vmatpush1.msra.mxu0 0.0
    %5437 = vmatprep.subr.mxu0 0.0
    %5438 = vmatpush1.msra.mxu0 0.0
    %5439 = vmatprep.subr.mxu0 0.0
    %5440 = vmatpush1.msra.mxu0 0.0
    %5441 = vmatprep.subr.mxu0 0.0
    %5442 = vmatpush1.msra.mxu0 0.0
    %5443 = vmatprep.subr.mxu0 0.0
    %5444 = vmatpush1.msra.mxu0 0.0
    %5445 = vmatprep.subr.mxu0 0.0
    %5446 = vmatpush1.msra.mxu0 0.0
    %5447 = vmatprep.subr.mxu0 0.0
    %5448 = vmatpush1.msra.mxu0 0.0
    %5449 = vmatprep.subr.mxu0 0.0
    %5450 = vmatpush1.msra.mxu0 0.0
    %5451 = vmatprep.subr.mxu0 0.0
    %5452 = vmatpush1.msra.mxu0 0.0
    %5453 = vmatprep.subr.mxu0 0.0
    %5454 = vmatpush1.msra.mxu0 0.0
    %5455 = vmatprep.subr.mxu0 0.0
    %5456 = vmatpush1.msra.mxu0 0.0
    %5457 = vmatprep.subr.mxu0 0.0
    %5458 = vmatpush1.msra.mxu0 0.0
    %5459 = vmatprep.subr.mxu0 0.0
    %5460 = vmatpush1.msra.mxu0 0.0
    %5461 = vmatprep.subr.mxu0 0.0
    %5462 = vmatpush1.msra.mxu0 0.0
    %5463 = vmatprep.subr.mxu0 0.0
    %5464 = vmatpush1.msra.mxu0 0.0
    %5465 = vmatprep.subr.mxu0 0.0
    %5466 = vmatpush1.msra.mxu0 0.0
    %5467 = vmatprep.subr.mxu0 0.0
    %5468 = vmatpush1.msra.mxu0 0.0
    %5469 = vmatprep.subr.mxu0 0.0
    %5470 = vmatpush1.msra.mxu0 0.0
    %5471 = vmatprep.subr.mxu0 0.0
    %5472 = vmatpush1.msra.mxu0 0.0
    %5473 = vmatprep.subr.mxu0 0.0
    %5474 = vmatpush1.msra.mxu0 0.0
    %5475 = vmatprep.subr.mxu0 0.0
    %5476 = vmatpush1.msra.mxu0 0.0
    %5477 = vmatprep.subr.mxu0 0.0
    %5478 = vmatpush1.msra.mxu0 0.0
    %5479 = vmatprep.subr.mxu0 0.0
    %5480 = vmatpush1.msra.mxu0 0.0
    %5481 = vmatprep.subr.mxu0 0.0
    %5482 = vmatpush1.msra.mxu0 0.0
    %5483 = vmatprep.subr.mxu0 0.0
    %5484 = vmatpush1.msra.mxu0 0.0
    %5485 = vmatprep.subr.mxu0 0.0
    %5486 = vmatpush1.msra.mxu0 0.0
    %5487 = vmatprep.subr.mxu0 0.0
    %5488 = vmatpush1.msra.mxu0 0.0
    %5489 = vmatprep.subr.mxu0 0.0
    %5490 = vmatpush1.msra.mxu0 0.0
    %5491 = vmatprep.subr.mxu0 0.0
    %5492 = vmatpush1.msra.mxu0 0.0
    %5493 = vmatprep.subr.mxu0 0.0
    %5494 = vmatpush1.msra.mxu0 0.0
    %5495 = vmatprep.mubr.f32.mxu0 0.0
    %5496 = vmatmul.mubr.f32.gmra.mrb[0].mxu0 %v5429
    %v5497 = vpop.f32.mrb[0].mxu0
    %v5498 = vadd.f32 0.0, %v5497
    %v5499 = vpop.f32.mrb[0].mxu0
    %5500 = vdwg.mxu0
    %5501 = vmatprep.subr.mxu0 0.0
    %5502 = vmatpush1.msra.mxu0 %v5275
    %5503 = vmatprep.subr.mxu0 0.0
    %5504 = vmatpush1.msra.mxu0 %v5355
    %5505 = vmatprep.subr.mxu0 0.0
    %5506 = vmatpush1.msra.mxu0 0.0
    %5507 = vmatprep.subr.mxu0 0.0
    %5508 = vmatpush1.msra.mxu0 0.0
    %5509 = vmatprep.subr.mxu0 0.0
    %5510 = vmatpush1.msra.mxu0 0.0
    %5511 = vmatprep.subr.mxu0 0.0
    %5512 = vmatpush1.msra.mxu0 0.0
    %5513 = vmatprep.subr.mxu0 0.0
    %5514 = vmatpush1.msra.mxu0 0.0
    %5515 = vmatprep.subr.mxu0 0.0
    %5516 = vmatpush1.msra.mxu0 0.0
    %5517 = vmatprep.subr.mxu0 0.0
    %5518 = vmatpush1.msra.mxu0 0.0
    %5519 = vmatprep.subr.mxu0 0.0
    %5520 = vmatpush1.msra.mxu0 0.0
    %5521 = vmatprep.subr.mxu0 0.0
    %5522 = vmatpush1.msra.mxu0 0.0
    %5523 = vmatprep.subr.mxu0 0.0
    %5524 = vmatpush1.msra.mxu0 0.0
    %5525 = vmatprep.subr.mxu0 0.0
    %5526 = vmatpush1.msra.mxu0 0.0
    %5527 = vmatprep.subr.mxu0 0.0
    %5528 = vmatpush1.msra.mxu0 0.0
    %5529 = vmatprep.subr.mxu0 0.0
    %5530 = vmatpush1.msra.mxu0 0.0
    %5531 = vmatprep.subr.mxu0 0.0
    %5532 = vmatpush1.msra.mxu0 0.0
    %5533 = vmatprep.subr.mxu0 0.0
    %5534 = vmatpush1.msra.mxu0 0.0
    %5535 = vmatprep.subr.mxu0 0.0
    %5536 = vmatpush1.msra.mxu0 0.0
    %5537 = vmatprep.subr.mxu0 0.0
    %5538 = vmatpush1.msra.mxu0 0.0
    %5539 = vmatprep.subr.mxu0 0.0
    %5540 = vmatpush1.msra.mxu0 0.0
    %5541 = vmatprep.subr.mxu0 0.0
    %5542 = vmatpush1.msra.mxu0 0.0
    %5543 = vmatprep.subr.mxu0 0.0
    %5544 = vmatpush1.msra.mxu0 0.0
    %5545 = vmatprep.subr.mxu0 0.0
    %5546 = vmatpush1.msra.mxu0 0.0
    %5547 = vmatprep.subr.mxu0 0.0
    %5548 = vmatpush1.msra.mxu0 0.0
    %5549 = vmatprep.subr.mxu0 0.0
    %5550 = vmatpush1.msra.mxu0 0.0
    %5551 = vmatprep.subr.mxu0 0.0
    %5552 = vmatpush1.msra.mxu0 0.0
    %5553 = vmatprep.subr.mxu0 0.0
    %5554 = vmatpush1.msra.mxu0 0.0
    %5555 = vmatprep.subr.mxu0 0.0
    %5556 = vmatpush1.msra.mxu0 0.0
    %5557 = vmatprep.subr.mxu0 0.0
    %5558 = vmatpush1.msra.mxu0 0.0
    %5559 = vmatprep.subr.mxu0 0.0
    %5560 = vmatpush1.msra.mxu0 0.0
    %5561 = vmatprep.subr.mxu0 0.0
    %5562 = vmatpush1.msra.mxu0 0.0
    %5563 = vmatprep.subr.mxu0 0.0
    %5564 = vmatpush1.msra.mxu0 0.0
    %5565 = vmatprep.mubr.f32.mxu0 0.0
    %5566 = vmatmul.mubr.f32.gmra.mrb[0].mxu0 %v5429
    %v5567 = vpop.f32.mrb[0].mxu0
    %v5568 = vadd.f32 0.0, %v5567
    %v5569 = vpop.f32.mrb[0].mxu0
    %5570 = vdwg.mxu0
    %v5571 = vmax.f32 %v5351, %v5424
    %v5572 = vmax.f32 %v5498, %v5568
    %v5573 = vmax.f32 %v5571, %v5572
    %v5574 = vld [vmem:[%s6] sm:$0x1]
    %v5576 = vlaneseq
    %v5577 = vshrl.u32 %v5576, 7
    %v5578 = vsub.s32 0, %v5577
    %v5579 = vrot.slane %v5574, %v5578
    %v5581 = vadd.f32 %v5573, %v5579
    %v5582 = vmax.f32 %v5581, 0.0
    %v5583 = vld [vmem:[#allocation2] sm:$0xff]
    %v5584 = vld [vmem:[#allocation2 + $0x8] sm:$0xff]
    %v5585 = vld [vmem:[#allocation2 + $0x10] sm:$0xff]
    %v5586 = vld [vmem:[#allocation2 + $0x18] sm:$0xff]
    %v5587 = vld [vmem:[#allocation2 + $0x20] sm:$0xff]
    %v5588 = vld [vmem:[#allocation2 + $0x28] sm:$0xff]
    %v5589 = vld [vmem:[#allocation2 + $0x30] sm:$0xff]
    %v5590 = vld [vmem:[#allocation2 + $0x38] sm:$0xff]
    %v5591 = vld [vmem:[#allocation2 + $0x40] sm:$0xff]
    %v5592 = vld [vmem:[#allocation2 + $0x48] sm:$0xff]
    %v5593 = vld [vmem:[#allocation2 + $0x50] sm:$0xff]
    %v5594 = vld [vmem:[#allocation2 + $0x58] sm:$0xff]
    %v5595 = vld [vmem:[#allocation2 + $0x60] sm:$0xff]
    %v5596 = vld [vmem:[#allocation2 + $0x68] sm:$0xff]
    %v5597 = vld [vmem:[#allocation2 + $0x70] sm:$0xf]
    %v5598 = vld [vmem:[#allocation2 + $0x78] sm:$0xf]
    %v5599 = vld [vmem:[%s2088] sm:$0xff]
    %v5600 = vld [vmem:[%s2088 + $0x8] sm:$0xff]
    %v5601 = vld [vmem:[%s2088 + $0x10] sm:$0xff]
    %v5602 = vld [vmem:[%s2088 + $0x18] sm:$0xff]
    %v5603 = vld [vmem:[%s2088 + $0x20] sm:$0xff]
    %v5604 = vld [vmem:[%s2088 + $0x28] sm:$0xff]
    %v5605 = vld [vmem:[%s2088 + $0x30] sm:$0xff]
    %v5606 = vld [vmem:[%s2088 + $0x38] sm:$0xff]
    %v5607 = vld [vmem:[%s2088 + $0x40] sm:$0xff]
    %v5608 = vld [vmem:[%s2088 + $0x48] sm:$0xff]
    %v5609 = vld [vmem:[%s2088 + $0x50] sm:$0xff]
    %v5610 = vld [vmem:[%s2088 + $0x58] sm:$0xff]
    %v5611 = vld [vmem:[%s2088 + $0x60] sm:$0xff]
    %v5612 = vld [vmem:[%s2088 + $0x68] sm:$0xff]
    %v5613 = vld [vmem:[%s2088 + $0x70] sm:$0xf]
    %v5614 = vld [vmem:[%s2088 + $0x78] sm:$0xf]
    %v5616 = vrot.slane %v5582, 1
    %v5617 = vsel %vm2107, %v5616, 0
    %v5620 = vsel %vm93, %v5613, 0
    %v5623 = vsel %vm93, %v5614, 0
    %5625 = vmatprep.subr.mxu0 %v5600
    %5626 = vmatpush1.msra.mxu0 %v5599
    %5627 = vmatprep.subr.mxu0 %v5602
    %5628 = vmatpush1.msra.mxu0 %v5601
    %5629 = vmatprep.subr.mxu0 %v5604
    %5630 = vmatpush1.msra.mxu0 %v5603
    %5631 = vmatprep.subr.mxu0 %v5606
    %5632 = vmatpush1.msra.mxu0 %v5605
    %5633 = vmatprep.subr.mxu0 %v5608
    %5634 = vmatpush1.msra.mxu0 %v5607
    %5635 = vmatprep.subr.mxu0 %v5610
    %5636 = vmatpush1.msra.mxu0 %v5609
    %5637 = vmatprep.subr.mxu0 %v5612
    %5638 = vmatpush1.msra.mxu0 %v5611
    %5639 = vmatprep.subr.mxu0 %v5623
    %5640 = vmatpush1.msra.mxu0 %v5620
    %5641 = vmatprep.subr.mxu0 0.0
    %5642 = vmatpush1.msra.mxu0 0.0
    %5643 = vmatprep.subr.mxu0 0.0
    %5644 = vmatpush1.msra.mxu0 0.0
    %5645 = vmatprep.subr.mxu0 0.0
    %5646 = vmatpush1.msra.mxu0 0.0
    %5647 = vmatprep.subr.mxu0 0.0
    %5648 = vmatpush1.msra.mxu0 0.0
    %5649 = vmatprep.subr.mxu0 0.0
    %5650 = vmatpush1.msra.mxu0 0.0
    %5651 = vmatprep.subr.mxu0 0.0
    %5652 = vmatpush1.msra.mxu0 0.0
    %5653 = vmatprep.subr.mxu0 0.0
    %5654 = vmatpush1.msra.mxu0 0.0
    %5655 = vmatprep.subr.mxu0 0.0
    %5656 = vmatpush1.msra.mxu0 0.0
    %5657 = vmatprep.subr.mxu0 0.0
    %5658 = vmatpush1.msra.mxu0 0.0
    %5659 = vmatprep.subr.mxu0 0.0
    %5660 = vmatpush1.msra.mxu0 0.0
    %5661 = vmatprep.subr.mxu0 0.0
    %5662 = vmatpush1.msra.mxu0 0.0
    %5663 = vmatprep.subr.mxu0 0.0
    %5664 = vmatpush1.msra.mxu0 0.0
    %5665 = vmatprep.subr.mxu0 0.0
    %5666 = vmatpush1.msra.mxu0 0.0
    %5667 = vmatprep.subr.mxu0 0.0
    %5668 = vmatpush1.msra.mxu0 0.0
    %5669 = vmatprep.subr.mxu0 0.0
    %5670 = vmatpush1.msra.mxu0 0.0
    %5671 = vmatprep.subr.mxu0 0.0
    %5672 = vmatpush1.msra.mxu0 0.0
    %5673 = vmatprep.subr.mxu0 0.0
    %5674 = vmatpush1.msra.mxu0 0.0
    %5675 = vmatprep.subr.mxu0 0.0
    %5676 = vmatpush1.msra.mxu0 0.0
    %5677 = vmatprep.subr.mxu0 0.0
    %5678 = vmatpush1.msra.mxu0 0.0
    %5679 = vmatprep.subr.mxu0 0.0
    %5680 = vmatpush1.msra.mxu0 0.0
    %5681 = vmatprep.subr.mxu0 0.0
    %5682 = vmatpush1.msra.mxu0 0.0
    %5683 = vmatprep.subr.mxu0 0.0
    %5684 = vmatpush1.msra.mxu0 0.0
    %5685 = vmatprep.subr.mxu0 0.0
    %5686 = vmatpush1.msra.mxu0 0.0
    %5687 = vmatprep.subr.mxu0 0.0
    %5688 = vmatpush1.msra.mxu0 0.0
    %5689 = vmatprep.mubr.f32.mxu0 0.0
    %5690 = vmatmul.mubr.f32.gmra.mrb[0].mxu0 %v5617
    %v5691 = vpop.f32.mrb[0].mxu0
    %v5692 = vadd.f32 0.0, %v5691
    %v5693 = vpop.f32.mrb[0].mxu0
    %v5694 = vadd.f32 0.0, %v5693
    %5695 = vdwg.mxu0
    %v5696 = vsel %vm2107, %v5582, 0
    %v5699 = vsel %vm93, %v5597, 0
    %v5702 = vsel %vm93, %v5598, 0
    %5704 = vmatprep.subr.mxu0 %v5584
    %5705 = vmatpush1.msra.mxu0 %v5583
    %5706 = vmatprep.subr.mxu0 %v5586
    %5707 = vmatpush1.msra.mxu0 %v5585
    %5708 = vmatprep.subr.mxu0 %v5588
    %5709 = vmatpush1.msra.mxu0 %v5587
    %5710 = vmatprep.subr.mxu0 %v5590
    %5711 = vmatpush1.msra.mxu0 %v5589
    %5712 = vmatprep.subr.mxu0 %v5592
    %5713 = vmatpush1.msra.mxu0 %v5591
    %5714 = vmatprep.subr.mxu0 %v5594
    %5715 = vmatpush1.msra.mxu0 %v5593
    %5716 = vmatprep.subr.mxu0 %v5596
    %5717 = vmatpush1.msra.mxu0 %v5595
    %5718 = vmatprep.subr.mxu0 %v5702
    %5719 = vmatpush1.msra.mxu0 %v5699
    %5720 = vmatprep.subr.mxu0 0.0
    %5721 = vmatpush1.msra.mxu0 0.0
    %5722 = vmatprep.subr.mxu0 0.0
    %5723 = vmatpush1.msra.mxu0 0.0
    %5724 = vmatprep.subr.mxu0 0.0
    %5725 = vmatpush1.msra.mxu0 0.0
    %5726 = vmatprep.subr.mxu0 0.0
    %5727 = vmatpush1.msra.mxu0 0.0
    %5728 = vmatprep.subr.mxu0 0.0
    %5729 = vmatpush1.msra.mxu0 0.0
    %5730 = vmatprep.subr.mxu0 0.0
    %5731 = vmatpush1.msra.mxu0 0.0
    %5732 = vmatprep.subr.mxu0 0.0
    %5733 = vmatpush1.msra.mxu0 0.0
    %5734 = vmatprep.subr.mxu0 0.0
    %5735 = vmatpush1.msra.mxu0 0.0
    %5736 = vmatprep.subr.mxu0 0.0
    %5737 = vmatpush1.msra.mxu0 0.0
    %5738 = vmatprep.subr.mxu0 0.0
    %5739 = vmatpush1.msra.mxu0 0.0
    %5740 = vmatprep.subr.mxu0 0.0
    %5741 = vmatpush1.msra.mxu0 0.0
    %5742 = vmatprep.subr.mxu0 0.0
    %5743 = vmatpush1.msra.mxu0 0.0
    %5744 = vmatprep.subr.mxu0 0.0
    %5745 = vmatpush1.msra.mxu0 0.0
    %5746 = vmatprep.subr.mxu0 0.0
    %5747 = vmatpush1.msra.mxu0 0.0
    %5748 = vmatprep.subr.mxu0 0.0
    %5749 = vmatpush1.msra.mxu0 0.0
    %5750 = vmatprep.subr.mxu0 0.0
    %5751 = vmatpush1.msra.mxu0 0.0
    %5752 = vmatprep.subr.mxu0 0.0
    %5753 = vmatpush1.msra.mxu0 0.0
    %5754 = vmatprep.subr.mxu0 0.0
    %5755 = vmatpush1.msra.mxu0 0.0
    %5756 = vmatprep.subr.mxu0 0.0
    %5757 = vmatpush1.msra.mxu0 0.0
    %5758 = vmatprep.subr.mxu0 0.0
    %5759 = vmatpush1.msra.mxu0 0.0
    %5760 = vmatprep.subr.mxu0 0.0
    %5761 = vmatpush1.msra.mxu0 0.0
    %5762 = vmatprep.subr.mxu0 0.0
    %5763 = vmatpush1.msra.mxu0 0.0
    %5764 = vmatprep.subr.mxu0 0.0
    %5765 = vmatpush1.msra.mxu0 0.0
    %5766 = vmatprep.subr.mxu0 0.0
    %5767 = vmatpush1.msra.mxu0 0.0
    %5768 = vmatprep.mubr.f32.mxu0 0.0
    %5769 = vmatmul.mubr.f32.gmra.mrb[0].mxu0 %v5696
    %v5770 = vpop.f32.mrb[0].mxu0
    %v5771 = vadd.f32 %v5692, %v5770
    %v5772 = vpop.f32.mrb[0].mxu0
    %v5773 = vadd.f32 %v5694, %v5772
    %5774 = vdwg.mxu0
    %v5775 = vld [vmem:[%s2266] sm:$0xff]
    %v5776 = vld [vmem:[%s2266 + $0x8] sm:$0xff]
    %v5777 = vld [vmem:[%s2266 + $0x10] sm:$0xff]
    %v5778 = vld [vmem:[%s2266 + $0x18] sm:$0xff]
    %v5779 = vld [vmem:[%s2266 + $0x20] sm:$0xff]
    %v5780 = vld [vmem:[%s2266 + $0x28] sm:$0xff]
    %v5781 = vld [vmem:[%s2266 + $0x30] sm:$0xff]
    %v5782 = vld [vmem:[%s2266 + $0x38] sm:$0xff]
    %v5783 = vld [vmem:[%s2266 + $0x40] sm:$0xff]
    %v5784 = vld [vmem:[%s2266 + $0x48] sm:$0xff]
    %v5785 = vld [vmem:[%s2266 + $0x50] sm:$0xff]
    %v5786 = vld [vmem:[%s2266 + $0x58] sm:$0xff]
    %v5787 = vld [vmem:[%s2266 + $0x60] sm:$0xff]
    %v5788 = vld [vmem:[%s2266 + $0x68] sm:$0xff]
    %v5789 = vld [vmem:[%s2266 + $0x70] sm:$0xf]
    %v5790 = vld [vmem:[%s2266 + $0x78] sm:$0xf]
    %v5791 = vrot.slane %v5582, 2
    %v5792 = vsel %vm2107, %v5791, 0
    %v5795 = vsel %vm93, %v5789, 0
    %v5798 = vsel %vm93, %v5790, 0
    %5800 = vmatprep.subr.mxu0 %v5776
    %5801 = vmatpush1.msra.mxu0 %v5775
    %5802 = vmatprep.subr.mxu0 %v5778
    %5803 = vmatpush1.msra.mxu0 %v5777
    %5804 = vmatprep.subr.mxu0 %v5780
    %5805 = vmatpush1.msra.mxu0 %v5779
    %5806 = vmatprep.subr.mxu0 %v5782
    %5807 = vmatpush1.msra.mxu0 %v5781
    %5808 = vmatprep.subr.mxu0 %v5784
    %5809 = vmatpush1.msra.mxu0 %v5783
    %5810 = vmatprep.subr.mxu0 %v5786
    %5811 = vmatpush1.msra.mxu0 %v5785
    %5812 = vmatprep.subr.mxu0 %v5788
    %5813 = vmatpush1.msra.mxu0 %v5787
    %5814 = vmatprep.subr.mxu0 %v5798
    %5815 = vmatpush1.msra.mxu0 %v5795
    %5816 = vmatprep.subr.mxu0 0.0
    %5817 = vmatpush1.msra.mxu0 0.0
    %5818 = vmatprep.subr.mxu0 0.0
    %5819 = vmatpush1.msra.mxu0 0.0
    %5820 = vmatprep.subr.mxu0 0.0
    %5821 = vmatpush1.msra.mxu0 0.0
    %5822 = vmatprep.subr.mxu0 0.0
    %5823 = vmatpush1.msra.mxu0 0.0
    %5824 = vmatprep.subr.mxu0 0.0
    %5825 = vmatpush1.msra.mxu0 0.0
    %5826 = vmatprep.subr.mxu0 0.0
    %5827 = vmatpush1.msra.mxu0 0.0
    %5828 = vmatprep.subr.mxu0 0.0
    %5829 = vmatpush1.msra.mxu0 0.0
    %5830 = vmatprep.subr.mxu0 0.0
    %5831 = vmatpush1.msra.mxu0 0.0
    %5832 = vmatprep.subr.mxu0 0.0
    %5833 = vmatpush1.msra.mxu0 0.0
    %5834 = vmatprep.subr.mxu0 0.0
    %5835 = vmatpush1.msra.mxu0 0.0
    %5836 = vmatprep.subr.mxu0 0.0
    %5837 = vmatpush1.msra.mxu0 0.0
    %5838 = vmatprep.subr.mxu0 0.0
    %5839 = vmatpush1.msra.mxu0 0.0
    %5840 = vmatprep.subr.mxu0 0.0
    %5841 = vmatpush1.msra.mxu0 0.0
    %5842 = vmatprep.subr.mxu0 0.0
    %5843 = vmatpush1.msra.mxu0 0.0
    %5844 = vmatprep.subr.mxu0 0.0
    %5845 = vmatpush1.msra.mxu0 0.0
    %5846 = vmatprep.subr.mxu0 0.0
    %5847 = vmatpush1.msra.mxu0 0.0
    %5848 = vmatprep.subr.mxu0 0.0
    %5849 = vmatpush1.msra.mxu0 0.0
    %5850 = vmatprep.subr.mxu0 0.0
    %5851 = vmatpush1.msra.mxu0 0.0
    %5852 = vmatprep.subr.mxu0 0.0
    %5853 = vmatpush1.msra.mxu0 0.0
    %5854 = vmatprep.subr.mxu0 0.0
    %5855 = vmatpush1.msra.mxu0 0.0
    %5856 = vmatprep.subr.mxu0 0.0
    %5857 = vmatpush1.msra.mxu0 0.0
    %5858 = vmatprep.subr.mxu0 0.0
    %5859 = vmatpush1.msra.mxu0 0.0
    %5860 = vmatprep.subr.mxu0 0.0
    %5861 = vmatpush1.msra.mxu0 0.0
    %5862 = vmatprep.subr.mxu0 0.0
    %5863 = vmatpush1.msra.mxu0 0.0
    %5864 = vmatprep.mubr.f32.mxu0 0.0
    %5865 = vmatmul.mubr.f32.gmra.mrb[0].mxu0 %v5792
    %v5866 = vpop.f32.mrb[0].mxu0
    %v5867 = vadd.f32 0.0, %v5866
    %v5868 = vpop.f32.mrb[0].mxu0
    %v5869 = vadd.f32 0.0, %v5868
    %5870 = vdwg.mxu0
    %v5871 = vadd.f32 %v5771, %v5867
    %v5872 = vadd.f32 %v5773, %v5869
    %v5873 = vld [vmem:[%s2365] sm:$0xff]
    %v5874 = vld [vmem:[%s2365 + $0x8] sm:$0xff]
    %v5875 = vld [vmem:[%s2365 + $0x10] sm:$0xff]
    %v5876 = vld [vmem:[%s2365 + $0x18] sm:$0xff]
    %v5877 = vld [vmem:[%s2365 + $0x20] sm:$0xff]
    %v5878 = vld [vmem:[%s2365 + $0x28] sm:$0xff]
    %v5879 = vld [vmem:[%s2365 + $0x30] sm:$0xff]
    %v5880 = vld [vmem:[%s2365 + $0x38] sm:$0xff]
    %v5881 = vld [vmem:[%s2365 + $0x40] sm:$0xff]
    %v5882 = vld [vmem:[%s2365 + $0x48] sm:$0xff]
    %v5883 = vld [vmem:[%s2365 + $0x50] sm:$0xff]
    %v5884 = vld [vmem:[%s2365 + $0x58] sm:$0xff]
    %v5885 = vld [vmem:[%s2365 + $0x60] sm:$0xff]
    %v5886 = vld [vmem:[%s2365 + $0x68] sm:$0xff]
    %v5887 = vld [vmem:[%s2365 + $0x70] sm:$0xf]
    %v5888 = vld [vmem:[%s2365 + $0x78] sm:$0xf]
    %v5889 = vrot.slane %v5582, 3
    %v5890 = vsel %vm2107, %v5889, 0
    %v5893 = vsel %vm93, %v5887, 0
    %v5896 = vsel %vm93, %v5888, 0
    %5898 = vmatprep.subr.mxu0 %v5874
    %5899 = vmatpush1.msra.mxu0 %v5873
    %5900 = vmatprep.subr.mxu0 %v5876
    %5901 = vmatpush1.msra.mxu0 %v5875
    %5902 = vmatprep.subr.mxu0 %v5878
    %5903 = vmatpush1.msra.mxu0 %v5877
    %5904 = vmatprep.subr.mxu0 %v5880
    %5905 = vmatpush1.msra.mxu0 %v5879
    %5906 = vmatprep.subr.mxu0 %v5882
    %5907 = vmatpush1.msra.mxu0 %v5881
    %5908 = vmatprep.subr.mxu0 %v5884
    %5909 = vmatpush1.msra.mxu0 %v5883
    %5910 = vmatprep.subr.mxu0 %v5886
    %5911 = vmatpush1.msra.mxu0 %v5885
    %5912 = vmatprep.subr.mxu0 %v5896
    %5913 = vmatpush1.msra.mxu0 %v5893
    %5914 = vmatprep.subr.mxu0 0.0
    %5915 = vmatpush1.msra.mxu0 0.0
    %5916 = vmatprep.subr.mxu0 0.0
    %5917 = vmatpush1.msra.mxu0 0.0
    %5918 = vmatprep.subr.mxu0 0.0
    %5919 = vmatpush1.msra.mxu0 0.0
    %5920 = vmatprep.subr.mxu0 0.0
    %5921 = vmatpush1.msra.mxu0 0.0
    %5922 = vmatprep.subr.mxu0 0.0
    %5923 = vmatpush1.msra.mxu0 0.0
    %5924 = vmatprep.subr.mxu0 0.0
    %5925 = vmatpush1.msra.mxu0 0.0
    %5926 = vmatprep.subr.mxu0 0.0
    %5927 = vmatpush1.msra.mxu0 0.0
    %5928 = vmatprep.subr.mxu0 0.0
    %5929 = vmatpush1.msra.mxu0 0.0
    %5930 = vmatprep.subr.mxu0 0.0
    %5931 = vmatpush1.msra.mxu0 0.0
    %5932 = vmatprep.subr.mxu0 0.0
    %5933 = vmatpush1.msra.mxu0 0.0
    %5934 = vmatprep.subr.mxu0 0.0
    %5935 = vmatpush1.msra.mxu0 0.0
    %5936 = vmatprep.subr.mxu0 0.0
    %5937 = vmatpush1.msra.mxu0 0.0
    %5938 = vmatprep.subr.mxu0 0.0
    %5939 = vmatpush1.msra.mxu0 0.0
    %5940 = vmatprep.subr.mxu0 0.0
    %5941 = vmatpush1.msra.mxu0 0.0
    %5942 = vmatprep.subr.mxu0 0.0
    %5943 = vmatpush1.msra.mxu0 0.0
    %5944 = vmatprep.subr.mxu0 0.0
    %5945 = vmatpush1.msra.mxu0 0.0
    %5946 = vmatprep.subr.mxu0 0.0
    %5947 = vmatpush1.msra.mxu0 0.0
    %5948 = vmatprep.subr.mxu0 0.0
    %5949 = vmatpush1.msra.mxu0 0.0
    %5950 = vmatprep.subr.mxu0 0.0
    %5951 = vmatpush1.msra.mxu0 0.0
    %5952 = vmatprep.subr.mxu0 0.0
    %5953 = vmatpush1.msra.mxu0 0.0
    %5954 = vmatprep.subr.mxu0 0.0
    %5955 = vmatpush1.msra.mxu0 0.0
    %5956 = vmatprep.subr.mxu0 0.0
    %5957 = vmatpush1.msra.mxu0 0.0
    %5958 = vmatprep.subr.mxu0 0.0
    %5959 = vmatpush1.msra.mxu0 0.0
    %5960 = vmatprep.subr.mxu0 0.0
    %5961 = vmatpush1.msra.mxu0 0.0
    %5962 = vmatprep.mubr.f32.mxu0 0.0
    %5963 = vmatmul.mubr.f32.gmra.mrb[0].mxu0 %v5890
    %v5964 = vpop.f32.mrb[0].mxu0
    %v5965 = vadd.f32 0.0, %v5964
    %v5966 = vpop.f32.mrb[0].mxu0
    %v5967 = vadd.f32 0.0, %v5966
    %5968 = vdwg.mxu0
    %v5969 = vadd.f32 %v5871, %v5965
    %v5970 = vadd.f32 %v5872, %v5967
    %v5971 = vld [vmem:[%s2464] sm:$0xff]
    %v5972 = vld [vmem:[%s2464 + $0x8] sm:$0xff]
    %v5973 = vld [vmem:[%s2464 + $0x10] sm:$0xff]
    %v5974 = vld [vmem:[%s2464 + $0x18] sm:$0xff]
    %v5975 = vld [vmem:[%s2464 + $0x20] sm:$0xff]
    %v5976 = vld [vmem:[%s2464 + $0x28] sm:$0xff]
    %v5977 = vld [vmem:[%s2464 + $0x30] sm:$0xff]
    %v5978 = vld [vmem:[%s2464 + $0x38] sm:$0xff]
    %v5979 = vld [vmem:[%s2464 + $0x40] sm:$0xff]
    %v5980 = vld [vmem:[%s2464 + $0x48] sm:$0xff]
    %v5981 = vld [vmem:[%s2464 + $0x50] sm:$0xff]
    %v5982 = vld [vmem:[%s2464 + $0x58] sm:$0xff]
    %v5983 = vld [vmem:[%s2464 + $0x60] sm:$0xff]
    %v5984 = vld [vmem:[%s2464 + $0x68] sm:$0xff]
    %v5985 = vld [vmem:[%s2464 + $0x70] sm:$0xf]
    %v5986 = vld [vmem:[%s2464 + $0x78] sm:$0xf]
    %v5987 = vrot.slane %v5582, 4
    %v5988 = vsel %vm2107, %v5987, 0
    %v5991 = vsel %vm93, %v5985, 0
    %v5994 = vsel %vm93, %v5986, 0
    %5996 = vmatprep.subr.mxu0 %v5972
    %5997 = vmatpush1.msra.mxu0 %v5971
    %5998 = vmatprep.subr.mxu0 %v5974
    %5999 = vmatpush1.msra.mxu0 %v5973
    %6000 = vmatprep.subr.mxu0 %v5976
    %6001 = vmatpush1.msra.mxu0 %v5975
    %6002 = vmatprep.subr.mxu0 %v5978
    %6003 = vmatpush1.msra.mxu0 %v5977
    %6004 = vmatprep.subr.mxu0 %v5980
    %6005 = vmatpush1.msra.mxu0 %v5979
    %6006 = vmatprep.subr.mxu0 %v5982
    %6007 = vmatpush1.msra.mxu0 %v5981
    %6008 = vmatprep.subr.mxu0 %v5984
    %6009 = vmatpush1.msra.mxu0 %v5983
    %6010 = vmatprep.subr.mxu0 %v5994
    %6011 = vmatpush1.msra.mxu0 %v5991
    %6012 = vmatprep.subr.mxu0 0.0
    %6013 = vmatpush1.msra.mxu0 0.0
    %6014 = vmatprep.subr.mxu0 0.0
    %6015 = vmatpush1.msra.mxu0 0.0
    %6016 = vmatprep.subr.mxu0 0.0
    %6017 = vmatpush1.msra.mxu0 0.0
    %6018 = vmatprep.subr.mxu0 0.0
    %6019 = vmatpush1.msra.mxu0 0.0
    %6020 = vmatprep.subr.mxu0 0.0
    %6021 = vmatpush1.msra.mxu0 0.0
    %6022 = vmatprep.subr.mxu0 0.0
    %6023 = vmatpush1.msra.mxu0 0.0
    %6024 = vmatprep.subr.mxu0 0.0
    %6025 = vmatpush1.msra.mxu0 0.0
    %6026 = vmatprep.subr.mxu0 0.0
    %6027 = vmatpush1.msra.mxu0 0.0
    %6028 = vmatprep.subr.mxu0 0.0
    %6029 = vmatpush1.msra.mxu0 0.0
    %6030 = vmatprep.subr.mxu0 0.0
    %6031 = vmatpush1.msra.mxu0 0.0
    %6032 = vmatprep.subr.mxu0 0.0
    %6033 = vmatpush1.msra.mxu0 0.0
    %6034 = vmatprep.subr.mxu0 0.0
    %6035 = vmatpush1.msra.mxu0 0.0
    %6036 = vmatprep.subr.mxu0 0.0
    %6037 = vmatpush1.msra.mxu0 0.0
    %6038 = vmatprep.subr.mxu0 0.0
    %6039 = vmatpush1.msra.mxu0 0.0
    %6040 = vmatprep.subr.mxu0 0.0
    %6041 = vmatpush1.msra.mxu0 0.0
    %6042 = vmatprep.subr.mxu0 0.0
    %6043 = vmatpush1.msra.mxu0 0.0
    %6044 = vmatprep.subr.mxu0 0.0
    %6045 = vmatpush1.msra.mxu0 0.0
    %6046 = vmatprep.subr.mxu0 0.0
    %6047 = vmatpush1.msra.mxu0 0.0
    %6048 = vmatprep.subr.mxu0 0.0
    %6049 = vmatpush1.msra.mxu0 0.0
    %6050 = vmatprep.subr.mxu0 0.0
    %6051 = vmatpush1.msra.mxu0 0.0
    %6052 = vmatprep.subr.mxu0 0.0
    %6053 = vmatpush1.msra.mxu0 0.0
    %6054 = vmatprep.subr.mxu0 0.0
    %6055 = vmatpush1.msra.mxu0 0.0
    %6056 = vmatprep.subr.mxu0 0.0
    %6057 = vmatpush1.msra.mxu0 0.0
    %6058 = vmatprep.subr.mxu0 0.0
    %6059 = vmatpush1.msra.mxu0 0.0
    %6060 = vmatprep.mubr.f32.mxu0 0.0
    %6061 = vmatmul.mubr.f32.gmra.mrb[0].mxu0 %v5988
    %v6062 = vpop.f32.mrb[0].mxu0
    %v6063 = vadd.f32 0.0, %v6062
    %v6064 = vpop.f32.mrb[0].mxu0
    %v6065 = vadd.f32 0.0, %v6064
    %6066 = vdwg.mxu0
    %v6067 = vadd.f32 %v5969, %v6063
    %v6068 = vadd.f32 %v5970, %v6065
    %v6069 = vld [vmem:[%s8] sm:$0x3]
    %v6071 = vlaneseq
    %v6072 = vshrl.u32 %v6071, 7
    %v6073 = vsub.s32 0, %v6072
    %v6074 = vrot.slane %v6069, %v6073
    %v6075 = vlaneseq
    %v6076 = vshrl.u32 %v6075, 7
    %v6077 = vsub.s32 1, %v6076
    %v6078 = vrot.slane %v6069, %v6077
    %v6081 = vadd.f32 %v6067, %v6074
    %v6082 = vadd.f32 %v6068, %v6078
    %v6083 = vmax.f32 %v6081, 0.0
    %v6084 = vmax.f32 %v6082, 0.0
    %v6085 = vld [vmem:[%s9] sm:$0xff]
    %v6086 = vld [vmem:[%s9 + $0x8] sm:$0xff]
    %v6087 = vld [vmem:[%s9 + $0x10] sm:$0xff]
    %v6088 = vld [vmem:[%s9 + $0x18] sm:$0xff]
    %v6089 = vld [vmem:[%s9 + $0x20] sm:$0xff]
    %v6090 = vld [vmem:[%s9 + $0x28] sm:$0xff]
    %v6091 = vld [vmem:[%s9 + $0x30] sm:$0xff]
    %v6092 = vld [vmem:[%s9 + $0x38] sm:$0xff]
    %v6093 = vld [vmem:[%s9 + $0x40] sm:$0xff]
    %v6094 = vld [vmem:[%s9 + $0x48] sm:$0xff]
    %v6095 = vld [vmem:[%s9 + $0x50] sm:$0xff]
    %v6096 = vld [vmem:[%s9 + $0x58] sm:$0xff]
    %v6097 = vld [vmem:[%s9 + $0x60] sm:$0xff]
    %v6098 = vld [vmem:[%s9 + $0x68] sm:$0xff]
    %v6099 = vld [vmem:[%s9 + $0x70] sm:$0xff]
    %v6100 = vld [vmem:[%s9 + $0x78] sm:$0xff]
    %v6101 = vld [vmem:[%s9 + $0x80] sm:$0xff]
    %v6102 = vld [vmem:[%s9 + $0x88] sm:$0xff]
    %v6103 = vld [vmem:[%s9 + $0x90] sm:$0xff]
    %v6104 = vld [vmem:[%s9 + $0x98] sm:$0xff]
    %v6105 = vld [vmem:[%s9 + $0xa0] sm:$0xff]
    %v6106 = vld [vmem:[%s9 + $0xa8] sm:$0xff]
    %v6107 = vld [vmem:[%s9 + $0xb0] sm:$0xff]
    %v6108 = vld [vmem:[%s9 + $0xb8] sm:$0xff]
    %v6109 = vld [vmem:[%s9 + $0xc0] sm:$0xff]
    %v6110 = vld [vmem:[%s9 + $0xc8] sm:$0xff]
    %v6111 = vld [vmem:[%s9 + $0xd0] sm:$0xff]
    %v6112 = vld [vmem:[%s9 + $0xd8] sm:$0xff]
    %v6113 = vld [vmem:[%s9 + $0xe0] sm:$0xff]
    %v6114 = vld [vmem:[%s9 + $0xe8] sm:$0xff]
    %v6115 = vld [vmem:[%s9 + $0xf0] sm:$0xff]
    %v6116 = vld [vmem:[%s9 + $0xf8] sm:$0xff]
    %v6117 = vld [vmem:[%s9 + $0x100] sm:$0xff]
    %v6118 = vld [vmem:[%s9 + $0x108] sm:$0xff]
    %v6119 = vld [vmem:[%s9 + $0x110] sm:$0xff]
    %v6120 = vld [vmem:[%s9 + $0x118] sm:$0xff]
    %v6121 = vld [vmem:[%s9 + $0x120] sm:$0xff]
    %v6122 = vld [vmem:[%s9 + $0x128] sm:$0xff]
    %v6123 = vld [vmem:[%s9 + $0x130] sm:$0xff]
    %v6124 = vld [vmem:[%s9 + $0x138] sm:$0xff]
    %v6125 = vld [vmem:[%s9 + $0x140] sm:$0xff]
    %v6126 = vld [vmem:[%s9 + $0x148] sm:$0xff]
    %v6127 = vld [vmem:[%s9 + $0x150] sm:$0xff]
    %v6128 = vld [vmem:[%s9 + $0x158] sm:$0xff]
    %v6129 = vld [vmem:[%s9 + $0x160] sm:$0xff]
    %v6130 = vld [vmem:[%s9 + $0x168] sm:$0xff]
    %v6131 = vld [vmem:[%s9 + $0x170] sm:$0xff]
    %v6132 = vld [vmem:[%s9 + $0x178] sm:$0xff]
    %v6133 = vld [vmem:[%s9 + $0x180] sm:$0xff]
    %v6134 = vld [vmem:[%s9 + $0x188] sm:$0xff]
    %v6135 = vld [vmem:[%s9 + $0x190] sm:$0xff]
    %v6136 = vld [vmem:[%s9 + $0x198] sm:$0xff]
    %v6137 = vld [vmem:[%s9 + $0x1a0] sm:$0xff]
    %v6138 = vld [vmem:[%s9 + $0x1a8] sm:$0xff]
    %v6139 = vld [vmem:[%s9 + $0x1b0] sm:$0xff]
    %v6140 = vld [vmem:[%s9 + $0x1b8] sm:$0xff]
    %v6141 = vld [vmem:[%s9 + $0x1c0] sm:$0xff]
    %v6142 = vld [vmem:[%s9 + $0x1c8] sm:$0xff]
    %v6143 = vld [vmem:[%s9 + $0x1d0] sm:$0xff]
    %v6144 = vld [vmem:[%s9 + $0x1d8] sm:$0xff]
    %v6145 = vld [vmem:[%s9 + $0x1e0] sm:$0xff]
    %v6146 = vld [vmem:[%s9 + $0x1e8] sm:$0xff]
    %v6147 = vld [vmem:[%s9 + $0x1f0] sm:$0xff]
    %v6148 = vld [vmem:[%s9 + $0x1f8] sm:$0xff]
    %v6149 = vld [vmem:[%s9 + $0x200] sm:$0xff]
    %v6150 = vld [vmem:[%s9 + $0x208] sm:$0xff]
    %v6151 = vld [vmem:[%s9 + $0x210] sm:$0xff]
    %v6152 = vld [vmem:[%s9 + $0x218] sm:$0xff]
    %v6153 = vld [vmem:[%s9 + $0x220] sm:$0xff]
    %v6154 = vld [vmem:[%s9 + $0x228] sm:$0xff]
    %v6155 = vld [vmem:[%s9 + $0x230] sm:$0xff]
    %v6156 = vld [vmem:[%s9 + $0x238] sm:$0xff]
    %v6157 = vld [vmem:[%s9 + $0x240] sm:$0xff]
    %v6158 = vld [vmem:[%s9 + $0x248] sm:$0xff]
    %v6159 = vld [vmem:[%s9 + $0x250] sm:$0xff]
    %v6160 = vld [vmem:[%s9 + $0x258] sm:$0xff]
    %v6161 = vld [vmem:[%s9 + $0x260] sm:$0xff]
    %v6162 = vld [vmem:[%s9 + $0x268] sm:$0xff]
    %v6163 = vld [vmem:[%s9 + $0x270] sm:$0xff]
    %v6164 = vld [vmem:[%s9 + $0x278] sm:$0xff]
    %v6165 = vld [vmem:[%s9 + $0x280] sm:$0xff]
    %v6166 = vld [vmem:[%s9 + $0x288] sm:$0xff]
    %v6167 = vld [vmem:[%s9 + $0x290] sm:$0xff]
    %v6168 = vld [vmem:[%s9 + $0x298] sm:$0xff]
    %v6169 = vld [vmem:[%s9 + $0x2a0] sm:$0xff]
    %v6170 = vld [vmem:[%s9 + $0x2a8] sm:$0xff]
    %v6171 = vld [vmem:[%s9 + $0x2b0] sm:$0xff]
    %v6172 = vld [vmem:[%s9 + $0x2b8] sm:$0xff]
    %v6173 = vld [vmem:[%s9 + $0x2c0] sm:$0xff]
    %v6174 = vld [vmem:[%s9 + $0x2c8] sm:$0xff]
    %v6175 = vld [vmem:[%s9 + $0x2d0] sm:$0xff]
    %v6176 = vld [vmem:[%s9 + $0x2d8] sm:$0xff]
    %v6177 = vld [vmem:[%s9 + $0x2e0] sm:$0xff]
    %v6178 = vld [vmem:[%s9 + $0x2e8] sm:$0xff]
    %v6179 = vld [vmem:[%s9 + $0x2f0] sm:$0xff]
    %v6180 = vld [vmem:[%s9 + $0x2f8] sm:$0xff]
    %v6181 = vld [vmem:[%s9 + $0x300] sm:$0xff]
    %v6182 = vld [vmem:[%s9 + $0x308] sm:$0xff]
    %v6183 = vld [vmem:[%s9 + $0x310] sm:$0xff]
    %v6184 = vld [vmem:[%s9 + $0x318] sm:$0xff]
    %v6185 = vld [vmem:[%s9 + $0x320] sm:$0xff]
    %v6186 = vld [vmem:[%s9 + $0x328] sm:$0xff]
    %v6187 = vld [vmem:[%s9 + $0x330] sm:$0xff]
    %v6188 = vld [vmem:[%s9 + $0x338] sm:$0xff]
    %v6189 = vld [vmem:[%s9 + $0x340] sm:$0xff]
    %v6190 = vld [vmem:[%s9 + $0x348] sm:$0xff]
    %v6191 = vld [vmem:[%s9 + $0x350] sm:$0xff]
    %v6192 = vld [vmem:[%s9 + $0x358] sm:$0xff]
    %v6193 = vld [vmem:[%s9 + $0x360] sm:$0xff]
    %v6194 = vld [vmem:[%s9 + $0x368] sm:$0xff]
    %v6195 = vld [vmem:[%s9 + $0x370] sm:$0xff]
    %v6196 = vld [vmem:[%s9 + $0x378] sm:$0xff]
    %v6197 = vld [vmem:[%s9 + $0x380] sm:$0xff]
    %v6198 = vld [vmem:[%s9 + $0x388] sm:$0xff]
    %v6199 = vld [vmem:[%s9 + $0x390] sm:$0xff]
    %v6200 = vld [vmem:[%s9 + $0x398] sm:$0xff]
    %v6201 = vld [vmem:[%s9 + $0x3a0] sm:$0xff]
    %v6202 = vld [vmem:[%s9 + $0x3a8] sm:$0xff]
    %v6203 = vld [vmem:[%s9 + $0x3b0] sm:$0xff]
    %v6204 = vld [vmem:[%s9 + $0x3b8] sm:$0xff]
    %v6205 = vld [vmem:[%s9 + $0x3c0] sm:$0xff]
    %v6206 = vld [vmem:[%s9 + $0x3c8] sm:$0xff]
    %v6207 = vld [vmem:[%s9 + $0x3d0] sm:$0xff]
    %v6208 = vld [vmem:[%s9 + $0x3d8] sm:$0xff]
    %v6209 = vld [vmem:[%s9 + $0x3e0] sm:$0xff]
    %v6210 = vld [vmem:[%s9 + $0x3e8] sm:$0xff]
    %v6211 = vld [vmem:[%s9 + $0x3f0] sm:$0xff]
    %v6212 = vld [vmem:[%s9 + $0x3f8] sm:$0xff]
    %v6213 = vld [vmem:[%s9 + $0x400] sm:$0xff]
    %v6214 = vld [vmem:[%s9 + $0x408] sm:$0xff]
    %v6215 = vld [vmem:[%s9 + $0x410] sm:$0xff]
    %v6216 = vld [vmem:[%s9 + $0x418] sm:$0xff]
    %v6217 = vld [vmem:[%s9 + $0x420] sm:$0xff]
    %v6218 = vld [vmem:[%s9 + $0x428] sm:$0xff]
    %v6219 = vld [vmem:[%s9 + $0x430] sm:$0xff]
    %v6220 = vld [vmem:[%s9 + $0x438] sm:$0xff]
    %v6221 = vld [vmem:[%s9 + $0x440] sm:$0xff]
    %v6222 = vld [vmem:[%s9 + $0x448] sm:$0xff]
    %v6223 = vld [vmem:[%s9 + $0x450] sm:$0xff]
    %v6224 = vld [vmem:[%s9 + $0x458] sm:$0xff]
    %v6225 = vld [vmem:[%s9 + $0x460] sm:$0xff]
    %v6226 = vld [vmem:[%s9 + $0x468] sm:$0xff]
    %v6227 = vld [vmem:[%s9 + $0x470] sm:$0xff]
    %v6228 = vld [vmem:[%s9 + $0x478] sm:$0xff]
    %v6229 = vld [vmem:[%s9 + $0x480] sm:$0xff]
    %v6230 = vld [vmem:[%s9 + $0x488] sm:$0xff]
    %v6231 = vld [vmem:[%s9 + $0x490] sm:$0xff]
    %v6232 = vld [vmem:[%s9 + $0x498] sm:$0xff]
    %v6233 = vld [vmem:[%s9 + $0x4a0] sm:$0xff]
    %v6234 = vld [vmem:[%s9 + $0x4a8] sm:$0xff]
    %v6235 = vld [vmem:[%s9 + $0x4b0] sm:$0xff]
    %v6236 = vld [vmem:[%s9 + $0x4b8] sm:$0xff]
    %v6237 = vld [vmem:[%s9 + $0x4c0] sm:$0xff]
    %v6238 = vld [vmem:[%s9 + $0x4c8] sm:$0xff]
    %v6239 = vld [vmem:[%s9 + $0x4d0] sm:$0xff]
    %v6240 = vld [vmem:[%s9 + $0x4d8] sm:$0xff]
    %v6241 = vld [vmem:[%s9 + $0x4e0] sm:$0xff]
    %v6242 = vld [vmem:[%s9 + $0x4e8] sm:$0xff]
    %v6243 = vld [vmem:[%s9 + $0x4f0] sm:$0xff]
    %v6244 = vld [vmem:[%s9 + $0x4f8] sm:$0xff]
    %v6245 = vld [vmem:[%s9 + $0x500] sm:$0xff]
    %v6246 = vld [vmem:[%s9 + $0x508] sm:$0xff]
    %v6247 = vld [vmem:[%s9 + $0x510] sm:$0xff]
    %v6248 = vld [vmem:[%s9 + $0x518] sm:$0xff]
    %v6249 = vld [vmem:[%s9 + $0x520] sm:$0xff]
    %v6250 = vld [vmem:[%s9 + $0x528] sm:$0xff]
    %v6251 = vld [vmem:[%s9 + $0x530] sm:$0xff]
    %v6252 = vld [vmem:[%s9 + $0x538] sm:$0xff]
    %v6253 = vld [vmem:[%s9 + $0x540] sm:$0xff]
    %v6254 = vld [vmem:[%s9 + $0x548] sm:$0xff]
    %v6255 = vld [vmem:[%s9 + $0x550] sm:$0xff]
    %v6256 = vld [vmem:[%s9 + $0x558] sm:$0xff]
    %v6257 = vld [vmem:[%s9 + $0x560] sm:$0xff]
    %v6258 = vld [vmem:[%s9 + $0x568] sm:$0xff]
    %v6259 = vld [vmem:[%s9 + $0x570] sm:$0xff]
    %v6260 = vld [vmem:[%s9 + $0x578] sm:$0xff]
    %v6261 = vld [vmem:[%s9 + $0x580] sm:$0xff]
    %v6262 = vld [vmem:[%s9 + $0x588] sm:$0xff]
    %v6263 = vld [vmem:[%s9 + $0x590] sm:$0xff]
    %v6264 = vld [vmem:[%s9 + $0x598] sm:$0xff]
    %v6265 = vld [vmem:[%s9 + $0x5a0] sm:$0xff]
    %v6266 = vld [vmem:[%s9 + $0x5a8] sm:$0xff]
    %v6267 = vld [vmem:[%s9 + $0x5b0] sm:$0xff]
    %v6268 = vld [vmem:[%s9 + $0x5b8] sm:$0xff]
    %v6269 = vld [vmem:[%s9 + $0x5c0] sm:$0xff]
    %v6270 = vld [vmem:[%s9 + $0x5c8] sm:$0xff]
    %v6271 = vld [vmem:[%s9 + $0x5d0] sm:$0xff]
    %v6272 = vld [vmem:[%s9 + $0x5d8] sm:$0xff]
    %v6273 = vld [vmem:[%s9 + $0x5e0] sm:$0xff]
    %v6274 = vld [vmem:[%s9 + $0x5e8] sm:$0xff]
    %v6275 = vld [vmem:[%s9 + $0x5f0] sm:$0xff]
    %v6276 = vld [vmem:[%s9 + $0x5f8] sm:$0xff]
    %v6277 = vld [vmem:[%s9 + $0x600] sm:$0xff]
    %v6278 = vld [vmem:[%s9 + $0x608] sm:$0xff]
    %v6279 = vld [vmem:[%s9 + $0x610] sm:$0xff]
    %v6280 = vld [vmem:[%s9 + $0x618] sm:$0xff]
    %v6281 = vld [vmem:[%s9 + $0x620] sm:$0xff]
    %v6282 = vld [vmem:[%s9 + $0x628] sm:$0xff]
    %v6283 = vld [vmem:[%s9 + $0x630] sm:$0xff]
    %v6284 = vld [vmem:[%s9 + $0x638] sm:$0xff]
    %v6285 = vld [vmem:[%s9 + $0x640] sm:$0xff]
    %v6286 = vld [vmem:[%s9 + $0x648] sm:$0xff]
    %v6287 = vld [vmem:[%s9 + $0x650] sm:$0xff]
    %v6288 = vld [vmem:[%s9 + $0x658] sm:$0xff]
    %v6289 = vld [vmem:[%s9 + $0x660] sm:$0xff]
    %v6290 = vld [vmem:[%s9 + $0x668] sm:$0xff]
    %v6291 = vld [vmem:[%s9 + $0x670] sm:$0xff]
    %v6292 = vld [vmem:[%s9 + $0x678] sm:$0xff]
    %v6293 = vld [vmem:[%s9 + $0x680] sm:$0xff]
    %v6294 = vld [vmem:[%s9 + $0x688] sm:$0xff]
    %v6295 = vld [vmem:[%s9 + $0x690] sm:$0xff]
    %v6296 = vld [vmem:[%s9 + $0x698] sm:$0xff]
    %v6297 = vld [vmem:[%s9 + $0x6a0] sm:$0xff]
    %v6298 = vld [vmem:[%s9 + $0x6a8] sm:$0xff]
    %v6299 = vld [vmem:[%s9 + $0x6b0] sm:$0xff]
    %v6300 = vld [vmem:[%s9 + $0x6b8] sm:$0xff]
    %v6301 = vld [vmem:[%s9 + $0x6c0] sm:$0xff]
    %v6302 = vld [vmem:[%s9 + $0x6c8] sm:$0xff]
    %v6303 = vld [vmem:[%s9 + $0x6d0] sm:$0xff]
    %v6304 = vld [vmem:[%s9 + $0x6d8] sm:$0xff]
    %v6305 = vld [vmem:[%s9 + $0x6e0] sm:$0xff]
    %v6306 = vld [vmem:[%s9 + $0x6e8] sm:$0xff]
    %v6307 = vld [vmem:[%s9 + $0x6f0] sm:$0xff]
    %v6308 = vld [vmem:[%s9 + $0x6f8] sm:$0xff]
    %v6309 = vld [vmem:[%s9 + $0x700] sm:$0xff]
    %v6310 = vld [vmem:[%s9 + $0x708] sm:$0xff]
    %v6311 = vld [vmem:[%s9 + $0x710] sm:$0xff]
    %v6312 = vld [vmem:[%s9 + $0x718] sm:$0xff]
    %v6313 = vld [vmem:[%s9 + $0x720] sm:$0xff]
    %v6314 = vld [vmem:[%s9 + $0x728] sm:$0xff]
    %v6315 = vld [vmem:[%s9 + $0x730] sm:$0xff]
    %v6316 = vld [vmem:[%s9 + $0x738] sm:$0xff]
    %v6317 = vld [vmem:[%s9 + $0x740] sm:$0xff]
    %v6318 = vld [vmem:[%s9 + $0x748] sm:$0xff]
    %v6319 = vld [vmem:[%s9 + $0x750] sm:$0xff]
    %v6320 = vld [vmem:[%s9 + $0x758] sm:$0xff]
    %v6321 = vld [vmem:[%s9 + $0x760] sm:$0xff]
    %v6322 = vld [vmem:[%s9 + $0x768] sm:$0xff]
    %v6323 = vld [vmem:[%s9 + $0x770] sm:$0xff]
    %v6324 = vld [vmem:[%s9 + $0x778] sm:$0xff]
    %v6325 = vld [vmem:[%s9 + $0x780] sm:$0xff]
    %v6326 = vld [vmem:[%s9 + $0x788] sm:$0xff]
    %v6327 = vld [vmem:[%s9 + $0x790] sm:$0xff]
    %v6328 = vld [vmem:[%s9 + $0x798] sm:$0xff]
    %v6329 = vld [vmem:[%s9 + $0x7a0] sm:$0xff]
    %v6330 = vld [vmem:[%s9 + $0x7a8] sm:$0xff]
    %v6331 = vld [vmem:[%s9 + $0x7b0] sm:$0xff]
    %v6332 = vld [vmem:[%s9 + $0x7b8] sm:$0xff]
    %v6333 = vld [vmem:[%s9 + $0x7c0] sm:$0xff]
    %v6334 = vld [vmem:[%s9 + $0x7c8] sm:$0xff]
    %v6335 = vld [vmem:[%s9 + $0x7d0] sm:$0xff]
    %v6336 = vld [vmem:[%s9 + $0x7d8] sm:$0xff]
    %v6337 = vld [vmem:[%s9 + $0x7e0] sm:$0xff]
    %v6338 = vld [vmem:[%s9 + $0x7e8] sm:$0xff]
    %v6339 = vld [vmem:[%s9 + $0x7f0] sm:$0xff]
    %v6340 = vld [vmem:[%s9 + $0x7f8] sm:$0xff]
    %v6341 = vld [vmem:[%s10] sm:$0xff]
    %v6343 = vlaneseq
    %v6344 = vshrl.u32 %v6343, 7
    %v6345 = vsub.s32 0, %v6344
    %v6346 = vrot.slane %v6341, %v6345
    %v6347 = vlaneseq
    %v6348 = vshrl.u32 %v6347, 7
    %v6349 = vsub.s32 1, %v6348
    %v6350 = vrot.slane %v6341, %v6349
    %v6351 = vlaneseq
    %v6352 = vshrl.u32 %v6351, 7
    %v6353 = vsub.s32 2, %v6352
    %v6354 = vrot.slane %v6341, %v6353
    %v6355 = vlaneseq
    %v6356 = vshrl.u32 %v6355, 7
    %v6357 = vsub.s32 3, %v6356
    %v6358 = vrot.slane %v6341, %v6357
    %v6359 = vlaneseq
    %v6360 = vshrl.u32 %v6359, 7
    %v6361 = vsub.s32 4, %v6360
    %v6362 = vrot.slane %v6341, %v6361
    %v6363 = vlaneseq
    %v6364 = vshrl.u32 %v6363, 7
    %v6365 = vsub.s32 5, %v6364
    %v6366 = vrot.slane %v6341, %v6365
    %v6367 = vlaneseq
    %v6368 = vshrl.u32 %v6367, 7
    %v6369 = vsub.s32 6, %v6368
    %v6370 = vrot.slane %v6341, %v6369
    %v6371 = vlaneseq
    %v6372 = vshrl.u32 %v6371, 7
    %v6373 = vsub.s32 7, %v6372
    %v6374 = vrot.slane %v6341, %v6373
    %6383 = vmatprep.subr.mxu0 %v6086
    %6384 = vmatpush1.msra.mxu0 %v6085
    %6385 = vmatprep.subr.mxu0 %v6094
    %6386 = vmatpush1.msra.mxu0 %v6093
    %6387 = vmatprep.subr.mxu0 %v6102
    %6388 = vmatpush1.msra.mxu0 %v6101
    %6389 = vmatprep.subr.mxu0 %v6110
    %6390 = vmatpush1.msra.mxu0 %v6109
    %6391 = vmatprep.subr.mxu0 %v6118
    %6392 = vmatpush1.msra.mxu0 %v6117
    %6393 = vmatprep.subr.mxu0 %v6126
    %6394 = vmatpush1.msra.mxu0 %v6125
    %6395 = vmatprep.subr.mxu0 %v6134
    %6396 = vmatpush1.msra.mxu0 %v6133
    %6397 = vmatprep.subr.mxu0 %v6142
    %6398 = vmatpush1.msra.mxu0 %v6141
    %6399 = vmatprep.subr.mxu0 %v6150
    %6400 = vmatpush1.msra.mxu0 %v6149
    %6401 = vmatprep.subr.mxu0 %v6158
    %6402 = vmatpush1.msra.mxu0 %v6157
    %6403 = vmatprep.subr.mxu0 %v6166
    %6404 = vmatpush1.msra.mxu0 %v6165
    %6405 = vmatprep.subr.mxu0 %v6174
    %6406 = vmatpush1.msra.mxu0 %v6173
    %6407 = vmatprep.subr.mxu0 %v6182
    %6408 = vmatpush1.msra.mxu0 %v6181
    %6409 = vmatprep.subr.mxu0 %v6190
    %6410 = vmatpush1.msra.mxu0 %v6189
    %6411 = vmatprep.subr.mxu0 %v6198
    %6412 = vmatpush1.msra.mxu0 %v6197
    %6413 = vmatprep.subr.mxu0 %v6206
    %6414 = vmatpush1.msra.mxu0 %v6205
    %6415 = vmatprep.subr.mxu0 %v6214
    %6416 = vmatpush1.msra.mxu0 %v6213
    %6417 = vmatprep.subr.mxu0 %v6222
    %6418 = vmatpush1.msra.mxu0 %v6221
    %6419 = vmatprep.subr.mxu0 %v6230
    %6420 = vmatpush1.msra.mxu0 %v6229
    %6421 = vmatprep.subr.mxu0 %v6238
    %6422 = vmatpush1.msra.mxu0 %v6237
    %6423 = vmatprep.subr.mxu0 %v6246
    %6424 = vmatpush1.msra.mxu0 %v6245
    %6425 = vmatprep.subr.mxu0 %v6254
    %6426 = vmatpush1.msra.mxu0 %v6253
    %6427 = vmatprep.subr.mxu0 %v6262
    %6428 = vmatpush1.msra.mxu0 %v6261
    %6429 = vmatprep.subr.mxu0 %v6270
    %6430 = vmatpush1.msra.mxu0 %v6269
    %6431 = vmatprep.subr.mxu0 %v6278
    %6432 = vmatpush1.msra.mxu0 %v6277
    %6433 = vmatprep.subr.mxu0 %v6286
    %6434 = vmatpush1.msra.mxu0 %v6285
    %6435 = vmatprep.subr.mxu0 %v6294
    %6436 = vmatpush1.msra.mxu0 %v6293
    %6437 = vmatprep.subr.mxu0 %v6302
    %6438 = vmatpush1.msra.mxu0 %v6301
    %6439 = vmatprep.subr.mxu0 %v6310
    %6440 = vmatpush1.msra.mxu0 %v6309
    %6441 = vmatprep.subr.mxu0 %v6318
    %6442 = vmatpush1.msra.mxu0 %v6317
    %6443 = vmatprep.subr.mxu0 %v6326
    %6444 = vmatpush1.msra.mxu0 %v6325
    %6445 = vmatprep.subr.mxu0 %v6334
    %6446 = vmatpush1.msra.mxu0 %v6333
    %6447 = vmatprep.mubr.f32.mxu0 %v6084
    %6448 = vmatmul.mubr.f32.gmra.mrb[0].mxu0 %v6083
    %v6449 = vpop.f32.mrb[0].mxu0
    %v6450 = vadd.f32 %v6346, %v6449
    %v6451 = vpop.f32.mrb[0].mxu0
    %v6452 = vadd.f32 %v6350, %v6451
    %6453 = vdwg.mxu0
    %6454 = vmatprep.subr.mxu0 %v6088
    %6455 = vmatpush1.msra.mxu0 %v6087
    %6456 = vmatprep.subr.mxu0 %v6096
    %6457 = vmatpush1.msra.mxu0 %v6095
    %6458 = vmatprep.subr.mxu0 %v6104
    %6459 = vmatpush1.msra.mxu0 %v6103
    %6460 = vmatprep.subr.mxu0 %v6112
    %6461 = vmatpush1.msra.mxu0 %v6111
    %6462 = vmatprep.subr.mxu0 %v6120
    %6463 = vmatpush1.msra.mxu0 %v6119
    %6464 = vmatprep.subr.mxu0 %v6128
    %6465 = vmatpush1.msra.mxu0 %v6127
    %6466 = vmatprep.subr.mxu0 %v6136
    %6467 = vmatpush1.msra.mxu0 %v6135
    %6468 = vmatprep.subr.mxu0 %v6144
    %6469 = vmatpush1.msra.mxu0 %v6143
    %6470 = vmatprep.subr.mxu0 %v6152
    %6471 = vmatpush1.msra.mxu0 %v6151
    %6472 = vmatprep.subr.mxu0 %v6160
    %6473 = vmatpush1.msra.mxu0 %v6159
    %6474 = vmatprep.subr.mxu0 %v6168
    %6475 = vmatpush1.msra.mxu0 %v6167
    %6476 = vmatprep.subr.mxu0 %v6176
    %6477 = vmatpush1.msra.mxu0 %v6175
    %6478 = vmatprep.subr.mxu0 %v6184
    %6479 = vmatpush1.msra.mxu0 %v6183
    %6480 = vmatprep.subr.mxu0 %v6192
    %6481 = vmatpush1.msra.mxu0 %v6191
    %6482 = vmatprep.subr.mxu0 %v6200
    %6483 = vmatpush1.msra.mxu0 %v6199
    %6484 = vmatprep.subr.mxu0 %v6208
    %6485 = vmatpush1.msra.mxu0 %v6207
    %6486 = vmatprep.subr.mxu0 %v6216
    %6487 = vmatpush1.msra.mxu0 %v6215
    %6488 = vmatprep.subr.mxu0 %v6224
    %6489 = vmatpush1.msra.mxu0 %v6223
    %6490 = vmatprep.subr.mxu0 %v6232
    %6491 = vmatpush1.msra.mxu0 %v6231
    %6492 = vmatprep.subr.mxu0 %v6240
    %6493 = vmatpush1.msra.mxu0 %v6239
    %6494 = vmatprep.subr.mxu0 %v6248
    %6495 = vmatpush1.msra.mxu0 %v6247
    %6496 = vmatprep.subr.mxu0 %v6256
    %6497 = vmatpush1.msra.mxu0 %v6255
    %6498 = vmatprep.subr.mxu0 %v6264
    %6499 = vmatpush1.msra.mxu0 %v6263
    %6500 = vmatprep.subr.mxu0 %v6272
    %6501 = vmatpush1.msra.mxu0 %v6271
    %6502 = vmatprep.subr.mxu0 %v6280
    %6503 = vmatpush1.msra.mxu0 %v6279
    %6504 = vmatprep.subr.mxu0 %v6288
    %6505 = vmatpush1.msra.mxu0 %v6287
    %6506 = vmatprep.subr.mxu0 %v6296
    %6507 = vmatpush1.msra.mxu0 %v6295
    %6508 = vmatprep.subr.mxu0 %v6304
    %6509 = vmatpush1.msra.mxu0 %v6303
    %6510 = vmatprep.subr.mxu0 %v6312
    %6511 = vmatpush1.msra.mxu0 %v6311
    %6512 = vmatprep.subr.mxu0 %v6320
    %6513 = vmatpush1.msra.mxu0 %v6319
    %6514 = vmatprep.subr.mxu0 %v6328
    %6515 = vmatpush1.msra.mxu0 %v6327
    %6516 = vmatprep.subr.mxu0 %v6336
    %6517 = vmatpush1.msra.mxu0 %v6335
    %6518 = vmatprep.mubr.f32.mxu0 %v6084
    %6519 = vmatmul.mubr.f32.gmra.mrb[0].mxu0 %v6083
    %v6520 = vpop.f32.mrb[0].mxu0
    %v6521 = vadd.f32 %v6354, %v6520
    %v6522 = vpop.f32.mrb[0].mxu0
    %v6523 = vadd.f32 %v6358, %v6522
    %6524 = vdwg.mxu0
    %6525 = vmatprep.subr.mxu0 %v6090
    %6526 = vmatpush1.msra.mxu0 %v6089
    %6527 = vmatprep.subr.mxu0 %v6098
    %6528 = vmatpush1.msra.mxu0 %v6097
    %6529 = vmatprep.subr.mxu0 %v6106
    %6530 = vmatpush1.msra.mxu0 %v6105
    %6531 = vmatprep.subr.mxu0 %v6114
    %6532 = vmatpush1.msra.mxu0 %v6113
    %6533 = vmatprep.subr.mxu0 %v6122
    %6534 = vmatpush1.msra.mxu0 %v6121
    %6535 = vmatprep.subr.mxu0 %v6130
    %6536 = vmatpush1.msra.mxu0 %v6129
    %6537 = vmatprep.subr.mxu0 %v6138
    %6538 = vmatpush1.msra.mxu0 %v6137
    %6539 = vmatprep.subr.mxu0 %v6146
    %6540 = vmatpush1.msra.mxu0 %v6145
    %6541 = vmatprep.subr.mxu0 %v6154
    %6542 = vmatpush1.msra.mxu0 %v6153
    %6543 = vmatprep.subr.mxu0 %v6162
    %6544 = vmatpush1.msra.mxu0 %v6161
    %6545 = vmatprep.subr.mxu0 %v6170
    %6546 = vmatpush1.msra.mxu0 %v6169
    %6547 = vmatprep.subr.mxu0 %v6178
    %6548 = vmatpush1.msra.mxu0 %v6177
    %6549 = vmatprep.subr.mxu0 %v6186
    %6550 = vmatpush1.msra.mxu0 %v6185
    %6551 = vmatprep.subr.mxu0 %v6194
    %6552 = vmatpush1.msra.mxu0 %v6193
    %6553 = vmatprep.subr.mxu0 %v6202
    %6554 = vmatpush1.msra.mxu0 %v6201
    %6555 = vmatprep.subr.mxu0 %v6210
    %6556 = vmatpush1.msra.mxu0 %v6209
    %6557 = vmatprep.subr.mxu0 %v6218
    %6558 = vmatpush1.msra.mxu0 %v6217
    %6559 = vmatprep.subr.mxu0 %v6226
    %6560 = vmatpush1.msra.mxu0 %v6225
    %6561 = vmatprep.subr.mxu0 %v6234
    %6562 = vmatpush1.msra.mxu0 %v6233
    %6563 = vmatprep.subr.mxu0 %v6242
    %6564 = vmatpush1.msra.mxu0 %v6241
    %6565 = vmatprep.subr.mxu0 %v6250
    %6566 = vmatpush1.msra.mxu0 %v6249
    %6567 = vmatprep.subr.mxu0 %v6258
    %6568 = vmatpush1.msra.mxu0 %v6257
    %6569 = vmatprep.subr.mxu0 %v6266
    %6570 = vmatpush1.msra.mxu0 %v6265
    %6571 = vmatprep.subr.mxu0 %v6274
    %6572 = vmatpush1.msra.mxu0 %v6273
    %6573 = vmatprep.subr.mxu0 %v6282
    %6574 = vmatpush1.msra.mxu0 %v6281
    %6575 = vmatprep.subr.mxu0 %v6290
    %6576 = vmatpush1.msra.mxu0 %v6289
    %6577 = vmatprep.subr.mxu0 %v6298
    %6578 = vmatpush1.msra.mxu0 %v6297
    %6579 = vmatprep.subr.mxu0 %v6306
    %6580 = vmatpush1.msra.mxu0 %v6305
    %6581 = vmatprep.subr.mxu0 %v6314
    %6582 = vmatpush1.msra.mxu0 %v6313
    %6583 = vmatprep.subr.mxu0 %v6322
    %6584 = vmatpush1.msra.mxu0 %v6321
    %6585 = vmatprep.subr.mxu0 %v6330
    %6586 = vmatpush1.msra.mxu0 %v6329
    %6587 = vmatprep.subr.mxu0 %v6338
    %6588 = vmatpush1.msra.mxu0 %v6337
    %6589 = vmatprep.mubr.f32.mxu0 %v6084
    %6590 = vmatmul.mubr.f32.gmra.mrb[0].mxu0 %v6083
    %v6591 = vpop.f32.mrb[0].mxu0
    %v6592 = vadd.f32 %v6362, %v6591
    %v6593 = vpop.f32.mrb[0].mxu0
    %v6594 = vadd.f32 %v6366, %v6593
    %6595 = vdwg.mxu0
    %6596 = vmatprep.subr.mxu0 %v6092
    %6597 = vmatpush1.msra.mxu0 %v6091
    %6598 = vmatprep.subr.mxu0 %v6100
    %6599 = vmatpush1.msra.mxu0 %v6099
    %6600 = vmatprep.subr.mxu0 %v6108
    %6601 = vmatpush1.msra.mxu0 %v6107
    %6602 = vmatprep.subr.mxu0 %v6116
    %6603 = vmatpush1.msra.mxu0 %v6115
    %6604 = vmatprep.subr.mxu0 %v6124
    %6605 = vmatpush1.msra.mxu0 %v6123
    %6606 = vmatprep.subr.mxu0 %v6132
    %6607 = vmatpush1.msra.mxu0 %v6131
    %6608 = vmatprep.subr.mxu0 %v6140
    %6609 = vmatpush1.msra.mxu0 %v6139
    %6610 = vmatprep.subr.mxu0 %v6148
    %6611 = vmatpush1.msra.mxu0 %v6147
    %6612 = vmatprep.subr.mxu0 %v6156
    %6613 = vmatpush1.msra.mxu0 %v6155
    %6614 = vmatprep.subr.mxu0 %v6164
    %6615 = vmatpush1.msra.mxu0 %v6163
    %6616 = vmatprep.subr.mxu0 %v6172
    %6617 = vmatpush1.msra.mxu0 %v6171
    %6618 = vmatprep.subr.mxu0 %v6180
    %6619 = vmatpush1.msra.mxu0 %v6179
    %6620 = vmatprep.subr.mxu0 %v6188
    %6621 = vmatpush1.msra.mxu0 %v6187
    %6622 = vmatprep.subr.mxu0 %v6196
    %6623 = vmatpush1.msra.mxu0 %v6195
    %6624 = vmatprep.subr.mxu0 %v6204
    %6625 = vmatpush1.msra.mxu0 %v6203
    %6626 = vmatprep.subr.mxu0 %v6212
    %6627 = vmatpush1.msra.mxu0 %v6211
    %6628 = vmatprep.subr.mxu0 %v6220
    %6629 = vmatpush1.msra.mxu0 %v6219
    %6630 = vmatprep.subr.mxu0 %v6228
    %6631 = vmatpush1.msra.mxu0 %v6227
    %6632 = vmatprep.subr.mxu0 %v6236
    %6633 = vmatpush1.msra.mxu0 %v6235
    %6634 = vmatprep.subr.mxu0 %v6244
    %6635 = vmatpush1.msra.mxu0 %v6243
    %6636 = vmatprep.subr.mxu0 %v6252
    %6637 = vmatpush1.msra.mxu0 %v6251
    %6638 = vmatprep.subr.mxu0 %v6260
    %6639 = vmatpush1.msra.mxu0 %v6259
    %6640 = vmatprep.subr.mxu0 %v6268
    %6641 = vmatpush1.msra.mxu0 %v6267
    %6642 = vmatprep.subr.mxu0 %v6276
    %6643 = vmatpush1.msra.mxu0 %v6275
    %6644 = vmatprep.subr.mxu0 %v6284
    %6645 = vmatpush1.msra.mxu0 %v6283
    %6646 = vmatprep.subr.mxu0 %v6292
    %6647 = vmatpush1.msra.mxu0 %v6291
    %6648 = vmatprep.subr.mxu0 %v6300
    %6649 = vmatpush1.msra.mxu0 %v6299
    %6650 = vmatprep.subr.mxu0 %v6308
    %6651 = vmatpush1.msra.mxu0 %v6307
    %6652 = vmatprep.subr.mxu0 %v6316
    %6653 = vmatpush1.msra.mxu0 %v6315
    %6654 = vmatprep.subr.mxu0 %v6324
    %6655 = vmatpush1.msra.mxu0 %v6323
    %6656 = vmatprep.subr.mxu0 %v6332
    %6657 = vmatpush1.msra.mxu0 %v6331
    %6658 = vmatprep.subr.mxu0 %v6340
    %6659 = vmatpush1.msra.mxu0 %v6339
    %6660 = vmatprep.mubr.f32.mxu0 %v6084
    %6661 = vmatmul.mubr.f32.gmra.mrb[0].mxu0 %v6083
    %v6662 = vpop.f32.mrb[0].mxu0
    %v6663 = vadd.f32 %v6370, %v6662
    %v6664 = vpop.f32.mrb[0].mxu0
    %v6665 = vadd.f32 %v6374, %v6664
    %6666 = vdwg.mxu0
    %v6667 = vmax.f32 %v6450, 0.0
    %v6668 = vmax.f32 %v6452, 0.0
    %v6669 = vmax.f32 %v6521, 0.0
    %v6670 = vmax.f32 %v6523, 0.0
    %v6671 = vmax.f32 %v6592, 0.0
    %v6672 = vmax.f32 %v6594, 0.0
    %v6673 = vmax.f32 %v6663, 0.0
    %v6674 = vmax.f32 %v6665, 0.0
    %v6675 = vld [vmem:[%s11] sm:$0xff]
    %v6676 = vld [vmem:[%s11 + $0x8] sm:$0xff]
    %v6677 = vld [vmem:[%s11 + $0x10] sm:$0xff]
    %v6678 = vld [vmem:[%s11 + $0x18] sm:$0xff]
    %v6679 = vld [vmem:[%s11 + $0x20] sm:$0xff]
    %v6680 = vld [vmem:[%s11 + $0x28] sm:$0xff]
    %v6681 = vld [vmem:[%s11 + $0x30] sm:$0xff]
    %v6682 = vld [vmem:[%s11 + $0x38] sm:$0xff]
    %v6683 = vld [vmem:[%s11 + $0x40] sm:$0xff]
    %v6684 = vld [vmem:[%s11 + $0x48] sm:$0xff]
    %v6685 = vld [vmem:[%s11 + $0x50] sm:$0xff]
    %v6686 = vld [vmem:[%s11 + $0x58] sm:$0xff]
    %v6687 = vld [vmem:[%s11 + $0x60] sm:$0xff]
    %v6688 = vld [vmem:[%s11 + $0x68] sm:$0xff]
    %v6689 = vld [vmem:[%s11 + $0x70] sm:$0xff]
    %v6690 = vld [vmem:[%s11 + $0x78] sm:$0xff]
    %v6691 = vld [vmem:[%s11 + $0x80] sm:$0xff]
    %v6692 = vld [vmem:[%s11 + $0x88] sm:$0xff]
    %v6693 = vld [vmem:[%s11 + $0x90] sm:$0xff]
    %v6694 = vld [vmem:[%s11 + $0x98] sm:$0xff]
    %v6695 = vld [vmem:[%s11 + $0xa0] sm:$0xff]
    %v6696 = vld [vmem:[%s11 + $0xa8] sm:$0xff]
    %v6697 = vld [vmem:[%s11 + $0xb0] sm:$0xff]
    %v6698 = vld [vmem:[%s11 + $0xb8] sm:$0xff]
    %v6699 = vld [vmem:[%s11 + $0xc0] sm:$0xff]
    %v6700 = vld [vmem:[%s11 + $0xc8] sm:$0xff]
    %v6701 = vld [vmem:[%s11 + $0xd0] sm:$0xff]
    %v6702 = vld [vmem:[%s11 + $0xd8] sm:$0xff]
    %v6703 = vld [vmem:[%s11 + $0xe0] sm:$0xff]
    %v6704 = vld [vmem:[%s11 + $0xe8] sm:$0xff]
    %v6705 = vld [vmem:[%s11 + $0xf0] sm:$0xff]
    %v6706 = vld [vmem:[%s11 + $0xf8] sm:$0xff]
    %v6707 = vld [vmem:[%s11 + $0x100] sm:$0xff]
    %v6708 = vld [vmem:[%s11 + $0x108] sm:$0xff]
    %v6709 = vld [vmem:[%s11 + $0x110] sm:$0xff]
    %v6710 = vld [vmem:[%s11 + $0x118] sm:$0xff]
    %v6711 = vld [vmem:[%s11 + $0x120] sm:$0xff]
    %v6712 = vld [vmem:[%s11 + $0x128] sm:$0xff]
    %v6713 = vld [vmem:[%s11 + $0x130] sm:$0xff]
    %v6714 = vld [vmem:[%s11 + $0x138] sm:$0xff]
    %v6715 = vld [vmem:[%s11 + $0x140] sm:$0xff]
    %v6716 = vld [vmem:[%s11 + $0x148] sm:$0xff]
    %v6717 = vld [vmem:[%s11 + $0x150] sm:$0xff]
    %v6718 = vld [vmem:[%s11 + $0x158] sm:$0xff]
    %v6719 = vld [vmem:[%s11 + $0x160] sm:$0xff]
    %v6720 = vld [vmem:[%s11 + $0x168] sm:$0xff]
    %v6721 = vld [vmem:[%s11 + $0x170] sm:$0xff]
    %v6722 = vld [vmem:[%s11 + $0x178] sm:$0xff]
    %v6723 = vld [vmem:[%s11 + $0x180] sm:$0xff]
    %v6724 = vld [vmem:[%s11 + $0x188] sm:$0xff]
    %v6725 = vld [vmem:[%s11 + $0x190] sm:$0xff]
    %v6726 = vld [vmem:[%s11 + $0x198] sm:$0xff]
    %v6727 = vld [vmem:[%s11 + $0x1a0] sm:$0xff]
    %v6728 = vld [vmem:[%s11 + $0x1a8] sm:$0xff]
    %v6729 = vld [vmem:[%s11 + $0x1b0] sm:$0xff]
    %v6730 = vld [vmem:[%s11 + $0x1b8] sm:$0xff]
    %v6731 = vld [vmem:[%s11 + $0x1c0] sm:$0xff]
    %v6732 = vld [vmem:[%s11 + $0x1c8] sm:$0xff]
    %v6733 = vld [vmem:[%s11 + $0x1d0] sm:$0xff]
    %v6734 = vld [vmem:[%s11 + $0x1d8] sm:$0xff]
    %v6735 = vld [vmem:[%s11 + $0x1e0] sm:$0xff]
    %v6736 = vld [vmem:[%s11 + $0x1e8] sm:$0xff]
    %v6737 = vld [vmem:[%s11 + $0x1f0] sm:$0xff]
    %v6738 = vld [vmem:[%s11 + $0x1f8] sm:$0xff]
    %v6739 = vld [vmem:[%s11 + $0x200] sm:$0xff]
    %v6740 = vld [vmem:[%s11 + $0x208] sm:$0xff]
    %v6741 = vld [vmem:[%s11 + $0x210] sm:$0xff]
    %v6742 = vld [vmem:[%s11 + $0x218] sm:$0xff]
    %v6743 = vld [vmem:[%s11 + $0x220] sm:$0xff]
    %v6744 = vld [vmem:[%s11 + $0x228] sm:$0xff]
    %v6745 = vld [vmem:[%s11 + $0x230] sm:$0xff]
    %v6746 = vld [vmem:[%s11 + $0x238] sm:$0xff]
    %v6747 = vld [vmem:[%s11 + $0x240] sm:$0xff]
    %v6748 = vld [vmem:[%s11 + $0x248] sm:$0xff]
    %v6749 = vld [vmem:[%s11 + $0x250] sm:$0xff]
    %v6750 = vld [vmem:[%s11 + $0x258] sm:$0xff]
    %v6751 = vld [vmem:[%s11 + $0x260] sm:$0xff]
    %v6752 = vld [vmem:[%s11 + $0x268] sm:$0xff]
    %v6753 = vld [vmem:[%s11 + $0x270] sm:$0xff]
    %v6754 = vld [vmem:[%s11 + $0x278] sm:$0xff]
    %v6755 = vld [vmem:[%s11 + $0x280] sm:$0xff]
    %v6756 = vld [vmem:[%s11 + $0x288] sm:$0xff]
    %v6757 = vld [vmem:[%s11 + $0x290] sm:$0xff]
    %v6758 = vld [vmem:[%s11 + $0x298] sm:$0xff]
    %v6759 = vld [vmem:[%s11 + $0x2a0] sm:$0xff]
    %v6760 = vld [vmem:[%s11 + $0x2a8] sm:$0xff]
    %v6761 = vld [vmem:[%s11 + $0x2b0] sm:$0xff]
    %v6762 = vld [vmem:[%s11 + $0x2b8] sm:$0xff]
    %v6763 = vld [vmem:[%s11 + $0x2c0] sm:$0xff]
    %v6764 = vld [vmem:[%s11 + $0x2c8] sm:$0xff]
    %v6765 = vld [vmem:[%s11 + $0x2d0] sm:$0xff]
    %v6766 = vld [vmem:[%s11 + $0x2d8] sm:$0xff]
    %v6767 = vld [vmem:[%s11 + $0x2e0] sm:$0xff]
    %v6768 = vld [vmem:[%s11 + $0x2e8] sm:$0xff]
    %v6769 = vld [vmem:[%s11 + $0x2f0] sm:$0xff]
    %v6770 = vld [vmem:[%s11 + $0x2f8] sm:$0xff]
    %v6771 = vld [vmem:[%s11 + $0x300] sm:$0xff]
    %v6772 = vld [vmem:[%s11 + $0x308] sm:$0xff]
    %v6773 = vld [vmem:[%s11 + $0x310] sm:$0xff]
    %v6774 = vld [vmem:[%s11 + $0x318] sm:$0xff]
    %v6775 = vld [vmem:[%s11 + $0x320] sm:$0xff]
    %v6776 = vld [vmem:[%s11 + $0x328] sm:$0xff]
    %v6777 = vld [vmem:[%s11 + $0x330] sm:$0xff]
    %v6778 = vld [vmem:[%s11 + $0x338] sm:$0xff]
    %v6779 = vld [vmem:[%s11 + $0x340] sm:$0xff]
    %v6780 = vld [vmem:[%s11 + $0x348] sm:$0xff]
    %v6781 = vld [vmem:[%s11 + $0x350] sm:$0xff]
    %v6782 = vld [vmem:[%s11 + $0x358] sm:$0xff]
    %v6783 = vld [vmem:[%s11 + $0x360] sm:$0xff]
    %v6784 = vld [vmem:[%s11 + $0x368] sm:$0xff]
    %v6785 = vld [vmem:[%s11 + $0x370] sm:$0xff]
    %v6786 = vld [vmem:[%s11 + $0x378] sm:$0xff]
    %v6787 = vld [vmem:[%s11 + $0x380] sm:$0xff]
    %v6788 = vld [vmem:[%s11 + $0x388] sm:$0xff]
    %v6789 = vld [vmem:[%s11 + $0x390] sm:$0xff]
    %v6790 = vld [vmem:[%s11 + $0x398] sm:$0xff]
    %v6791 = vld [vmem:[%s11 + $0x3a0] sm:$0xff]
    %v6792 = vld [vmem:[%s11 + $0x3a8] sm:$0xff]
    %v6793 = vld [vmem:[%s11 + $0x3b0] sm:$0xff]
    %v6794 = vld [vmem:[%s11 + $0x3b8] sm:$0xff]
    %v6795 = vld [vmem:[%s11 + $0x3c0] sm:$0xff]
    %v6796 = vld [vmem:[%s11 + $0x3c8] sm:$0xff]
    %v6797 = vld [vmem:[%s11 + $0x3d0] sm:$0xff]
    %v6798 = vld [vmem:[%s11 + $0x3d8] sm:$0xff]
    %v6799 = vld [vmem:[%s11 + $0x3e0] sm:$0xff]
    %v6800 = vld [vmem:[%s11 + $0x3e8] sm:$0xff]
    %v6801 = vld [vmem:[%s11 + $0x3f0] sm:$0xff]
    %v6802 = vld [vmem:[%s11 + $0x3f8] sm:$0xff]
    %v6803 = vld [vmem:[%s12] sm:$0x1]
    %6804 = vmatprep.subr.mxu0 0.0
    %6805 = vmatpush1.msra.mxu0 %v6675
    %6806 = vmatprep.subr.mxu0 0.0
    %6807 = vmatpush1.msra.mxu0 %v6676
    %6808 = vmatprep.subr.mxu0 0.0
    %6809 = vmatpush1.msra.mxu0 %v6677
    %6810 = vmatprep.subr.mxu0 0.0
    %6811 = vmatpush1.msra.mxu0 %v6678
    %6812 = vmatprep.subr.mxu0 0.0
    %6813 = vmatpush1.msra.mxu0 %v6679
    %6814 = vmatprep.subr.mxu0 0.0
    %6815 = vmatpush1.msra.mxu0 %v6680
    %6816 = vmatprep.subr.mxu0 0.0
    %6817 = vmatpush1.msra.mxu0 %v6681
    %6818 = vmatprep.subr.mxu0 0.0
    %6819 = vmatpush1.msra.mxu0 %v6682
    %6820 = vmatprep.subr.mxu0 0.0
    %6821 = vmatpush1.msra.mxu0 %v6683
    %6822 = vmatprep.subr.mxu0 0.0
    %6823 = vmatpush1.msra.mxu0 %v6684
    %6824 = vmatprep.subr.mxu0 0.0
    %6825 = vmatpush1.msra.mxu0 %v6685
    %6826 = vmatprep.subr.mxu0 0.0
    %6827 = vmatpush1.msra.mxu0 %v6686
    %6828 = vmatprep.subr.mxu0 0.0
    %6829 = vmatpush1.msra.mxu0 %v6687
    %6830 = vmatprep.subr.mxu0 0.0
    %6831 = vmatpush1.msra.mxu0 %v6688
    %6832 = vmatprep.subr.mxu0 0.0
    %6833 = vmatpush1.msra.mxu0 %v6689
    %6834 = vmatprep.subr.mxu0 0.0
    %6835 = vmatpush1.msra.mxu0 %v6690
    %6836 = vmatprep.subr.mxu0 0.0
    %6837 = vmatpush1.msra.mxu0 %v6691
    %6838 = vmatprep.subr.mxu0 0.0
    %6839 = vmatpush1.msra.mxu0 %v6692
    %6840 = vmatprep.subr.mxu0 0.0
    %6841 = vmatpush1.msra.mxu0 %v6693
    %6842 = vmatprep.subr.mxu0 0.0
    %6843 = vmatpush1.msra.mxu0 %v6694
    %6844 = vmatprep.subr.mxu0 0.0
    %6845 = vmatpush1.msra.mxu0 %v6695
    %6846 = vmatprep.subr.mxu0 0.0
    %6847 = vmatpush1.msra.mxu0 %v6696
    %6848 = vmatprep.subr.mxu0 0.0
    %6849 = vmatpush1.msra.mxu0 %v6697
    %6850 = vmatprep.subr.mxu0 0.0
    %6851 = vmatpush1.msra.mxu0 %v6698
    %6852 = vmatprep.subr.mxu0 0.0
    %6853 = vmatpush1.msra.mxu0 %v6699
    %6854 = vmatprep.subr.mxu0 0.0
    %6855 = vmatpush1.msra.mxu0 %v6700
    %6856 = vmatprep.subr.mxu0 0.0
    %6857 = vmatpush1.msra.mxu0 %v6701
    %6858 = vmatprep.subr.mxu0 0.0
    %6859 = vmatpush1.msra.mxu0 %v6702
    %6860 = vmatprep.subr.mxu0 0.0
    %6861 = vmatpush1.msra.mxu0 %v6703
    %6862 = vmatprep.subr.mxu0 0.0
    %6863 = vmatpush1.msra.mxu0 %v6704
    %6864 = vmatprep.subr.mxu0 0.0
    %6865 = vmatpush1.msra.mxu0 %v6705
    %6866 = vmatprep.subr.mxu0 0.0
    %6867 = vmatpush1.msra.mxu0 %v6706
    %6868 = vmatprep.mubr.f32.mxu0 %v6668
    %6869 = vmatmul.mubr.f32.gmra.mrb[0].mxu0 %v6667
    %v6870 = vpop.f32.mrb[0].mxu0
    %v6871 = vadd.f32 %v6803, %v6870
    %v6872 = vpop.f32.mrb[0].mxu0
    %6873 = vdwg.mxu0
    %6874 = vmatprep.subr.mxu0 0.0
    %6875 = vmatpush1.msra.mxu0 %v6707
    %6876 = vmatprep.subr.mxu0 0.0
    %6877 = vmatpush1.msra.mxu0 %v6708
    %6878 = vmatprep.subr.mxu0 0.0
    %6879 = vmatpush1.msra.mxu0 %v6709
    %6880 = vmatprep.subr.mxu0 0.0
    %6881 = vmatpush1.msra.mxu0 %v6710
    %6882 = vmatprep.subr.mxu0 0.0
    %6883 = vmatpush1.msra.mxu0 %v6711
    %6884 = vmatprep.subr.mxu0 0.0
    %6885 = vmatpush1.msra.mxu0 %v6712
    %6886 = vmatprep.subr.mxu0 0.0
    %6887 = vmatpush1.msra.mxu0 %v6713
    %6888 = vmatprep.subr.mxu0 0.0
    %6889 = vmatpush1.msra.mxu0 %v6714
    %6890 = vmatprep.subr.mxu0 0.0
    %6891 = vmatpush1.msra.mxu0 %v6715
    %6892 = vmatprep.subr.mxu0 0.0
    %6893 = vmatpush1.msra.mxu0 %v6716
    %6894 = vmatprep.subr.mxu0 0.0
    %6895 = vmatpush1.msra.mxu0 %v6717
    %6896 = vmatprep.subr.mxu0 0.0
    %6897 = vmatpush1.msra.mxu0 %v6718
    %6898 = vmatprep.subr.mxu0 0.0
    %6899 = vmatpush1.msra.mxu0 %v6719
    %6900 = vmatprep.subr.mxu0 0.0
    %6901 = vmatpush1.msra.mxu0 %v6720
    %6902 = vmatprep.subr.mxu0 0.0
    %6903 = vmatpush1.msra.mxu0 %v6721
    %6904 = vmatprep.subr.mxu0 0.0
    %6905 = vmatpush1.msra.mxu0 %v6722
    %6906 = vmatprep.subr.mxu0 0.0
    %6907 = vmatpush1.msra.mxu0 %v6723
    %6908 = vmatprep.subr.mxu0 0.0
    %6909 = vmatpush1.msra.mxu0 %v6724
    %6910 = vmatprep.subr.mxu0 0.0
    %6911 = vmatpush1.msra.mxu0 %v6725
    %6912 = vmatprep.subr.mxu0 0.0
    %6913 = vmatpush1.msra.mxu0 %v6726
    %6914 = vmatprep.subr.mxu0 0.0
    %6915 = vmatpush1.msra.mxu0 %v6727
    %6916 = vmatprep.subr.mxu0 0.0
    %6917 = vmatpush1.msra.mxu0 %v6728
    %6918 = vmatprep.subr.mxu0 0.0
    %6919 = vmatpush1.msra.mxu0 %v6729
    %6920 = vmatprep.subr.mxu0 0.0
    %6921 = vmatpush1.msra.mxu0 %v6730
    %6922 = vmatprep.subr.mxu0 0.0
    %6923 = vmatpush1.msra.mxu0 %v6731
    %6924 = vmatprep.subr.mxu0 0.0
    %6925 = vmatpush1.msra.mxu0 %v6732
    %6926 = vmatprep.subr.mxu0 0.0
    %6927 = vmatpush1.msra.mxu0 %v6733
    %6928 = vmatprep.subr.mxu0 0.0
    %6929 = vmatpush1.msra.mxu0 %v6734
    %6930 = vmatprep.subr.mxu0 0.0
    %6931 = vmatpush1.msra.mxu0 %v6735
    %6932 = vmatprep.subr.mxu0 0.0
    %6933 = vmatpush1.msra.mxu0 %v6736
    %6934 = vmatprep.subr.mxu0 0.0
    %6935 = vmatpush1.msra.mxu0 %v6737
    %6936 = vmatprep.subr.mxu0 0.0
    %6937 = vmatpush1.msra.mxu0 %v6738
    %6938 = vmatprep.mubr.f32.mxu0 %v6670
    %6939 = vmatmul.mubr.f32.gmra.mrb[0].mxu0 %v6669
    %v6940 = vpop.f32.mrb[0].mxu0
    %v6941 = vadd.f32 %v6871, %v6940
    %v6942 = vpop.f32.mrb[0].mxu0
    %6943 = vdwg.mxu0
    %6944 = vmatprep.subr.mxu0 0.0
    %6945 = vmatpush1.msra.mxu0 %v6739
    %6946 = vmatprep.subr.mxu0 0.0
    %6947 = vmatpush1.msra.mxu0 %v6740
    %6948 = vmatprep.subr.mxu0 0.0
    %6949 = vmatpush1.msra.mxu0 %v6741
    %6950 = vmatprep.subr.mxu0 0.0
    %6951 = vmatpush1.msra.mxu0 %v6742
    %6952 = vmatprep.subr.mxu0 0.0
    %6953 = vmatpush1.msra.mxu0 %v6743
    %6954 = vmatprep.subr.mxu0 0.0
    %6955 = vmatpush1.msra.mxu0 %v6744
    %6956 = vmatprep.subr.mxu0 0.0
    %6957 = vmatpush1.msra.mxu0 %v6745
    %6958 = vmatprep.subr.mxu0 0.0
    %6959 = vmatpush1.msra.mxu0 %v6746
    %6960 = vmatprep.subr.mxu0 0.0
    %6961 = vmatpush1.msra.mxu0 %v6747
    %6962 = vmatprep.subr.mxu0 0.0
    %6963 = vmatpush1.msra.mxu0 %v6748
    %6964 = vmatprep.subr.mxu0 0.0
    %6965 = vmatpush1.msra.mxu0 %v6749
    %6966 = vmatprep.subr.mxu0 0.0
    %6967 = vmatpush1.msra.mxu0 %v6750
    %6968 = vmatprep.subr.mxu0 0.0
    %6969 = vmatpush1.msra.mxu0 %v6751
    %6970 = vmatprep.subr.mxu0 0.0
    %6971 = vmatpush1.msra.mxu0 %v6752
    %6972 = vmatprep.subr.mxu0 0.0
    %6973 = vmatpush1.msra.mxu0 %v6753
    %6974 = vmatprep.subr.mxu0 0.0
    %6975 = vmatpush1.msra.mxu0 %v6754
    %6976 = vmatprep.subr.mxu0 0.0
    %6977 = vmatpush1.msra.mxu0 %v6755
    %6978 = vmatprep.subr.mxu0 0.0
    %6979 = vmatpush1.msra.mxu0 %v6756
    %6980 = vmatprep.subr.mxu0 0.0
    %6981 = vmatpush1.msra.mxu0 %v6757
    %6982 = vmatprep.subr.mxu0 0.0
    %6983 = vmatpush1.msra.mxu0 %v6758
    %6984 = vmatprep.subr.mxu0 0.0
    %6985 = vmatpush1.msra.mxu0 %v6759
    %6986 = vmatprep.subr.mxu0 0.0
    %6987 = vmatpush1.msra.mxu0 %v6760
    %6988 = vmatprep.subr.mxu0 0.0
    %6989 = vmatpush1.msra.mxu0 %v6761
    %6990 = vmatprep.subr.mxu0 0.0
    %6991 = vmatpush1.msra.mxu0 %v6762
    %6992 = vmatprep.subr.mxu0 0.0
    %6993 = vmatpush1.msra.mxu0 %v6763
    %6994 = vmatprep.subr.mxu0 0.0
    %6995 = vmatpush1.msra.mxu0 %v6764
    %6996 = vmatprep.subr.mxu0 0.0
    %6997 = vmatpush1.msra.mxu0 %v6765
    %6998 = vmatprep.subr.mxu0 0.0
    %6999 = vmatpush1.msra.mxu0 %v6766
    %7000 = vmatprep.subr.mxu0 0.0
    %7001 = vmatpush1.msra.mxu0 %v6767
    %7002 = vmatprep.subr.mxu0 0.0
    %7003 = vmatpush1.msra.mxu0 %v6768
    %7004 = vmatprep.subr.mxu0 0.0
    %7005 = vmatpush1.msra.mxu0 %v6769
    %7006 = vmatprep.subr.mxu0 0.0
    %7007 = vmatpush1.msra.mxu0 %v6770
    %7008 = vmatprep.mubr.f32.mxu0 %v6672
    %7009 = vmatmul.mubr.f32.gmra.mrb[0].mxu0 %v6671
    %v7010 = vpop.f32.mrb[0].mxu0
    %v7011 = vadd.f32 %v6941, %v7010
    %v7012 = vpop.f32.mrb[0].mxu0
    %7013 = vdwg.mxu0
    %7014 = vmatprep.subr.mxu0 0.0
    %7015 = vmatpush1.msra.mxu0 %v6771
    %7016 = vmatprep.subr.mxu0 0.0
    %7017 = vmatpush1.msra.mxu0 %v6772
    %7018 = vmatprep.subr.mxu0 0.0
    %7019 = vmatpush1.msra.mxu0 %v6773
    %7020 = vmatprep.subr.mxu0 0.0
    %7021 = vmatpush1.msra.mxu0 %v6774
    %7022 = vmatprep.subr.mxu0 0.0
    %7023 = vmatpush1.msra.mxu0 %v6775
    %7024 = vmatprep.subr.mxu0 0.0
    %7025 = vmatpush1.msra.mxu0 %v6776
    %7026 = vmatprep.subr.mxu0 0.0
    %7027 = vmatpush1.msra.mxu0 %v6777
    %7028 = vmatprep.subr.mxu0 0.0
    %7029 = vmatpush1.msra.mxu0 %v6778
    %7030 = vmatprep.subr.mxu0 0.0
    %7031 = vmatpush1.msra.mxu0 %v6779
    %7032 = vmatprep.subr.mxu0 0.0
    %7033 = vmatpush1.msra.mxu0 %v6780
    %7034 = vmatprep.subr.mxu0 0.0
    %7035 = vmatpush1.msra.mxu0 %v6781
    %7036 = vmatprep.subr.mxu0 0.0
    %7037 = vmatpush1.msra.mxu0 %v6782
    %7038 = vmatprep.subr.mxu0 0.0
    %7039 = vmatpush1.msra.mxu0 %v6783
    %7040 = vmatprep.subr.mxu0 0.0
    %7041 = vmatpush1.msra.mxu0 %v6784
    %7042 = vmatprep.subr.mxu0 0.0
    %7043 = vmatpush1.msra.mxu0 %v6785
    %7044 = vmatprep.subr.mxu0 0.0
    %7045 = vmatpush1.msra.mxu0 %v6786
    %7046 = vmatprep.subr.mxu0 0.0
    %7047 = vmatpush1.msra.mxu0 %v6787
    %7048 = vmatprep.subr.mxu0 0.0
    %7049 = vmatpush1.msra.mxu0 %v6788
    %7050 = vmatprep.subr.mxu0 0.0
    %7051 = vmatpush1.msra.mxu0 %v6789
    %7052 = vmatprep.subr.mxu0 0.0
    %7053 = vmatpush1.msra.mxu0 %v6790
    %7054 = vmatprep.subr.mxu0 0.0
    %7055 = vmatpush1.msra.mxu0 %v6791
    %7056 = vmatprep.subr.mxu0 0.0
    %7057 = vmatpush1.msra.mxu0 %v6792
    %7058 = vmatprep.subr.mxu0 0.0
    %7059 = vmatpush1.msra.mxu0 %v6793
    %7060 = vmatprep.subr.mxu0 0.0
    %7061 = vmatpush1.msra.mxu0 %v6794
    %7062 = vmatprep.subr.mxu0 0.0
    %7063 = vmatpush1.msra.mxu0 %v6795
    %7064 = vmatprep.subr.mxu0 0.0
    %7065 = vmatpush1.msra.mxu0 %v6796
    %7066 = vmatprep.subr.mxu0 0.0
    %7067 = vmatpush1.msra.mxu0 %v6797
    %7068 = vmatprep.subr.mxu0 0.0
    %7069 = vmatpush1.msra.mxu0 %v6798
    %7070 = vmatprep.subr.mxu0 0.0
    %7071 = vmatpush1.msra.mxu0 %v6799
    %7072 = vmatprep.subr.mxu0 0.0
    %7073 = vmatpush1.msra.mxu0 %v6800
    %7074 = vmatprep.subr.mxu0 0.0
    %7075 = vmatpush1.msra.mxu0 %v6801
    %7076 = vmatprep.subr.mxu0 0.0
    %7077 = vmatpush1.msra.mxu0 %v6802
    %7078 = vmatprep.mubr.f32.mxu0 %v6674
    %7079 = vmatmul.mubr.f32.gmra.mrb[0].mxu0 %v6673
    %v7080 = vpop.f32.mrb[0].mxu0
    %v7081 = vadd.f32 %v7011, %v7080
    %v7082 = vpop.f32.mrb[0].mxu0
    %7083 = vdwg.mxu0
    %v7084 = vsel %vm3578, %v7081, -inf
    %7085 = vmax.xlane.f32.xlu0 %v7084
    %v7086 = vpop.xlane.xlu0 %7085
    %v7087 = vsub.f32 %v7081, %v7086
    %v7088 = vmul.f32 %v7087, 1.442695
    %v7089 = vpow.pop %v7088
    %v7090 = vsel %vm3578, %v7089, 0.0
    %7091 = vadd.xlane.f32.xlu0 %v7090
    %v7092 = vpop.xlane.xlu0 %7091
    %v7093 = vlog2.pop %v7092
    %v7094 = vmul.f32 %v7093, 0.6931472
    %v7095 = vsub.f32 %v7087, %v7094
    %7096 = vst.msk [vmem:[#allocation5 + $0x1] sm:$0x1] %vm3578, %v7095
    // Predicated region
    $region58: #{model_forward.1} parent=1 // pred_check
      _
    $region59: #{model_forward.1} parent=1 // pred_check_branch
      %7098 = sbr.rel (0) target = $region61
    $region60: #{model_forward.1} parent=1 // pred_region
      %s7100 = ssub.s32 32, 32
      %7101 = vsyncadd [#allocation4], %s7100
      %s7103 = sshll.u32 [#allocation5], 4
      %s7104 = int_to_ptr.vmem [resolvable:$true] %s7103
      %7106 = dma.vmem_to_hbm [thread:$0]  %s7104, 32, %s13, [#allocation4]
    $region61: #{model_forward.1} parent=1 // pred_fallthru
      _
    // Predicated region
    $region62: #{model_forward.1} parent=1 // pred_check
      _
    $region63: #{model_forward.1} parent=1 // pred_check_branch
      %7108 = sbr.rel (0) target = $region65
    $region64: #{model_forward.1} parent=1 // pred_region
      %7109 = dma.done [#allocation4], 32
    $region65: #{model_forward.1} parent=1 // pred_fallthru
      _
    %7110 = vsyncpa [#allocation3], 1
    %7111 = vsyncpa [#allocation4], 1

</llo_original>
